<compile_context>
chip_gen: v6e
topology: v6e:2x2x1
jax: 0.10.0
libtpu: 0.0.40
codegen_flags: <defaults>
</compile_context>

<pallas_src>
import functools

import jax
import jax.numpy as jnp
from jax import lax
from jax.experimental import pallas as pl
from jax.experimental.pallas import tpu as pltpu


# -----------------------------------------------------------------------------
# Kernel
# -----------------------------------------------------------------------------
def _seq2seq_kernel(
    # inputs
    enc_in_ref,      # (S_enc*B, I)          VMEM  encoder inputs (rows = (t, b))
    dec_in_ref,      # (S_dec, B, O_PAD)     VMEM  decoder inputs, lane padded
    tf_ref,          # (S_dec,) int32        SMEM  teacher-forcing flags
    wx_e_ref,        # (I, 4H)               encoder LSTM input weights
    wh_e_ref,        # (H, 4H)               encoder LSTM hidden weights
    b_e_ref,         # (1, 4H)               encoder LSTM bias (b_ih + b_hh)
    wxd_x_ref,       # (O_PAD, 4H)           decoder LSTM weights for x (zero-padded rows)
    wxd_c_ref,       # (H, 4H)               decoder LSTM weights for context
    wh_d_ref,        # (H, 4H)               decoder LSTM hidden weights
    b_d_ref,         # (1, 4H)               decoder LSTM bias
    wa_h_ref,        # (H, H)                attention linear (hidden half)
    wa_e_ref,        # (H, H)                attention linear (encoder half)
    ba_ref,          # (1, H)                attention linear bias
    v_ref,           # (1, H)                attention scoring vector
    wfc_h_ref,       # (H, O_PAD)            FC weights (lstm-output half), lane padded
    wfc_c_ref,       # (H, O_PAD)            FC weights (context half), lane padded
    bfc_ref,         # (1, O_PAD)            FC bias, lane padded
    # outputs
    out_ref,         # (S_dec, B, O_PAD)     VMEM  lane-dense predictions
    # scratch
    enc_pre_ref,     # (S_enc, B, 4H)        VMEM  hoisted encoder input projections
    enc_outs_ref,    # (S_enc, B, H)         VMEM  encoder hidden states
    enc_proj_ref,    # (S_enc, B, H)         VMEM  enc_outs @ W_a_enc + b_a (step-invariant)
    *, B, H, S_enc, S_dec,
):
    f32 = jnp.float32

    def gates_to_hc(gates, c):
        # PyTorch gate order: i, f, g, o
        i = jax.nn.sigmoid(gates[:, 0 * H:1 * H])
        f = jax.nn.sigmoid(gates[:, 1 * H:2 * H])
        g = jnp.tanh(gates[:, 2 * H:3 * H])
        o = jax.nn.sigmoid(gates[:, 3 * H:4 * H])
        c_new = f * c + i * g
        h_new = o * jnp.tanh(c_new)
        return h_new, c_new

    # ----------------------- encoder LSTM -----------------------
    # Hoisted, time-invariant input projection: one (S_enc*B, I) x (I, 4H) dot.
    pre2d = (
        jnp.dot(enc_in_ref[...], wx_e_ref[...], preferred_element_type=f32)
        + b_e_ref[...]
    )
    enc_pre_ref[...] = pre2d.reshape(S_enc, B, 4 * H)   # free relayout (B == 8 sublanes)

    def enc_body(t, carry):
        h, c = carry
        gates = enc_pre_ref[t] + jnp.dot(h, wh_e_ref[...], preferred_element_type=f32)
        h, c = gates_to_hc(gates, c)
        enc_outs_ref[t] = h
        return (h, c)

    h0 = jnp.zeros((B, H), f32)
    c0 = jnp.zeros((B, H), f32)
    h_enc, c_enc = lax.fori_loop(0, S_enc, enc_body, (h0, c0), unroll=True)

    # Encoder part of the attention energy is step-invariant; compute it once
    # and keep it in VMEM scratch (not as a live value across the unrolled
    # decoder loop).
    proj2d = (
        jnp.dot(enc_outs_ref[...].reshape(S_enc * B, H), wa_e_ref[...],
                preferred_element_type=f32)
        + ba_ref[...]
    )
    enc_proj_ref[...] = proj2d.reshape(S_enc, B, H)

    # Hoisted out of the decoder loop (broadcast_in_dim is not CSE'd by JAX).
    v_b = v_ref[...].reshape(1, 1, H)                    # (1, 1, H)

    # ----------------------- decoder loop -----------------------
    def dec_body(t, carry):
        h, c, x_pad = carry                              # (B,H), (B,H), (B,O_PAD)

        # Bahdanau attention. Single layout throughout: the H-reduction keeps
        # its (S_enc, B, 1) shape; max / exp / sum / divide stay there, and the
        # only broadcast-back happens in attn * enc_outs.
        hid_part = jnp.dot(h, wa_h_ref[...], preferred_element_type=f32)     # (B, H)
        energy = jnp.tanh(enc_proj_ref[...] + hid_part[None, :, :])          # (S_enc,B,H)
        scores = jnp.sum(energy * v_b, axis=-1, keepdims=True)               # (S_enc,B,1)
        m = jnp.max(scores, axis=0, keepdims=True)
        ew = jnp.exp(scores - m)
        denom = jnp.sum(ew, axis=0, keepdims=True)
        attn = ew / denom                                # exact: feeds back autoregressively
        context = jnp.sum(attn * enc_outs_ref[...], axis=0)                  # (B, H)

        # Decoder LSTM on cat([x, context]) done as separate dots (no lane
        # concat on the critical path; MXU has slack at M=8).
        gates = (
            jnp.dot(x_pad, wxd_x_ref[...], preferred_element_type=f32)
            + jnp.dot(context, wxd_c_ref[...], preferred_element_type=f32)
            + jnp.dot(h, wh_d_ref[...], preferred_element_type=f32)
            + b_d_ref[...]
        )
        h_new, c_new = gates_to_hc(gates, c)

        # Output FC on cat([lstm_out, context]) -> lane-dense (B, O_PAD).
        pred = (
            jnp.dot(h_new, wfc_h_ref[...], preferred_element_type=f32)
            + jnp.dot(context, wfc_c_ref[...], preferred_element_type=f32)
            + bfc_ref[...]
        )
        out_ref[t] = pred                                # aligned, unmasked store

        # Next decoder input: teacher forcing (precomputed flag) or own output.
        # NOTE: at the last step min(t+1, S_dec-1) duplicates the final teacher
        # token, but the flag is forced to 0 there and the carry is never
        # consumed afterwards — intentional, matches the PyTorch loop.
        tf = (tf_ref[t] > 0).astype(f32)
        teacher = dec_in_ref[jnp.minimum(t + 1, S_dec - 1)]                   # (B, O_PAD)
        x_next = tf * teacher + (1.0 - tf) * pred
        return (h_new, c_new, x_next)

    x0 = dec_in_ref[0]
    lax.fori_loop(0, S_dec, dec_body, (h_enc, c_enc, x0), unroll=True)


# -----------------------------------------------------------------------------
# Wrapper
# -----------------------------------------------------------------------------
@jax.jit
def seq2seq_forward(params, encoder_inputs, decoder_inputs, tf_flags):
    """encoder_inputs: (B, S_enc, I), decoder_inputs: (B, S_dec, O) -> (B, S_dec, O)."""
    B, S_enc, I = encoder_inputs.shape
    _, S_dec, O = decoder_inputs.shape
    H = params["wh_e"].shape[0]
    B_PAD = max(8, ((B + 7) // 8) * 8)            # sublane-dense batch
    O_PAD = max(128, ((O + 127) // 128) * 128)    # lane-dense output width

    # Time-major + batch padded to 8 so every per-step slab is one aligned tile.
    enc_tm = jnp.transpose(encoder_inputs, (1, 0, 2)).astype(jnp.float32)   # (S_enc, B, I)
    enc_tm = jnp.pad(enc_tm, ((0, 0), (0, B_PAD - B), (0, 0)))
    enc_2d = enc_tm.reshape(S_enc * B_PAD, I)

    dec_tm = jnp.transpose(decoder_inputs, (1, 0, 2)).astype(jnp.float32)   # (S_dec, B, O)
    dec_3d = jnp.pad(dec_tm, ((0, 0), (0, B_PAD - B), (0, O_PAD - O)))      # (S_dec, B_PAD, O_PAD)

    # Host-side weight prep: pad output dim to 128 lanes (zero rows/cols so the
    # padded lanes stay exactly zero -> safe autoregressive feedback).
    wxd_x_pad = jnp.zeros((O_PAD, 4 * H), jnp.float32).at[:O, :].set(params["wxd_x"])
    wfc_h_pad = jnp.zeros((H, O_PAD), jnp.float32).at[:, :O].set(params["wfc_h"])
    wfc_c_pad = jnp.zeros((H, O_PAD), jnp.float32).at[:, :O].set(params["wfc_c"])
    bfc_pad = jnp.zeros((1, O_PAD), jnp.float32).at[:, :O].set(params["bfc"])

    vmem = pl.BlockSpec(memory_space=pltpu.MemorySpace.VMEM)
    smem = pl.BlockSpec(memory_space=pltpu.MemorySpace.SMEM)

    kernel = functools.partial(_seq2seq_kernel, B=B_PAD, H=H, S_enc=S_enc, S_dec=S_dec)

    out_pad = pl.pallas_call(
        kernel,
        out_shape=jax.ShapeDtypeStruct((S_dec, B_PAD, O_PAD), jnp.float32),
        in_specs=[vmem, vmem, smem] + [vmem] * 14,
        out_specs=vmem,
        scratch_shapes=[
            pltpu.VMEM((S_enc, B_PAD, 4 * H), jnp.float32),   # hoisted input projections
            pltpu.VMEM((S_enc, B_PAD, H), jnp.float32),       # encoder hidden states
            pltpu.VMEM((S_enc, B_PAD, H), jnp.float32),       # encoder attention projection
        ],
    )(
        enc_2d, dec_3d, tf_flags.astype(jnp.int32),
        params["wx_e"], params["wh_e"], params["b_e"],
        wxd_x_pad, params["wxd_c"], params["wh_d"], params["b_d"],
        params["wa_h"], params["wa_e"], params["ba"], params["v"],
        wfc_h_pad, wfc_c_pad, bfc_pad,
    )

    out = out_pad[:, :B, :O]                       # (S_dec, B, O)
    return jnp.transpose(out, (1, 0, 2))           # (B, S_dec, O)


# -----------------------------------------------------------------------------
# Pure-JAX reference (same math, same teacher-forcing flags) for sanity check
# -----------------------------------------------------------------------------
def seq2seq_reference(params, encoder_inputs, decoder_inputs, tf_flags):
    H = params["wh_e"].shape[0]
    B, S_enc, _ = encoder_inputs.shape
    _, S_dec, O = decoder_inputs.shape

    def lstm_cell(pre, h, c, wh, b):
        gates = pre + h @ wh + b
        i = jax.nn.sigmoid(gates[:, 0 * H:1 * H])
        f = jax.nn.sigmoid(gates[:, 1 * H:2 * H])
        g = jnp.tanh(gates[:, 2 * H:3 * H])
        o = jax.nn.sigmoid(gates[:, 3 * H:4 * H])
        c = f * c + i * g
        return o * jnp.tanh(c), c

    h = jnp.zeros((B, H), jnp.float32)
    c = jnp.zeros((B, H), jnp.float32)
    enc_outs = []
    for t in range(S_enc):
        h, c = lstm_cell(encoder_inputs[:, t, :] @ params["wx_e"], h, c,
                         params["wh_e"], params["b_e"])
        enc_outs.append(h)
    enc_outs = jnp.stack(enc_outs, axis=1)  # (B, S_enc, H)

    outs = []
    x_dec = decoder_inputs[:, 0, :]
    for t in range(S_dec):
        hid_part = h @ params["wa_h"] + params["ba"]
        energy = jnp.tanh(enc_outs @ params["wa_e"] + hid_part[:, None, :])
        scores = jnp.sum(energy * params["v"][None, :, :], axis=-1)  # (B, S_enc)
        attn = jax.nn.softmax(scores, axis=1)
        context = jnp.sum(attn[:, :, None] * enc_outs, axis=1)       # (B, H)
        pre = x_dec @ params["wxd_x"] + context @ params["wxd_c"]
        h, c = lstm_cell(pre, h, c, params["wh_d"], params["b_d"])
        pred = h @ params["wfc_h"] + context @ params["wfc_c"] + params["bfc"]
        outs.append(pred)
        teacher = decoder_inputs[:, min(t + 1, S_dec - 1), :]
        x_dec = jnp.where(tf_flags[t] > 0, teacher, pred)
    return jnp.stack(outs, axis=1)


# -----------------------------------------------------------------------------
# Main
# -----------------------------------------------------------------------------
if __name__ == "__main__":
    B, S_ENC, S_DEC = 2, 8, 8
    INPUT_SIZE, HIDDEN, OUTPUT_SIZE = 4, 32, 5

    key = jax.random.PRNGKey(0)
    keys = jax.random.split(key, 20)

    def init(k, shape, scale=0.1):
        return (scale * jax.random.normal(k, shape)).astype(jnp.float32)

    H, I, O = HIDDEN, INPUT_SIZE, OUTPUT_SIZE
    params = {
        # encoder LSTM
        "wx_e": init(keys[0], (I, 4 * H)),
        "wh_e": init(keys[1], (H, 4 * H)),
        "b_e": init(keys[2], (1, 4 * H)),
        # decoder LSTM (input = cat([x(O), context(H)]))
        "wxd_x": init(keys[3], (O, 4 * H)),
        "wxd_c": init(keys[4], (H, 4 * H)),
        "wh_d": init(keys[5], (H, 4 * H)),
        "b_d": init(keys[6], (1, 4 * H)),
        # attention: Linear(2H -> H) split into hidden / encoder halves, plus v
        "wa_h": init(keys[7], (H, H)),
        "wa_e": init(keys[8], (H, H)),
        "ba": init(keys[9], (1, H)),
        "v": init(keys[10], (1, H)),
        # output FC: Linear(2H -> O) split into lstm-output / context halves
        "wfc_h": init(keys[11], (H, O)),
        "wfc_c": init(keys[12], (H, O)),
        "bfc": init(keys[13], (1, O)),
    }

    encoder_inputs = jax.random.normal(keys[14], (B, S_ENC, I), jnp.float32)
    decoder_inputs = jax.random.normal(keys[15], (B, S_DEC, O), jnp.float32)

    # Deterministic teacher-forcing flags (torch.rand(1) < 0.5; never at last step).
    tf_flags = jax.random.bernoulli(keys[16], 0.5, (S_DEC,)).astype(jnp.int32)
    tf_flags = tf_flags.at[S_DEC - 1].set(0)

    out = seq2seq_forward(params, encoder_inputs, decoder_inputs, tf_flags)
    out = jax.block_until_ready(out)

    ref = seq2seq_reference(params, encoder_inputs, decoder_inputs, tf_flags)

    assert out.shape == (B, S_DEC, O), out.shape
    assert bool(jnp.all(jnp.isfinite(out)))
    max_diff = float(jnp.max(jnp.abs(out - ref)))
    assert max_diff < 5e-3, f"mismatch vs reference: {max_diff}"

    print("KERNEL_OK")
</pallas_src>

<mosaic_0001>
module attributes {stable_mosaic.version = 11 : i64} {
  func.func @_seq2seq_kernel(%arg0: memref<64x4xf32, #tpu.memory_space<vmem>>, %arg1: memref<8x8x128xf32, #tpu.memory_space<vmem>>, %arg2: memref<8xi32, #tpu.memory_space<smem>>, %arg3: memref<4x128xf32, #tpu.memory_space<vmem>>, %arg4: memref<32x128xf32, #tpu.memory_space<vmem>>, %arg5: memref<1x128xf32, #tpu.memory_space<vmem>>, %arg6: memref<128x128xf32, #tpu.memory_space<vmem>>, %arg7: memref<32x128xf32, #tpu.memory_space<vmem>>, %arg8: memref<32x128xf32, #tpu.memory_space<vmem>>, %arg9: memref<1x128xf32, #tpu.memory_space<vmem>>, %arg10: memref<32x32xf32, #tpu.memory_space<vmem>>, %arg11: memref<32x32xf32, #tpu.memory_space<vmem>>, %arg12: memref<1x32xf32, #tpu.memory_space<vmem>>, %arg13: memref<1x32xf32, #tpu.memory_space<vmem>>, %arg14: memref<32x128xf32, #tpu.memory_space<vmem>>, %arg15: memref<32x128xf32, #tpu.memory_space<vmem>>, %arg16: memref<1x128xf32, #tpu.memory_space<vmem>>, %arg17: memref<8x8x128xf32, #tpu.memory_space<vmem>>, %arg18: memref<8x8x128xf32, #tpu.memory_space<vmem>>, %arg19: memref<8x8x32xf32, #tpu.memory_space<vmem>>, %arg20: memref<8x8x32xf32, #tpu.memory_space<vmem>>) attributes {dimension_semantics = [], scalar_prefetch = 0 : i64, scratch_operands = 3 : i64, tpu.core_type = #tpu.core_type<tc>} {
    %c0 = arith.constant 0 : index
    %c0_0 = arith.constant 0 : index
    %0 = vector.load %arg0[%c0, %c0_0] : memref<64x4xf32, #tpu.memory_space<vmem>>, vector<64x4xf32>
    %c0_1 = arith.constant 0 : index
    %c0_2 = arith.constant 0 : index
    %1 = vector.load %arg3[%c0_1, %c0_2] : memref<4x128xf32, #tpu.memory_space<vmem>>, vector<4x128xf32>
    %cst = arith.constant dense<0.000000e+00> : vector<64x128xf32>
    %2 = tpu.matmul %0, %1, %cst {dimension_numbers = #tpu.dot_dimension_numbers<[1], [0], [0], [1], [0, 0, 1, 1], [], []>} : vector<64x4xf32>, vector<4x128xf32>, vector<64x128xf32> -> vector<64x128xf32>
    %c0_3 = arith.constant 0 : index
    %c0_4 = arith.constant 0 : index
    %3 = vector.load %arg5[%c0_3, %c0_4] : memref<1x128xf32, #tpu.memory_space<vmem>>, vector<1x128xf32>
    %4 = vector.broadcast %3 : vector<1x128xf32> to vector<64x128xf32>
    %5 = arith.addf %2, %4 : vector<64x128xf32>
    %6 = vector.shape_cast %5 : vector<64x128xf32> to vector<8x8x128xf32>
    %c0_5 = arith.constant 0 : index
    %c0_6 = arith.constant 0 : index
    %c0_7 = arith.constant 0 : index
    %7 = vector.load %arg18[%c0_5, %c0_6, %c0_7] : memref<8x8x128xf32, #tpu.memory_space<vmem>>, vector<8x8x128xf32>
    tpu.vector_store %arg18[%c0_5, %c0_6, %c0_7], %6 {strides = array<i32>} : memref<8x8x128xf32, #tpu.memory_space<vmem>>, vector<8x8x128xf32>,
    %cst_8 = arith.constant 0.000000e+00 : f32
    %8 = vector.broadcast %cst_8 : f32 to vector<8x32xf32>
    %cst_9 = arith.constant 0.000000e+00 : f32
    %9 = vector.broadcast %cst_9 : f32 to vector<8x32xf32>
    %c0_i32 = arith.constant 0 : i32
    %10 = arith.index_cast %c0_i32 : i32 to index
    %c0_10 = arith.constant 0 : index
    %c0_11 = arith.constant 0 : index
    %11 = vector.load %arg18[%10, %c0_10, %c0_11] : memref<8x8x128xf32, #tpu.memory_space<vmem>>, vector<1x8x128xf32>
    %12 = vector.shape_cast %11 : vector<1x8x128xf32> to vector<8x128xf32>
    %c0_12 = arith.constant 0 : index
    %c0_13 = arith.constant 0 : index
    %13 = vector.load %arg4[%c0_12, %c0_13] : memref<32x128xf32, #tpu.memory_space<vmem>>, vector<32x128xf32>
    %cst_14 = arith.constant dense<0.000000e+00> : vector<8x128xf32>
    %14 = tpu.matmul %8, %13, %cst_14 {dimension_numbers = #tpu.dot_dimension_numbers<[1], [0], [0], [1], [0, 0, 1, 1], [], []>} : vector<8x32xf32>, vector<32x128xf32>, vector<8x128xf32> -> vector<8x128xf32>
    %15 = arith.addf %12, %14 : vector<8x128xf32>
    %16 = vector.extract_strided_slice %15 {offsets = [0, 0], sizes = [8, 32], strides = [1, 1]} : vector<8x128xf32> to vector<8x32xf32>
    %17 = arith.negf %16 : vector<8x32xf32>
    %18 = math.exp %17 : vector<8x32xf32>
    %cst_15 = arith.constant 1.000000e+00 : f32
    %19 = vector.broadcast %cst_15 : f32 to vector<8x32xf32>
    %20 = arith.addf %19, %18 : vector<8x32xf32>
    %21 = arith.divf %19, %20 : vector<8x32xf32>
    %22 = vector.extract_strided_slice %15 {offsets = [0, 32], sizes = [8, 32], strides = [1, 1]} : vector<8x128xf32> to vector<8x32xf32>
    %23 = arith.negf %22 : vector<8x32xf32>
    %24 = math.exp %23 : vector<8x32xf32>
    %cst_16 = arith.constant 1.000000e+00 : f32
    %25 = vector.broadcast %cst_16 : f32 to vector<8x32xf32>
    %26 = arith.addf %25, %24 : vector<8x32xf32>
    %27 = arith.divf %25, %26 : vector<8x32xf32>
    %28 = vector.extract_strided_slice %15 {offsets = [0, 64], sizes = [8, 32], strides = [1, 1]} : vector<8x128xf32> to vector<8x32xf32>
    %29 = math.tanh %28 : vector<8x32xf32>
    %30 = vector.extract_strided_slice %15 {offsets = [0, 96], sizes = [8, 32], strides = [1, 1]} : vector<8x128xf32> to vector<8x32xf32>
    %31 = arith.negf %30 : vector<8x32xf32>
    %32 = math.exp %31 : vector<8x32xf32>
    %cst_17 = arith.constant 1.000000e+00 : f32
    %33 = vector.broadcast %cst_17 : f32 to vector<8x32xf32>
    %34 = arith.addf %33, %32 : vector<8x32xf32>
    %35 = arith.divf %33, %34 : vector<8x32xf32>
    %36 = arith.mulf %27, %9 : vector<8x32xf32>
    %37 = arith.mulf %21, %29 : vector<8x32xf32>
    %38 = arith.addf %36, %37 : vector<8x32xf32>
    %39 = math.tanh %38 : vector<8x32xf32>
    %40 = arith.mulf %35, %39 : vector<8x32xf32>
    %41 = arith.index_cast %c0_i32 : i32 to index
    %c0_18 = arith.constant 0 : index
    %c0_19 = arith.constant 0 : index
    %42 = vector.load %arg19[%41, %c0_18, %c0_19] : memref<8x8x32xf32, #tpu.memory_space<vmem>>, vector<1x8x32xf32>
    %43 = vector.shape_cast %42 : vector<1x8x32xf32> to vector<8x32xf32>
    %44 = vector.shape_cast %40 : vector<8x32xf32> to vector<1x8x32xf32>
    tpu.vector_store %arg19[%41, %c0_18, %c0_19], %44 {strides = array<i32>} : memref<8x8x32xf32, #tpu.memory_space<vmem>>, vector<1x8x32xf32>,
    %c1_i32 = arith.constant 1 : i32
    %45 = arith.index_cast %c1_i32 : i32 to index
    %c0_20 = arith.constant 0 : index
    %c0_21 = arith.constant 0 : index
    %46 = vector.load %arg18[%45, %c0_20, %c0_21] : memref<8x8x128xf32, #tpu.memory_space<vmem>>, vector<1x8x128xf32>
    %47 = vector.shape_cast %46 : vector<1x8x128xf32> to vector<8x128xf32>
    %c0_22 = arith.constant 0 : index
    %c0_23 = arith.constant 0 : index
    %48 = vector.load %arg4[%c0_22, %c0_23] : memref<32x128xf32, #tpu.memory_space<vmem>>, vector<32x128xf32>
    %cst_24 = arith.constant dense<0.000000e+00> : vector<8x128xf32>
    %49 = tpu.matmul %40, %48, %cst_24 {dimension_numbers = #tpu.dot_dimension_numbers<[1], [0], [0], [1], [0, 0, 1, 1], [], []>} : vector<8x32xf32>, vector<32x128xf32>, vector<8x128xf32> -> vector<8x128xf32>
    %50 = arith.addf %47, %49 : vector<8x128xf32>
    %51 = vector.extract_strided_slice %50 {offsets = [0, 0], sizes = [8, 32], strides = [1, 1]} : vector<8x128xf32> to vector<8x32xf32>
    %52 = arith.negf %51 : vector<8x32xf32>
    %53 = math.exp %52 : vector<8x32xf32>
    %cst_25 = arith.constant 1.000000e+00 : f32
    %54 = vector.broadcast %cst_25 : f32 to vector<8x32xf32>
    %55 = arith.addf %54, %53 : vector<8x32xf32>
    %56 = arith.divf %54, %55 : vector<8x32xf32>
    %57 = vector.extract_strided_slice %50 {offsets = [0, 32], sizes = [8, 32], strides = [1, 1]} : vector<8x128xf32> to vector<8x32xf32>
    %58 = arith.negf %57 : vector<8x32xf32>
    %59 = math.exp %58 : vector<8x32xf32>
    %cst_26 = arith.constant 1.000000e+00 : f32
    %60 = vector.broadcast %cst_26 : f32 to vector<8x32xf32>
    %61 = arith.addf %60, %59 : vector<8x32xf32>
    %62 = arith.divf %60, %61 : vector<8x32xf32>
    %63 = vector.extract_strided_slice %50 {offsets = [0, 64], sizes = [8, 32], strides = [1, 1]} : vector<8x128xf32> to vector<8x32xf32>
    %64 = math.tanh %63 : vector<8x32xf32>
    %65 = vector.extract_strided_slice %50 {offsets = [0, 96], sizes = [8, 32], strides = [1, 1]} : vector<8x128xf32> to vector<8x32xf32>
    %66 = arith.negf %65 : vector<8x32xf32>
    %67 = math.exp %66 : vector<8x32xf32>
    %cst_27 = arith.constant 1.000000e+00 : f32
    %68 = vector.broadcast %cst_27 : f32 to vector<8x32xf32>
    %69 = arith.addf %68, %67 : vector<8x32xf32>
    %70 = arith.divf %68, %69 : vector<8x32xf32>
    %71 = arith.mulf %62, %38 : vector<8x32xf32>
    %72 = arith.mulf %56, %64 : vector<8x32xf32>
    %73 = arith.addf %71, %72 : vector<8x32xf32>
    %74 = math.tanh %73 : vector<8x32xf32>
    %75 = arith.mulf %70, %74 : vector<8x32xf32>
    %76 = arith.index_cast %c1_i32 : i32 to index
    %c0_28 = arith.constant 0 : index
    %c0_29 = arith.constant 0 : index
    %77 = vector.load %arg19[%76, %c0_28, %c0_29] : memref<8x8x32xf32, #tpu.memory_space<vmem>>, vector<1x8x32xf32>
    %78 = vector.shape_cast %77 : vector<1x8x32xf32> to vector<8x32xf32>
    %79 = vector.shape_cast %75 : vector<8x32xf32> to vector<1x8x32xf32>
    tpu.vector_store %arg19[%76, %c0_28, %c0_29], %79 {strides = array<i32>} : memref<8x8x32xf32, #tpu.memory_space<vmem>>, vector<1x8x32xf32>,
    %c2_i32 = arith.constant 2 : i32
    %80 = arith.index_cast %c2_i32 : i32 to index
    %c0_30 = arith.constant 0 : index
    %c0_31 = arith.constant 0 : index
    %81 = vector.load %arg18[%80, %c0_30, %c0_31] : memref<8x8x128xf32, #tpu.memory_space<vmem>>, vector<1x8x128xf32>
    %82 = vector.shape_cast %81 : vector<1x8x128xf32> to vector<8x128xf32>
    %c0_32 = arith.constant 0 : index
    %c0_33 = arith.constant 0 : index
    %83 = vector.load %arg4[%c0_32, %c0_33] : memref<32x128xf32, #tpu.memory_space<vmem>>, vector<32x128xf32>
    %cst_34 = arith.constant dense<0.000000e+00> : vector<8x128xf32>
    %84 = tpu.matmul %75, %83, %cst_34 {dimension_numbers = #tpu.dot_dimension_numbers<[1], [0], [0], [1], [0, 0, 1, 1], [], []>} : vector<8x32xf32>, vector<32x128xf32>, vector<8x128xf32> -> vector<8x128xf32>
    %85 = arith.addf %82, %84 : vector<8x128xf32>
    %86 = vector.extract_strided_slice %85 {offsets = [0, 0], sizes = [8, 32], strides = [1, 1]} : vector<8x128xf32> to vector<8x32xf32>
    %87 = arith.negf %86 : vector<8x32xf32>
    %88 = math.exp %87 : vector<8x32xf32>
    %cst_35 = arith.constant 1.000000e+00 : f32
    %89 = vector.broadcast %cst_35 : f32 to vector<8x32xf32>
    %90 = arith.addf %89, %88 : vector<8x32xf32>
    %91 = arith.divf %89, %90 : vector<8x32xf32>
    %92 = vector.extract_strided_slice %85 {offsets = [0, 32], sizes = [8, 32], strides = [1, 1]} : vector<8x128xf32> to vector<8x32xf32>
    %93 = arith.negf %92 : vector<8x32xf32>
    %94 = math.exp %93 : vector<8x32xf32>
    %cst_36 = arith.constant 1.000000e+00 : f32
    %95 = vector.broadcast %cst_36 : f32 to vector<8x32xf32>
    %96 = arith.addf %95, %94 : vector<8x32xf32>
    %97 = arith.divf %95, %96 : vector<8x32xf32>
    %98 = vector.extract_strided_slice %85 {offsets = [0, 64], sizes = [8, 32], strides = [1, 1]} : vector<8x128xf32> to vector<8x32xf32>
    %99 = math.tanh %98 : vector<8x32xf32>
    %100 = vector.extract_strided_slice %85 {offsets = [0, 96], sizes = [8, 32], strides = [1, 1]} : vector<8x128xf32> to vector<8x32xf32>
    %101 = arith.negf %100 : vector<8x32xf32>
    %102 = math.exp %101 : vector<8x32xf32>
    %cst_37 = arith.constant 1.000000e+00 : f32
    %103 = vector.broadcast %cst_37 : f32 to vector<8x32xf32>
    %104 = arith.addf %103, %102 : vector<8x32xf32>
    %105 = arith.divf %103, %104 : vector<8x32xf32>
    %106 = arith.mulf %97, %73 : vector<8x32xf32>
    %107 = arith.mulf %91, %99 : vector<8x32xf32>
    %108 = arith.addf %106, %107 : vector<8x32xf32>
    %109 = math.tanh %108 : vector<8x32xf32>
    %110 = arith.mulf %105, %109 : vector<8x32xf32>
    %111 = arith.index_cast %c2_i32 : i32 to index
    %c0_38 = arith.constant 0 : index
    %c0_39 = arith.constant 0 : index
    %112 = vector.load %arg19[%111, %c0_38, %c0_39] : memref<8x8x32xf32, #tpu.memory_space<vmem>>, vector<1x8x32xf32>
    %113 = vector.shape_cast %112 : vector<1x8x32xf32> to vector<8x32xf32>
    %114 = vector.shape_cast %110 : vector<8x32xf32> to vector<1x8x32xf32>
    tpu.vector_store %arg19[%111, %c0_38, %c0_39], %114 {strides = array<i32>} : memref<8x8x32xf32, #tpu.memory_space<vmem>>, vector<1x8x32xf32>,
    %c3_i32 = arith.constant 3 : i32
    %115 = arith.index_cast %c3_i32 : i32 to index
    %c0_40 = arith.constant 0 : index
    %c0_41 = arith.constant 0 : index
    %116 = vector.load %arg18[%115, %c0_40, %c0_41] : memref<8x8x128xf32, #tpu.memory_space<vmem>>, vector<1x8x128xf32>
    %117 = vector.shape_cast %116 : vector<1x8x128xf32> to vector<8x128xf32>
    %c0_42 = arith.constant 0 : index
    %c0_43 = arith.constant 0 : index
    %118 = vector.load %arg4[%c0_42, %c0_43] : memref<32x128xf32, #tpu.memory_space<vmem>>, vector<32x128xf32>
    %cst_44 = arith.constant dense<0.000000e+00> : vector<8x128xf32>
    %119 = tpu.matmul %110, %118, %cst_44 {dimension_numbers = #tpu.dot_dimension_numbers<[1], [0], [0], [1], [0, 0, 1, 1], [], []>} : vector<8x32xf32>, vector<32x128xf32>, vector<8x128xf32> -> vector<8x128xf32>
    %120 = arith.addf %117, %119 : vector<8x128xf32>
    %121 = vector.extract_strided_slice %120 {offsets = [0, 0], sizes = [8, 32], strides = [1, 1]} : vector<8x128xf32> to vector<8x32xf32>
    %122 = arith.negf %121 : vector<8x32xf32>
    %123 = math.exp %122 : vector<8x32xf32>
    %cst_45 = arith.constant 1.000000e+00 : f32
    %124 = vector.broadcast %cst_45 : f32 to vector<8x32xf32>
    %125 = arith.addf %124, %123 : vector<8x32xf32>
    %126 = arith.divf %124, %125 : vector<8x32xf32>
    %127 = vector.extract_strided_slice %120 {offsets = [0, 32], sizes = [8, 32], strides = [1, 1]} : vector<8x128xf32> to vector<8x32xf32>
    %128 = arith.negf %127 : vector<8x32xf32>
    %129 = math.exp %128 : vector<8x32xf32>
    %cst_46 = arith.constant 1.000000e+00 : f32
    %130 = vector.broadcast %cst_46 : f32 to vector<8x32xf32>
    %131 = arith.addf %130, %129 : vector<8x32xf32>
    %132 = arith.divf %130, %131 : vector<8x32xf32>
    %133 = vector.extract_strided_slice %120 {offsets = [0, 64], sizes = [8, 32], strides = [1, 1]} : vector<8x128xf32> to vector<8x32xf32>
    %134 = math.tanh %133 : vector<8x32xf32>
    %135 = vector.extract_strided_slice %120 {offsets = [0, 96], sizes = [8, 32], strides = [1, 1]} : vector<8x128xf32> to vector<8x32xf32>
    %136 = arith.negf %135 : vector<8x32xf32>
    %137 = math.exp %136 : vector<8x32xf32>
    %cst_47 = arith.constant 1.000000e+00 : f32
    %138 = vector.broadcast %cst_47 : f32 to vector<8x32xf32>
    %139 = arith.addf %138, %137 : vector<8x32xf32>
    %140 = arith.divf %138, %139 : vector<8x32xf32>
    %141 = arith.mulf %132, %108 : vector<8x32xf32>
    %142 = arith.mulf %126, %134 : vector<8x32xf32>
    %143 = arith.addf %141, %142 : vector<8x32xf32>
    %144 = math.tanh %143 : vector<8x32xf32>
    %145 = arith.mulf %140, %144 : vector<8x32xf32>
    %146 = arith.index_cast %c3_i32 : i32 to index
    %c0_48 = arith.constant 0 : index
    %c0_49 = arith.constant 0 : index
    %147 = vector.load %arg19[%146, %c0_48, %c0_49] : memref<8x8x32xf32, #tpu.memory_space<vmem>>, vector<1x8x32xf32>
    %148 = vector.shape_cast %147 : vector<1x8x32xf32> to vector<8x32xf32>
    %149 = vector.shape_cast %145 : vector<8x32xf32> to vector<1x8x32xf32>
    tpu.vector_store %arg19[%146, %c0_48, %c0_49], %149 {strides = array<i32>} : memref<8x8x32xf32, #tpu.memory_space<vmem>>, vector<1x8x32xf32>,
    %c4_i32 = arith.constant 4 : i32
    %150 = arith.index_cast %c4_i32 : i32 to index
    %c0_50 = arith.constant 0 : index
    %c0_51 = arith.constant 0 : index
    %151 = vector.load %arg18[%150, %c0_50, %c0_51] : memref<8x8x128xf32, #tpu.memory_space<vmem>>, vector<1x8x128xf32>
    %152 = vector.shape_cast %151 : vector<1x8x128xf32> to vector<8x128xf32>
    %c0_52 = arith.constant 0 : index
    %c0_53 = arith.constant 0 : index
    %153 = vector.load %arg4[%c0_52, %c0_53] : memref<32x128xf32, #tpu.memory_space<vmem>>, vector<32x128xf32>
    %cst_54 = arith.constant dense<0.000000e+00> : vector<8x128xf32>
    %154 = tpu.matmul %145, %153, %cst_54 {dimension_numbers = #tpu.dot_dimension_numbers<[1], [0], [0], [1], [0, 0, 1, 1], [], []>} : vector<8x32xf32>, vector<32x128xf32>, vector<8x128xf32> -> vector<8x128xf32>
    %155 = arith.addf %152, %154 : vector<8x128xf32>
    %156 = vector.extract_strided_slice %155 {offsets = [0, 0], sizes = [8, 32], strides = [1, 1]} : vector<8x128xf32> to vector<8x32xf32>
    %157 = arith.negf %156 : vector<8x32xf32>
    %158 = math.exp %157 : vector<8x32xf32>
    %cst_55 = arith.constant 1.000000e+00 : f32
    %159 = vector.broadcast %cst_55 : f32 to vector<8x32xf32>
    %160 = arith.addf %159, %158 : vector<8x32xf32>
    %161 = arith.divf %159, %160 : vector<8x32xf32>
    %162 = vector.extract_strided_slice %155 {offsets = [0, 32], sizes = [8, 32], strides = [1, 1]} : vector<8x128xf32> to vector<8x32xf32>
    %163 = arith.negf %162 : vector<8x32xf32>
    %164 = math.exp %163 : vector<8x32xf32>
    %cst_56 = arith.constant 1.000000e+00 : f32
    %165 = vector.broadcast %cst_56 : f32 to vector<8x32xf32>
    %166 = arith.addf %165, %164 : vector<8x32xf32>
    %167 = arith.divf %165, %166 : vector<8x32xf32>
    %168 = vector.extract_strided_slice %155 {offsets = [0, 64], sizes = [8, 32], strides = [1, 1]} : vector<8x128xf32> to vector<8x32xf32>
    %169 = math.tanh %168 : vector<8x32xf32>
    %170 = vector.extract_strided_slice %155 {offsets = [0, 96], sizes = [8, 32], strides = [1, 1]} : vector<8x128xf32> to vector<8x32xf32>
    %171 = arith.negf %170 : vector<8x32xf32>
    %172 = math.exp %171 : vector<8x32xf32>
    %cst_57 = arith.constant 1.000000e+00 : f32
    %173 = vector.broadcast %cst_57 : f32 to vector<8x32xf32>
    %174 = arith.addf %173, %172 : vector<8x32xf32>
    %175 = arith.divf %173, %174 : vector<8x32xf32>
    %176 = arith.mulf %167, %143 : vector<8x32xf32>
    %177 = arith.mulf %161, %169 : vector<8x32xf32>
    %178 = arith.addf %176, %177 : vector<8x32xf32>
    %179 = math.tanh %178 : vector<8x32xf32>
    %180 = arith.mulf %175, %179 : vector<8x32xf32>
    %181 = arith.index_cast %c4_i32 : i32 to index
    %c0_58 = arith.constant 0 : index
    %c0_59 = arith.constant 0 : index
    %182 = vector.load %arg19[%181, %c0_58, %c0_59] : memref<8x8x32xf32, #tpu.memory_space<vmem>>, vector<1x8x32xf32>
    %183 = vector.shape_cast %182 : vector<1x8x32xf32> to vector<8x32xf32>
    %184 = vector.shape_cast %180 : vector<8x32xf32> to vector<1x8x32xf32>
    tpu.vector_store %arg19[%181, %c0_58, %c0_59], %184 {strides = array<i32>} : memref<8x8x32xf32, #tpu.memory_space<vmem>>, vector<1x8x32xf32>,
    %c5_i32 = arith.constant 5 : i32
    %185 = arith.index_cast %c5_i32 : i32 to index
    %c0_60 = arith.constant 0 : index
    %c0_61 = arith.constant 0 : index
    %186 = vector.load %arg18[%185, %c0_60, %c0_61] : memref<8x8x128xf32, #tpu.memory_space<vmem>>, vector<1x8x128xf32>
    %187 = vector.shape_cast %186 : vector<1x8x128xf32> to vector<8x128xf32>
    %c0_62 = arith.constant 0 : index
    %c0_63 = arith.constant 0 : index
    %188 = vector.load %arg4[%c0_62, %c0_63] : memref<32x128xf32, #tpu.memory_space<vmem>>, vector<32x128xf32>
    %cst_64 = arith.constant dense<0.000000e+00> : vector<8x128xf32>
    %189 = tpu.matmul %180, %188, %cst_64 {dimension_numbers = #tpu.dot_dimension_numbers<[1], [0], [0], [1], [0, 0, 1, 1], [], []>} : vector<8x32xf32>, vector<32x128xf32>, vector<8x128xf32> -> vector<8x128xf32>
    %190 = arith.addf %187, %189 : vector<8x128xf32>
    %191 = vector.extract_strided_slice %190 {offsets = [0, 0], sizes = [8, 32], strides = [1, 1]} : vector<8x128xf32> to vector<8x32xf32>
    %192 = arith.negf %191 : vector<8x32xf32>
    %193 = math.exp %192 : vector<8x32xf32>
    %cst_65 = arith.constant 1.000000e+00 : f32
    %194 = vector.broadcast %cst_65 : f32 to vector<8x32xf32>
    %195 = arith.addf %194, %193 : vector<8x32xf32>
    %196 = arith.divf %194, %195 : vector<8x32xf32>
    %197 = vector.extract_strided_slice %190 {offsets = [0, 32], sizes = [8, 32], strides = [1, 1]} : vector<8x128xf32> to vector<8x32xf32>
    %198 = arith.negf %197 : vector<8x32xf32>
    %199 = math.exp %198 : vector<8x32xf32>
    %cst_66 = arith.constant 1.000000e+00 : f32
    %200 = vector.broadcast %cst_66 : f32 to vector<8x32xf32>
    %201 = arith.addf %200, %199 : vector<8x32xf32>
    %202 = arith.divf %200, %201 : vector<8x32xf32>
    %203 = vector.extract_strided_slice %190 {offsets = [0, 64], sizes = [8, 32], strides = [1, 1]} : vector<8x128xf32> to vector<8x32xf32>
    %204 = math.tanh %203 : vector<8x32xf32>
    %205 = vector.extract_strided_slice %190 {offsets = [0, 96], sizes = [8, 32], strides = [1, 1]} : vector<8x128xf32> to vector<8x32xf32>
    %206 = arith.negf %205 : vector<8x32xf32>
    %207 = math.exp %206 : vector<8x32xf32>
    %cst_67 = arith.constant 1.000000e+00 : f32
    %208 = vector.broadcast %cst_67 : f32 to vector<8x32xf32>
    %209 = arith.addf %208, %207 : vector<8x32xf32>
    %210 = arith.divf %208, %209 : vector<8x32xf32>
    %211 = arith.mulf %202, %178 : vector<8x32xf32>
    %212 = arith.mulf %196, %204 : vector<8x32xf32>
    %213 = arith.addf %211, %212 : vector<8x32xf32>
    %214 = math.tanh %213 : vector<8x32xf32>
    %215 = arith.mulf %210, %214 : vector<8x32xf32>
    %216 = arith.index_cast %c5_i32 : i32 to index
    %c0_68 = arith.constant 0 : index
    %c0_69 = arith.constant 0 : index
    %217 = vector.load %arg19[%216, %c0_68, %c0_69] : memref<8x8x32xf32, #tpu.memory_space<vmem>>, vector<1x8x32xf32>
    %218 = vector.shape_cast %217 : vector<1x8x32xf32> to vector<8x32xf32>
    %219 = vector.shape_cast %215 : vector<8x32xf32> to vector<1x8x32xf32>
    tpu.vector_store %arg19[%216, %c0_68, %c0_69], %219 {strides = array<i32>} : memref<8x8x32xf32, #tpu.memory_space<vmem>>, vector<1x8x32xf32>,
    %c6_i32 = arith.constant 6 : i32
    %220 = arith.index_cast %c6_i32 : i32 to index
    %c0_70 = arith.constant 0 : index
    %c0_71 = arith.constant 0 : index
    %221 = vector.load %arg18[%220, %c0_70, %c0_71] : memref<8x8x128xf32, #tpu.memory_space<vmem>>, vector<1x8x128xf32>
    %222 = vector.shape_cast %221 : vector<1x8x128xf32> to vector<8x128xf32>
    %c0_72 = arith.constant 0 : index
    %c0_73 = arith.constant 0 : index
    %223 = vector.load %arg4[%c0_72, %c0_73] : memref<32x128xf32, #tpu.memory_space<vmem>>, vector<32x128xf32>
    %cst_74 = arith.constant dense<0.000000e+00> : vector<8x128xf32>
    %224 = tpu.matmul %215, %223, %cst_74 {dimension_numbers = #tpu.dot_dimension_numbers<[1], [0], [0], [1], [0, 0, 1, 1], [], []>} : vector<8x32xf32>, vector<32x128xf32>, vector<8x128xf32> -> vector<8x128xf32>
    %225 = arith.addf %222, %224 : vector<8x128xf32>
    %226 = vector.extract_strided_slice %225 {offsets = [0, 0], sizes = [8, 32], strides = [1, 1]} : vector<8x128xf32> to vector<8x32xf32>
    %227 = arith.negf %226 : vector<8x32xf32>
    %228 = math.exp %227 : vector<8x32xf32>
    %cst_75 = arith.constant 1.000000e+00 : f32
    %229 = vector.broadcast %cst_75 : f32 to vector<8x32xf32>
    %230 = arith.addf %229, %228 : vector<8x32xf32>
    %231 = arith.divf %229, %230 : vector<8x32xf32>
    %232 = vector.extract_strided_slice %225 {offsets = [0, 32], sizes = [8, 32], strides = [1, 1]} : vector<8x128xf32> to vector<8x32xf32>
    %233 = arith.negf %232 : vector<8x32xf32>
    %234 = math.exp %233 : vector<8x32xf32>
    %cst_76 = arith.constant 1.000000e+00 : f32
    %235 = vector.broadcast %cst_76 : f32 to vector<8x32xf32>
    %236 = arith.addf %235, %234 : vector<8x32xf32>
    %237 = arith.divf %235, %236 : vector<8x32xf32>
    %238 = vector.extract_strided_slice %225 {offsets = [0, 64], sizes = [8, 32], strides = [1, 1]} : vector<8x128xf32> to vector<8x32xf32>
    %239 = math.tanh %238 : vector<8x32xf32>
    %240 = vector.extract_strided_slice %225 {offsets = [0, 96], sizes = [8, 32], strides = [1, 1]} : vector<8x128xf32> to vector<8x32xf32>
    %241 = arith.negf %240 : vector<8x32xf32>
    %242 = math.exp %241 : vector<8x32xf32>
    %cst_77 = arith.constant 1.000000e+00 : f32
    %243 = vector.broadcast %cst_77 : f32 to vector<8x32xf32>
    %244 = arith.addf %243, %242 : vector<8x32xf32>
    %245 = arith.divf %243, %244 : vector<8x32xf32>
    %246 = arith.mulf %237, %213 : vector<8x32xf32>
    %247 = arith.mulf %231, %239 : vector<8x32xf32>
    %248 = arith.addf %246, %247 : vector<8x32xf32>
    %249 = math.tanh %248 : vector<8x32xf32>
    %250 = arith.mulf %245, %249 : vector<8x32xf32>
    %251 = arith.index_cast %c6_i32 : i32 to index
    %c0_78 = arith.constant 0 : index
    %c0_79 = arith.constant 0 : index
    %252 = vector.load %arg19[%251, %c0_78, %c0_79] : memref<8x8x32xf32, #tpu.memory_space<vmem>>, vector<1x8x32xf32>
    %253 = vector.shape_cast %252 : vector<1x8x32xf32> to vector<8x32xf32>
    %254 = vector.shape_cast %250 : vector<8x32xf32> to vector<1x8x32xf32>
    tpu.vector_store %arg19[%251, %c0_78, %c0_79], %254 {strides = array<i32>} : memref<8x8x32xf32, #tpu.memory_space<vmem>>, vector<1x8x32xf32>,
    %c7_i32 = arith.constant 7 : i32
    %255 = arith.index_cast %c7_i32 : i32 to index
    %c0_80 = arith.constant 0 : index
    %c0_81 = arith.constant 0 : index
    %256 = vector.load %arg18[%255, %c0_80, %c0_81] : memref<8x8x128xf32, #tpu.memory_space<vmem>>, vector<1x8x128xf32>
    %257 = vector.shape_cast %256 : vector<1x8x128xf32> to vector<8x128xf32>
    %c0_82 = arith.constant 0 : index
    %c0_83 = arith.constant 0 : index
    %258 = vector.load %arg4[%c0_82, %c0_83] : memref<32x128xf32, #tpu.memory_space<vmem>>, vector<32x128xf32>
    %cst_84 = arith.constant dense<0.000000e+00> : vector<8x128xf32>
    %259 = tpu.matmul %250, %258, %cst_84 {dimension_numbers = #tpu.dot_dimension_numbers<[1], [0], [0], [1], [0, 0, 1, 1], [], []>} : vector<8x32xf32>, vector<32x128xf32>, vector<8x128xf32> -> vector<8x128xf32>
    %260 = arith.addf %257, %259 : vector<8x128xf32>
    %261 = vector.extract_strided_slice %260 {offsets = [0, 0], sizes = [8, 32], strides = [1, 1]} : vector<8x128xf32> to vector<8x32xf32>
    %262 = arith.negf %261 : vector<8x32xf32>
    %263 = math.exp %262 : vector<8x32xf32>
    %cst_85 = arith.constant 1.000000e+00 : f32
    %264 = vector.broadcast %cst_85 : f32 to vector<8x32xf32>
    %265 = arith.addf %264, %263 : vector<8x32xf32>
    %266 = arith.divf %264, %265 : vector<8x32xf32>
    %267 = vector.extract_strided_slice %260 {offsets = [0, 32], sizes = [8, 32], strides = [1, 1]} : vector<8x128xf32> to vector<8x32xf32>
    %268 = arith.negf %267 : vector<8x32xf32>
    %269 = math.exp %268 : vector<8x32xf32>
    %cst_86 = arith.constant 1.000000e+00 : f32
    %270 = vector.broadcast %cst_86 : f32 to vector<8x32xf32>
    %271 = arith.addf %270, %269 : vector<8x32xf32>
    %272 = arith.divf %270, %271 : vector<8x32xf32>
    %273 = vector.extract_strided_slice %260 {offsets = [0, 64], sizes = [8, 32], strides = [1, 1]} : vector<8x128xf32> to vector<8x32xf32>
    %274 = math.tanh %273 : vector<8x32xf32>
    %275 = vector.extract_strided_slice %260 {offsets = [0, 96], sizes = [8, 32], strides = [1, 1]} : vector<8x128xf32> to vector<8x32xf32>
    %276 = arith.negf %275 : vector<8x32xf32>
    %277 = math.exp %276 : vector<8x32xf32>
    %cst_87 = arith.constant 1.000000e+00 : f32
    %278 = vector.broadcast %cst_87 : f32 to vector<8x32xf32>
    %279 = arith.addf %278, %277 : vector<8x32xf32>
    %280 = arith.divf %278, %279 : vector<8x32xf32>
    %281 = arith.mulf %272, %248 : vector<8x32xf32>
    %282 = arith.mulf %266, %274 : vector<8x32xf32>
    %283 = arith.addf %281, %282 : vector<8x32xf32>
    %284 = math.tanh %283 : vector<8x32xf32>
    %285 = arith.mulf %280, %284 : vector<8x32xf32>
    %286 = arith.index_cast %c7_i32 : i32 to index
    %c0_88 = arith.constant 0 : index
    %c0_89 = arith.constant 0 : index
    %287 = vector.load %arg19[%286, %c0_88, %c0_89] : memref<8x8x32xf32, #tpu.memory_space<vmem>>, vector<1x8x32xf32>
    %288 = vector.shape_cast %287 : vector<1x8x32xf32> to vector<8x32xf32>
    %289 = vector.shape_cast %285 : vector<8x32xf32> to vector<1x8x32xf32>
    tpu.vector_store %arg19[%286, %c0_88, %c0_89], %289 {strides = array<i32>} : memref<8x8x32xf32, #tpu.memory_space<vmem>>, vector<1x8x32xf32>,
    %c8_i32 = arith.constant 8 : i32
    %c0_90 = arith.constant 0 : index
    %c0_91 = arith.constant 0 : index
    %c0_92 = arith.constant 0 : index
    %290 = vector.load %arg19[%c0_90, %c0_91, %c0_92] : memref<8x8x32xf32, #tpu.memory_space<vmem>>, vector<8x8x32xf32>
    %291 = vector.shape_cast %290 : vector<8x8x32xf32> to vector<64x32xf32>
    %c0_93 = arith.constant 0 : index
    %c0_94 = arith.constant 0 : index
    %292 = vector.load %arg11[%c0_93, %c0_94] : memref<32x32xf32, #tpu.memory_space<vmem>>, vector<32x32xf32>
    %cst_95 = arith.constant dense<0.000000e+00> : vector<64x32xf32>
    %293 = tpu.matmul %291, %292, %cst_95 {dimension_numbers = #tpu.dot_dimension_numbers<[1], [0], [0], [1], [0, 0, 1, 1], [], []>} : vector<64x32xf32>, vector<32x32xf32>, vector<64x32xf32> -> vector<64x32xf32>
    %c0_96 = arith.constant 0 : index
    %c0_97 = arith.constant 0 : index
    %294 = vector.load %arg12[%c0_96, %c0_97] : memref<1x32xf32, #tpu.memory_space<vmem>>, vector<1x32xf32>
    %295 = vector.broadcast %294 : vector<1x32xf32> to vector<64x32xf32>
    %296 = arith.addf %293, %295 : vector<64x32xf32>
    %297 = vector.shape_cast %296 : vector<64x32xf32> to vector<8x8x32xf32>
    %c0_98 = arith.constant 0 : index
    %c0_99 = arith.constant 0 : index
    %c0_100 = arith.constant 0 : index
    %298 = vector.load %arg20[%c0_98, %c0_99, %c0_100] : memref<8x8x32xf32, #tpu.memory_space<vmem>>, vector<8x8x32xf32>
    tpu.vector_store %arg20[%c0_98, %c0_99, %c0_100], %297 {strides = array<i32>} : memref<8x8x32xf32, #tpu.memory_space<vmem>>, vector<8x8x32xf32>,
    %c0_101 = arith.constant 0 : index
    %c0_102 = arith.constant 0 : index
    %299 = vector.load %arg13[%c0_101, %c0_102] : memref<1x32xf32, #tpu.memory_space<vmem>>, vector<1x32xf32>
    %300 = vector.shape_cast %299 : vector<1x32xf32> to vector<1x1x32xf32>
    %c0_103 = arith.constant 0 : index
    %c0_104 = arith.constant 0 : index
    %c0_105 = arith.constant 0 : index
    %301 = vector.load %arg1[%c0_103, %c0_104, %c0_105] : memref<8x8x128xf32, #tpu.memory_space<vmem>>, vector<1x8x128xf32>
    %302 = vector.shape_cast %301 : vector<1x8x128xf32> to vector<8x128xf32>
    %c0_i32_106 = arith.constant 0 : i32
    %c0_107 = arith.constant 0 : index
    %c0_108 = arith.constant 0 : index
    %303 = vector.load %arg10[%c0_107, %c0_108] : memref<32x32xf32, #tpu.memory_space<vmem>>, vector<32x32xf32>
    %cst_109 = arith.constant dense<0.000000e+00> : vector<8x32xf32>
    %304 = tpu.matmul %285, %303, %cst_109 {dimension_numbers = #tpu.dot_dimension_numbers<[1], [0], [0], [1], [0, 0, 1, 1], [], []>} : vector<8x32xf32>, vector<32x32xf32>, vector<8x32xf32> -> vector<8x32xf32>
    %c0_110 = arith.constant 0 : index
    %c0_111 = arith.constant 0 : index
    %c0_112 = arith.constant 0 : index
    %305 = vector.load %arg20[%c0_110, %c0_111, %c0_112] : memref<8x8x32xf32, #tpu.memory_space<vmem>>, vector<8x8x32xf32>
    %306 = vector.shape_cast %304 : vector<8x32xf32> to vector<1x8x32xf32>
    %307 = vector.broadcast %306 : vector<1x8x32xf32> to vector<8x8x32xf32>
    %308 = arith.addf %305, %307 : vector<8x8x32xf32>
    %309 = math.tanh %308 : vector<8x8x32xf32>
    %310 = vector.broadcast %300 : vector<1x1x32xf32> to vector<8x8x32xf32>
    %311 = arith.mulf %309, %310 : vector<8x8x32xf32>
    %cst_113 = arith.constant dense<0.000000e+00> : vector<8x8xf32>
    %312 = vector.multi_reduction <add>, %311, %cst_113 [2] : vector<8x8x32xf32> to vector<8x8xf32>
    %313 = vector.shape_cast %312 : vector<8x8xf32> to vector<8x8x1xf32>
    %cst_114 = arith.constant dense<0xFF800000> : vector<8x1xf32>
    %314 = vector.multi_reduction <maximumf>, %313, %cst_114 [0] : vector<8x8x1xf32> to vector<8x1xf32>
    %315 = vector.shape_cast %314 : vector<8x1xf32> to vector<1x8x1xf32>
    %316 = vector.broadcast %315 : vector<1x8x1xf32> to vector<8x8x1xf32>
    %317 = arith.subf %313, %316 : vector<8x8x1xf32>
    %318 = math.exp %317 : vector<8x8x1xf32>
    %cst_115 = arith.constant dense<0.000000e+00> : vector<8x1xf32>
    %319 = vector.multi_reduction <add>, %318, %cst_115 [0] : vector<8x8x1xf32> to vector<8x1xf32>
    %320 = vector.shape_cast %319 : vector<8x1xf32> to vector<1x8x1xf32>
    %321 = vector.broadcast %320 : vector<1x8x1xf32> to vector<8x8x1xf32>
    %322 = arith.divf %318, %321 : vector<8x8x1xf32>
    %c0_116 = arith.constant 0 : index
    %c0_117 = arith.constant 0 : index
    %c0_118 = arith.constant 0 : index
    %323 = vector.load %arg19[%c0_116, %c0_117, %c0_118] : memref<8x8x32xf32, #tpu.memory_space<vmem>>, vector<8x8x32xf32>
    %324 = vector.broadcast %322 : vector<8x8x1xf32> to vector<8x8x32xf32>
    %325 = arith.mulf %324, %323 : vector<8x8x32xf32>
    %cst_119 = arith.constant dense<0.000000e+00> : vector<8x32xf32>
    %326 = vector.multi_reduction <add>, %325, %cst_119 [0] : vector<8x8x32xf32> to vector<8x32xf32>
    %c0_120 = arith.constant 0 : index
    %c0_121 = arith.constant 0 : index
    %327 = vector.load %arg6[%c0_120, %c0_121] : memref<128x128xf32, #tpu.memory_space<vmem>>, vector<128x128xf32>
    %cst_122 = arith.constant dense<0.000000e+00> : vector<8x128xf32>
    %328 = tpu.matmul %302, %327, %cst_122 {dimension_numbers = #tpu.dot_dimension_numbers<[1], [0], [0], [1], [0, 0, 1, 1], [], []>} : vector<8x128xf32>, vector<128x128xf32>, vector<8x128xf32> -> vector<8x128xf32>
    %c0_123 = arith.constant 0 : index
    %c0_124 = arith.constant 0 : index
    %329 = vector.load %arg7[%c0_123, %c0_124] : memref<32x128xf32, #tpu.memory_space<vmem>>, vector<32x128xf32>
    %cst_125 = arith.constant dense<0.000000e+00> : vector<8x128xf32>
    %330 = tpu.matmul %326, %329, %cst_125 {dimension_numbers = #tpu.dot_dimension_numbers<[1], [0], [0], [1], [0, 0, 1, 1], [], []>} : vector<8x32xf32>, vector<32x128xf32>, vector<8x128xf32> -> vector<8x128xf32>
    %331 = arith.addf %328, %330 : vector<8x128xf32>
    %c0_126 = arith.constant 0 : index
    %c0_127 = arith.constant 0 : index
    %332 = vector.load %arg8[%c0_126, %c0_127] : memref<32x128xf32, #tpu.memory_space<vmem>>, vector<32x128xf32>
    %cst_128 = arith.constant dense<0.000000e+00> : vector<8x128xf32>
    %333 = tpu.matmul %285, %332, %cst_128 {dimension_numbers = #tpu.dot_dimension_numbers<[1], [0], [0], [1], [0, 0, 1, 1], [], []>} : vector<8x32xf32>, vector<32x128xf32>, vector<8x128xf32> -> vector<8x128xf32>
    %334 = arith.addf %331, %333 : vector<8x128xf32>
    %c0_129 = arith.constant 0 : index
    %c0_130 = arith.constant 0 : index
    %335 = vector.load %arg9[%c0_129, %c0_130] : memref<1x128xf32, #tpu.memory_space<vmem>>, vector<1x128xf32>
    %336 = vector.broadcast %335 : vector<1x128xf32> to vector<8x128xf32>
    %337 = arith.addf %334, %336 : vector<8x128xf32>
    %338 = vector.extract_strided_slice %337 {offsets = [0, 0], sizes = [8, 32], strides = [1, 1]} : vector<8x128xf32> to vector<8x32xf32>
    %339 = arith.negf %338 : vector<8x32xf32>
    %340 = math.exp %339 : vector<8x32xf32>
    %cst_131 = arith.constant 1.000000e+00 : f32
    %341 = vector.broadcast %cst_131 : f32 to vector<8x32xf32>
    %342 = arith.addf %341, %340 : vector<8x32xf32>
    %343 = arith.divf %341, %342 : vector<8x32xf32>
    %344 = vector.extract_strided_slice %337 {offsets = [0, 32], sizes = [8, 32], strides = [1, 1]} : vector<8x128xf32> to vector<8x32xf32>
    %345 = arith.negf %344 : vector<8x32xf32>
    %346 = math.exp %345 : vector<8x32xf32>
    %cst_132 = arith.constant 1.000000e+00 : f32
    %347 = vector.broadcast %cst_132 : f32 to vector<8x32xf32>
    %348 = arith.addf %347, %346 : vector<8x32xf32>
    %349 = arith.divf %347, %348 : vector<8x32xf32>
    %350 = vector.extract_strided_slice %337 {offsets = [0, 64], sizes = [8, 32], strides = [1, 1]} : vector<8x128xf32> to vector<8x32xf32>
    %351 = math.tanh %350 : vector<8x32xf32>
    %352 = vector.extract_strided_slice %337 {offsets = [0, 96], sizes = [8, 32], strides = [1, 1]} : vector<8x128xf32> to vector<8x32xf32>
    %353 = arith.negf %352 : vector<8x32xf32>
    %354 = math.exp %353 : vector<8x32xf32>
    %cst_133 = arith.constant 1.000000e+00 : f32
    %355 = vector.broadcast %cst_133 : f32 to vector<8x32xf32>
    %356 = arith.addf %355, %354 : vector<8x32xf32>
    %357 = arith.divf %355, %356 : vector<8x32xf32>
    %358 = arith.mulf %349, %283 : vector<8x32xf32>
    %359 = arith.mulf %343, %351 : vector<8x32xf32>
    %360 = arith.addf %358, %359 : vector<8x32xf32>
    %361 = math.tanh %360 : vector<8x32xf32>
    %362 = arith.mulf %357, %361 : vector<8x32xf32>
    %c0_134 = arith.constant 0 : index
    %c0_135 = arith.constant 0 : index
    %363 = vector.load %arg14[%c0_134, %c0_135] : memref<32x128xf32, #tpu.memory_space<vmem>>, vector<32x128xf32>
    %cst_136 = arith.constant dense<0.000000e+00> : vector<8x128xf32>
    %364 = tpu.matmul %362, %363, %cst_136 {dimension_numbers = #tpu.dot_dimension_numbers<[1], [0], [0], [1], [0, 0, 1, 1], [], []>} : vector<8x32xf32>, vector<32x128xf32>, vector<8x128xf32> -> vector<8x128xf32>
    %c0_137 = arith.constant 0 : index
    %c0_138 = arith.constant 0 : index
    %365 = vector.load %arg15[%c0_137, %c0_138] : memref<32x128xf32, #tpu.memory_space<vmem>>, vector<32x128xf32>
    %cst_139 = arith.constant dense<0.000000e+00> : vector<8x128xf32>
    %366 = tpu.matmul %326, %365, %cst_139 {dimension_numbers = #tpu.dot_dimension_numbers<[1], [0], [0], [1], [0, 0, 1, 1], [], []>} : vector<8x32xf32>, vector<32x128xf32>, vector<8x128xf32> -> vector<8x128xf32>
    %367 = arith.addf %364, %366 : vector<8x128xf32>
    %c0_140 = arith.constant 0 : index
    %c0_141 = arith.constant 0 : index
    %368 = vector.load %arg16[%c0_140, %c0_141] : memref<1x128xf32, #tpu.memory_space<vmem>>, vector<1x128xf32>
    %369 = vector.broadcast %368 : vector<1x128xf32> to vector<8x128xf32>
    %370 = arith.addf %367, %369 : vector<8x128xf32>
    %371 = arith.index_cast %c0_i32_106 : i32 to index
    %c0_142 = arith.constant 0 : index
    %c0_143 = arith.constant 0 : index
    %372 = vector.load %arg17[%371, %c0_142, %c0_143] : memref<8x8x128xf32, #tpu.memory_space<vmem>>, vector<1x8x128xf32>
    %373 = vector.shape_cast %372 : vector<1x8x128xf32> to vector<8x128xf32>
    %374 = vector.shape_cast %370 : vector<8x128xf32> to vector<1x8x128xf32>
    tpu.vector_store %arg17[%371, %c0_142, %c0_143], %374 {strides = array<i32>} : memref<8x8x128xf32, #tpu.memory_space<vmem>>, vector<1x8x128xf32>,
    %375 = arith.index_cast %c0_i32_106 : i32 to index
    %376 = memref.load %arg2[%375] : memref<8xi32, #tpu.memory_space<smem>>
    %c0_i32_144 = arith.constant 0 : i32
    %377 = arith.cmpi sgt, %376, %c0_i32_144 : i32
    %378 = arith.extui %377 : i1 to i32
    %379 = arith.sitofp %378 : i32 to f32
    %c1_i32_145 = arith.constant 1 : i32
    %380 = arith.addi %c0_i32_106, %c1_i32_145 : i32
    %c7_i32_146 = arith.constant 7 : i32
    %381 = arith.minsi %380, %c7_i32_146 : i32
    %382 = arith.index_cast %381 : i32 to index
    %c0_147 = arith.constant 0 : index
    %c0_148 = arith.constant 0 : index
    %383 = vector.load %arg1[%382, %c0_147, %c0_148] : memref<8x8x128xf32, #tpu.memory_space<vmem>>, vector<1x8x128xf32>
    %384 = vector.shape_cast %383 : vector<1x8x128xf32> to vector<8x128xf32>
    %385 = vector.broadcast %379 : f32 to vector<8x128xf32>
    %386 = arith.mulf %385, %384 : vector<8x128xf32>
    %cst_149 = arith.constant 1.000000e+00 : f32
    %387 = arith.subf %cst_149, %379 : f32
    %388 = vector.broadcast %387 : f32 to vector<8x128xf32>
    %389 = arith.mulf %388, %370 : vector<8x128xf32>
    %390 = arith.addf %386, %389 : vector<8x128xf32>
    %c1_i32_150 = arith.constant 1 : i32
    %c0_151 = arith.constant 0 : index
    %c0_152 = arith.constant 0 : index
    %391 = vector.load %arg10[%c0_151, %c0_152] : memref<32x32xf32, #tpu.memory_space<vmem>>, vector<32x32xf32>
    %cst_153 = arith.constant dense<0.000000e+00> : vector<8x32xf32>
    %392 = tpu.matmul %362, %391, %cst_153 {dimension_numbers = #tpu.dot_dimension_numbers<[1], [0], [0], [1], [0, 0, 1, 1], [], []>} : vector<8x32xf32>, vector<32x32xf32>, vector<8x32xf32> -> vector<8x32xf32>
    %c0_154 = arith.constant 0 : index
    %c0_155 = arith.constant 0 : index
    %c0_156 = arith.constant 0 : index
    %393 = vector.load %arg20[%c0_154, %c0_155, %c0_156] : memref<8x8x32xf32, #tpu.memory_space<vmem>>, vector<8x8x32xf32>
    %394 = vector.shape_cast %392 : vector<8x32xf32> to vector<1x8x32xf32>
    %395 = vector.broadcast %394 : vector<1x8x32xf32> to vector<8x8x32xf32>
    %396 = arith.addf %393, %395 : vector<8x8x32xf32>
    %397 = math.tanh %396 : vector<8x8x32xf32>
    %398 = vector.broadcast %300 : vector<1x1x32xf32> to vector<8x8x32xf32>
    %399 = arith.mulf %397, %398 : vector<8x8x32xf32>
    %cst_157 = arith.constant dense<0.000000e+00> : vector<8x8xf32>
    %400 = vector.multi_reduction <add>, %399, %cst_157 [2] : vector<8x8x32xf32> to vector<8x8xf32>
    %401 = vector.shape_cast %400 : vector<8x8xf32> to vector<8x8x1xf32>
    %cst_158 = arith.constant dense<0xFF800000> : vector<8x1xf32>
    %402 = vector.multi_reduction <maximumf>, %401, %cst_158 [0] : vector<8x8x1xf32> to vector<8x1xf32>
    %403 = vector.shape_cast %402 : vector<8x1xf32> to vector<1x8x1xf32>
    %404 = vector.broadcast %403 : vector<1x8x1xf32> to vector<8x8x1xf32>
    %405 = arith.subf %401, %404 : vector<8x8x1xf32>
    %406 = math.exp %405 : vector<8x8x1xf32>
    %cst_159 = arith.constant dense<0.000000e+00> : vector<8x1xf32>
    %407 = vector.multi_reduction <add>, %406, %cst_159 [0] : vector<8x8x1xf32> to vector<8x1xf32>
    %408 = vector.shape_cast %407 : vector<8x1xf32> to vector<1x8x1xf32>
    %409 = vector.broadcast %408 : vector<1x8x1xf32> to vector<8x8x1xf32>
    %410 = arith.divf %406, %409 : vector<8x8x1xf32>
    %c0_160 = arith.constant 0 : index
    %c0_161 = arith.constant 0 : index
    %c0_162 = arith.constant 0 : index
    %411 = vector.load %arg19[%c0_160, %c0_161, %c0_162] : memref<8x8x32xf32, #tpu.memory_space<vmem>>, vector<8x8x32xf32>
    %412 = vector.broadcast %410 : vector<8x8x1xf32> to vector<8x8x32xf32>
    %413 = arith.mulf %412, %411 : vector<8x8x32xf32>
    %cst_163 = arith.constant dense<0.000000e+00> : vector<8x32xf32>
    %414 = vector.multi_reduction <add>, %413, %cst_163 [0] : vector<8x8x32xf32> to vector<8x32xf32>
    %c0_164 = arith.constant 0 : index
    %c0_165 = arith.constant 0 : index
    %415 = vector.load %arg6[%c0_164, %c0_165] : memref<128x128xf32, #tpu.memory_space<vmem>>, vector<128x128xf32>
    %cst_166 = arith.constant dense<0.000000e+00> : vector<8x128xf32>
    %416 = tpu.matmul %390, %415, %cst_166 {dimension_numbers = #tpu.dot_dimension_numbers<[1], [0], [0], [1], [0, 0, 1, 1], [], []>} : vector<8x128xf32>, vector<128x128xf32>, vector<8x128xf32> -> vector<8x128xf32>
    %c0_167 = arith.constant 0 : index
    %c0_168 = arith.constant 0 : index
    %417 = vector.load %arg7[%c0_167, %c0_168] : memref<32x128xf32, #tpu.memory_space<vmem>>, vector<32x128xf32>
    %cst_169 = arith.constant dense<0.000000e+00> : vector<8x128xf32>
    %418 = tpu.matmul %414, %417, %cst_169 {dimension_numbers = #tpu.dot_dimension_numbers<[1], [0], [0], [1], [0, 0, 1, 1], [], []>} : vector<8x32xf32>, vector<32x128xf32>, vector<8x128xf32> -> vector<8x128xf32>
    %419 = arith.addf %416, %418 : vector<8x128xf32>
    %c0_170 = arith.constant 0 : index
    %c0_171 = arith.constant 0 : index
    %420 = vector.load %arg8[%c0_170, %c0_171] : memref<32x128xf32, #tpu.memory_space<vmem>>, vector<32x128xf32>
    %cst_172 = arith.constant dense<0.000000e+00> : vector<8x128xf32>
    %421 = tpu.matmul %362, %420, %cst_172 {dimension_numbers = #tpu.dot_dimension_numbers<[1], [0], [0], [1], [0, 0, 1, 1], [], []>} : vector<8x32xf32>, vector<32x128xf32>, vector<8x128xf32> -> vector<8x128xf32>
    %422 = arith.addf %419, %421 : vector<8x128xf32>
    %c0_173 = arith.constant 0 : index
    %c0_174 = arith.constant 0 : index
    %423 = vector.load %arg9[%c0_173, %c0_174] : memref<1x128xf32, #tpu.memory_space<vmem>>, vector<1x128xf32>
    %424 = vector.broadcast %423 : vector<1x128xf32> to vector<8x128xf32>
    %425 = arith.addf %422, %424 : vector<8x128xf32>
    %426 = vector.extract_strided_slice %425 {offsets = [0, 0], sizes = [8, 32], strides = [1, 1]} : vector<8x128xf32> to vector<8x32xf32>
    %427 = arith.negf %426 : vector<8x32xf32>
    %428 = math.exp %427 : vector<8x32xf32>
    %cst_175 = arith.constant 1.000000e+00 : f32
    %429 = vector.broadcast %cst_175 : f32 to vector<8x32xf32>
    %430 = arith.addf %429, %428 : vector<8x32xf32>
    %431 = arith.divf %429, %430 : vector<8x32xf32>
    %432 = vector.extract_strided_slice %425 {offsets = [0, 32], sizes = [8, 32], strides = [1, 1]} : vector<8x128xf32> to vector<8x32xf32>
    %433 = arith.negf %432 : vector<8x32xf32>
    %434 = math.exp %433 : vector<8x32xf32>
    %cst_176 = arith.constant 1.000000e+00 : f32
    %435 = vector.broadcast %cst_176 : f32 to vector<8x32xf32>
    %436 = arith.addf %435, %434 : vector<8x32xf32>
    %437 = arith.divf %435, %436 : vector<8x32xf32>
    %438 = vector.extract_strided_slice %425 {offsets = [0, 64], sizes = [8, 32], strides = [1, 1]} : vector<8x128xf32> to vector<8x32xf32>
    %439 = math.tanh %438 : vector<8x32xf32>
    %440 = vector.extract_strided_slice %425 {offsets = [0, 96], sizes = [8, 32], strides = [1, 1]} : vector<8x128xf32> to vector<8x32xf32>
    %441 = arith.negf %440 : vector<8x32xf32>
    %442 = math.exp %441 : vector<8x32xf32>
    %cst_177 = arith.constant 1.000000e+00 : f32
    %443 = vector.broadcast %cst_177 : f32 to vector<8x32xf32>
    %444 = arith.addf %443, %442 : vector<8x32xf32>
    %445 = arith.divf %443, %444 : vector<8x32xf32>
    %446 = arith.mulf %437, %360 : vector<8x32xf32>
    %447 = arith.mulf %431, %439 : vector<8x32xf32>
    %448 = arith.addf %446, %447 : vector<8x32xf32>
    %449 = math.tanh %448 : vector<8x32xf32>
    %450 = arith.mulf %445, %449 : vector<8x32xf32>
    %c0_178 = arith.constant 0 : index
    %c0_179 = arith.constant 0 : index
    %451 = vector.load %arg14[%c0_178, %c0_179] : memref<32x128xf32, #tpu.memory_space<vmem>>, vector<32x128xf32>
    %cst_180 = arith.constant dense<0.000000e+00> : vector<8x128xf32>
    %452 = tpu.matmul %450, %451, %cst_180 {dimension_numbers = #tpu.dot_dimension_numbers<[1], [0], [0], [1], [0, 0, 1, 1], [], []>} : vector<8x32xf32>, vector<32x128xf32>, vector<8x128xf32> -> vector<8x128xf32>
    %c0_181 = arith.constant 0 : index
    %c0_182 = arith.constant 0 : index
    %453 = vector.load %arg15[%c0_181, %c0_182] : memref<32x128xf32, #tpu.memory_space<vmem>>, vector<32x128xf32>
    %cst_183 = arith.constant dense<0.000000e+00> : vector<8x128xf32>
    %454 = tpu.matmul %414, %453, %cst_183 {dimension_numbers = #tpu.dot_dimension_numbers<[1], [0], [0], [1], [0, 0, 1, 1], [], []>} : vector<8x32xf32>, vector<32x128xf32>, vector<8x128xf32> -> vector<8x128xf32>
    %455 = arith.addf %452, %454 : vector<8x128xf32>
    %c0_184 = arith.constant 0 : index
    %c0_185 = arith.constant 0 : index
    %456 = vector.load %arg16[%c0_184, %c0_185] : memref<1x128xf32, #tpu.memory_space<vmem>>, vector<1x128xf32>
    %457 = vector.broadcast %456 : vector<1x128xf32> to vector<8x128xf32>
    %458 = arith.addf %455, %457 : vector<8x128xf32>
    %459 = arith.index_cast %c1_i32_150 : i32 to index
    %c0_186 = arith.constant 0 : index
    %c0_187 = arith.constant 0 : index
    %460 = vector.load %arg17[%459, %c0_186, %c0_187] : memref<8x8x128xf32, #tpu.memory_space<vmem>>, vector<1x8x128xf32>
    %461 = vector.shape_cast %460 : vector<1x8x128xf32> to vector<8x128xf32>
    %462 = vector.shape_cast %458 : vector<8x128xf32> to vector<1x8x128xf32>
    tpu.vector_store %arg17[%459, %c0_186, %c0_187], %462 {strides = array<i32>} : memref<8x8x128xf32, #tpu.memory_space<vmem>>, vector<1x8x128xf32>,
    %463 = arith.index_cast %c1_i32_150 : i32 to index
    %464 = memref.load %arg2[%463] : memref<8xi32, #tpu.memory_space<smem>>
    %c0_i32_188 = arith.constant 0 : i32
    %465 = arith.cmpi sgt, %464, %c0_i32_188 : i32
    %466 = arith.extui %465 : i1 to i32
    %467 = arith.sitofp %466 : i32 to f32
    %c1_i32_189 = arith.constant 1 : i32
    %468 = arith.addi %c1_i32_150, %c1_i32_189 : i32
    %c7_i32_190 = arith.constant 7 : i32
    %469 = arith.minsi %468, %c7_i32_190 : i32
    %470 = arith.index_cast %469 : i32 to index
    %c0_191 = arith.constant 0 : index
    %c0_192 = arith.constant 0 : index
    %471 = vector.load %arg1[%470, %c0_191, %c0_192] : memref<8x8x128xf32, #tpu.memory_space<vmem>>, vector<1x8x128xf32>
    %472 = vector.shape_cast %471 : vector<1x8x128xf32> to vector<8x128xf32>
    %473 = vector.broadcast %467 : f32 to vector<8x128xf32>
    %474 = arith.mulf %473, %472 : vector<8x128xf32>
    %cst_193 = arith.constant 1.000000e+00 : f32
    %475 = arith.subf %cst_193, %467 : f32
    %476 = vector.broadcast %475 : f32 to vector<8x128xf32>
    %477 = arith.mulf %476, %458 : vector<8x128xf32>
    %478 = arith.addf %474, %477 : vector<8x128xf32>
    %c2_i32_194 = arith.constant 2 : i32
    %c0_195 = arith.constant 0 : index
    %c0_196 = arith.constant 0 : index
    %479 = vector.load %arg10[%c0_195, %c0_196] : memref<32x32xf32, #tpu.memory_space<vmem>>, vector<32x32xf32>
    %cst_197 = arith.constant dense<0.000000e+00> : vector<8x32xf32>
    %480 = tpu.matmul %450, %479, %cst_197 {dimension_numbers = #tpu.dot_dimension_numbers<[1], [0], [0], [1], [0, 0, 1, 1], [], []>} : vector<8x32xf32>, vector<32x32xf32>, vector<8x32xf32> -> vector<8x32xf32>
    %c0_198 = arith.constant 0 : index
    %c0_199 = arith.constant 0 : index
    %c0_200 = arith.constant 0 : index
    %481 = vector.load %arg20[%c0_198, %c0_199, %c0_200] : memref<8x8x32xf32, #tpu.memory_space<vmem>>, vector<8x8x32xf32>
    %482 = vector.shape_cast %480 : vector<8x32xf32> to vector<1x8x32xf32>
    %483 = vector.broadcast %482 : vector<1x8x32xf32> to vector<8x8x32xf32>
    %484 = arith.addf %481, %483 : vector<8x8x32xf32>
    %485 = math.tanh %484 : vector<8x8x32xf32>
    %486 = vector.broadcast %300 : vector<1x1x32xf32> to vector<8x8x32xf32>
    %487 = arith.mulf %485, %486 : vector<8x8x32xf32>
    %cst_201 = arith.constant dense<0.000000e+00> : vector<8x8xf32>
    %488 = vector.multi_reduction <add>, %487, %cst_201 [2] : vector<8x8x32xf32> to vector<8x8xf32>
    %489 = vector.shape_cast %488 : vector<8x8xf32> to vector<8x8x1xf32>
    %cst_202 = arith.constant dense<0xFF800000> : vector<8x1xf32>
    %490 = vector.multi_reduction <maximumf>, %489, %cst_202 [0] : vector<8x8x1xf32> to vector<8x1xf32>
    %491 = vector.shape_cast %490 : vector<8x1xf32> to vector<1x8x1xf32>
    %492 = vector.broadcast %491 : vector<1x8x1xf32> to vector<8x8x1xf32>
    %493 = arith.subf %489, %492 : vector<8x8x1xf32>
    %494 = math.exp %493 : vector<8x8x1xf32>
    %cst_203 = arith.constant dense<0.000000e+00> : vector<8x1xf32>
    %495 = vector.multi_reduction <add>, %494, %cst_203 [0] : vector<8x8x1xf32> to vector<8x1xf32>
    %496 = vector.shape_cast %495 : vector<8x1xf32> to vector<1x8x1xf32>
    %497 = vector.broadcast %496 : vector<1x8x1xf32> to vector<8x8x1xf32>
    %498 = arith.divf %494, %497 : vector<8x8x1xf32>
    %c0_204 = arith.constant 0 : index
    %c0_205 = arith.constant 0 : index
    %c0_206 = arith.constant 0 : index
    %499 = vector.load %arg19[%c0_204, %c0_205, %c0_206] : memref<8x8x32xf32, #tpu.memory_space<vmem>>, vector<8x8x32xf32>
    %500 = vector.broadcast %498 : vector<8x8x1xf32> to vector<8x8x32xf32>
    %501 = arith.mulf %500, %499 : vector<8x8x32xf32>
    %cst_207 = arith.constant dense<0.000000e+00> : vector<8x32xf32>
    %502 = vector.multi_reduction <add>, %501, %cst_207 [0] : vector<8x8x32xf32> to vector<8x32xf32>
    %c0_208 = arith.constant 0 : index
    %c0_209 = arith.constant 0 : index
    %503 = vector.load %arg6[%c0_208, %c0_209] : memref<128x128xf32, #tpu.memory_space<vmem>>, vector<128x128xf32>
    %cst_210 = arith.constant dense<0.000000e+00> : vector<8x128xf32>
    %504 = tpu.matmul %478, %503, %cst_210 {dimension_numbers = #tpu.dot_dimension_numbers<[1], [0], [0], [1], [0, 0, 1, 1], [], []>} : vector<8x128xf32>, vector<128x128xf32>, vector<8x128xf32> -> vector<8x128xf32>
    %c0_211 = arith.constant 0 : index
    %c0_212 = arith.constant 0 : index
    %505 = vector.load %arg7[%c0_211, %c0_212] : memref<32x128xf32, #tpu.memory_space<vmem>>, vector<32x128xf32>
    %cst_213 = arith.constant dense<0.000000e+00> : vector<8x128xf32>
    %506 = tpu.matmul %502, %505, %cst_213 {dimension_numbers = #tpu.dot_dimension_numbers<[1], [0], [0], [1], [0, 0, 1, 1], [], []>} : vector<8x32xf32>, vector<32x128xf32>, vector<8x128xf32> -> vector<8x128xf32>
    %507 = arith.addf %504, %506 : vector<8x128xf32>
    %c0_214 = arith.constant 0 : index
    %c0_215 = arith.constant 0 : index
    %508 = vector.load %arg8[%c0_214, %c0_215] : memref<32x128xf32, #tpu.memory_space<vmem>>, vector<32x128xf32>
    %cst_216 = arith.constant dense<0.000000e+00> : vector<8x128xf32>
    %509 = tpu.matmul %450, %508, %cst_216 {dimension_numbers = #tpu.dot_dimension_numbers<[1], [0], [0], [1], [0, 0, 1, 1], [], []>} : vector<8x32xf32>, vector<32x128xf32>, vector<8x128xf32> -> vector<8x128xf32>
    %510 = arith.addf %507, %509 : vector<8x128xf32>
    %c0_217 = arith.constant 0 : index
    %c0_218 = arith.constant 0 : index
    %511 = vector.load %arg9[%c0_217, %c0_218] : memref<1x128xf32, #tpu.memory_space<vmem>>, vector<1x128xf32>
    %512 = vector.broadcast %511 : vector<1x128xf32> to vector<8x128xf32>
    %513 = arith.addf %510, %512 : vector<8x128xf32>
    %514 = vector.extract_strided_slice %513 {offsets = [0, 0], sizes = [8, 32], strides = [1, 1]} : vector<8x128xf32> to vector<8x32xf32>
    %515 = arith.negf %514 : vector<8x32xf32>
    %516 = math.exp %515 : vector<8x32xf32>
    %cst_219 = arith.constant 1.000000e+00 : f32
    %517 = vector.broadcast %cst_219 : f32 to vector<8x32xf32>
    %518 = arith.addf %517, %516 : vector<8x32xf32>
    %519 = arith.divf %517, %518 : vector<8x32xf32>
    %520 = vector.extract_strided_slice %513 {offsets = [0, 32], sizes = [8, 32], strides = [1, 1]} : vector<8x128xf32> to vector<8x32xf32>
    %521 = arith.negf %520 : vector<8x32xf32>
    %522 = math.exp %521 : vector<8x32xf32>
    %cst_220 = arith.constant 1.000000e+00 : f32
    %523 = vector.broadcast %cst_220 : f32 to vector<8x32xf32>
    %524 = arith.addf %523, %522 : vector<8x32xf32>
    %525 = arith.divf %523, %524 : vector<8x32xf32>
    %526 = vector.extract_strided_slice %513 {offsets = [0, 64], sizes = [8, 32], strides = [1, 1]} : vector<8x128xf32> to vector<8x32xf32>
    %527 = math.tanh %526 : vector<8x32xf32>
    %528 = vector.extract_strided_slice %513 {offsets = [0, 96], sizes = [8, 32], strides = [1, 1]} : vector<8x128xf32> to vector<8x32xf32>
    %529 = arith.negf %528 : vector<8x32xf32>
    %530 = math.exp %529 : vector<8x32xf32>
    %cst_221 = arith.constant 1.000000e+00 : f32
    %531 = vector.broadcast %cst_221 : f32 to vector<8x32xf32>
    %532 = arith.addf %531, %530 : vector<8x32xf32>
    %533 = arith.divf %531, %532 : vector<8x32xf32>
    %534 = arith.mulf %525, %448 : vector<8x32xf32>
    %535 = arith.mulf %519, %527 : vector<8x32xf32>
    %536 = arith.addf %534, %535 : vector<8x32xf32>
    %537 = math.tanh %536 : vector<8x32xf32>
    %538 = arith.mulf %533, %537 : vector<8x32xf32>
    %c0_222 = arith.constant 0 : index
    %c0_223 = arith.constant 0 : index
    %539 = vector.load %arg14[%c0_222, %c0_223] : memref<32x128xf32, #tpu.memory_space<vmem>>, vector<32x128xf32>
    %cst_224 = arith.constant dense<0.000000e+00> : vector<8x128xf32>
    %540 = tpu.matmul %538, %539, %cst_224 {dimension_numbers = #tpu.dot_dimension_numbers<[1], [0], [0], [1], [0, 0, 1, 1], [], []>} : vector<8x32xf32>, vector<32x128xf32>, vector<8x128xf32> -> vector<8x128xf32>
    %c0_225 = arith.constant 0 : index
    %c0_226 = arith.constant 0 : index
    %541 = vector.load %arg15[%c0_225, %c0_226] : memref<32x128xf32, #tpu.memory_space<vmem>>, vector<32x128xf32>
    %cst_227 = arith.constant dense<0.000000e+00> : vector<8x128xf32>
    %542 = tpu.matmul %502, %541, %cst_227 {dimension_numbers = #tpu.dot_dimension_numbers<[1], [0], [0], [1], [0, 0, 1, 1], [], []>} : vector<8x32xf32>, vector<32x128xf32>, vector<8x128xf32> -> vector<8x128xf32>
    %543 = arith.addf %540, %542 : vector<8x128xf32>
    %c0_228 = arith.constant 0 : index
    %c0_229 = arith.constant 0 : index
    %544 = vector.load %arg16[%c0_228, %c0_229] : memref<1x128xf32, #tpu.memory_space<vmem>>, vector<1x128xf32>
    %545 = vector.broadcast %544 : vector<1x128xf32> to vector<8x128xf32>
    %546 = arith.addf %543, %545 : vector<8x128xf32>
    %547 = arith.index_cast %c2_i32_194 : i32 to index
    %c0_230 = arith.constant 0 : index
    %c0_231 = arith.constant 0 : index
    %548 = vector.load %arg17[%547, %c0_230, %c0_231] : memref<8x8x128xf32, #tpu.memory_space<vmem>>, vector<1x8x128xf32>
    %549 = vector.shape_cast %548 : vector<1x8x128xf32> to vector<8x128xf32>
    %550 = vector.shape_cast %546 : vector<8x128xf32> to vector<1x8x128xf32>
    tpu.vector_store %arg17[%547, %c0_230, %c0_231], %550 {strides = array<i32>} : memref<8x8x128xf32, #tpu.memory_space<vmem>>, vector<1x8x128xf32>,
    %551 = arith.index_cast %c2_i32_194 : i32 to index
    %552 = memref.load %arg2[%551] : memref<8xi32, #tpu.memory_space<smem>>
    %c0_i32_232 = arith.constant 0 : i32
    %553 = arith.cmpi sgt, %552, %c0_i32_232 : i32
    %554 = arith.extui %553 : i1 to i32
    %555 = arith.sitofp %554 : i32 to f32
    %c1_i32_233 = arith.constant 1 : i32
    %556 = arith.addi %c2_i32_194, %c1_i32_233 : i32
    %c7_i32_234 = arith.constant 7 : i32
    %557 = arith.minsi %556, %c7_i32_234 : i32
    %558 = arith.index_cast %557 : i32 to index
    %c0_235 = arith.constant 0 : index
    %c0_236 = arith.constant 0 : index
    %559 = vector.load %arg1[%558, %c0_235, %c0_236] : memref<8x8x128xf32, #tpu.memory_space<vmem>>, vector<1x8x128xf32>
    %560 = vector.shape_cast %559 : vector<1x8x128xf32> to vector<8x128xf32>
    %561 = vector.broadcast %555 : f32 to vector<8x128xf32>
    %562 = arith.mulf %561, %560 : vector<8x128xf32>
    %cst_237 = arith.constant 1.000000e+00 : f32
    %563 = arith.subf %cst_237, %555 : f32
    %564 = vector.broadcast %563 : f32 to vector<8x128xf32>
    %565 = arith.mulf %564, %546 : vector<8x128xf32>
    %566 = arith.addf %562, %565 : vector<8x128xf32>
    %c3_i32_238 = arith.constant 3 : i32
    %c0_239 = arith.constant 0 : index
    %c0_240 = arith.constant 0 : index
    %567 = vector.load %arg10[%c0_239, %c0_240] : memref<32x32xf32, #tpu.memory_space<vmem>>, vector<32x32xf32>
    %cst_241 = arith.constant dense<0.000000e+00> : vector<8x32xf32>
    %568 = tpu.matmul %538, %567, %cst_241 {dimension_numbers = #tpu.dot_dimension_numbers<[1], [0], [0], [1], [0, 0, 1, 1], [], []>} : vector<8x32xf32>, vector<32x32xf32>, vector<8x32xf32> -> vector<8x32xf32>
    %c0_242 = arith.constant 0 : index
    %c0_243 = arith.constant 0 : index
    %c0_244 = arith.constant 0 : index
    %569 = vector.load %arg20[%c0_242, %c0_243, %c0_244] : memref<8x8x32xf32, #tpu.memory_space<vmem>>, vector<8x8x32xf32>
    %570 = vector.shape_cast %568 : vector<8x32xf32> to vector<1x8x32xf32>
    %571 = vector.broadcast %570 : vector<1x8x32xf32> to vector<8x8x32xf32>
    %572 = arith.addf %569, %571 : vector<8x8x32xf32>
    %573 = math.tanh %572 : vector<8x8x32xf32>
    %574 = vector.broadcast %300 : vector<1x1x32xf32> to vector<8x8x32xf32>
    %575 = arith.mulf %573, %574 : vector<8x8x32xf32>
    %cst_245 = arith.constant dense<0.000000e+00> : vector<8x8xf32>
    %576 = vector.multi_reduction <add>, %575, %cst_245 [2] : vector<8x8x32xf32> to vector<8x8xf32>
    %577 = vector.shape_cast %576 : vector<8x8xf32> to vector<8x8x1xf32>
    %cst_246 = arith.constant dense<0xFF800000> : vector<8x1xf32>
    %578 = vector.multi_reduction <maximumf>, %577, %cst_246 [0] : vector<8x8x1xf32> to vector<8x1xf32>
    %579 = vector.shape_cast %578 : vector<8x1xf32> to vector<1x8x1xf32>
    %580 = vector.broadcast %579 : vector<1x8x1xf32> to vector<8x8x1xf32>
    %581 = arith.subf %577, %580 : vector<8x8x1xf32>
    %582 = math.exp %581 : vector<8x8x1xf32>
    %cst_247 = arith.constant dense<0.000000e+00> : vector<8x1xf32>
    %583 = vector.multi_reduction <add>, %582, %cst_247 [0] : vector<8x8x1xf32> to vector<8x1xf32>
    %584 = vector.shape_cast %583 : vector<8x1xf32> to vector<1x8x1xf32>
    %585 = vector.broadcast %584 : vector<1x8x1xf32> to vector<8x8x1xf32>
    %586 = arith.divf %582, %585 : vector<8x8x1xf32>
    %c0_248 = arith.constant 0 : index
    %c0_249 = arith.constant 0 : index
    %c0_250 = arith.constant 0 : index
    %587 = vector.load %arg19[%c0_248, %c0_249, %c0_250] : memref<8x8x32xf32, #tpu.memory_space<vmem>>, vector<8x8x32xf32>
    %588 = vector.broadcast %586 : vector<8x8x1xf32> to vector<8x8x32xf32>
    %589 = arith.mulf %588, %587 : vector<8x8x32xf32>
    %cst_251 = arith.constant dense<0.000000e+00> : vector<8x32xf32>
    %590 = vector.multi_reduction <add>, %589, %cst_251 [0] : vector<8x8x32xf32> to vector<8x32xf32>
    %c0_252 = arith.constant 0 : index
    %c0_253 = arith.constant 0 : index
    %591 = vector.load %arg6[%c0_252, %c0_253] : memref<128x128xf32, #tpu.memory_space<vmem>>, vector<128x128xf32>
    %cst_254 = arith.constant dense<0.000000e+00> : vector<8x128xf32>
    %592 = tpu.matmul %566, %591, %cst_254 {dimension_numbers = #tpu.dot_dimension_numbers<[1], [0], [0], [1], [0, 0, 1, 1], [], []>} : vector<8x128xf32>, vector<128x128xf32>, vector<8x128xf32> -> vector<8x128xf32>
    %c0_255 = arith.constant 0 : index
    %c0_256 = arith.constant 0 : index
    %593 = vector.load %arg7[%c0_255, %c0_256] : memref<32x128xf32, #tpu.memory_space<vmem>>, vector<32x128xf32>
    %cst_257 = arith.constant dense<0.000000e+00> : vector<8x128xf32>
    %594 = tpu.matmul %590, %593, %cst_257 {dimension_numbers = #tpu.dot_dimension_numbers<[1], [0], [0], [1], [0, 0, 1, 1], [], []>} : vector<8x32xf32>, vector<32x128xf32>, vector<8x128xf32> -> vector<8x128xf32>
    %595 = arith.addf %592, %594 : vector<8x128xf32>
    %c0_258 = arith.constant 0 : index
    %c0_259 = arith.constant 0 : index
    %596 = vector.load %arg8[%c0_258, %c0_259] : memref<32x128xf32, #tpu.memory_space<vmem>>, vector<32x128xf32>
    %cst_260 = arith.constant dense<0.000000e+00> : vector<8x128xf32>
    %597 = tpu.matmul %538, %596, %cst_260 {dimension_numbers = #tpu.dot_dimension_numbers<[1], [0], [0], [1], [0, 0, 1, 1], [], []>} : vector<8x32xf32>, vector<32x128xf32>, vector<8x128xf32> -> vector<8x128xf32>
    %598 = arith.addf %595, %597 : vector<8x128xf32>
    %c0_261 = arith.constant 0 : index
    %c0_262 = arith.constant 0 : index
    %599 = vector.load %arg9[%c0_261, %c0_262] : memref<1x128xf32, #tpu.memory_space<vmem>>, vector<1x128xf32>
    %600 = vector.broadcast %599 : vector<1x128xf32> to vector<8x128xf32>
    %601 = arith.addf %598, %600 : vector<8x128xf32>
    %602 = vector.extract_strided_slice %601 {offsets = [0, 0], sizes = [8, 32], strides = [1, 1]} : vector<8x128xf32> to vector<8x32xf32>
    %603 = arith.negf %602 : vector<8x32xf32>
    %604 = math.exp %603 : vector<8x32xf32>
    %cst_263 = arith.constant 1.000000e+00 : f32
    %605 = vector.broadcast %cst_263 : f32 to vector<8x32xf32>
    %606 = arith.addf %605, %604 : vector<8x32xf32>
    %607 = arith.divf %605, %606 : vector<8x32xf32>
    %608 = vector.extract_strided_slice %601 {offsets = [0, 32], sizes = [8, 32], strides = [1, 1]} : vector<8x128xf32> to vector<8x32xf32>
    %609 = arith.negf %608 : vector<8x32xf32>
    %610 = math.exp %609 : vector<8x32xf32>
    %cst_264 = arith.constant 1.000000e+00 : f32
    %611 = vector.broadcast %cst_264 : f32 to vector<8x32xf32>
    %612 = arith.addf %611, %610 : vector<8x32xf32>
    %613 = arith.divf %611, %612 : vector<8x32xf32>
    %614 = vector.extract_strided_slice %601 {offsets = [0, 64], sizes = [8, 32], strides = [1, 1]} : vector<8x128xf32> to vector<8x32xf32>
    %615 = math.tanh %614 : vector<8x32xf32>
    %616 = vector.extract_strided_slice %601 {offsets = [0, 96], sizes = [8, 32], strides = [1, 1]} : vector<8x128xf32> to vector<8x32xf32>
    %617 = arith.negf %616 : vector<8x32xf32>
    %618 = math.exp %617 : vector<8x32xf32>
    %cst_265 = arith.constant 1.000000e+00 : f32
    %619 = vector.broadcast %cst_265 : f32 to vector<8x32xf32>
    %620 = arith.addf %619, %618 : vector<8x32xf32>
    %621 = arith.divf %619, %620 : vector<8x32xf32>
    %622 = arith.mulf %613, %536 : vector<8x32xf32>
    %623 = arith.mulf %607, %615 : vector<8x32xf32>
    %624 = arith.addf %622, %623 : vector<8x32xf32>
    %625 = math.tanh %624 : vector<8x32xf32>
    %626 = arith.mulf %621, %625 : vector<8x32xf32>
    %c0_266 = arith.constant 0 : index
    %c0_267 = arith.constant 0 : index
    %627 = vector.load %arg14[%c0_266, %c0_267] : memref<32x128xf32, #tpu.memory_space<vmem>>, vector<32x128xf32>
    %cst_268 = arith.constant dense<0.000000e+00> : vector<8x128xf32>
    %628 = tpu.matmul %626, %627, %cst_268 {dimension_numbers = #tpu.dot_dimension_numbers<[1], [0], [0], [1], [0, 0, 1, 1], [], []>} : vector<8x32xf32>, vector<32x128xf32>, vector<8x128xf32> -> vector<8x128xf32>
    %c0_269 = arith.constant 0 : index
    %c0_270 = arith.constant 0 : index
    %629 = vector.load %arg15[%c0_269, %c0_270] : memref<32x128xf32, #tpu.memory_space<vmem>>, vector<32x128xf32>
    %cst_271 = arith.constant dense<0.000000e+00> : vector<8x128xf32>
    %630 = tpu.matmul %590, %629, %cst_271 {dimension_numbers = #tpu.dot_dimension_numbers<[1], [0], [0], [1], [0, 0, 1, 1], [], []>} : vector<8x32xf32>, vector<32x128xf32>, vector<8x128xf32> -> vector<8x128xf32>
    %631 = arith.addf %628, %630 : vector<8x128xf32>
    %c0_272 = arith.constant 0 : index
    %c0_273 = arith.constant 0 : index
    %632 = vector.load %arg16[%c0_272, %c0_273] : memref<1x128xf32, #tpu.memory_space<vmem>>, vector<1x128xf32>
    %633 = vector.broadcast %632 : vector<1x128xf32> to vector<8x128xf32>
    %634 = arith.addf %631, %633 : vector<8x128xf32>
    %635 = arith.index_cast %c3_i32_238 : i32 to index
    %c0_274 = arith.constant 0 : index
    %c0_275 = arith.constant 0 : index
    %636 = vector.load %arg17[%635, %c0_274, %c0_275] : memref<8x8x128xf32, #tpu.memory_space<vmem>>, vector<1x8x128xf32>
    %637 = vector.shape_cast %636 : vector<1x8x128xf32> to vector<8x128xf32>
    %638 = vector.shape_cast %634 : vector<8x128xf32> to vector<1x8x128xf32>
    tpu.vector_store %arg17[%635, %c0_274, %c0_275], %638 {strides = array<i32>} : memref<8x8x128xf32, #tpu.memory_space<vmem>>, vector<1x8x128xf32>,
    %639 = arith.index_cast %c3_i32_238 : i32 to index
    %640 = memref.load %arg2[%639] : memref<8xi32, #tpu.memory_space<smem>>
    %c0_i32_276 = arith.constant 0 : i32
    %641 = arith.cmpi sgt, %640, %c0_i32_276 : i32
    %642 = arith.extui %641 : i1 to i32
    %643 = arith.sitofp %642 : i32 to f32
    %c1_i32_277 = arith.constant 1 : i32
    %644 = arith.addi %c3_i32_238, %c1_i32_277 : i32
    %c7_i32_278 = arith.constant 7 : i32
    %645 = arith.minsi %644, %c7_i32_278 : i32
    %646 = arith.index_cast %645 : i32 to index
    %c0_279 = arith.constant 0 : index
    %c0_280 = arith.constant 0 : index
    %647 = vector.load %arg1[%646, %c0_279, %c0_280] : memref<8x8x128xf32, #tpu.memory_space<vmem>>, vector<1x8x128xf32>
    %648 = vector.shape_cast %647 : vector<1x8x128xf32> to vector<8x128xf32>
    %649 = vector.broadcast %643 : f32 to vector<8x128xf32>
    %650 = arith.mulf %649, %648 : vector<8x128xf32>
    %cst_281 = arith.constant 1.000000e+00 : f32
    %651 = arith.subf %cst_281, %643 : f32
    %652 = vector.broadcast %651 : f32 to vector<8x128xf32>
    %653 = arith.mulf %652, %634 : vector<8x128xf32>
    %654 = arith.addf %650, %653 : vector<8x128xf32>
    %c4_i32_282 = arith.constant 4 : i32
    %c0_283 = arith.constant 0 : index
    %c0_284 = arith.constant 0 : index
    %655 = vector.load %arg10[%c0_283, %c0_284] : memref<32x32xf32, #tpu.memory_space<vmem>>, vector<32x32xf32>
    %cst_285 = arith.constant dense<0.000000e+00> : vector<8x32xf32>
    %656 = tpu.matmul %626, %655, %cst_285 {dimension_numbers = #tpu.dot_dimension_numbers<[1], [0], [0], [1], [0, 0, 1, 1], [], []>} : vector<8x32xf32>, vector<32x32xf32>, vector<8x32xf32> -> vector<8x32xf32>
    %c0_286 = arith.constant 0 : index
    %c0_287 = arith.constant 0 : index
    %c0_288 = arith.constant 0 : index
    %657 = vector.load %arg20[%c0_286, %c0_287, %c0_288] : memref<8x8x32xf32, #tpu.memory_space<vmem>>, vector<8x8x32xf32>
    %658 = vector.shape_cast %656 : vector<8x32xf32> to vector<1x8x32xf32>
    %659 = vector.broadcast %658 : vector<1x8x32xf32> to vector<8x8x32xf32>
    %660 = arith.addf %657, %659 : vector<8x8x32xf32>
    %661 = math.tanh %660 : vector<8x8x32xf32>
    %662 = vector.broadcast %300 : vector<1x1x32xf32> to vector<8x8x32xf32>
    %663 = arith.mulf %661, %662 : vector<8x8x32xf32>
    %cst_289 = arith.constant dense<0.000000e+00> : vector<8x8xf32>
    %664 = vector.multi_reduction <add>, %663, %cst_289 [2] : vector<8x8x32xf32> to vector<8x8xf32>
    %665 = vector.shape_cast %664 : vector<8x8xf32> to vector<8x8x1xf32>
    %cst_290 = arith.constant dense<0xFF800000> : vector<8x1xf32>
    %666 = vector.multi_reduction <maximumf>, %665, %cst_290 [0] : vector<8x8x1xf32> to vector<8x1xf32>
    %667 = vector.shape_cast %666 : vector<8x1xf32> to vector<1x8x1xf32>
    %668 = vector.broadcast %667 : vector<1x8x1xf32> to vector<8x8x1xf32>
    %669 = arith.subf %665, %668 : vector<8x8x1xf32>
    %670 = math.exp %669 : vector<8x8x1xf32>
    %cst_291 = arith.constant dense<0.000000e+00> : vector<8x1xf32>
    %671 = vector.multi_reduction <add>, %670, %cst_291 [0] : vector<8x8x1xf32> to vector<8x1xf32>
    %672 = vector.shape_cast %671 : vector<8x1xf32> to vector<1x8x1xf32>
    %673 = vector.broadcast %672 : vector<1x8x1xf32> to vector<8x8x1xf32>
    %674 = arith.divf %670, %673 : vector<8x8x1xf32>
    %c0_292 = arith.constant 0 : index
    %c0_293 = arith.constant 0 : index
    %c0_294 = arith.constant 0 : index
    %675 = vector.load %arg19[%c0_292, %c0_293, %c0_294] : memref<8x8x32xf32, #tpu.memory_space<vmem>>, vector<8x8x32xf32>
    %676 = vector.broadcast %674 : vector<8x8x1xf32> to vector<8x8x32xf32>
    %677 = arith.mulf %676, %675 : vector<8x8x32xf32>
    %cst_295 = arith.constant dense<0.000000e+00> : vector<8x32xf32>
    %678 = vector.multi_reduction <add>, %677, %cst_295 [0] : vector<8x8x32xf32> to vector<8x32xf32>
    %c0_296 = arith.constant 0 : index
    %c0_297 = arith.constant 0 : index
    %679 = vector.load %arg6[%c0_296, %c0_297] : memref<128x128xf32, #tpu.memory_space<vmem>>, vector<128x128xf32>
    %cst_298 = arith.constant dense<0.000000e+00> : vector<8x128xf32>
    %680 = tpu.matmul %654, %679, %cst_298 {dimension_numbers = #tpu.dot_dimension_numbers<[1], [0], [0], [1], [0, 0, 1, 1], [], []>} : vector<8x128xf32>, vector<128x128xf32>, vector<8x128xf32> -> vector<8x128xf32>
    %c0_299 = arith.constant 0 : index
    %c0_300 = arith.constant 0 : index
    %681 = vector.load %arg7[%c0_299, %c0_300] : memref<32x128xf32, #tpu.memory_space<vmem>>, vector<32x128xf32>
    %cst_301 = arith.constant dense<0.000000e+00> : vector<8x128xf32>
    %682 = tpu.matmul %678, %681, %cst_301 {dimension_numbers = #tpu.dot_dimension_numbers<[1], [0], [0], [1], [0, 0, 1, 1], [], []>} : vector<8x32xf32>, vector<32x128xf32>, vector<8x128xf32> -> vector<8x128xf32>
    %683 = arith.addf %680, %682 : vector<8x128xf32>
    %c0_302 = arith.constant 0 : index
    %c0_303 = arith.constant 0 : index
    %684 = vector.load %arg8[%c0_302, %c0_303] : memref<32x128xf32, #tpu.memory_space<vmem>>, vector<32x128xf32>
    %cst_304 = arith.constant dense<0.000000e+00> : vector<8x128xf32>
    %685 = tpu.matmul %626, %684, %cst_304 {dimension_numbers = #tpu.dot_dimension_numbers<[1], [0], [0], [1], [0, 0, 1, 1], [], []>} : vector<8x32xf32>, vector<32x128xf32>, vector<8x128xf32> -> vector<8x128xf32>
    %686 = arith.addf %683, %685 : vector<8x128xf32>
    %c0_305 = arith.constant 0 : index
    %c0_306 = arith.constant 0 : index
    %687 = vector.load %arg9[%c0_305, %c0_306] : memref<1x128xf32, #tpu.memory_space<vmem>>, vector<1x128xf32>
    %688 = vector.broadcast %687 : vector<1x128xf32> to vector<8x128xf32>
    %689 = arith.addf %686, %688 : vector<8x128xf32>
    %690 = vector.extract_strided_slice %689 {offsets = [0, 0], sizes = [8, 32], strides = [1, 1]} : vector<8x128xf32> to vector<8x32xf32>
    %691 = arith.negf %690 : vector<8x32xf32>
    %692 = math.exp %691 : vector<8x32xf32>
    %cst_307 = arith.constant 1.000000e+00 : f32
    %693 = vector.broadcast %cst_307 : f32 to vector<8x32xf32>
    %694 = arith.addf %693, %692 : vector<8x32xf32>
    %695 = arith.divf %693, %694 : vector<8x32xf32>
    %696 = vector.extract_strided_slice %689 {offsets = [0, 32], sizes = [8, 32], strides = [1, 1]} : vector<8x128xf32> to vector<8x32xf32>
    %697 = arith.negf %696 : vector<8x32xf32>
    %698 = math.exp %697 : vector<8x32xf32>
    %cst_308 = arith.constant 1.000000e+00 : f32
    %699 = vector.broadcast %cst_308 : f32 to vector<8x32xf32>
    %700 = arith.addf %699, %698 : vector<8x32xf32>
    %701 = arith.divf %699, %700 : vector<8x32xf32>
    %702 = vector.extract_strided_slice %689 {offsets = [0, 64], sizes = [8, 32], strides = [1, 1]} : vector<8x128xf32> to vector<8x32xf32>
    %703 = math.tanh %702 : vector<8x32xf32>
    %704 = vector.extract_strided_slice %689 {offsets = [0, 96], sizes = [8, 32], strides = [1, 1]} : vector<8x128xf32> to vector<8x32xf32>
    %705 = arith.negf %704 : vector<8x32xf32>
    %706 = math.exp %705 : vector<8x32xf32>
    %cst_309 = arith.constant 1.000000e+00 : f32
    %707 = vector.broadcast %cst_309 : f32 to vector<8x32xf32>
    %708 = arith.addf %707, %706 : vector<8x32xf32>
    %709 = arith.divf %707, %708 : vector<8x32xf32>
    %710 = arith.mulf %701, %624 : vector<8x32xf32>
    %711 = arith.mulf %695, %703 : vector<8x32xf32>
    %712 = arith.addf %710, %711 : vector<8x32xf32>
    %713 = math.tanh %712 : vector<8x32xf32>
    %714 = arith.mulf %709, %713 : vector<8x32xf32>
    %c0_310 = arith.constant 0 : index
    %c0_311 = arith.constant 0 : index
    %715 = vector.load %arg14[%c0_310, %c0_311] : memref<32x128xf32, #tpu.memory_space<vmem>>, vector<32x128xf32>
    %cst_312 = arith.constant dense<0.000000e+00> : vector<8x128xf32>
    %716 = tpu.matmul %714, %715, %cst_312 {dimension_numbers = #tpu.dot_dimension_numbers<[1], [0], [0], [1], [0, 0, 1, 1], [], []>} : vector<8x32xf32>, vector<32x128xf32>, vector<8x128xf32> -> vector<8x128xf32>
    %c0_313 = arith.constant 0 : index
    %c0_314 = arith.constant 0 : index
    %717 = vector.load %arg15[%c0_313, %c0_314] : memref<32x128xf32, #tpu.memory_space<vmem>>, vector<32x128xf32>
    %cst_315 = arith.constant dense<0.000000e+00> : vector<8x128xf32>
    %718 = tpu.matmul %678, %717, %cst_315 {dimension_numbers = #tpu.dot_dimension_numbers<[1], [0], [0], [1], [0, 0, 1, 1], [], []>} : vector<8x32xf32>, vector<32x128xf32>, vector<8x128xf32> -> vector<8x128xf32>
    %719 = arith.addf %716, %718 : vector<8x128xf32>
    %c0_316 = arith.constant 0 : index
    %c0_317 = arith.constant 0 : index
    %720 = vector.load %arg16[%c0_316, %c0_317] : memref<1x128xf32, #tpu.memory_space<vmem>>, vector<1x128xf32>
    %721 = vector.broadcast %720 : vector<1x128xf32> to vector<8x128xf32>
    %722 = arith.addf %719, %721 : vector<8x128xf32>
    %723 = arith.index_cast %c4_i32_282 : i32 to index
    %c0_318 = arith.constant 0 : index
    %c0_319 = arith.constant 0 : index
    %724 = vector.load %arg17[%723, %c0_318, %c0_319] : memref<8x8x128xf32, #tpu.memory_space<vmem>>, vector<1x8x128xf32>
    %725 = vector.shape_cast %724 : vector<1x8x128xf32> to vector<8x128xf32>
    %726 = vector.shape_cast %722 : vector<8x128xf32> to vector<1x8x128xf32>
    tpu.vector_store %arg17[%723, %c0_318, %c0_319], %726 {strides = array<i32>} : memref<8x8x128xf32, #tpu.memory_space<vmem>>, vector<1x8x128xf32>,
    %727 = arith.index_cast %c4_i32_282 : i32 to index
    %728 = memref.load %arg2[%727] : memref<8xi32, #tpu.memory_space<smem>>
    %c0_i32_320 = arith.constant 0 : i32
    %729 = arith.cmpi sgt, %728, %c0_i32_320 : i32
    %730 = arith.extui %729 : i1 to i32
    %731 = arith.sitofp %730 : i32 to f32
    %c1_i32_321 = arith.constant 1 : i32
    %732 = arith.addi %c4_i32_282, %c1_i32_321 : i32
    %c7_i32_322 = arith.constant 7 : i32
    %733 = arith.minsi %732, %c7_i32_322 : i32
    %734 = arith.index_cast %733 : i32 to index
    %c0_323 = arith.constant 0 : index
    %c0_324 = arith.constant 0 : index
    %735 = vector.load %arg1[%734, %c0_323, %c0_324] : memref<8x8x128xf32, #tpu.memory_space<vmem>>, vector<1x8x128xf32>
    %736 = vector.shape_cast %735 : vector<1x8x128xf32> to vector<8x128xf32>
    %737 = vector.broadcast %731 : f32 to vector<8x128xf32>
    %738 = arith.mulf %737, %736 : vector<8x128xf32>
    %cst_325 = arith.constant 1.000000e+00 : f32
    %739 = arith.subf %cst_325, %731 : f32
    %740 = vector.broadcast %739 : f32 to vector<8x128xf32>
    %741 = arith.mulf %740, %722 : vector<8x128xf32>
    %742 = arith.addf %738, %741 : vector<8x128xf32>
    %c5_i32_326 = arith.constant 5 : i32
    %c0_327 = arith.constant 0 : index
    %c0_328 = arith.constant 0 : index
    %743 = vector.load %arg10[%c0_327, %c0_328] : memref<32x32xf32, #tpu.memory_space<vmem>>, vector<32x32xf32>
    %cst_329 = arith.constant dense<0.000000e+00> : vector<8x32xf32>
    %744 = tpu.matmul %714, %743, %cst_329 {dimension_numbers = #tpu.dot_dimension_numbers<[1], [0], [0], [1], [0, 0, 1, 1], [], []>} : vector<8x32xf32>, vector<32x32xf32>, vector<8x32xf32> -> vector<8x32xf32>
    %c0_330 = arith.constant 0 : index
    %c0_331 = arith.constant 0 : index
    %c0_332 = arith.constant 0 : index
    %745 = vector.load %arg20[%c0_330, %c0_331, %c0_332] : memref<8x8x32xf32, #tpu.memory_space<vmem>>, vector<8x8x32xf32>
    %746 = vector.shape_cast %744 : vector<8x32xf32> to vector<1x8x32xf32>
    %747 = vector.broadcast %746 : vector<1x8x32xf32> to vector<8x8x32xf32>
    %748 = arith.addf %745, %747 : vector<8x8x32xf32>
    %749 = math.tanh %748 : vector<8x8x32xf32>
    %750 = vector.broadcast %300 : vector<1x1x32xf32> to vector<8x8x32xf32>
    %751 = arith.mulf %749, %750 : vector<8x8x32xf32>
    %cst_333 = arith.constant dense<0.000000e+00> : vector<8x8xf32>
    %752 = vector.multi_reduction <add>, %751, %cst_333 [2] : vector<8x8x32xf32> to vector<8x8xf32>
    %753 = vector.shape_cast %752 : vector<8x8xf32> to vector<8x8x1xf32>
    %cst_334 = arith.constant dense<0xFF800000> : vector<8x1xf32>
    %754 = vector.multi_reduction <maximumf>, %753, %cst_334 [0] : vector<8x8x1xf32> to vector<8x1xf32>
    %755 = vector.shape_cast %754 : vector<8x1xf32> to vector<1x8x1xf32>
    %756 = vector.broadcast %755 : vector<1x8x1xf32> to vector<8x8x1xf32>
    %757 = arith.subf %753, %756 : vector<8x8x1xf32>
    %758 = math.exp %757 : vector<8x8x1xf32>
    %cst_335 = arith.constant dense<0.000000e+00> : vector<8x1xf32>
    %759 = vector.multi_reduction <add>, %758, %cst_335 [0] : vector<8x8x1xf32> to vector<8x1xf32>
    %760 = vector.shape_cast %759 : vector<8x1xf32> to vector<1x8x1xf32>
    %761 = vector.broadcast %760 : vector<1x8x1xf32> to vector<8x8x1xf32>
    %762 = arith.divf %758, %761 : vector<8x8x1xf32>
    %c0_336 = arith.constant 0 : index
    %c0_337 = arith.constant 0 : index
    %c0_338 = arith.constant 0 : index
    %763 = vector.load %arg19[%c0_336, %c0_337, %c0_338] : memref<8x8x32xf32, #tpu.memory_space<vmem>>, vector<8x8x32xf32>
    %764 = vector.broadcast %762 : vector<8x8x1xf32> to vector<8x8x32xf32>
    %765 = arith.mulf %764, %763 : vector<8x8x32xf32>
    %cst_339 = arith.constant dense<0.000000e+00> : vector<8x32xf32>
    %766 = vector.multi_reduction <add>, %765, %cst_339 [0] : vector<8x8x32xf32> to vector<8x32xf32>
    %c0_340 = arith.constant 0 : index
    %c0_341 = arith.constant 0 : index
    %767 = vector.load %arg6[%c0_340, %c0_341] : memref<128x128xf32, #tpu.memory_space<vmem>>, vector<128x128xf32>
    %cst_342 = arith.constant dense<0.000000e+00> : vector<8x128xf32>
    %768 = tpu.matmul %742, %767, %cst_342 {dimension_numbers = #tpu.dot_dimension_numbers<[1], [0], [0], [1], [0, 0, 1, 1], [], []>} : vector<8x128xf32>, vector<128x128xf32>, vector<8x128xf32> -> vector<8x128xf32>
    %c0_343 = arith.constant 0 : index
    %c0_344 = arith.constant 0 : index
    %769 = vector.load %arg7[%c0_343, %c0_344] : memref<32x128xf32, #tpu.memory_space<vmem>>, vector<32x128xf32>
    %cst_345 = arith.constant dense<0.000000e+00> : vector<8x128xf32>
    %770 = tpu.matmul %766, %769, %cst_345 {dimension_numbers = #tpu.dot_dimension_numbers<[1], [0], [0], [1], [0, 0, 1, 1], [], []>} : vector<8x32xf32>, vector<32x128xf32>, vector<8x128xf32> -> vector<8x128xf32>
    %771 = arith.addf %768, %770 : vector<8x128xf32>
    %c0_346 = arith.constant 0 : index
    %c0_347 = arith.constant 0 : index
    %772 = vector.load %arg8[%c0_346, %c0_347] : memref<32x128xf32, #tpu.memory_space<vmem>>, vector<32x128xf32>
    %cst_348 = arith.constant dense<0.000000e+00> : vector<8x128xf32>
    %773 = tpu.matmul %714, %772, %cst_348 {dimension_numbers = #tpu.dot_dimension_numbers<[1], [0], [0], [1], [0, 0, 1, 1], [], []>} : vector<8x32xf32>, vector<32x128xf32>, vector<8x128xf32> -> vector<8x128xf32>
    %774 = arith.addf %771, %773 : vector<8x128xf32>
    %c0_349 = arith.constant 0 : index
    %c0_350 = arith.constant 0 : index
    %775 = vector.load %arg9[%c0_349, %c0_350] : memref<1x128xf32, #tpu.memory_space<vmem>>, vector<1x128xf32>
    %776 = vector.broadcast %775 : vector<1x128xf32> to vector<8x128xf32>
    %777 = arith.addf %774, %776 : vector<8x128xf32>
    %778 = vector.extract_strided_slice %777 {offsets = [0, 0], sizes = [8, 32], strides = [1, 1]} : vector<8x128xf32> to vector<8x32xf32>
    %779 = arith.negf %778 : vector<8x32xf32>
    %780 = math.exp %779 : vector<8x32xf32>
    %cst_351 = arith.constant 1.000000e+00 : f32
    %781 = vector.broadcast %cst_351 : f32 to vector<8x32xf32>
    %782 = arith.addf %781, %780 : vector<8x32xf32>
    %783 = arith.divf %781, %782 : vector<8x32xf32>
    %784 = vector.extract_strided_slice %777 {offsets = [0, 32], sizes = [8, 32], strides = [1, 1]} : vector<8x128xf32> to vector<8x32xf32>
    %785 = arith.negf %784 : vector<8x32xf32>
    %786 = math.exp %785 : vector<8x32xf32>
    %cst_352 = arith.constant 1.000000e+00 : f32
    %787 = vector.broadcast %cst_352 : f32 to vector<8x32xf32>
    %788 = arith.addf %787, %786 : vector<8x32xf32>
    %789 = arith.divf %787, %788 : vector<8x32xf32>
    %790 = vector.extract_strided_slice %777 {offsets = [0, 64], sizes = [8, 32], strides = [1, 1]} : vector<8x128xf32> to vector<8x32xf32>
    %791 = math.tanh %790 : vector<8x32xf32>
    %792 = vector.extract_strided_slice %777 {offsets = [0, 96], sizes = [8, 32], strides = [1, 1]} : vector<8x128xf32> to vector<8x32xf32>
    %793 = arith.negf %792 : vector<8x32xf32>
    %794 = math.exp %793 : vector<8x32xf32>
    %cst_353 = arith.constant 1.000000e+00 : f32
    %795 = vector.broadcast %cst_353 : f32 to vector<8x32xf32>
    %796 = arith.addf %795, %794 : vector<8x32xf32>
    %797 = arith.divf %795, %796 : vector<8x32xf32>
    %798 = arith.mulf %789, %712 : vector<8x32xf32>
    %799 = arith.mulf %783, %791 : vector<8x32xf32>
    %800 = arith.addf %798, %799 : vector<8x32xf32>
    %801 = math.tanh %800 : vector<8x32xf32>
    %802 = arith.mulf %797, %801 : vector<8x32xf32>
    %c0_354 = arith.constant 0 : index
    %c0_355 = arith.constant 0 : index
    %803 = vector.load %arg14[%c0_354, %c0_355] : memref<32x128xf32, #tpu.memory_space<vmem>>, vector<32x128xf32>
    %cst_356 = arith.constant dense<0.000000e+00> : vector<8x128xf32>
    %804 = tpu.matmul %802, %803, %cst_356 {dimension_numbers = #tpu.dot_dimension_numbers<[1], [0], [0], [1], [0, 0, 1, 1], [], []>} : vector<8x32xf32>, vector<32x128xf32>, vector<8x128xf32> -> vector<8x128xf32>
    %c0_357 = arith.constant 0 : index
    %c0_358 = arith.constant 0 : index
    %805 = vector.load %arg15[%c0_357, %c0_358] : memref<32x128xf32, #tpu.memory_space<vmem>>, vector<32x128xf32>
    %cst_359 = arith.constant dense<0.000000e+00> : vector<8x128xf32>
    %806 = tpu.matmul %766, %805, %cst_359 {dimension_numbers = #tpu.dot_dimension_numbers<[1], [0], [0], [1], [0, 0, 1, 1], [], []>} : vector<8x32xf32>, vector<32x128xf32>, vector<8x128xf32> -> vector<8x128xf32>
    %807 = arith.addf %804, %806 : vector<8x128xf32>
    %c0_360 = arith.constant 0 : index
    %c0_361 = arith.constant 0 : index
    %808 = vector.load %arg16[%c0_360, %c0_361] : memref<1x128xf32, #tpu.memory_space<vmem>>, vector<1x128xf32>
    %809 = vector.broadcast %808 : vector<1x128xf32> to vector<8x128xf32>
    %810 = arith.addf %807, %809 : vector<8x128xf32>
    %811 = arith.index_cast %c5_i32_326 : i32 to index
    %c0_362 = arith.constant 0 : index
    %c0_363 = arith.constant 0 : index
    %812 = vector.load %arg17[%811, %c0_362, %c0_363] : memref<8x8x128xf32, #tpu.memory_space<vmem>>, vector<1x8x128xf32>
    %813 = vector.shape_cast %812 : vector<1x8x128xf32> to vector<8x128xf32>
    %814 = vector.shape_cast %810 : vector<8x128xf32> to vector<1x8x128xf32>
    tpu.vector_store %arg17[%811, %c0_362, %c0_363], %814 {strides = array<i32>} : memref<8x8x128xf32, #tpu.memory_space<vmem>>, vector<1x8x128xf32>,
    %815 = arith.index_cast %c5_i32_326 : i32 to index
    %816 = memref.load %arg2[%815] : memref<8xi32, #tpu.memory_space<smem>>
    %c0_i32_364 = arith.constant 0 : i32
    %817 = arith.cmpi sgt, %816, %c0_i32_364 : i32
    %818 = arith.extui %817 : i1 to i32
    %819 = arith.sitofp %818 : i32 to f32
    %c1_i32_365 = arith.constant 1 : i32
    %820 = arith.addi %c5_i32_326, %c1_i32_365 : i32
    %c7_i32_366 = arith.constant 7 : i32
    %821 = arith.minsi %820, %c7_i32_366 : i32
    %822 = arith.index_cast %821 : i32 to index
    %c0_367 = arith.constant 0 : index
    %c0_368 = arith.constant 0 : index
    %823 = vector.load %arg1[%822, %c0_367, %c0_368] : memref<8x8x128xf32, #tpu.memory_space<vmem>>, vector<1x8x128xf32>
    %824 = vector.shape_cast %823 : vector<1x8x128xf32> to vector<8x128xf32>
    %825 = vector.broadcast %819 : f32 to vector<8x128xf32>
    %826 = arith.mulf %825, %824 : vector<8x128xf32>
    %cst_369 = arith.constant 1.000000e+00 : f32
    %827 = arith.subf %cst_369, %819 : f32
    %828 = vector.broadcast %827 : f32 to vector<8x128xf32>
    %829 = arith.mulf %828, %810 : vector<8x128xf32>
    %830 = arith.addf %826, %829 : vector<8x128xf32>
    %c6_i32_370 = arith.constant 6 : i32
    %c0_371 = arith.constant 0 : index
    %c0_372 = arith.constant 0 : index
    %831 = vector.load %arg10[%c0_371, %c0_372] : memref<32x32xf32, #tpu.memory_space<vmem>>, vector<32x32xf32>
    %cst_373 = arith.constant dense<0.000000e+00> : vector<8x32xf32>
    %832 = tpu.matmul %802, %831, %cst_373 {dimension_numbers = #tpu.dot_dimension_numbers<[1], [0], [0], [1], [0, 0, 1, 1], [], []>} : vector<8x32xf32>, vector<32x32xf32>, vector<8x32xf32> -> vector<8x32xf32>
    %c0_374 = arith.constant 0 : index
    %c0_375 = arith.constant 0 : index
    %c0_376 = arith.constant 0 : index
    %833 = vector.load %arg20[%c0_374, %c0_375, %c0_376] : memref<8x8x32xf32, #tpu.memory_space<vmem>>, vector<8x8x32xf32>
    %834 = vector.shape_cast %832 : vector<8x32xf32> to vector<1x8x32xf32>
    %835 = vector.broadcast %834 : vector<1x8x32xf32> to vector<8x8x32xf32>
    %836 = arith.addf %833, %835 : vector<8x8x32xf32>
    %837 = math.tanh %836 : vector<8x8x32xf32>
    %838 = vector.broadcast %300 : vector<1x1x32xf32> to vector<8x8x32xf32>
    %839 = arith.mulf %837, %838 : vector<8x8x32xf32>
    %cst_377 = arith.constant dense<0.000000e+00> : vector<8x8xf32>
    %840 = vector.multi_reduction <add>, %839, %cst_377 [2] : vector<8x8x32xf32> to vector<8x8xf32>
    %841 = vector.shape_cast %840 : vector<8x8xf32> to vector<8x8x1xf32>
    %cst_378 = arith.constant dense<0xFF800000> : vector<8x1xf32>
    %842 = vector.multi_reduction <maximumf>, %841, %cst_378 [0] : vector<8x8x1xf32> to vector<8x1xf32>
    %843 = vector.shape_cast %842 : vector<8x1xf32> to vector<1x8x1xf32>
    %844 = vector.broadcast %843 : vector<1x8x1xf32> to vector<8x8x1xf32>
    %845 = arith.subf %841, %844 : vector<8x8x1xf32>
    %846 = math.exp %845 : vector<8x8x1xf32>
    %cst_379 = arith.constant dense<0.000000e+00> : vector<8x1xf32>
    %847 = vector.multi_reduction <add>, %846, %cst_379 [0] : vector<8x8x1xf32> to vector<8x1xf32>
    %848 = vector.shape_cast %847 : vector<8x1xf32> to vector<1x8x1xf32>
    %849 = vector.broadcast %848 : vector<1x8x1xf32> to vector<8x8x1xf32>
    %850 = arith.divf %846, %849 : vector<8x8x1xf32>
    %c0_380 = arith.constant 0 : index
    %c0_381 = arith.constant 0 : index
    %c0_382 = arith.constant 0 : index
    %851 = vector.load %arg19[%c0_380, %c0_381, %c0_382] : memref<8x8x32xf32, #tpu.memory_space<vmem>>, vector<8x8x32xf32>
    %852 = vector.broadcast %850 : vector<8x8x1xf32> to vector<8x8x32xf32>
    %853 = arith.mulf %852, %851 : vector<8x8x32xf32>
    %cst_383 = arith.constant dense<0.000000e+00> : vector<8x32xf32>
    %854 = vector.multi_reduction <add>, %853, %cst_383 [0] : vector<8x8x32xf32> to vector<8x32xf32>
    %c0_384 = arith.constant 0 : index
    %c0_385 = arith.constant 0 : index
    %855 = vector.load %arg6[%c0_384, %c0_385] : memref<128x128xf32, #tpu.memory_space<vmem>>, vector<128x128xf32>
    %cst_386 = arith.constant dense<0.000000e+00> : vector<8x128xf32>
    %856 = tpu.matmul %830, %855, %cst_386 {dimension_numbers = #tpu.dot_dimension_numbers<[1], [0], [0], [1], [0, 0, 1, 1], [], []>} : vector<8x128xf32>, vector<128x128xf32>, vector<8x128xf32> -> vector<8x128xf32>
    %c0_387 = arith.constant 0 : index
    %c0_388 = arith.constant 0 : index
    %857 = vector.load %arg7[%c0_387, %c0_388] : memref<32x128xf32, #tpu.memory_space<vmem>>, vector<32x128xf32>
    %cst_389 = arith.constant dense<0.000000e+00> : vector<8x128xf32>
    %858 = tpu.matmul %854, %857, %cst_389 {dimension_numbers = #tpu.dot_dimension_numbers<[1], [0], [0], [1], [0, 0, 1, 1], [], []>} : vector<8x32xf32>, vector<32x128xf32>, vector<8x128xf32> -> vector<8x128xf32>
    %859 = arith.addf %856, %858 : vector<8x128xf32>
    %c0_390 = arith.constant 0 : index
    %c0_391 = arith.constant 0 : index
    %860 = vector.load %arg8[%c0_390, %c0_391] : memref<32x128xf32, #tpu.memory_space<vmem>>, vector<32x128xf32>
    %cst_392 = arith.constant dense<0.000000e+00> : vector<8x128xf32>
    %861 = tpu.matmul %802, %860, %cst_392 {dimension_numbers = #tpu.dot_dimension_numbers<[1], [0], [0], [1], [0, 0, 1, 1], [], []>} : vector<8x32xf32>, vector<32x128xf32>, vector<8x128xf32> -> vector<8x128xf32>
    %862 = arith.addf %859, %861 : vector<8x128xf32>
    %c0_393 = arith.constant 0 : index
    %c0_394 = arith.constant 0 : index
    %863 = vector.load %arg9[%c0_393, %c0_394] : memref<1x128xf32, #tpu.memory_space<vmem>>, vector<1x128xf32>
    %864 = vector.broadcast %863 : vector<1x128xf32> to vector<8x128xf32>
    %865 = arith.addf %862, %864 : vector<8x128xf32>
    %866 = vector.extract_strided_slice %865 {offsets = [0, 0], sizes = [8, 32], strides = [1, 1]} : vector<8x128xf32> to vector<8x32xf32>
    %867 = arith.negf %866 : vector<8x32xf32>
    %868 = math.exp %867 : vector<8x32xf32>
    %cst_395 = arith.constant 1.000000e+00 : f32
    %869 = vector.broadcast %cst_395 : f32 to vector<8x32xf32>
    %870 = arith.addf %869, %868 : vector<8x32xf32>
    %871 = arith.divf %869, %870 : vector<8x32xf32>
    %872 = vector.extract_strided_slice %865 {offsets = [0, 32], sizes = [8, 32], strides = [1, 1]} : vector<8x128xf32> to vector<8x32xf32>
    %873 = arith.negf %872 : vector<8x32xf32>
    %874 = math.exp %873 : vector<8x32xf32>
    %cst_396 = arith.constant 1.000000e+00 : f32
    %875 = vector.broadcast %cst_396 : f32 to vector<8x32xf32>
    %876 = arith.addf %875, %874 : vector<8x32xf32>
    %877 = arith.divf %875, %876 : vector<8x32xf32>
    %878 = vector.extract_strided_slice %865 {offsets = [0, 64], sizes = [8, 32], strides = [1, 1]} : vector<8x128xf32> to vector<8x32xf32>
    %879 = math.tanh %878 : vector<8x32xf32>
    %880 = vector.extract_strided_slice %865 {offsets = [0, 96], sizes = [8, 32], strides = [1, 1]} : vector<8x128xf32> to vector<8x32xf32>
    %881 = arith.negf %880 : vector<8x32xf32>
    %882 = math.exp %881 : vector<8x32xf32>
    %cst_397 = arith.constant 1.000000e+00 : f32
    %883 = vector.broadcast %cst_397 : f32 to vector<8x32xf32>
    %884 = arith.addf %883, %882 : vector<8x32xf32>
    %885 = arith.divf %883, %884 : vector<8x32xf32>
    %886 = arith.mulf %877, %800 : vector<8x32xf32>
    %887 = arith.mulf %871, %879 : vector<8x32xf32>
    %888 = arith.addf %886, %887 : vector<8x32xf32>
    %889 = math.tanh %888 : vector<8x32xf32>
    %890 = arith.mulf %885, %889 : vector<8x32xf32>
    %c0_398 = arith.constant 0 : index
    %c0_399 = arith.constant 0 : index
    %891 = vector.load %arg14[%c0_398, %c0_399] : memref<32x128xf32, #tpu.memory_space<vmem>>, vector<32x128xf32>
    %cst_400 = arith.constant dense<0.000000e+00> : vector<8x128xf32>
    %892 = tpu.matmul %890, %891, %cst_400 {dimension_numbers = #tpu.dot_dimension_numbers<[1], [0], [0], [1], [0, 0, 1, 1], [], []>} : vector<8x32xf32>, vector<32x128xf32>, vector<8x128xf32> -> vector<8x128xf32>
    %c0_401 = arith.constant 0 : index
    %c0_402 = arith.constant 0 : index
    %893 = vector.load %arg15[%c0_401, %c0_402] : memref<32x128xf32, #tpu.memory_space<vmem>>, vector<32x128xf32>
    %cst_403 = arith.constant dense<0.000000e+00> : vector<8x128xf32>
    %894 = tpu.matmul %854, %893, %cst_403 {dimension_numbers = #tpu.dot_dimension_numbers<[1], [0], [0], [1], [0, 0, 1, 1], [], []>} : vector<8x32xf32>, vector<32x128xf32>, vector<8x128xf32> -> vector<8x128xf32>
    %895 = arith.addf %892, %894 : vector<8x128xf32>
    %c0_404 = arith.constant 0 : index
    %c0_405 = arith.constant 0 : index
    %896 = vector.load %arg16[%c0_404, %c0_405] : memref<1x128xf32, #tpu.memory_space<vmem>>, vector<1x128xf32>
    %897 = vector.broadcast %896 : vector<1x128xf32> to vector<8x128xf32>
    %898 = arith.addf %895, %897 : vector<8x128xf32>
    %899 = arith.index_cast %c6_i32_370 : i32 to index
    %c0_406 = arith.constant 0 : index
    %c0_407 = arith.constant 0 : index
    %900 = vector.load %arg17[%899, %c0_406, %c0_407] : memref<8x8x128xf32, #tpu.memory_space<vmem>>, vector<1x8x128xf32>
    %901 = vector.shape_cast %900 : vector<1x8x128xf32> to vector<8x128xf32>
    %902 = vector.shape_cast %898 : vector<8x128xf32> to vector<1x8x128xf32>
    tpu.vector_store %arg17[%899, %c0_406, %c0_407], %902 {strides = array<i32>} : memref<8x8x128xf32, #tpu.memory_space<vmem>>, vector<1x8x128xf32>,
    %903 = arith.index_cast %c6_i32_370 : i32 to index
    %904 = memref.load %arg2[%903] : memref<8xi32, #tpu.memory_space<smem>>
    %c0_i32_408 = arith.constant 0 : i32
    %905 = arith.cmpi sgt, %904, %c0_i32_408 : i32
    %906 = arith.extui %905 : i1 to i32
    %907 = arith.sitofp %906 : i32 to f32
    %c1_i32_409 = arith.constant 1 : i32
    %908 = arith.addi %c6_i32_370, %c1_i32_409 : i32
    %c7_i32_410 = arith.constant 7 : i32
    %909 = arith.minsi %908, %c7_i32_410 : i32
    %910 = arith.index_cast %909 : i32 to index
    %c0_411 = arith.constant 0 : index
    %c0_412 = arith.constant 0 : index
    %911 = vector.load %arg1[%910, %c0_411, %c0_412] : memref<8x8x128xf32, #tpu.memory_space<vmem>>, vector<1x8x128xf32>
    %912 = vector.shape_cast %911 : vector<1x8x128xf32> to vector<8x128xf32>
    %913 = vector.broadcast %907 : f32 to vector<8x128xf32>
    %914 = arith.mulf %913, %912 : vector<8x128xf32>
    %cst_413 = arith.constant 1.000000e+00 : f32
    %915 = arith.subf %cst_413, %907 : f32
    %916 = vector.broadcast %915 : f32 to vector<8x128xf32>
    %917 = arith.mulf %916, %898 : vector<8x128xf32>
    %918 = arith.addf %914, %917 : vector<8x128xf32>
    %c7_i32_414 = arith.constant 7 : i32
    %c0_415 = arith.constant 0 : index
    %c0_416 = arith.constant 0 : index
    %919 = vector.load %arg10[%c0_415, %c0_416] : memref<32x32xf32, #tpu.memory_space<vmem>>, vector<32x32xf32>
    %cst_417 = arith.constant dense<0.000000e+00> : vector<8x32xf32>
    %920 = tpu.matmul %890, %919, %cst_417 {dimension_numbers = #tpu.dot_dimension_numbers<[1], [0], [0], [1], [0, 0, 1, 1], [], []>} : vector<8x32xf32>, vector<32x32xf32>, vector<8x32xf32> -> vector<8x32xf32>
    %c0_418 = arith.constant 0 : index
    %c0_419 = arith.constant 0 : index
    %c0_420 = arith.constant 0 : index
    %921 = vector.load %arg20[%c0_418, %c0_419, %c0_420] : memref<8x8x32xf32, #tpu.memory_space<vmem>>, vector<8x8x32xf32>
    %922 = vector.shape_cast %920 : vector<8x32xf32> to vector<1x8x32xf32>
    %923 = vector.broadcast %922 : vector<1x8x32xf32> to vector<8x8x32xf32>
    %924 = arith.addf %921, %923 : vector<8x8x32xf32>
    %925 = math.tanh %924 : vector<8x8x32xf32>
    %926 = vector.broadcast %300 : vector<1x1x32xf32> to vector<8x8x32xf32>
    %927 = arith.mulf %925, %926 : vector<8x8x32xf32>
    %cst_421 = arith.constant dense<0.000000e+00> : vector<8x8xf32>
    %928 = vector.multi_reduction <add>, %927, %cst_421 [2] : vector<8x8x32xf32> to vector<8x8xf32>
    %929 = vector.shape_cast %928 : vector<8x8xf32> to vector<8x8x1xf32>
    %cst_422 = arith.constant dense<0xFF800000> : vector<8x1xf32>
    %930 = vector.multi_reduction <maximumf>, %929, %cst_422 [0] : vector<8x8x1xf32> to vector<8x1xf32>
    %931 = vector.shape_cast %930 : vector<8x1xf32> to vector<1x8x1xf32>
    %932 = vector.broadcast %931 : vector<1x8x1xf32> to vector<8x8x1xf32>
    %933 = arith.subf %929, %932 : vector<8x8x1xf32>
    %934 = math.exp %933 : vector<8x8x1xf32>
    %cst_423 = arith.constant dense<0.000000e+00> : vector<8x1xf32>
    %935 = vector.multi_reduction <add>, %934, %cst_423 [0] : vector<8x8x1xf32> to vector<8x1xf32>
    %936 = vector.shape_cast %935 : vector<8x1xf32> to vector<1x8x1xf32>
    %937 = vector.broadcast %936 : vector<1x8x1xf32> to vector<8x8x1xf32>
    %938 = arith.divf %934, %937 : vector<8x8x1xf32>
    %c0_424 = arith.constant 0 : index
    %c0_425 = arith.constant 0 : index
    %c0_426 = arith.constant 0 : index
    %939 = vector.load %arg19[%c0_424, %c0_425, %c0_426] : memref<8x8x32xf32, #tpu.memory_space<vmem>>, vector<8x8x32xf32>
    %940 = vector.broadcast %938 : vector<8x8x1xf32> to vector<8x8x32xf32>
    %941 = arith.mulf %940, %939 : vector<8x8x32xf32>
    %cst_427 = arith.constant dense<0.000000e+00> : vector<8x32xf32>
    %942 = vector.multi_reduction <add>, %941, %cst_427 [0] : vector<8x8x32xf32> to vector<8x32xf32>
    %c0_428 = arith.constant 0 : index
    %c0_429 = arith.constant 0 : index
    %943 = vector.load %arg6[%c0_428, %c0_429] : memref<128x128xf32, #tpu.memory_space<vmem>>, vector<128x128xf32>
    %cst_430 = arith.constant dense<0.000000e+00> : vector<8x128xf32>
    %944 = tpu.matmul %918, %943, %cst_430 {dimension_numbers = #tpu.dot_dimension_numbers<[1], [0], [0], [1], [0, 0, 1, 1], [], []>} : vector<8x128xf32>, vector<128x128xf32>, vector<8x128xf32> -> vector<8x128xf32>
    %c0_431 = arith.constant 0 : index
    %c0_432 = arith.constant 0 : index
    %945 = vector.load %arg7[%c0_431, %c0_432] : memref<32x128xf32, #tpu.memory_space<vmem>>, vector<32x128xf32>
    %cst_433 = arith.constant dense<0.000000e+00> : vector<8x128xf32>
    %946 = tpu.matmul %942, %945, %cst_433 {dimension_numbers = #tpu.dot_dimension_numbers<[1], [0], [0], [1], [0, 0, 1, 1], [], []>} : vector<8x32xf32>, vector<32x128xf32>, vector<8x128xf32> -> vector<8x128xf32>
    %947 = arith.addf %944, %946 : vector<8x128xf32>
    %c0_434 = arith.constant 0 : index
    %c0_435 = arith.constant 0 : index
    %948 = vector.load %arg8[%c0_434, %c0_435] : memref<32x128xf32, #tpu.memory_space<vmem>>, vector<32x128xf32>
    %cst_436 = arith.constant dense<0.000000e+00> : vector<8x128xf32>
    %949 = tpu.matmul %890, %948, %cst_436 {dimension_numbers = #tpu.dot_dimension_numbers<[1], [0], [0], [1], [0, 0, 1, 1], [], []>} : vector<8x32xf32>, vector<32x128xf32>, vector<8x128xf32> -> vector<8x128xf32>
    %950 = arith.addf %947, %949 : vector<8x128xf32>
    %c0_437 = arith.constant 0 : index
    %c0_438 = arith.constant 0 : index
    %951 = vector.load %arg9[%c0_437, %c0_438] : memref<1x128xf32, #tpu.memory_space<vmem>>, vector<1x128xf32>
    %952 = vector.broadcast %951 : vector<1x128xf32> to vector<8x128xf32>
    %953 = arith.addf %950, %952 : vector<8x128xf32>
    %954 = vector.extract_strided_slice %953 {offsets = [0, 0], sizes = [8, 32], strides = [1, 1]} : vector<8x128xf32> to vector<8x32xf32>
    %955 = arith.negf %954 : vector<8x32xf32>
    %956 = math.exp %955 : vector<8x32xf32>
    %cst_439 = arith.constant 1.000000e+00 : f32
    %957 = vector.broadcast %cst_439 : f32 to vector<8x32xf32>
    %958 = arith.addf %957, %956 : vector<8x32xf32>
    %959 = arith.divf %957, %958 : vector<8x32xf32>
    %960 = vector.extract_strided_slice %953 {offsets = [0, 32], sizes = [8, 32], strides = [1, 1]} : vector<8x128xf32> to vector<8x32xf32>
    %961 = arith.negf %960 : vector<8x32xf32>
    %962 = math.exp %961 : vector<8x32xf32>
    %cst_440 = arith.constant 1.000000e+00 : f32
    %963 = vector.broadcast %cst_440 : f32 to vector<8x32xf32>
    %964 = arith.addf %963, %962 : vector<8x32xf32>
    %965 = arith.divf %963, %964 : vector<8x32xf32>
    %966 = vector.extract_strided_slice %953 {offsets = [0, 64], sizes = [8, 32], strides = [1, 1]} : vector<8x128xf32> to vector<8x32xf32>
    %967 = math.tanh %966 : vector<8x32xf32>
    %968 = vector.extract_strided_slice %953 {offsets = [0, 96], sizes = [8, 32], strides = [1, 1]} : vector<8x128xf32> to vector<8x32xf32>
    %969 = arith.negf %968 : vector<8x32xf32>
    %970 = math.exp %969 : vector<8x32xf32>
    %cst_441 = arith.constant 1.000000e+00 : f32
    %971 = vector.broadcast %cst_441 : f32 to vector<8x32xf32>
    %972 = arith.addf %971, %970 : vector<8x32xf32>
    %973 = arith.divf %971, %972 : vector<8x32xf32>
    %974 = arith.mulf %965, %888 : vector<8x32xf32>
    %975 = arith.mulf %959, %967 : vector<8x32xf32>
    %976 = arith.addf %974, %975 : vector<8x32xf32>
    %977 = math.tanh %976 : vector<8x32xf32>
    %978 = arith.mulf %973, %977 : vector<8x32xf32>
    %c0_442 = arith.constant 0 : index
    %c0_443 = arith.constant 0 : index
    %979 = vector.load %arg14[%c0_442, %c0_443] : memref<32x128xf32, #tpu.memory_space<vmem>>, vector<32x128xf32>
    %cst_444 = arith.constant dense<0.000000e+00> : vector<8x128xf32>
    %980 = tpu.matmul %978, %979, %cst_444 {dimension_numbers = #tpu.dot_dimension_numbers<[1], [0], [0], [1], [0, 0, 1, 1], [], []>} : vector<8x32xf32>, vector<32x128xf32>, vector<8x128xf32> -> vector<8x128xf32>
    %c0_445 = arith.constant 0 : index
    %c0_446 = arith.constant 0 : index
    %981 = vector.load %arg15[%c0_445, %c0_446] : memref<32x128xf32, #tpu.memory_space<vmem>>, vector<32x128xf32>
    %cst_447 = arith.constant dense<0.000000e+00> : vector<8x128xf32>
    %982 = tpu.matmul %942, %981, %cst_447 {dimension_numbers = #tpu.dot_dimension_numbers<[1], [0], [0], [1], [0, 0, 1, 1], [], []>} : vector<8x32xf32>, vector<32x128xf32>, vector<8x128xf32> -> vector<8x128xf32>
    %983 = arith.addf %980, %982 : vector<8x128xf32>
    %c0_448 = arith.constant 0 : index
    %c0_449 = arith.constant 0 : index
    %984 = vector.load %arg16[%c0_448, %c0_449] : memref<1x128xf32, #tpu.memory_space<vmem>>, vector<1x128xf32>
    %985 = vector.broadcast %984 : vector<1x128xf32> to vector<8x128xf32>
    %986 = arith.addf %983, %985 : vector<8x128xf32>
    %987 = arith.index_cast %c7_i32_414 : i32 to index
    %c0_450 = arith.constant 0 : index
    %c0_451 = arith.constant 0 : index
    %988 = vector.load %arg17[%987, %c0_450, %c0_451] : memref<8x8x128xf32, #tpu.memory_space<vmem>>, vector<1x8x128xf32>
    %989 = vector.shape_cast %988 : vector<1x8x128xf32> to vector<8x128xf32>
    %990 = vector.shape_cast %986 : vector<8x128xf32> to vector<1x8x128xf32>
    tpu.vector_store %arg17[%987, %c0_450, %c0_451], %990 {strides = array<i32>} : memref<8x8x128xf32, #tpu.memory_space<vmem>>, vector<1x8x128xf32>,
    %991 = arith.index_cast %c7_i32_414 : i32 to index
    %992 = memref.load %arg2[%991] : memref<8xi32, #tpu.memory_space<smem>>
    %c0_i32_452 = arith.constant 0 : i32
    %993 = arith.cmpi sgt, %992, %c0_i32_452 : i32
    %994 = arith.extui %993 : i1 to i32
    %995 = arith.sitofp %994 : i32 to f32
    %c1_i32_453 = arith.constant 1 : i32
    %996 = arith.addi %c7_i32_414, %c1_i32_453 : i32
    %c7_i32_454 = arith.constant 7 : i32
    %997 = arith.minsi %996, %c7_i32_454 : i32
    %998 = arith.index_cast %997 : i32 to index
    %c0_455 = arith.constant 0 : index
    %c0_456 = arith.constant 0 : index
    %999 = vector.load %arg1[%998, %c0_455, %c0_456] : memref<8x8x128xf32, #tpu.memory_space<vmem>>, vector<1x8x128xf32>
    %1000 = vector.shape_cast %999 : vector<1x8x128xf32> to vector<8x128xf32>
    %1001 = vector.broadcast %995 : f32 to vector<8x128xf32>
    %1002 = arith.mulf %1001, %1000 : vector<8x128xf32>
    %cst_457 = arith.constant 1.000000e+00 : f32
    %1003 = arith.subf %cst_457, %995 : f32
    %1004 = vector.broadcast %1003 : f32 to vector<8x128xf32>
    %1005 = arith.mulf %1004, %986 : vector<8x128xf32>
    %1006 = arith.addf %1002, %1005 : vector<8x128xf32>
    %c8_i32_458 = arith.constant 8 : i32
    return
  }
}

</mosaic_0001>

<llo_original>
// kernel: seq2seq_forward.1
$region0: #{seq2seq_forward.1}
  #allocation0 [shape = 'u32[]', space=smem, size = 0x4, offset = 0x4, fixed_abs, tag = 'smem constant byte address 0x4 - core index']
  #allocation1 [shape = 'u32[144,128]{1,0:T(1,128)}', space=vmem, size = 0x12000, scoped, tag = 'internal scratch']
  #allocation2 [shape = 'f32[8,8,128]{2,1,0:T(8,128)}', space=vmem, size = 0x8000, scoped, tag = 'scratch operand']
  #allocation3 [shape = 'f32[8,8,32]{2,1,0:T(8,128)}', space=vmem, size = 0x8000, scoped, tag = 'scratch operand']
  #allocation4 [shape = 'f32[8,8,32]{2,1,0:T(8,128)}', space=vmem, size = 0x8000, scoped, tag = 'scratch operand']
  %s0 = inlined_call_operand.vmem [shape: f32[64,4], index: 0, kind: input, shape index: {}]
  %s1 = inlined_call_operand.vmem [shape: f32[8,8,128], index: 1, kind: input, shape index: {}]
  %s2 = inlined_call_operand.vmem [shape: s32[8], index: 2, kind: input, shape index: {}]
  %s3 = inlined_call_operand.vmem [shape: f32[4,128], index: 3, kind: input, shape index: {}]
  %s4 = inlined_call_operand.vmem [shape: f32[32,128], index: 4, kind: input, shape index: {}]
  %s5 = inlined_call_operand.vmem [shape: f32[1,128], index: 5, kind: input, shape index: {}]
  %s6 = inlined_call_operand.vmem [shape: f32[128,128], index: 6, kind: input, shape index: {}]
  %s7 = inlined_call_operand.vmem [shape: f32[32,128], index: 7, kind: input, shape index: {}]
  %s8 = inlined_call_operand.vmem [shape: f32[32,128], index: 8, kind: input, shape index: {}]
  %s9 = inlined_call_operand.vmem [shape: f32[1,128], index: 9, kind: input, shape index: {}]
  %s10 = inlined_call_operand.vmem [shape: f32[32,32], index: 10, kind: input, shape index: {}]
  %s11 = inlined_call_operand.vmem [shape: f32[32,32], index: 11, kind: input, shape index: {}]
  %s12 = inlined_call_operand.vmem [shape: f32[1,32], index: 12, kind: input, shape index: {}]
  %s13 = inlined_call_operand.vmem [shape: f32[1,32], index: 13, kind: input, shape index: {}]
  %s14 = inlined_call_operand.vmem [shape: f32[32,128], index: 14, kind: input, shape index: {}]
  %s15 = inlined_call_operand.vmem [shape: f32[32,128], index: 15, kind: input, shape index: {}]
  %s16 = inlined_call_operand.vmem [shape: f32[1,128], index: 16, kind: input, shape index: {}]
  %s17 = inlined_call_operand.vmem [shape: f32[8,8,128], index: 17, kind: output, shape index: {}]
  %s18 = sld [smem:[#allocation0]]
  $region82: #{seq2seq_forward.1} parent=0
    _
  %s20 = ssub.s32 1, %s18
  %s21 = scalar_select 0, %s20, %s18
  $region1: #{seq2seq_forward.1} parent=0
    #allocation5 [shape = 'u8[512]{0}', space=smem, size = 0x200, scoped, tag = 'input window, operand 2, single buffered']
    #allocation6 [shape = 's32[1]{0}', space=sflag, size = 0x4, scoped, tag = 'scoped memory for seq2seq_forward.1']
    %22 = vsyncpa [#allocation6], 0
    // Predicated region
    $region2: #{seq2seq_forward.1} parent=1 // pred_check
      _
    $region3: #{seq2seq_forward.1} parent=1 // pred_check_branch
      %24 = sbr.rel (0) target = $region5
    $region4: #{seq2seq_forward.1} parent=1 // pred_region
      _
    $region5: #{seq2seq_forward.1} parent=1 // pred_fallthru
      _
    // Predicated region
    $region6: #{seq2seq_forward.1} parent=1 // pred_check
      _
    $region7: #{seq2seq_forward.1} parent=1 // pred_check_branch
      %26 = sbr.rel (0) target = $region9
    $region8: #{seq2seq_forward.1} parent=1 // pred_region
      _
    $region9: #{seq2seq_forward.1} parent=1 // pred_fallthru
      _
    // Predicated region
    $region10: #{seq2seq_forward.1} parent=1 // pred_check
      _
    $region11: #{seq2seq_forward.1} parent=1 // pred_check_branch
      %28 = sbr.rel (0) target = $region13
    $region12: #{seq2seq_forward.1} parent=1 // pred_region
      %s30 = ssub.s32 16, 16
      %31 = vsyncadd [#allocation6], %s30
      %s33 = sshll.u32 %s2, 4
      %s34 = int_to_ptr.vmem [resolvable:$true] %s33
      %36 = dma.vmem_to_smem %s34, 16, [#allocation5], [#allocation6]
    $region13: #{seq2seq_forward.1} parent=1 // pred_fallthru
      _
    // Predicated region
    $region14: #{seq2seq_forward.1} parent=1 // pred_check
      _
    $region15: #{seq2seq_forward.1} parent=1 // pred_check_branch
      %38 = sbr.rel (0) target = $region17
    $region16: #{seq2seq_forward.1} parent=1 // pred_region
      _
    $region17: #{seq2seq_forward.1} parent=1 // pred_fallthru
      _
    // Predicated region
    $region18: #{seq2seq_forward.1} parent=1 // pred_check
      _
    $region19: #{seq2seq_forward.1} parent=1 // pred_check_branch
      %40 = sbr.rel (0) target = $region21
    $region20: #{seq2seq_forward.1} parent=1 // pred_region
      _
    $region21: #{seq2seq_forward.1} parent=1 // pred_fallthru
      _
    // Predicated region
    $region22: #{seq2seq_forward.1} parent=1 // pred_check
      _
    $region23: #{seq2seq_forward.1} parent=1 // pred_check_branch
      %42 = sbr.rel (0) target = $region25
    $region24: #{seq2seq_forward.1} parent=1 // pred_region
      _
    $region25: #{seq2seq_forward.1} parent=1 // pred_fallthru
      _
    // Predicated region
    $region26: #{seq2seq_forward.1} parent=1 // pred_check
      _
    $region27: #{seq2seq_forward.1} parent=1 // pred_check_branch
      %44 = sbr.rel (0) target = $region29
    $region28: #{seq2seq_forward.1} parent=1 // pred_region
      _
    $region29: #{seq2seq_forward.1} parent=1 // pred_fallthru
      _
    // Predicated region
    $region30: #{seq2seq_forward.1} parent=1 // pred_check
      _
    $region31: #{seq2seq_forward.1} parent=1 // pred_check_branch
      %46 = sbr.rel (0) target = $region33
    $region32: #{seq2seq_forward.1} parent=1 // pred_region
      _
    $region33: #{seq2seq_forward.1} parent=1 // pred_fallthru
      _
    // Predicated region
    $region34: #{seq2seq_forward.1} parent=1 // pred_check
      _
    $region35: #{seq2seq_forward.1} parent=1 // pred_check_branch
      %48 = sbr.rel (0) target = $region37
    $region36: #{seq2seq_forward.1} parent=1 // pred_region
      _
    $region37: #{seq2seq_forward.1} parent=1 // pred_fallthru
      _
    // Predicated region
    $region38: #{seq2seq_forward.1} parent=1 // pred_check
      _
    $region39: #{seq2seq_forward.1} parent=1 // pred_check_branch
      %50 = sbr.rel (0) target = $region41
    $region40: #{seq2seq_forward.1} parent=1 // pred_region
      _
    $region41: #{seq2seq_forward.1} parent=1 // pred_fallthru
      _
    // Predicated region
    $region42: #{seq2seq_forward.1} parent=1 // pred_check
      _
    $region43: #{seq2seq_forward.1} parent=1 // pred_check_branch
      %52 = sbr.rel (0) target = $region45
    $region44: #{seq2seq_forward.1} parent=1 // pred_region
      _
    $region45: #{seq2seq_forward.1} parent=1 // pred_fallthru
      _
    // Predicated region
    $region46: #{seq2seq_forward.1} parent=1 // pred_check
      _
    $region47: #{seq2seq_forward.1} parent=1 // pred_check_branch
      %54 = sbr.rel (0) target = $region49
    $region48: #{seq2seq_forward.1} parent=1 // pred_region
      _
    $region49: #{seq2seq_forward.1} parent=1 // pred_fallthru
      _
    // Predicated region
    $region50: #{seq2seq_forward.1} parent=1 // pred_check
      _
    $region51: #{seq2seq_forward.1} parent=1 // pred_check_branch
      %56 = sbr.rel (0) target = $region53
    $region52: #{seq2seq_forward.1} parent=1 // pred_region
      _
    $region53: #{seq2seq_forward.1} parent=1 // pred_fallthru
      _
    // Predicated region
    $region54: #{seq2seq_forward.1} parent=1 // pred_check
      _
    $region55: #{seq2seq_forward.1} parent=1 // pred_check_branch
      %58 = sbr.rel (0) target = $region57
    $region56: #{seq2seq_forward.1} parent=1 // pred_region
      _
    $region57: #{seq2seq_forward.1} parent=1 // pred_fallthru
      _
    // Predicated region
    $region58: #{seq2seq_forward.1} parent=1 // pred_check
      _
    $region59: #{seq2seq_forward.1} parent=1 // pred_check_branch
      %60 = sbr.rel (0) target = $region61
    $region60: #{seq2seq_forward.1} parent=1 // pred_region
      _
    $region61: #{seq2seq_forward.1} parent=1 // pred_fallthru
      _
    // Predicated region
    $region62: #{seq2seq_forward.1} parent=1 // pred_check
      _
    $region63: #{seq2seq_forward.1} parent=1 // pred_check_branch
      %62 = sbr.rel (0) target = $region65
    $region64: #{seq2seq_forward.1} parent=1 // pred_region
      _
    $region65: #{seq2seq_forward.1} parent=1 // pred_fallthru
      _
    // Predicated region
    $region66: #{seq2seq_forward.1} parent=1 // pred_check
      _
    $region67: #{seq2seq_forward.1} parent=1 // pred_check_branch
      %64 = sbr.rel (0) target = $region69
    $region68: #{seq2seq_forward.1} parent=1 // pred_region
      _
    $region69: #{seq2seq_forward.1} parent=1 // pred_fallthru
      _
    // Predicated region
    $region70: #{seq2seq_forward.1} parent=1 // pred_check
      _
    $region71: #{seq2seq_forward.1} parent=1 // pred_check_branch
      %66 = sbr.rel (0) target = $region73
    $region72: #{seq2seq_forward.1} parent=1 // pred_region
      %67 = dma.done [#allocation6], 16
    $region73: #{seq2seq_forward.1} parent=1 // pred_fallthru
      _
    %68 = sfence
    %v69 = vld [vmem:[%s0] sm:$0xff]
    %v70 = vld [vmem:[%s0 + $0x8] sm:$0xff]
    %v71 = vld [vmem:[%s0 + $0x10] sm:$0xff]
    %v72 = vld [vmem:[%s0 + $0x18] sm:$0xff]
    %v73 = vld [vmem:[%s0 + $0x20] sm:$0xff]
    %v74 = vld [vmem:[%s0 + $0x28] sm:$0xff]
    %v75 = vld [vmem:[%s0 + $0x30] sm:$0xff]
    %v76 = vld [vmem:[%s0 + $0x38] sm:$0xff]
    %v77 = vld [vmem:[%s3] sm:$0xf]
    %v78 = vld [vmem:[%s5] sm:$0x1]
    %v80 = vlaneseq
    %v81 = vshrl.u32 %v80, 7
    %v82 = vsub.s32 0, %v81
    %v83 = vrot.slane %v78, %v82
    %vm85 = vcmask 31744
    %v87 = vsel %vm85, %v69, 0
    %v90 = vsel %vm85, %v70, 0
    %v93 = vsel %vm85, %v71, 0
    %v96 = vsel %vm85, %v72, 0
    %v99 = vsel %vm85, %v73, 0
    %v102 = vsel %vm85, %v74, 0
    %v105 = vsel %vm85, %v75, 0
    %v108 = vsel %vm85, %v76, 0
    %vm110 = vcmask 1043456
    %v112 = vsel %vm110, %v77, 0
    %114 = vmatprep.subr.mxu0 0.0
    %115 = vmatpush1.msra.mxu0 0.0
    %116 = vmatprep.subr.mxu0 0.0
    %117 = vmatpush1.msra.mxu0 0.0
    %118 = vmatprep.subr.mxu0 0.0
    %119 = vmatpush1.msra.mxu0 0.0
    %120 = vmatprep.subr.mxu0 0.0
    %121 = vmatpush1.msra.mxu0 0.0
    %122 = vmatprep.subr.mxu0 0.0
    %123 = vmatpush1.msra.mxu0 0.0
    %124 = vmatprep.subr.mxu0 0.0
    %125 = vmatpush1.msra.mxu0 0.0
    %126 = vmatprep.subr.mxu0 0.0
    %127 = vmatpush1.msra.mxu0 0.0
    %128 = vmatprep.subr.mxu0 0.0
    %129 = vmatpush1.msra.mxu0 0.0
    %130 = vmatprep.subr.mxu0 0.0
    %131 = vmatpush1.msra.mxu0 0.0
    %132 = vmatprep.subr.mxu0 0.0
    %133 = vmatpush1.msra.mxu0 0.0
    %134 = vmatprep.subr.mxu0 0.0
    %135 = vmatpush1.msra.mxu0 0.0
    %136 = vmatprep.subr.mxu0 0.0
    %137 = vmatpush1.msra.mxu0 0.0
    %138 = vmatprep.subr.mxu0 0.0
    %139 = vmatpush1.msra.mxu0 0.0
    %140 = vmatprep.subr.mxu0 0.0
    %141 = vmatpush1.msra.mxu0 0.0
    %142 = vmatprep.subr.mxu0 0.0
    %143 = vmatpush1.msra.mxu0 0.0
    %144 = vmatprep.subr.mxu0 0.0
    %145 = vmatpush1.msra.mxu0 %v112
    %146 = vmatprep.subr.mxu0 0.0
    %147 = vmatpush2.msra.mxu0 0.0
    %148 = vmatprep.subr.mxu0 0.0
    %149 = vmatpush2.msra.mxu0 0.0
    %150 = vmatprep.subr.mxu0 0.0
    %151 = vmatpush2.msra.mxu0 0.0
    %152 = vmatprep.subr.mxu0 0.0
    %153 = vmatpush2.msra.mxu0 0.0
    %154 = vmatprep.subr.mxu0 0.0
    %155 = vmatpush2.msra.mxu0 0.0
    %156 = vmatprep.subr.mxu0 0.0
    %157 = vmatpush2.msra.mxu0 0.0
    %158 = vmatprep.subr.mxu0 0.0
    %159 = vmatpush2.msra.mxu0 0.0
    %160 = vmatprep.subr.mxu0 0.0
    %161 = vmatpush2.msra.mxu0 0.0
    %162 = vmatprep.subr.mxu0 0.0
    %163 = vmatpush2.msra.mxu0 0.0
    %164 = vmatprep.subr.mxu0 0.0
    %165 = vmatpush2.msra.mxu0 0.0
    %166 = vmatprep.subr.mxu0 0.0
    %167 = vmatpush2.msra.mxu0 0.0
    %168 = vmatprep.subr.mxu0 0.0
    %169 = vmatpush2.msra.mxu0 0.0
    %170 = vmatprep.subr.mxu0 0.0
    %171 = vmatpush2.msra.mxu0 0.0
    %172 = vmatprep.subr.mxu0 0.0
    %173 = vmatpush2.msra.mxu0 0.0
    %174 = vmatprep.subr.mxu0 0.0
    %175 = vmatpush2.msra.mxu0 0.0
    %176 = vmatprep.subr.mxu0 0.0
    %177 = vmatpush2.msra.mxu0 0.0
    %178 = vmatprep.mubr.f32.mxu0 0.0
    %179 = vmatmul.mubr.f32.gmra.mxu0 %v87
    %v180 = vpop.f32.mrf.mxu0
    %v181 = vadd.f32 %v83, %v180
    %v182 = vpop.f32.mrf.mxu0
    %183 = vmatprep.mubr.f32.mxu0 0.0
    %184 = vmatmul.mubr.f32.gmra.mxu0 %v90
    %v185 = vpop.f32.mrf.mxu0
    %v186 = vadd.f32 %v83, %v185
    %v187 = vpop.f32.mrf.mxu0
    %188 = vmatprep.mubr.f32.mxu0 0.0
    %189 = vmatmul.mubr.f32.gmra.mxu0 %v93
    %v190 = vpop.f32.mrf.mxu0
    %v191 = vadd.f32 %v83, %v190
    %v192 = vpop.f32.mrf.mxu0
    %193 = vmatprep.mubr.f32.mxu0 0.0
    %194 = vmatmul.mubr.f32.gmra.mxu0 %v96
    %v195 = vpop.f32.mrf.mxu0
    %v196 = vadd.f32 %v83, %v195
    %v197 = vpop.f32.mrf.mxu0
    %198 = vmatprep.mubr.f32.mxu0 0.0
    %199 = vmatmul.mubr.f32.gmra.mxu0 %v99
    %v200 = vpop.f32.mrf.mxu0
    %v201 = vadd.f32 %v83, %v200
    %v202 = vpop.f32.mrf.mxu0
    %203 = vmatprep.mubr.f32.mxu0 0.0
    %204 = vmatmul.mubr.f32.gmra.mxu0 %v102
    %v205 = vpop.f32.mrf.mxu0
    %v206 = vadd.f32 %v83, %v205
    %v207 = vpop.f32.mrf.mxu0
    %208 = vmatprep.mubr.f32.mxu0 0.0
    %209 = vmatmul.mubr.f32.gmra.mxu0 %v105
    %v210 = vpop.f32.mrf.mxu0
    %v211 = vadd.f32 %v83, %v210
    %v212 = vpop.f32.mrf.mxu0
    %213 = vmatprep.mubr.f32.mxu0 0.0
    %214 = vmatmul.mubr.f32.gmra.mxu0 %v108
    %v215 = vpop.f32.mrf.mxu0
    %v216 = vadd.f32 %v83, %v215
    %v217 = vpop.f32.mrf.mxu0
    %218 = vdwg.mxu0
    %219 = vst [vmem:[#allocation2] sm:$0xff] %v181
    %220 = vst [vmem:[#allocation2 + $0x8] sm:$0xff] %v186
    %221 = vst [vmem:[#allocation2 + $0x10] sm:$0xff] %v191
    %222 = vst [vmem:[#allocation2 + $0x18] sm:$0xff] %v196
    %223 = vst [vmem:[#allocation2 + $0x20] sm:$0xff] %v201
    %224 = vst [vmem:[#allocation2 + $0x28] sm:$0xff] %v206
    %225 = vst [vmem:[#allocation2 + $0x30] sm:$0xff] %v211
    %226 = vst [vmem:[#allocation2 + $0x38] sm:$0xff] %v216
    %v227 = vld [vmem:[#allocation2] sm:$0xff]
    %v228 = vld [vmem:[%s4] sm:$0xff]
    %v229 = vld [vmem:[%s4 + $0x8] sm:$0xff]
    %v230 = vld [vmem:[%s4 + $0x10] sm:$0xff]
    %v231 = vld [vmem:[%s4 + $0x18] sm:$0xff]
    %vm232 = vcmask 261120
    %v234 = vsel %vm232, 0.0, 0
    %236 = vmatprep.subr.mxu0 0.0
    %237 = vmatpush1.msra.mxu0 0.0
    %238 = vmatprep.subr.mxu0 0.0
    %239 = vmatpush1.msra.mxu0 0.0
    %240 = vmatprep.subr.mxu0 0.0
    %241 = vmatpush1.msra.mxu0 0.0
    %242 = vmatprep.subr.mxu0 0.0
    %243 = vmatpush1.msra.mxu0 0.0
    %244 = vmatprep.subr.mxu0 0.0
    %245 = vmatpush1.msra.mxu0 0.0
    %246 = vmatprep.subr.mxu0 0.0
    %247 = vmatpush1.msra.mxu0 0.0
    %248 = vmatprep.subr.mxu0 0.0
    %249 = vmatpush1.msra.mxu0 0.0
    %250 = vmatprep.subr.mxu0 0.0
    %251 = vmatpush1.msra.mxu0 0.0
    %252 = vmatprep.subr.mxu0 0.0
    %253 = vmatpush1.msra.mxu0 0.0
    %254 = vmatprep.subr.mxu0 0.0
    %255 = vmatpush1.msra.mxu0 0.0
    %256 = vmatprep.subr.mxu0 0.0
    %257 = vmatpush1.msra.mxu0 0.0
    %258 = vmatprep.subr.mxu0 0.0
    %259 = vmatpush1.msra.mxu0 0.0
    %260 = vmatprep.subr.mxu0 0.0
    %261 = vmatpush1.msra.mxu0 %v231
    %262 = vmatprep.subr.mxu0 0.0
    %263 = vmatpush1.msra.mxu0 %v230
    %264 = vmatprep.subr.mxu0 0.0
    %265 = vmatpush1.msra.mxu0 %v229
    %266 = vmatprep.subr.mxu0 0.0
    %267 = vmatpush1.msra.mxu0 %v228
    %268 = vmatprep.subr.mxu0 0.0
    %269 = vmatpush2.msra.mxu0 0.0
    %270 = vmatprep.subr.mxu0 0.0
    %271 = vmatpush2.msra.mxu0 0.0
    %272 = vmatprep.subr.mxu0 0.0
    %273 = vmatpush2.msra.mxu0 0.0
    %274 = vmatprep.subr.mxu0 0.0
    %275 = vmatpush2.msra.mxu0 0.0
    %276 = vmatprep.subr.mxu0 0.0
    %277 = vmatpush2.msra.mxu0 0.0
    %278 = vmatprep.subr.mxu0 0.0
    %279 = vmatpush2.msra.mxu0 0.0
    %280 = vmatprep.subr.mxu0 0.0
    %281 = vmatpush2.msra.mxu0 0.0
    %282 = vmatprep.subr.mxu0 0.0
    %283 = vmatpush2.msra.mxu0 0.0
    %284 = vmatprep.subr.mxu0 0.0
    %285 = vmatpush2.msra.mxu0 0.0
    %286 = vmatprep.subr.mxu0 0.0
    %287 = vmatpush2.msra.mxu0 0.0
    %288 = vmatprep.subr.mxu0 0.0
    %289 = vmatpush2.msra.mxu0 0.0
    %290 = vmatprep.subr.mxu0 0.0
    %291 = vmatpush2.msra.mxu0 0.0
    %292 = vmatprep.subr.mxu0 0.0
    %293 = vmatpush2.msra.mxu0 0.0
    %294 = vmatprep.subr.mxu0 0.0
    %295 = vmatpush2.msra.mxu0 0.0
    %296 = vmatprep.subr.mxu0 0.0
    %297 = vmatpush2.msra.mxu0 0.0
    %298 = vmatprep.subr.mxu0 0.0
    %299 = vmatpush2.msra.mxu0 0.0
    %300 = vmatprep.mubr.f32.mxu0 0.0
    %301 = vmatmul.mubr.f32.gmra.mxu0 %v234
    %v302 = vpop.f32.mrf.mxu0
    %v303 = vadd.f32 0.0, %v302
    %v304 = vpop.f32.mrf.mxu0
    %305 = vdwg.mxu0
    %v306 = vadd.f32 %v227, %v303
    %v307 = vxor.u32 %v306, 2147483648
    %v308 = vmul.f32 %v307, 1.442695
    %v309 = vpow.pop %v308
    %v310 = vadd.f32 %v309, 1.0
    %v311 = vrcp.pop %v310
    %v312 = vmul.f32 1.0, %v311
    %v313 = vtanh.pop %v306
    %v314 = vmul.f32 %v312, 0.0
    %316 = vrot.lane.b32.xlu0 %v313, 64
    %v317 = vpop.permute.xlu0 %316
    %v319 = vmul.f32 %v312, %v317
    %321 = vrot.lane.b32.xlu0 %v319, 32
    %v322 = vpop.permute.xlu0 %321
    %v324 = vadd.f32 %v314, %v322
    %v325 = vtanh.pop %v324
    %327 = vrot.lane.b32.xlu0 %v325, 64
    %v328 = vpop.permute.xlu0 %327
    %v330 = vmul.f32 %v312, %v328
    %332 = vrot.lane.b32.xlu0 %v330, 32
    %v333 = vpop.permute.xlu0 %332
    %335 = vst.msk [vmem:[#allocation3] sm:$0xff] %vm232, %v333
    %s336 = scalar_lea.vmem [#allocation2], 8
    %v337 = vld [vmem:[%s336] sm:$0xff]
    %v338 = vld [vmem:[%s4] sm:$0xff]
    %v339 = vld [vmem:[%s4 + $0x8] sm:$0xff]
    %v340 = vld [vmem:[%s4 + $0x10] sm:$0xff]
    %v341 = vld [vmem:[%s4 + $0x18] sm:$0xff]
    %v342 = vsel %vm232, %v333, 0
    %344 = vmatprep.subr.mxu0 0.0
    %345 = vmatpush1.msra.mxu0 0.0
    %346 = vmatprep.subr.mxu0 0.0
    %347 = vmatpush1.msra.mxu0 0.0
    %348 = vmatprep.subr.mxu0 0.0
    %349 = vmatpush1.msra.mxu0 0.0
    %350 = vmatprep.subr.mxu0 0.0
    %351 = vmatpush1.msra.mxu0 0.0
    %352 = vmatprep.subr.mxu0 0.0
    %353 = vmatpush1.msra.mxu0 0.0
    %354 = vmatprep.subr.mxu0 0.0
    %355 = vmatpush1.msra.mxu0 0.0
    %356 = vmatprep.subr.mxu0 0.0
    %357 = vmatpush1.msra.mxu0 0.0
    %358 = vmatprep.subr.mxu0 0.0
    %359 = vmatpush1.msra.mxu0 0.0
    %360 = vmatprep.subr.mxu0 0.0
    %361 = vmatpush1.msra.mxu0 0.0
    %362 = vmatprep.subr.mxu0 0.0
    %363 = vmatpush1.msra.mxu0 0.0
    %364 = vmatprep.subr.mxu0 0.0
    %365 = vmatpush1.msra.mxu0 0.0
    %366 = vmatprep.subr.mxu0 0.0
    %367 = vmatpush1.msra.mxu0 0.0
    %368 = vmatprep.subr.mxu0 0.0
    %369 = vmatpush1.msra.mxu0 %v341
    %370 = vmatprep.subr.mxu0 0.0
    %371 = vmatpush1.msra.mxu0 %v340
    %372 = vmatprep.subr.mxu0 0.0
    %373 = vmatpush1.msra.mxu0 %v339
    %374 = vmatprep.subr.mxu0 0.0
    %375 = vmatpush1.msra.mxu0 %v338
    %376 = vmatprep.subr.mxu0 0.0
    %377 = vmatpush2.msra.mxu0 0.0
    %378 = vmatprep.subr.mxu0 0.0
    %379 = vmatpush2.msra.mxu0 0.0
    %380 = vmatprep.subr.mxu0 0.0
    %381 = vmatpush2.msra.mxu0 0.0
    %382 = vmatprep.subr.mxu0 0.0
    %383 = vmatpush2.msra.mxu0 0.0
    %384 = vmatprep.subr.mxu0 0.0
    %385 = vmatpush2.msra.mxu0 0.0
    %386 = vmatprep.subr.mxu0 0.0
    %387 = vmatpush2.msra.mxu0 0.0
    %388 = vmatprep.subr.mxu0 0.0
    %389 = vmatpush2.msra.mxu0 0.0
    %390 = vmatprep.subr.mxu0 0.0
    %391 = vmatpush2.msra.mxu0 0.0
    %392 = vmatprep.subr.mxu0 0.0
    %393 = vmatpush2.msra.mxu0 0.0
    %394 = vmatprep.subr.mxu0 0.0
    %395 = vmatpush2.msra.mxu0 0.0
    %396 = vmatprep.subr.mxu0 0.0
    %397 = vmatpush2.msra.mxu0 0.0
    %398 = vmatprep.subr.mxu0 0.0
    %399 = vmatpush2.msra.mxu0 0.0
    %400 = vmatprep.subr.mxu0 0.0
    %401 = vmatpush2.msra.mxu0 0.0
    %402 = vmatprep.subr.mxu0 0.0
    %403 = vmatpush2.msra.mxu0 0.0
    %404 = vmatprep.subr.mxu0 0.0
    %405 = vmatpush2.msra.mxu0 0.0
    %406 = vmatprep.subr.mxu0 0.0
    %407 = vmatpush2.msra.mxu0 0.0
    %408 = vmatprep.mubr.f32.mxu0 0.0
    %409 = vmatmul.mubr.f32.gmra.mxu0 %v342
    %v410 = vpop.f32.mrf.mxu0
    %v411 = vadd.f32 0.0, %v410
    %v412 = vpop.f32.mrf.mxu0
    %413 = vdwg.mxu0
    %v414 = vadd.f32 %v337, %v411
    %v415 = vxor.u32 %v414, 2147483648
    %v416 = vmul.f32 %v415, 1.442695
    %v417 = vpow.pop %v416
    %v418 = vadd.f32 %v417, 1.0
    %v419 = vrcp.pop %v418
    %v420 = vmul.f32 1.0, %v419
    %v421 = vtanh.pop %v414
    %v422 = vmul.f32 %v420, %v324
    %424 = vrot.lane.b32.xlu0 %v421, 64
    %v425 = vpop.permute.xlu0 %424
    %v427 = vmul.f32 %v420, %v425
    %429 = vrot.lane.b32.xlu0 %v427, 32
    %v430 = vpop.permute.xlu0 %429
    %v432 = vadd.f32 %v422, %v430
    %v433 = vtanh.pop %v432
    %435 = vrot.lane.b32.xlu0 %v433, 64
    %v436 = vpop.permute.xlu0 %435
    %v438 = vmul.f32 %v420, %v436
    %440 = vrot.lane.b32.xlu0 %v438, 32
    %v441 = vpop.permute.xlu0 %440
    %s443 = scalar_lea.vmem [#allocation3], 8
    %444 = vst.msk [vmem:[%s443] sm:$0xff] %vm232, %v441
    %s445 = scalar_lea.vmem [#allocation2], 16
    %v446 = vld [vmem:[%s445] sm:$0xff]
    %v447 = vld [vmem:[%s4] sm:$0xff]
    %v448 = vld [vmem:[%s4 + $0x8] sm:$0xff]
    %v449 = vld [vmem:[%s4 + $0x10] sm:$0xff]
    %v450 = vld [vmem:[%s4 + $0x18] sm:$0xff]
    %v451 = vsel %vm232, %v441, 0
    %453 = vmatprep.subr.mxu0 0.0
    %454 = vmatpush1.msra.mxu0 0.0
    %455 = vmatprep.subr.mxu0 0.0
    %456 = vmatpush1.msra.mxu0 0.0
    %457 = vmatprep.subr.mxu0 0.0
    %458 = vmatpush1.msra.mxu0 0.0
    %459 = vmatprep.subr.mxu0 0.0
    %460 = vmatpush1.msra.mxu0 0.0
    %461 = vmatprep.subr.mxu0 0.0
    %462 = vmatpush1.msra.mxu0 0.0
    %463 = vmatprep.subr.mxu0 0.0
    %464 = vmatpush1.msra.mxu0 0.0
    %465 = vmatprep.subr.mxu0 0.0
    %466 = vmatpush1.msra.mxu0 0.0
    %467 = vmatprep.subr.mxu0 0.0
    %468 = vmatpush1.msra.mxu0 0.0
    %469 = vmatprep.subr.mxu0 0.0
    %470 = vmatpush1.msra.mxu0 0.0
    %471 = vmatprep.subr.mxu0 0.0
    %472 = vmatpush1.msra.mxu0 0.0
    %473 = vmatprep.subr.mxu0 0.0
    %474 = vmatpush1.msra.mxu0 0.0
    %475 = vmatprep.subr.mxu0 0.0
    %476 = vmatpush1.msra.mxu0 0.0
    %477 = vmatprep.subr.mxu0 0.0
    %478 = vmatpush1.msra.mxu0 %v450
    %479 = vmatprep.subr.mxu0 0.0
    %480 = vmatpush1.msra.mxu0 %v449
    %481 = vmatprep.subr.mxu0 0.0
    %482 = vmatpush1.msra.mxu0 %v448
    %483 = vmatprep.subr.mxu0 0.0
    %484 = vmatpush1.msra.mxu0 %v447
    %485 = vmatprep.subr.mxu0 0.0
    %486 = vmatpush2.msra.mxu0 0.0
    %487 = vmatprep.subr.mxu0 0.0
    %488 = vmatpush2.msra.mxu0 0.0
    %489 = vmatprep.subr.mxu0 0.0
    %490 = vmatpush2.msra.mxu0 0.0
    %491 = vmatprep.subr.mxu0 0.0
    %492 = vmatpush2.msra.mxu0 0.0
    %493 = vmatprep.subr.mxu0 0.0
    %494 = vmatpush2.msra.mxu0 0.0
    %495 = vmatprep.subr.mxu0 0.0
    %496 = vmatpush2.msra.mxu0 0.0
    %497 = vmatprep.subr.mxu0 0.0
    %498 = vmatpush2.msra.mxu0 0.0
    %499 = vmatprep.subr.mxu0 0.0
    %500 = vmatpush2.msra.mxu0 0.0
    %501 = vmatprep.subr.mxu0 0.0
    %502 = vmatpush2.msra.mxu0 0.0
    %503 = vmatprep.subr.mxu0 0.0
    %504 = vmatpush2.msra.mxu0 0.0
    %505 = vmatprep.subr.mxu0 0.0
    %506 = vmatpush2.msra.mxu0 0.0
    %507 = vmatprep.subr.mxu0 0.0
    %508 = vmatpush2.msra.mxu0 0.0
    %509 = vmatprep.subr.mxu0 0.0
    %510 = vmatpush2.msra.mxu0 0.0
    %511 = vmatprep.subr.mxu0 0.0
    %512 = vmatpush2.msra.mxu0 0.0
    %513 = vmatprep.subr.mxu0 0.0
    %514 = vmatpush2.msra.mxu0 0.0
    %515 = vmatprep.subr.mxu0 0.0
    %516 = vmatpush2.msra.mxu0 0.0
    %517 = vmatprep.mubr.f32.mxu0 0.0
    %518 = vmatmul.mubr.f32.gmra.mxu0 %v451
    %v519 = vpop.f32.mrf.mxu0
    %v520 = vadd.f32 0.0, %v519
    %v521 = vpop.f32.mrf.mxu0
    %522 = vdwg.mxu0
    %v523 = vadd.f32 %v446, %v520
    %v524 = vxor.u32 %v523, 2147483648
    %v525 = vmul.f32 %v524, 1.442695
    %v526 = vpow.pop %v525
    %v527 = vadd.f32 %v526, 1.0
    %v528 = vrcp.pop %v527
    %v529 = vmul.f32 1.0, %v528
    %v530 = vtanh.pop %v523
    %v531 = vmul.f32 %v529, %v432
    %533 = vrot.lane.b32.xlu0 %v530, 64
    %v534 = vpop.permute.xlu0 %533
    %v536 = vmul.f32 %v529, %v534
    %538 = vrot.lane.b32.xlu0 %v536, 32
    %v539 = vpop.permute.xlu0 %538
    %v541 = vadd.f32 %v531, %v539
    %v542 = vtanh.pop %v541
    %544 = vrot.lane.b32.xlu0 %v542, 64
    %v545 = vpop.permute.xlu0 %544
    %v547 = vmul.f32 %v529, %v545
    %549 = vrot.lane.b32.xlu0 %v547, 32
    %v550 = vpop.permute.xlu0 %549
    %s552 = scalar_lea.vmem [#allocation3], 16
    %553 = vst.msk [vmem:[%s552] sm:$0xff] %vm232, %v550
    %s554 = scalar_lea.vmem [#allocation2], 24
    %v555 = vld [vmem:[%s554] sm:$0xff]
    %v556 = vld [vmem:[%s4] sm:$0xff]
    %v557 = vld [vmem:[%s4 + $0x8] sm:$0xff]
    %v558 = vld [vmem:[%s4 + $0x10] sm:$0xff]
    %v559 = vld [vmem:[%s4 + $0x18] sm:$0xff]
    %v560 = vsel %vm232, %v550, 0
    %562 = vmatprep.subr.mxu0 0.0
    %563 = vmatpush1.msra.mxu0 0.0
    %564 = vmatprep.subr.mxu0 0.0
    %565 = vmatpush1.msra.mxu0 0.0
    %566 = vmatprep.subr.mxu0 0.0
    %567 = vmatpush1.msra.mxu0 0.0
    %568 = vmatprep.subr.mxu0 0.0
    %569 = vmatpush1.msra.mxu0 0.0
    %570 = vmatprep.subr.mxu0 0.0
    %571 = vmatpush1.msra.mxu0 0.0
    %572 = vmatprep.subr.mxu0 0.0
    %573 = vmatpush1.msra.mxu0 0.0
    %574 = vmatprep.subr.mxu0 0.0
    %575 = vmatpush1.msra.mxu0 0.0
    %576 = vmatprep.subr.mxu0 0.0
    %577 = vmatpush1.msra.mxu0 0.0
    %578 = vmatprep.subr.mxu0 0.0
    %579 = vmatpush1.msra.mxu0 0.0
    %580 = vmatprep.subr.mxu0 0.0
    %581 = vmatpush1.msra.mxu0 0.0
    %582 = vmatprep.subr.mxu0 0.0
    %583 = vmatpush1.msra.mxu0 0.0
    %584 = vmatprep.subr.mxu0 0.0
    %585 = vmatpush1.msra.mxu0 0.0
    %586 = vmatprep.subr.mxu0 0.0
    %587 = vmatpush1.msra.mxu0 %v559
    %588 = vmatprep.subr.mxu0 0.0
    %589 = vmatpush1.msra.mxu0 %v558
    %590 = vmatprep.subr.mxu0 0.0
    %591 = vmatpush1.msra.mxu0 %v557
    %592 = vmatprep.subr.mxu0 0.0
    %593 = vmatpush1.msra.mxu0 %v556
    %594 = vmatprep.subr.mxu0 0.0
    %595 = vmatpush2.msra.mxu0 0.0
    %596 = vmatprep.subr.mxu0 0.0
    %597 = vmatpush2.msra.mxu0 0.0
    %598 = vmatprep.subr.mxu0 0.0
    %599 = vmatpush2.msra.mxu0 0.0
    %600 = vmatprep.subr.mxu0 0.0
    %601 = vmatpush2.msra.mxu0 0.0
    %602 = vmatprep.subr.mxu0 0.0
    %603 = vmatpush2.msra.mxu0 0.0
    %604 = vmatprep.subr.mxu0 0.0
    %605 = vmatpush2.msra.mxu0 0.0
    %606 = vmatprep.subr.mxu0 0.0
    %607 = vmatpush2.msra.mxu0 0.0
    %608 = vmatprep.subr.mxu0 0.0
    %609 = vmatpush2.msra.mxu0 0.0
    %610 = vmatprep.subr.mxu0 0.0
    %611 = vmatpush2.msra.mxu0 0.0
    %612 = vmatprep.subr.mxu0 0.0
    %613 = vmatpush2.msra.mxu0 0.0
    %614 = vmatprep.subr.mxu0 0.0
    %615 = vmatpush2.msra.mxu0 0.0
    %616 = vmatprep.subr.mxu0 0.0
    %617 = vmatpush2.msra.mxu0 0.0
    %618 = vmatprep.subr.mxu0 0.0
    %619 = vmatpush2.msra.mxu0 0.0
    %620 = vmatprep.subr.mxu0 0.0
    %621 = vmatpush2.msra.mxu0 0.0
    %622 = vmatprep.subr.mxu0 0.0
    %623 = vmatpush2.msra.mxu0 0.0
    %624 = vmatprep.subr.mxu0 0.0
    %625 = vmatpush2.msra.mxu0 0.0
    %626 = vmatprep.mubr.f32.mxu0 0.0
    %627 = vmatmul.mubr.f32.gmra.mxu0 %v560
    %v628 = vpop.f32.mrf.mxu0
    %v629 = vadd.f32 0.0, %v628
    %v630 = vpop.f32.mrf.mxu0
    %631 = vdwg.mxu0
    %v632 = vadd.f32 %v555, %v629
    %v633 = vxor.u32 %v632, 2147483648
    %v634 = vmul.f32 %v633, 1.442695
    %v635 = vpow.pop %v634
    %v636 = vadd.f32 %v635, 1.0
    %v637 = vrcp.pop %v636
    %v638 = vmul.f32 1.0, %v637
    %v639 = vtanh.pop %v632
    %v640 = vmul.f32 %v638, %v541
    %642 = vrot.lane.b32.xlu0 %v639, 64
    %v643 = vpop.permute.xlu0 %642
    %v645 = vmul.f32 %v638, %v643
    %647 = vrot.lane.b32.xlu0 %v645, 32
    %v648 = vpop.permute.xlu0 %647
    %v650 = vadd.f32 %v640, %v648
    %v651 = vtanh.pop %v650
    %653 = vrot.lane.b32.xlu0 %v651, 64
    %v654 = vpop.permute.xlu0 %653
    %v656 = vmul.f32 %v638, %v654
    %658 = vrot.lane.b32.xlu0 %v656, 32
    %v659 = vpop.permute.xlu0 %658
    %s661 = scalar_lea.vmem [#allocation3], 24
    %662 = vst.msk [vmem:[%s661] sm:$0xff] %vm232, %v659
    %s663 = scalar_lea.vmem [#allocation2], 32
    %v664 = vld [vmem:[%s663] sm:$0xff]
    %v665 = vld [vmem:[%s4] sm:$0xff]
    %v666 = vld [vmem:[%s4 + $0x8] sm:$0xff]
    %v667 = vld [vmem:[%s4 + $0x10] sm:$0xff]
    %v668 = vld [vmem:[%s4 + $0x18] sm:$0xff]
    %v669 = vsel %vm232, %v659, 0
    %671 = vmatprep.subr.mxu0 0.0
    %672 = vmatpush1.msra.mxu0 0.0
    %673 = vmatprep.subr.mxu0 0.0
    %674 = vmatpush1.msra.mxu0 0.0
    %675 = vmatprep.subr.mxu0 0.0
    %676 = vmatpush1.msra.mxu0 0.0
    %677 = vmatprep.subr.mxu0 0.0
    %678 = vmatpush1.msra.mxu0 0.0
    %679 = vmatprep.subr.mxu0 0.0
    %680 = vmatpush1.msra.mxu0 0.0
    %681 = vmatprep.subr.mxu0 0.0
    %682 = vmatpush1.msra.mxu0 0.0
    %683 = vmatprep.subr.mxu0 0.0
    %684 = vmatpush1.msra.mxu0 0.0
    %685 = vmatprep.subr.mxu0 0.0
    %686 = vmatpush1.msra.mxu0 0.0
    %687 = vmatprep.subr.mxu0 0.0
    %688 = vmatpush1.msra.mxu0 0.0
    %689 = vmatprep.subr.mxu0 0.0
    %690 = vmatpush1.msra.mxu0 0.0
    %691 = vmatprep.subr.mxu0 0.0
    %692 = vmatpush1.msra.mxu0 0.0
    %693 = vmatprep.subr.mxu0 0.0
    %694 = vmatpush1.msra.mxu0 0.0
    %695 = vmatprep.subr.mxu0 0.0
    %696 = vmatpush1.msra.mxu0 %v668
    %697 = vmatprep.subr.mxu0 0.0
    %698 = vmatpush1.msra.mxu0 %v667
    %699 = vmatprep.subr.mxu0 0.0
    %700 = vmatpush1.msra.mxu0 %v666
    %701 = vmatprep.subr.mxu0 0.0
    %702 = vmatpush1.msra.mxu0 %v665
    %703 = vmatprep.subr.mxu0 0.0
    %704 = vmatpush2.msra.mxu0 0.0
    %705 = vmatprep.subr.mxu0 0.0
    %706 = vmatpush2.msra.mxu0 0.0
    %707 = vmatprep.subr.mxu0 0.0
    %708 = vmatpush2.msra.mxu0 0.0
    %709 = vmatprep.subr.mxu0 0.0
    %710 = vmatpush2.msra.mxu0 0.0
    %711 = vmatprep.subr.mxu0 0.0
    %712 = vmatpush2.msra.mxu0 0.0
    %713 = vmatprep.subr.mxu0 0.0
    %714 = vmatpush2.msra.mxu0 0.0
    %715 = vmatprep.subr.mxu0 0.0
    %716 = vmatpush2.msra.mxu0 0.0
    %717 = vmatprep.subr.mxu0 0.0
    %718 = vmatpush2.msra.mxu0 0.0
    %719 = vmatprep.subr.mxu0 0.0
    %720 = vmatpush2.msra.mxu0 0.0
    %721 = vmatprep.subr.mxu0 0.0
    %722 = vmatpush2.msra.mxu0 0.0
    %723 = vmatprep.subr.mxu0 0.0
    %724 = vmatpush2.msra.mxu0 0.0
    %725 = vmatprep.subr.mxu0 0.0
    %726 = vmatpush2.msra.mxu0 0.0
    %727 = vmatprep.subr.mxu0 0.0
    %728 = vmatpush2.msra.mxu0 0.0
    %729 = vmatprep.subr.mxu0 0.0
    %730 = vmatpush2.msra.mxu0 0.0
    %731 = vmatprep.subr.mxu0 0.0
    %732 = vmatpush2.msra.mxu0 0.0
    %733 = vmatprep.subr.mxu0 0.0
    %734 = vmatpush2.msra.mxu0 0.0
    %735 = vmatprep.mubr.f32.mxu0 0.0
    %736 = vmatmul.mubr.f32.gmra.mxu0 %v669
    %v737 = vpop.f32.mrf.mxu0
    %v738 = vadd.f32 0.0, %v737
    %v739 = vpop.f32.mrf.mxu0
    %740 = vdwg.mxu0
    %v741 = vadd.f32 %v664, %v738
    %v742 = vxor.u32 %v741, 2147483648
    %v743 = vmul.f32 %v742, 1.442695
    %v744 = vpow.pop %v743
    %v745 = vadd.f32 %v744, 1.0
    %v746 = vrcp.pop %v745
    %v747 = vmul.f32 1.0, %v746
    %v748 = vtanh.pop %v741
    %v749 = vmul.f32 %v747, %v650
    %751 = vrot.lane.b32.xlu0 %v748, 64
    %v752 = vpop.permute.xlu0 %751
    %v754 = vmul.f32 %v747, %v752
    %756 = vrot.lane.b32.xlu0 %v754, 32
    %v757 = vpop.permute.xlu0 %756
    %v759 = vadd.f32 %v749, %v757
    %v760 = vtanh.pop %v759
    %762 = vrot.lane.b32.xlu0 %v760, 64
    %v763 = vpop.permute.xlu0 %762
    %v765 = vmul.f32 %v747, %v763
    %767 = vrot.lane.b32.xlu0 %v765, 32
    %v768 = vpop.permute.xlu0 %767
    %s770 = scalar_lea.vmem [#allocation3], 32
    %771 = vst.msk [vmem:[%s770] sm:$0xff] %vm232, %v768
    %s772 = scalar_lea.vmem [#allocation2], 40
    %v773 = vld [vmem:[%s772] sm:$0xff]
    %v774 = vld [vmem:[%s4] sm:$0xff]
    %v775 = vld [vmem:[%s4 + $0x8] sm:$0xff]
    %v776 = vld [vmem:[%s4 + $0x10] sm:$0xff]
    %v777 = vld [vmem:[%s4 + $0x18] sm:$0xff]
    %v778 = vsel %vm232, %v768, 0
    %780 = vmatprep.subr.mxu0 0.0
    %781 = vmatpush1.msra.mxu0 0.0
    %782 = vmatprep.subr.mxu0 0.0
    %783 = vmatpush1.msra.mxu0 0.0
    %784 = vmatprep.subr.mxu0 0.0
    %785 = vmatpush1.msra.mxu0 0.0
    %786 = vmatprep.subr.mxu0 0.0
    %787 = vmatpush1.msra.mxu0 0.0
    %788 = vmatprep.subr.mxu0 0.0
    %789 = vmatpush1.msra.mxu0 0.0
    %790 = vmatprep.subr.mxu0 0.0
    %791 = vmatpush1.msra.mxu0 0.0
    %792 = vmatprep.subr.mxu0 0.0
    %793 = vmatpush1.msra.mxu0 0.0
    %794 = vmatprep.subr.mxu0 0.0
    %795 = vmatpush1.msra.mxu0 0.0
    %796 = vmatprep.subr.mxu0 0.0
    %797 = vmatpush1.msra.mxu0 0.0
    %798 = vmatprep.subr.mxu0 0.0
    %799 = vmatpush1.msra.mxu0 0.0
    %800 = vmatprep.subr.mxu0 0.0
    %801 = vmatpush1.msra.mxu0 0.0
    %802 = vmatprep.subr.mxu0 0.0
    %803 = vmatpush1.msra.mxu0 0.0
    %804 = vmatprep.subr.mxu0 0.0
    %805 = vmatpush1.msra.mxu0 %v777
    %806 = vmatprep.subr.mxu0 0.0
    %807 = vmatpush1.msra.mxu0 %v776
    %808 = vmatprep.subr.mxu0 0.0
    %809 = vmatpush1.msra.mxu0 %v775
    %810 = vmatprep.subr.mxu0 0.0
    %811 = vmatpush1.msra.mxu0 %v774
    %812 = vmatprep.subr.mxu0 0.0
    %813 = vmatpush2.msra.mxu0 0.0
    %814 = vmatprep.subr.mxu0 0.0
    %815 = vmatpush2.msra.mxu0 0.0
    %816 = vmatprep.subr.mxu0 0.0
    %817 = vmatpush2.msra.mxu0 0.0
    %818 = vmatprep.subr.mxu0 0.0
    %819 = vmatpush2.msra.mxu0 0.0
    %820 = vmatprep.subr.mxu0 0.0
    %821 = vmatpush2.msra.mxu0 0.0
    %822 = vmatprep.subr.mxu0 0.0
    %823 = vmatpush2.msra.mxu0 0.0
    %824 = vmatprep.subr.mxu0 0.0
    %825 = vmatpush2.msra.mxu0 0.0
    %826 = vmatprep.subr.mxu0 0.0
    %827 = vmatpush2.msra.mxu0 0.0
    %828 = vmatprep.subr.mxu0 0.0
    %829 = vmatpush2.msra.mxu0 0.0
    %830 = vmatprep.subr.mxu0 0.0
    %831 = vmatpush2.msra.mxu0 0.0
    %832 = vmatprep.subr.mxu0 0.0
    %833 = vmatpush2.msra.mxu0 0.0
    %834 = vmatprep.subr.mxu0 0.0
    %835 = vmatpush2.msra.mxu0 0.0
    %836 = vmatprep.subr.mxu0 0.0
    %837 = vmatpush2.msra.mxu0 0.0
    %838 = vmatprep.subr.mxu0 0.0
    %839 = vmatpush2.msra.mxu0 0.0
    %840 = vmatprep.subr.mxu0 0.0
    %841 = vmatpush2.msra.mxu0 0.0
    %842 = vmatprep.subr.mxu0 0.0
    %843 = vmatpush2.msra.mxu0 0.0
    %844 = vmatprep.mubr.f32.mxu0 0.0
    %845 = vmatmul.mubr.f32.gmra.mxu0 %v778
    %v846 = vpop.f32.mrf.mxu0
    %v847 = vadd.f32 0.0, %v846
    %v848 = vpop.f32.mrf.mxu0
    %849 = vdwg.mxu0
    %v850 = vadd.f32 %v773, %v847
    %v851 = vxor.u32 %v850, 2147483648
    %v852 = vmul.f32 %v851, 1.442695
    %v853 = vpow.pop %v852
    %v854 = vadd.f32 %v853, 1.0
    %v855 = vrcp.pop %v854
    %v856 = vmul.f32 1.0, %v855
    %v857 = vtanh.pop %v850
    %v858 = vmul.f32 %v856, %v759
    %860 = vrot.lane.b32.xlu0 %v857, 64
    %v861 = vpop.permute.xlu0 %860
    %v863 = vmul.f32 %v856, %v861
    %865 = vrot.lane.b32.xlu0 %v863, 32
    %v866 = vpop.permute.xlu0 %865
    %v868 = vadd.f32 %v858, %v866
    %v869 = vtanh.pop %v868
    %871 = vrot.lane.b32.xlu0 %v869, 64
    %v872 = vpop.permute.xlu0 %871
    %v874 = vmul.f32 %v856, %v872
    %876 = vrot.lane.b32.xlu0 %v874, 32
    %v877 = vpop.permute.xlu0 %876
    %s879 = scalar_lea.vmem [#allocation3], 40
    %880 = vst.msk [vmem:[%s879] sm:$0xff] %vm232, %v877
    %s881 = scalar_lea.vmem [#allocation2], 48
    %v882 = vld [vmem:[%s881] sm:$0xff]
    %v883 = vld [vmem:[%s4] sm:$0xff]
    %v884 = vld [vmem:[%s4 + $0x8] sm:$0xff]
    %v885 = vld [vmem:[%s4 + $0x10] sm:$0xff]
    %v886 = vld [vmem:[%s4 + $0x18] sm:$0xff]
    %v887 = vsel %vm232, %v877, 0
    %889 = vmatprep.subr.mxu0 0.0
    %890 = vmatpush1.msra.mxu0 0.0
    %891 = vmatprep.subr.mxu0 0.0
    %892 = vmatpush1.msra.mxu0 0.0
    %893 = vmatprep.subr.mxu0 0.0
    %894 = vmatpush1.msra.mxu0 0.0
    %895 = vmatprep.subr.mxu0 0.0
    %896 = vmatpush1.msra.mxu0 0.0
    %897 = vmatprep.subr.mxu0 0.0
    %898 = vmatpush1.msra.mxu0 0.0
    %899 = vmatprep.subr.mxu0 0.0
    %900 = vmatpush1.msra.mxu0 0.0
    %901 = vmatprep.subr.mxu0 0.0
    %902 = vmatpush1.msra.mxu0 0.0
    %903 = vmatprep.subr.mxu0 0.0
    %904 = vmatpush1.msra.mxu0 0.0
    %905 = vmatprep.subr.mxu0 0.0
    %906 = vmatpush1.msra.mxu0 0.0
    %907 = vmatprep.subr.mxu0 0.0
    %908 = vmatpush1.msra.mxu0 0.0
    %909 = vmatprep.subr.mxu0 0.0
    %910 = vmatpush1.msra.mxu0 0.0
    %911 = vmatprep.subr.mxu0 0.0
    %912 = vmatpush1.msra.mxu0 0.0
    %913 = vmatprep.subr.mxu0 0.0
    %914 = vmatpush1.msra.mxu0 %v886
    %915 = vmatprep.subr.mxu0 0.0
    %916 = vmatpush1.msra.mxu0 %v885
    %917 = vmatprep.subr.mxu0 0.0
    %918 = vmatpush1.msra.mxu0 %v884
    %919 = vmatprep.subr.mxu0 0.0
    %920 = vmatpush1.msra.mxu0 %v883
    %921 = vmatprep.subr.mxu0 0.0
    %922 = vmatpush2.msra.mxu0 0.0
    %923 = vmatprep.subr.mxu0 0.0
    %924 = vmatpush2.msra.mxu0 0.0
    %925 = vmatprep.subr.mxu0 0.0
    %926 = vmatpush2.msra.mxu0 0.0
    %927 = vmatprep.subr.mxu0 0.0
    %928 = vmatpush2.msra.mxu0 0.0
    %929 = vmatprep.subr.mxu0 0.0
    %930 = vmatpush2.msra.mxu0 0.0
    %931 = vmatprep.subr.mxu0 0.0
    %932 = vmatpush2.msra.mxu0 0.0
    %933 = vmatprep.subr.mxu0 0.0
    %934 = vmatpush2.msra.mxu0 0.0
    %935 = vmatprep.subr.mxu0 0.0
    %936 = vmatpush2.msra.mxu0 0.0
    %937 = vmatprep.subr.mxu0 0.0
    %938 = vmatpush2.msra.mxu0 0.0
    %939 = vmatprep.subr.mxu0 0.0
    %940 = vmatpush2.msra.mxu0 0.0
    %941 = vmatprep.subr.mxu0 0.0
    %942 = vmatpush2.msra.mxu0 0.0
    %943 = vmatprep.subr.mxu0 0.0
    %944 = vmatpush2.msra.mxu0 0.0
    %945 = vmatprep.subr.mxu0 0.0
    %946 = vmatpush2.msra.mxu0 0.0
    %947 = vmatprep.subr.mxu0 0.0
    %948 = vmatpush2.msra.mxu0 0.0
    %949 = vmatprep.subr.mxu0 0.0
    %950 = vmatpush2.msra.mxu0 0.0
    %951 = vmatprep.subr.mxu0 0.0
    %952 = vmatpush2.msra.mxu0 0.0
    %953 = vmatprep.mubr.f32.mxu0 0.0
    %954 = vmatmul.mubr.f32.gmra.mxu0 %v887
    %v955 = vpop.f32.mrf.mxu0
    %v956 = vadd.f32 0.0, %v955
    %v957 = vpop.f32.mrf.mxu0
    %958 = vdwg.mxu0
    %v959 = vadd.f32 %v882, %v956
    %v960 = vxor.u32 %v959, 2147483648
    %v961 = vmul.f32 %v960, 1.442695
    %v962 = vpow.pop %v961
    %v963 = vadd.f32 %v962, 1.0
    %v964 = vrcp.pop %v963
    %v965 = vmul.f32 1.0, %v964
    %v966 = vtanh.pop %v959
    %v967 = vmul.f32 %v965, %v868
    %969 = vrot.lane.b32.xlu0 %v966, 64
    %v970 = vpop.permute.xlu0 %969
    %v972 = vmul.f32 %v965, %v970
    %974 = vrot.lane.b32.xlu0 %v972, 32
    %v975 = vpop.permute.xlu0 %974
    %v977 = vadd.f32 %v967, %v975
    %v978 = vtanh.pop %v977
    %980 = vrot.lane.b32.xlu0 %v978, 64
    %v981 = vpop.permute.xlu0 %980
    %v983 = vmul.f32 %v965, %v981
    %985 = vrot.lane.b32.xlu0 %v983, 32
    %v986 = vpop.permute.xlu0 %985
    %s988 = scalar_lea.vmem [#allocation3], 48
    %989 = vst.msk [vmem:[%s988] sm:$0xff] %vm232, %v986
    %s990 = scalar_lea.vmem [#allocation2], 56
    %v991 = vld [vmem:[%s990] sm:$0xff]
    %v992 = vld [vmem:[%s4] sm:$0xff]
    %v993 = vld [vmem:[%s4 + $0x8] sm:$0xff]
    %v994 = vld [vmem:[%s4 + $0x10] sm:$0xff]
    %v995 = vld [vmem:[%s4 + $0x18] sm:$0xff]
    %v996 = vsel %vm232, %v986, 0
    %998 = vmatprep.subr.mxu0 0.0
    %999 = vmatpush1.msra.mxu0 0.0
    %1000 = vmatprep.subr.mxu0 0.0
    %1001 = vmatpush1.msra.mxu0 0.0
    %1002 = vmatprep.subr.mxu0 0.0
    %1003 = vmatpush1.msra.mxu0 0.0
    %1004 = vmatprep.subr.mxu0 0.0
    %1005 = vmatpush1.msra.mxu0 0.0
    %1006 = vmatprep.subr.mxu0 0.0
    %1007 = vmatpush1.msra.mxu0 0.0
    %1008 = vmatprep.subr.mxu0 0.0
    %1009 = vmatpush1.msra.mxu0 0.0
    %1010 = vmatprep.subr.mxu0 0.0
    %1011 = vmatpush1.msra.mxu0 0.0
    %1012 = vmatprep.subr.mxu0 0.0
    %1013 = vmatpush1.msra.mxu0 0.0
    %1014 = vmatprep.subr.mxu0 0.0
    %1015 = vmatpush1.msra.mxu0 0.0
    %1016 = vmatprep.subr.mxu0 0.0
    %1017 = vmatpush1.msra.mxu0 0.0
    %1018 = vmatprep.subr.mxu0 0.0
    %1019 = vmatpush1.msra.mxu0 0.0
    %1020 = vmatprep.subr.mxu0 0.0
    %1021 = vmatpush1.msra.mxu0 0.0
    %1022 = vmatprep.subr.mxu0 0.0
    %1023 = vmatpush1.msra.mxu0 %v995
    %1024 = vmatprep.subr.mxu0 0.0
    %1025 = vmatpush1.msra.mxu0 %v994
    %1026 = vmatprep.subr.mxu0 0.0
    %1027 = vmatpush1.msra.mxu0 %v993
    %1028 = vmatprep.subr.mxu0 0.0
    %1029 = vmatpush1.msra.mxu0 %v992
    %1030 = vmatprep.subr.mxu0 0.0
    %1031 = vmatpush2.msra.mxu0 0.0
    %1032 = vmatprep.subr.mxu0 0.0
    %1033 = vmatpush2.msra.mxu0 0.0
    %1034 = vmatprep.subr.mxu0 0.0
    %1035 = vmatpush2.msra.mxu0 0.0
    %1036 = vmatprep.subr.mxu0 0.0
    %1037 = vmatpush2.msra.mxu0 0.0
    %1038 = vmatprep.subr.mxu0 0.0
    %1039 = vmatpush2.msra.mxu0 0.0
    %1040 = vmatprep.subr.mxu0 0.0
    %1041 = vmatpush2.msra.mxu0 0.0
    %1042 = vmatprep.subr.mxu0 0.0
    %1043 = vmatpush2.msra.mxu0 0.0
    %1044 = vmatprep.subr.mxu0 0.0
    %1045 = vmatpush2.msra.mxu0 0.0
    %1046 = vmatprep.subr.mxu0 0.0
    %1047 = vmatpush2.msra.mxu0 0.0
    %1048 = vmatprep.subr.mxu0 0.0
    %1049 = vmatpush2.msra.mxu0 0.0
    %1050 = vmatprep.subr.mxu0 0.0
    %1051 = vmatpush2.msra.mxu0 0.0
    %1052 = vmatprep.subr.mxu0 0.0
    %1053 = vmatpush2.msra.mxu0 0.0
    %1054 = vmatprep.subr.mxu0 0.0
    %1055 = vmatpush2.msra.mxu0 0.0
    %1056 = vmatprep.subr.mxu0 0.0
    %1057 = vmatpush2.msra.mxu0 0.0
    %1058 = vmatprep.subr.mxu0 0.0
    %1059 = vmatpush2.msra.mxu0 0.0
    %1060 = vmatprep.subr.mxu0 0.0
    %1061 = vmatpush2.msra.mxu0 0.0
    %1062 = vmatprep.mubr.f32.mxu0 0.0
    %1063 = vmatmul.mubr.f32.gmra.mxu0 %v996
    %v1064 = vpop.f32.mrf.mxu0
    %v1065 = vadd.f32 0.0, %v1064
    %v1066 = vpop.f32.mrf.mxu0
    %1067 = vdwg.mxu0
    %v1068 = vadd.f32 %v991, %v1065
    %v1069 = vxor.u32 %v1068, 2147483648
    %v1070 = vmul.f32 %v1069, 1.442695
    %v1071 = vpow.pop %v1070
    %v1072 = vadd.f32 %v1071, 1.0
    %v1073 = vrcp.pop %v1072
    %v1074 = vmul.f32 1.0, %v1073
    %v1075 = vtanh.pop %v1068
    %v1076 = vmul.f32 %v1074, %v977
    %1078 = vrot.lane.b32.xlu0 %v1075, 64
    %v1079 = vpop.permute.xlu0 %1078
    %v1081 = vmul.f32 %v1074, %v1079
    %1083 = vrot.lane.b32.xlu0 %v1081, 32
    %v1084 = vpop.permute.xlu0 %1083
    %v1086 = vadd.f32 %v1076, %v1084
    %v1087 = vtanh.pop %v1086
    %1089 = vrot.lane.b32.xlu0 %v1087, 64
    %v1090 = vpop.permute.xlu0 %1089
    %v1092 = vmul.f32 %v1074, %v1090
    %1094 = vrot.lane.b32.xlu0 %v1092, 32
    %v1095 = vpop.permute.xlu0 %1094
    %s1097 = scalar_lea.vmem [#allocation3], 56
    %1098 = vst.msk [vmem:[%s1097] sm:$0xff] %vm232, %v1095
    %v1099 = vld [vmem:[#allocation3] sm:$0xff]
    %v1100 = vld [vmem:[#allocation3 + $0x8] sm:$0xff]
    %v1101 = vld [vmem:[#allocation3 + $0x10] sm:$0xff]
    %v1102 = vld [vmem:[#allocation3 + $0x18] sm:$0xff]
    %v1103 = vld [vmem:[#allocation3 + $0x20] sm:$0xff]
    %v1104 = vld [vmem:[#allocation3 + $0x28] sm:$0xff]
    %v1105 = vld [vmem:[#allocation3 + $0x30] sm:$0xff]
    %v1106 = vld [vmem:[#allocation3 + $0x38] sm:$0xff]
    %v1107 = vld [vmem:[%s11] sm:$0xff]
    %v1108 = vld [vmem:[%s11 + $0x8] sm:$0xff]
    %v1109 = vld [vmem:[%s11 + $0x10] sm:$0xff]
    %v1110 = vld [vmem:[%s11 + $0x18] sm:$0xff]
    %v1111 = vld [vmem:[%s12] sm:$0x1]
    %v1113 = vlaneseq
    %v1114 = vshrl.u32 %v1113, 7
    %v1115 = vsub.s32 0, %v1114
    %v1116 = vrot.slane %v1111, %v1115
    %v1119 = vsel %vm232, %v1099, 0
    %v1122 = vsel %vm232, %v1100, 0
    %v1125 = vsel %vm232, %v1101, 0
    %v1128 = vsel %vm232, %v1102, 0
    %v1131 = vsel %vm232, %v1103, 0
    %v1134 = vsel %vm232, %v1104, 0
    %v1137 = vsel %vm232, %v1105, 0
    %v1140 = vsel %vm232, %v1106, 0
    %1142 = vmatprep.subr.mxu0 0.0
    %1143 = vmatpush1.msra.mxu0 0.0
    %1144 = vmatprep.subr.mxu0 0.0
    %1145 = vmatpush1.msra.mxu0 0.0
    %1146 = vmatprep.subr.mxu0 0.0
    %1147 = vmatpush1.msra.mxu0 0.0
    %1148 = vmatprep.subr.mxu0 0.0
    %1149 = vmatpush1.msra.mxu0 0.0
    %1150 = vmatprep.subr.mxu0 0.0
    %1151 = vmatpush1.msra.mxu0 0.0
    %1152 = vmatprep.subr.mxu0 0.0
    %1153 = vmatpush1.msra.mxu0 0.0
    %1154 = vmatprep.subr.mxu0 0.0
    %1155 = vmatpush1.msra.mxu0 0.0
    %1156 = vmatprep.subr.mxu0 0.0
    %1157 = vmatpush1.msra.mxu0 0.0
    %1158 = vmatprep.subr.mxu0 0.0
    %1159 = vmatpush1.msra.mxu0 0.0
    %1160 = vmatprep.subr.mxu0 0.0
    %1161 = vmatpush1.msra.mxu0 0.0
    %1162 = vmatprep.subr.mxu0 0.0
    %1163 = vmatpush1.msra.mxu0 0.0
    %1164 = vmatprep.subr.mxu0 0.0
    %1165 = vmatpush1.msra.mxu0 0.0
    %1166 = vmatprep.subr.mxu0 0.0
    %1167 = vmatpush1.msra.mxu0 %v1110
    %1168 = vmatprep.subr.mxu0 0.0
    %1169 = vmatpush1.msra.mxu0 %v1109
    %1170 = vmatprep.subr.mxu0 0.0
    %1171 = vmatpush1.msra.mxu0 %v1108
    %1172 = vmatprep.subr.mxu0 0.0
    %1173 = vmatpush1.msra.mxu0 %v1107
    %1174 = vmatprep.subr.mxu0 0.0
    %1175 = vmatpush2.msra.mxu0 0.0
    %1176 = vmatprep.subr.mxu0 0.0
    %1177 = vmatpush2.msra.mxu0 0.0
    %1178 = vmatprep.subr.mxu0 0.0
    %1179 = vmatpush2.msra.mxu0 0.0
    %1180 = vmatprep.subr.mxu0 0.0
    %1181 = vmatpush2.msra.mxu0 0.0
    %1182 = vmatprep.subr.mxu0 0.0
    %1183 = vmatpush2.msra.mxu0 0.0
    %1184 = vmatprep.subr.mxu0 0.0
    %1185 = vmatpush2.msra.mxu0 0.0
    %1186 = vmatprep.subr.mxu0 0.0
    %1187 = vmatpush2.msra.mxu0 0.0
    %1188 = vmatprep.subr.mxu0 0.0
    %1189 = vmatpush2.msra.mxu0 0.0
    %1190 = vmatprep.subr.mxu0 0.0
    %1191 = vmatpush2.msra.mxu0 0.0
    %1192 = vmatprep.subr.mxu0 0.0
    %1193 = vmatpush2.msra.mxu0 0.0
    %1194 = vmatprep.subr.mxu0 0.0
    %1195 = vmatpush2.msra.mxu0 0.0
    %1196 = vmatprep.subr.mxu0 0.0
    %1197 = vmatpush2.msra.mxu0 0.0
    %1198 = vmatprep.subr.mxu0 0.0
    %1199 = vmatpush2.msra.mxu0 0.0
    %1200 = vmatprep.subr.mxu0 0.0
    %1201 = vmatpush2.msra.mxu0 0.0
    %1202 = vmatprep.subr.mxu0 0.0
    %1203 = vmatpush2.msra.mxu0 0.0
    %1204 = vmatprep.subr.mxu0 0.0
    %1205 = vmatpush2.msra.mxu0 0.0
    %1206 = vmatprep.mubr.f32.mxu0 0.0
    %1207 = vmatmul.mubr.f32.gmra.mxu0 %v1119
    %v1208 = vpop.f32.mrf.mxu0
    %v1209 = vadd.f32 %v1116, %v1208
    %v1210 = vpop.f32.mrf.mxu0
    %1211 = vmatprep.mubr.f32.mxu0 0.0
    %1212 = vmatmul.mubr.f32.gmra.mxu0 %v1122
    %v1213 = vpop.f32.mrf.mxu0
    %v1214 = vadd.f32 %v1116, %v1213
    %v1215 = vpop.f32.mrf.mxu0
    %1216 = vmatprep.mubr.f32.mxu0 0.0
    %1217 = vmatmul.mubr.f32.gmra.mxu0 %v1125
    %v1218 = vpop.f32.mrf.mxu0
    %v1219 = vadd.f32 %v1116, %v1218
    %v1220 = vpop.f32.mrf.mxu0
    %1221 = vmatprep.mubr.f32.mxu0 0.0
    %1222 = vmatmul.mubr.f32.gmra.mxu0 %v1128
    %v1223 = vpop.f32.mrf.mxu0
    %v1224 = vadd.f32 %v1116, %v1223
    %v1225 = vpop.f32.mrf.mxu0
    %1226 = vmatprep.mubr.f32.mxu0 0.0
    %1227 = vmatmul.mubr.f32.gmra.mxu0 %v1131
    %v1228 = vpop.f32.mrf.mxu0
    %v1229 = vadd.f32 %v1116, %v1228
    %v1230 = vpop.f32.mrf.mxu0
    %1231 = vmatprep.mubr.f32.mxu0 0.0
    %1232 = vmatmul.mubr.f32.gmra.mxu0 %v1134
    %v1233 = vpop.f32.mrf.mxu0
    %v1234 = vadd.f32 %v1116, %v1233
    %v1235 = vpop.f32.mrf.mxu0
    %1236 = vmatprep.mubr.f32.mxu0 0.0
    %1237 = vmatmul.mubr.f32.gmra.mxu0 %v1137
    %v1238 = vpop.f32.mrf.mxu0
    %v1239 = vadd.f32 %v1116, %v1238
    %v1240 = vpop.f32.mrf.mxu0
    %1241 = vmatprep.mubr.f32.mxu0 0.0
    %1242 = vmatmul.mubr.f32.gmra.mxu0 %v1140
    %v1243 = vpop.f32.mrf.mxu0
    %v1244 = vadd.f32 %v1116, %v1243
    %v1245 = vpop.f32.mrf.mxu0
    %1246 = vdwg.mxu0
    %1247 = vst.msk [vmem:[#allocation4] sm:$0xff] %vm232, %v1209
    %1248 = vst.msk [vmem:[#allocation4 + $0x8] sm:$0xff] %vm232, %v1214
    %1249 = vst.msk [vmem:[#allocation4 + $0x10] sm:$0xff] %vm232, %v1219
    %1250 = vst.msk [vmem:[#allocation4 + $0x18] sm:$0xff] %vm232, %v1224
    %1251 = vst.msk [vmem:[#allocation4 + $0x20] sm:$0xff] %vm232, %v1229
    %1252 = vst.msk [vmem:[#allocation4 + $0x28] sm:$0xff] %vm232, %v1234
    %1253 = vst.msk [vmem:[#allocation4 + $0x30] sm:$0xff] %vm232, %v1239
    %1254 = vst.msk [vmem:[#allocation4 + $0x38] sm:$0xff] %vm232, %v1244
    %v1255 = vld [vmem:[%s13] sm:$0x1]
    %v1256 = vld [vmem:[%s1] sm:$0xff]
    %v1257 = vld [vmem:[%s10] sm:$0xff]
    %v1258 = vld [vmem:[%s10 + $0x8] sm:$0xff]
    %v1259 = vld [vmem:[%s10 + $0x10] sm:$0xff]
    %v1260 = vld [vmem:[%s10 + $0x18] sm:$0xff]
    %v1261 = vsel %vm232, %v1095, 0
    %1263 = vmatprep.subr.mxu0 0.0
    %1264 = vmatpush1.msra.mxu0 0.0
    %1265 = vmatprep.subr.mxu0 0.0
    %1266 = vmatpush1.msra.mxu0 0.0
    %1267 = vmatprep.subr.mxu0 0.0
    %1268 = vmatpush1.msra.mxu0 0.0
    %1269 = vmatprep.subr.mxu0 0.0
    %1270 = vmatpush1.msra.mxu0 0.0
    %1271 = vmatprep.subr.mxu0 0.0
    %1272 = vmatpush1.msra.mxu0 0.0
    %1273 = vmatprep.subr.mxu0 0.0
    %1274 = vmatpush1.msra.mxu0 0.0
    %1275 = vmatprep.subr.mxu0 0.0
    %1276 = vmatpush1.msra.mxu0 0.0
    %1277 = vmatprep.subr.mxu0 0.0
    %1278 = vmatpush1.msra.mxu0 0.0
    %1279 = vmatprep.subr.mxu0 0.0
    %1280 = vmatpush1.msra.mxu0 0.0
    %1281 = vmatprep.subr.mxu0 0.0
    %1282 = vmatpush1.msra.mxu0 0.0
    %1283 = vmatprep.subr.mxu0 0.0
    %1284 = vmatpush1.msra.mxu0 0.0
    %1285 = vmatprep.subr.mxu0 0.0
    %1286 = vmatpush1.msra.mxu0 0.0
    %1287 = vmatprep.subr.mxu0 0.0
    %1288 = vmatpush1.msra.mxu0 %v1260
    %1289 = vmatprep.subr.mxu0 0.0
    %1290 = vmatpush1.msra.mxu0 %v1259
    %1291 = vmatprep.subr.mxu0 0.0
    %1292 = vmatpush1.msra.mxu0 %v1258
    %1293 = vmatprep.subr.mxu0 0.0
    %1294 = vmatpush1.msra.mxu0 %v1257
    %1295 = vmatprep.subr.mxu0 0.0
    %1296 = vmatpush2.msra.mxu0 0.0
    %1297 = vmatprep.subr.mxu0 0.0
    %1298 = vmatpush2.msra.mxu0 0.0
    %1299 = vmatprep.subr.mxu0 0.0
    %1300 = vmatpush2.msra.mxu0 0.0
    %1301 = vmatprep.subr.mxu0 0.0
    %1302 = vmatpush2.msra.mxu0 0.0
    %1303 = vmatprep.subr.mxu0 0.0
    %1304 = vmatpush2.msra.mxu0 0.0
    %1305 = vmatprep.subr.mxu0 0.0
    %1306 = vmatpush2.msra.mxu0 0.0
    %1307 = vmatprep.subr.mxu0 0.0
    %1308 = vmatpush2.msra.mxu0 0.0
    %1309 = vmatprep.subr.mxu0 0.0
    %1310 = vmatpush2.msra.mxu0 0.0
    %1311 = vmatprep.subr.mxu0 0.0
    %1312 = vmatpush2.msra.mxu0 0.0
    %1313 = vmatprep.subr.mxu0 0.0
    %1314 = vmatpush2.msra.mxu0 0.0
    %1315 = vmatprep.subr.mxu0 0.0
    %1316 = vmatpush2.msra.mxu0 0.0
    %1317 = vmatprep.subr.mxu0 0.0
    %1318 = vmatpush2.msra.mxu0 0.0
    %1319 = vmatprep.subr.mxu0 0.0
    %1320 = vmatpush2.msra.mxu0 0.0
    %1321 = vmatprep.subr.mxu0 0.0
    %1322 = vmatpush2.msra.mxu0 0.0
    %1323 = vmatprep.subr.mxu0 0.0
    %1324 = vmatpush2.msra.mxu0 0.0
    %1325 = vmatprep.subr.mxu0 0.0
    %1326 = vmatpush2.msra.mxu0 0.0
    %1327 = vmatprep.mubr.f32.mxu0 0.0
    %1328 = vmatmul.mubr.f32.gmra.mxu0 %v1261
    %v1329 = vpop.f32.mrf.mxu0
    %v1330 = vadd.f32 0.0, %v1329
    %v1331 = vpop.f32.mrf.mxu0
    %1332 = vdwg.mxu0
    %v1333 = vld [vmem:[#allocation4] sm:$0xff]
    %v1334 = vld [vmem:[#allocation4 + $0x8] sm:$0xff]
    %v1335 = vld [vmem:[#allocation4 + $0x10] sm:$0xff]
    %v1336 = vld [vmem:[#allocation4 + $0x18] sm:$0xff]
    %v1337 = vld [vmem:[#allocation4 + $0x20] sm:$0xff]
    %v1338 = vld [vmem:[#allocation4 + $0x28] sm:$0xff]
    %v1339 = vld [vmem:[#allocation4 + $0x30] sm:$0xff]
    %v1340 = vld [vmem:[#allocation4 + $0x38] sm:$0xff]
    %v1341 = vadd.f32 %v1333, %v1330
    %v1342 = vadd.f32 %v1334, %v1330
    %v1343 = vadd.f32 %v1335, %v1330
    %v1344 = vadd.f32 %v1336, %v1330
    %v1345 = vadd.f32 %v1337, %v1330
    %v1346 = vadd.f32 %v1338, %v1330
    %v1347 = vadd.f32 %v1339, %v1330
    %v1348 = vadd.f32 %v1340, %v1330
    %v1349 = vtanh.pop %v1341
    %v1350 = vtanh.pop %v1342
    %v1351 = vtanh.pop %v1343
    %v1352 = vtanh.pop %v1344
    %v1353 = vtanh.pop %v1345
    %v1354 = vtanh.pop %v1346
    %v1355 = vtanh.pop %v1347
    %v1356 = vtanh.pop %v1348
    %v1358 = vlaneseq
    %v1359 = vshrl.u32 %v1358, 7
    %v1360 = vsub.s32 0, %v1359
    %v1361 = vrot.slane %v1255, %v1360
    %v1363 = vmul.f32 %v1349, %v1361
    %v1364 = vmul.f32 %v1350, %v1361
    %v1365 = vmul.f32 %v1351, %v1361
    %v1366 = vmul.f32 %v1352, %v1361
    %v1367 = vmul.f32 %v1353, %v1361
    %v1368 = vmul.f32 %v1354, %v1361
    %v1369 = vmul.f32 %v1355, %v1361
    %v1370 = vmul.f32 %v1356, %v1361
    %v1371 = vsel %vm232, %v1363, 0.0
    %1372 = vadd.xlane.f32.xlu0 %v1371
    %v1373 = vpop.xlane.xlu0 %1372
    %v1374 = vsel %vm232, %v1364, 0.0
    %1375 = vadd.xlane.f32.xlu0 %v1374
    %v1376 = vpop.xlane.xlu0 %1375
    %v1377 = vsel %vm232, %v1365, 0.0
    %1378 = vadd.xlane.f32.xlu0 %v1377
    %v1379 = vpop.xlane.xlu0 %1378
    %v1380 = vsel %vm232, %v1366, 0.0
    %1381 = vadd.xlane.f32.xlu0 %v1380
    %v1382 = vpop.xlane.xlu0 %1381
    %v1383 = vsel %vm232, %v1367, 0.0
    %1384 = vadd.xlane.f32.xlu0 %v1383
    %v1385 = vpop.xlane.xlu0 %1384
    %v1386 = vsel %vm232, %v1368, 0.0
    %1387 = vadd.xlane.f32.xlu0 %v1386
    %v1388 = vpop.xlane.xlu0 %1387
    %v1389 = vsel %vm232, %v1369, 0.0
    %1390 = vadd.xlane.f32.xlu0 %v1389
    %v1391 = vpop.xlane.xlu0 %1390
    %v1392 = vsel %vm232, %v1370, 0.0
    %1393 = vadd.xlane.f32.xlu0 %v1392
    %v1394 = vpop.xlane.xlu0 %1393
    %v1395 = vmax.f32 %v1373, %v1385
    %v1396 = vmax.f32 %v1376, %v1388
    %v1397 = vmax.f32 %v1379, %v1391
    %v1398 = vmax.f32 %v1382, %v1394
    %v1399 = vmax.f32 %v1395, %v1396
    %v1400 = vmax.f32 %v1397, %v1398
    %v1401 = vmax.f32 %v1399, %v1400
    %v1402 = vsub.f32 %v1373, %v1401
    %v1403 = vsub.f32 %v1376, %v1401
    %v1404 = vsub.f32 %v1379, %v1401
    %v1405 = vsub.f32 %v1382, %v1401
    %v1406 = vsub.f32 %v1385, %v1401
    %v1407 = vsub.f32 %v1388, %v1401
    %v1408 = vsub.f32 %v1391, %v1401
    %v1409 = vsub.f32 %v1394, %v1401
    %v1410 = vmul.f32 %v1402, 1.442695
    %v1411 = vpow.pop %v1410
    %v1412 = vmul.f32 %v1403, 1.442695
    %v1413 = vpow.pop %v1412
    %v1414 = vmul.f32 %v1404, 1.442695
    %v1415 = vpow.pop %v1414
    %v1416 = vmul.f32 %v1405, 1.442695
    %v1417 = vpow.pop %v1416
    %v1418 = vmul.f32 %v1406, 1.442695
    %v1419 = vpow.pop %v1418
    %v1420 = vmul.f32 %v1407, 1.442695
    %v1421 = vpow.pop %v1420
    %v1422 = vmul.f32 %v1408, 1.442695
    %v1423 = vpow.pop %v1422
    %v1424 = vmul.f32 %v1409, 1.442695
    %v1425 = vpow.pop %v1424
    %v1426 = vadd.f32 %v1411, %v1413
    %v1427 = vadd.f32 %v1426, %v1415
    %v1428 = vadd.f32 %v1427, %v1417
    %v1429 = vadd.f32 %v1428, %v1419
    %v1430 = vadd.f32 %v1429, %v1421
    %v1431 = vadd.f32 %v1430, %v1423
    %v1432 = vadd.f32 %v1431, %v1425
    %v1433 = vrcp.pop %v1432
    %v1434 = vmul.f32 %v1411, %v1433
    %v1435 = vmul.f32 %v1413, %v1433
    %v1436 = vmul.f32 %v1415, %v1433
    %v1437 = vmul.f32 %v1417, %v1433
    %v1438 = vmul.f32 %v1419, %v1433
    %v1439 = vmul.f32 %v1421, %v1433
    %v1440 = vmul.f32 %v1423, %v1433
    %v1441 = vmul.f32 %v1425, %v1433
    %v1442 = vld [vmem:[#allocation3] sm:$0xff]
    %v1443 = vld [vmem:[#allocation3 + $0x8] sm:$0xff]
    %v1444 = vld [vmem:[#allocation3 + $0x10] sm:$0xff]
    %v1445 = vld [vmem:[#allocation3 + $0x18] sm:$0xff]
    %v1446 = vld [vmem:[#allocation3 + $0x20] sm:$0xff]
    %v1447 = vld [vmem:[#allocation3 + $0x28] sm:$0xff]
    %v1448 = vld [vmem:[#allocation3 + $0x30] sm:$0xff]
    %v1449 = vld [vmem:[#allocation3 + $0x38] sm:$0xff]
    %v1450 = vmul.f32 %v1434, %v1442
    %v1451 = vmul.f32 %v1435, %v1443
    %v1452 = vmul.f32 %v1436, %v1444
    %v1453 = vmul.f32 %v1437, %v1445
    %v1454 = vmul.f32 %v1438, %v1446
    %v1455 = vmul.f32 %v1439, %v1447
    %v1456 = vmul.f32 %v1440, %v1448
    %v1457 = vmul.f32 %v1441, %v1449
    %v1458 = vsel %vm232, %v1450, 0.0
    %v1459 = vsel %vm232, %v1451, 0.0
    %v1460 = vadd.f32 %v1458, %v1459
    %v1461 = vsel %vm232, %v1452, 0.0
    %v1462 = vadd.f32 %v1460, %v1461
    %v1463 = vsel %vm232, %v1453, 0.0
    %v1464 = vadd.f32 %v1462, %v1463
    %v1465 = vsel %vm232, %v1454, 0.0
    %v1466 = vadd.f32 %v1464, %v1465
    %v1467 = vsel %vm232, %v1455, 0.0
    %v1468 = vadd.f32 %v1466, %v1467
    %v1469 = vsel %vm232, %v1456, 0.0
    %v1470 = vadd.f32 %v1468, %v1469
    %v1471 = vsel %vm232, %v1457, 0.0
    %v1472 = vadd.f32 %v1470, %v1471
    %v1473 = vld [vmem:[%s6] sm:$0xff]
    %v1474 = vld [vmem:[%s6 + $0x8] sm:$0xff]
    %v1475 = vld [vmem:[%s6 + $0x10] sm:$0xff]
    %v1476 = vld [vmem:[%s6 + $0x18] sm:$0xff]
    %v1477 = vld [vmem:[%s6 + $0x20] sm:$0xff]
    %v1478 = vld [vmem:[%s6 + $0x28] sm:$0xff]
    %v1479 = vld [vmem:[%s6 + $0x30] sm:$0xff]
    %v1480 = vld [vmem:[%s6 + $0x38] sm:$0xff]
    %v1481 = vld [vmem:[%s6 + $0x40] sm:$0xff]
    %v1482 = vld [vmem:[%s6 + $0x48] sm:$0xff]
    %v1483 = vld [vmem:[%s6 + $0x50] sm:$0xff]
    %v1484 = vld [vmem:[%s6 + $0x58] sm:$0xff]
    %v1485 = vld [vmem:[%s6 + $0x60] sm:$0xff]
    %v1486 = vld [vmem:[%s6 + $0x68] sm:$0xff]
    %v1487 = vld [vmem:[%s6 + $0x70] sm:$0xff]
    %v1488 = vld [vmem:[%s6 + $0x78] sm:$0xff]
    %v1489 = vld [vmem:[%s7] sm:$0xff]
    %v1490 = vld [vmem:[%s7 + $0x8] sm:$0xff]
    %v1491 = vld [vmem:[%s7 + $0x10] sm:$0xff]
    %v1492 = vld [vmem:[%s7 + $0x18] sm:$0xff]
    %v1494 = vsel %vm232, %v1472, 0
    %1496 = vmatprep.subr.mxu0 0.0
    %1497 = vmatpush1.msra.mxu0 0.0
    %1498 = vmatprep.subr.mxu0 0.0
    %1499 = vmatpush1.msra.mxu0 0.0
    %1500 = vmatprep.subr.mxu0 0.0
    %1501 = vmatpush1.msra.mxu0 0.0
    %1502 = vmatprep.subr.mxu0 0.0
    %1503 = vmatpush1.msra.mxu0 0.0
    %1504 = vmatprep.subr.mxu0 0.0
    %1505 = vmatpush1.msra.mxu0 0.0
    %1506 = vmatprep.subr.mxu0 0.0
    %1507 = vmatpush1.msra.mxu0 0.0
    %1508 = vmatprep.subr.mxu0 0.0
    %1509 = vmatpush1.msra.mxu0 0.0
    %1510 = vmatprep.subr.mxu0 0.0
    %1511 = vmatpush1.msra.mxu0 0.0
    %1512 = vmatprep.subr.mxu0 0.0
    %1513 = vmatpush1.msra.mxu0 0.0
    %1514 = vmatprep.subr.mxu0 0.0
    %1515 = vmatpush1.msra.mxu0 0.0
    %1516 = vmatprep.subr.mxu0 0.0
    %1517 = vmatpush1.msra.mxu0 0.0
    %1518 = vmatprep.subr.mxu0 0.0
    %1519 = vmatpush1.msra.mxu0 0.0
    %1520 = vmatprep.subr.mxu0 0.0
    %1521 = vmatpush1.msra.mxu0 %v1492
    %1522 = vmatprep.subr.mxu0 0.0
    %1523 = vmatpush1.msra.mxu0 %v1491
    %1524 = vmatprep.subr.mxu0 0.0
    %1525 = vmatpush1.msra.mxu0 %v1490
    %1526 = vmatprep.subr.mxu0 0.0
    %1527 = vmatpush1.msra.mxu0 %v1489
    %1528 = vmatprep.subr.mxu0 0.0
    %1529 = vmatpush2.msra.mxu0 0.0
    %1530 = vmatprep.subr.mxu0 0.0
    %1531 = vmatpush2.msra.mxu0 0.0
    %1532 = vmatprep.subr.mxu0 0.0
    %1533 = vmatpush2.msra.mxu0 0.0
    %1534 = vmatprep.subr.mxu0 0.0
    %1535 = vmatpush2.msra.mxu0 0.0
    %1536 = vmatprep.subr.mxu0 0.0
    %1537 = vmatpush2.msra.mxu0 0.0
    %1538 = vmatprep.subr.mxu0 0.0
    %1539 = vmatpush2.msra.mxu0 0.0
    %1540 = vmatprep.subr.mxu0 0.0
    %1541 = vmatpush2.msra.mxu0 0.0
    %1542 = vmatprep.subr.mxu0 0.0
    %1543 = vmatpush2.msra.mxu0 0.0
    %1544 = vmatprep.subr.mxu0 0.0
    %1545 = vmatpush2.msra.mxu0 0.0
    %1546 = vmatprep.subr.mxu0 0.0
    %1547 = vmatpush2.msra.mxu0 0.0
    %1548 = vmatprep.subr.mxu0 0.0
    %1549 = vmatpush2.msra.mxu0 0.0
    %1550 = vmatprep.subr.mxu0 0.0
    %1551 = vmatpush2.msra.mxu0 0.0
    %1552 = vmatprep.subr.mxu0 0.0
    %1553 = vmatpush2.msra.mxu0 0.0
    %1554 = vmatprep.subr.mxu0 0.0
    %1555 = vmatpush2.msra.mxu0 0.0
    %1556 = vmatprep.subr.mxu0 0.0
    %1557 = vmatpush2.msra.mxu0 0.0
    %1558 = vmatprep.subr.mxu0 0.0
    %1559 = vmatpush2.msra.mxu0 0.0
    %1560 = vmatprep.mubr.f32.mxu0 0.0
    %1561 = vmatmul.mubr.f32.gmra.mxu0 %v1494
    %v1562 = vpop.f32.mrf.mxu0
    %v1563 = vadd.f32 0.0, %v1562
    %v1564 = vpop.f32.mrf.mxu0
    %1565 = vdwg.mxu0
    %1566 = vmatprep.subr.mxu0 0.0
    %1567 = vmatpush1.msra.mxu0 %v1488
    %1568 = vmatprep.subr.mxu0 0.0
    %1569 = vmatpush1.msra.mxu0 %v1487
    %1570 = vmatprep.subr.mxu0 0.0
    %1571 = vmatpush1.msra.mxu0 %v1486
    %1572 = vmatprep.subr.mxu0 0.0
    %1573 = vmatpush1.msra.mxu0 %v1485
    %1574 = vmatprep.subr.mxu0 0.0
    %1575 = vmatpush1.msra.mxu0 %v1484
    %1576 = vmatprep.subr.mxu0 0.0
    %1577 = vmatpush1.msra.mxu0 %v1483
    %1578 = vmatprep.subr.mxu0 0.0
    %1579 = vmatpush1.msra.mxu0 %v1482
    %1580 = vmatprep.subr.mxu0 0.0
    %1581 = vmatpush1.msra.mxu0 %v1481
    %1582 = vmatprep.subr.mxu0 0.0
    %1583 = vmatpush1.msra.mxu0 %v1480
    %1584 = vmatprep.subr.mxu0 0.0
    %1585 = vmatpush1.msra.mxu0 %v1479
    %1586 = vmatprep.subr.mxu0 0.0
    %1587 = vmatpush1.msra.mxu0 %v1478
    %1588 = vmatprep.subr.mxu0 0.0
    %1589 = vmatpush1.msra.mxu0 %v1477
    %1590 = vmatprep.subr.mxu0 0.0
    %1591 = vmatpush1.msra.mxu0 %v1476
    %1592 = vmatprep.subr.mxu0 0.0
    %1593 = vmatpush1.msra.mxu0 %v1475
    %1594 = vmatprep.subr.mxu0 0.0
    %1595 = vmatpush1.msra.mxu0 %v1474
    %1596 = vmatprep.subr.mxu0 0.0
    %1597 = vmatpush1.msra.mxu0 %v1473
    %1598 = vmatprep.subr.mxu0 0.0
    %1599 = vmatpush2.msra.mxu0 0.0
    %1600 = vmatprep.subr.mxu0 0.0
    %1601 = vmatpush2.msra.mxu0 0.0
    %1602 = vmatprep.subr.mxu0 0.0
    %1603 = vmatpush2.msra.mxu0 0.0
    %1604 = vmatprep.subr.mxu0 0.0
    %1605 = vmatpush2.msra.mxu0 0.0
    %1606 = vmatprep.subr.mxu0 0.0
    %1607 = vmatpush2.msra.mxu0 0.0
    %1608 = vmatprep.subr.mxu0 0.0
    %1609 = vmatpush2.msra.mxu0 0.0
    %1610 = vmatprep.subr.mxu0 0.0
    %1611 = vmatpush2.msra.mxu0 0.0
    %1612 = vmatprep.subr.mxu0 0.0
    %1613 = vmatpush2.msra.mxu0 0.0
    %1614 = vmatprep.subr.mxu0 0.0
    %1615 = vmatpush2.msra.mxu0 0.0
    %1616 = vmatprep.subr.mxu0 0.0
    %1617 = vmatpush2.msra.mxu0 0.0
    %1618 = vmatprep.subr.mxu0 0.0
    %1619 = vmatpush2.msra.mxu0 0.0
    %1620 = vmatprep.subr.mxu0 0.0
    %1621 = vmatpush2.msra.mxu0 0.0
    %1622 = vmatprep.subr.mxu0 0.0
    %1623 = vmatpush2.msra.mxu0 0.0
    %1624 = vmatprep.subr.mxu0 0.0
    %1625 = vmatpush2.msra.mxu0 0.0
    %1626 = vmatprep.subr.mxu0 0.0
    %1627 = vmatpush2.msra.mxu0 0.0
    %1628 = vmatprep.subr.mxu0 0.0
    %1629 = vmatpush2.msra.mxu0 0.0
    %1630 = vmatprep.mubr.f32.mxu0 0.0
    %1631 = vmatmul.mubr.f32.gmra.mxu0 %v1256
    %v1632 = vpop.f32.mrf.mxu0
    %v1633 = vadd.f32 %v1563, %v1632
    %v1634 = vpop.f32.mrf.mxu0
    %1635 = vdwg.mxu0
    %v1636 = vld [vmem:[%s8] sm:$0xff]
    %v1637 = vld [vmem:[%s8 + $0x8] sm:$0xff]
    %v1638 = vld [vmem:[%s8 + $0x10] sm:$0xff]
    %v1639 = vld [vmem:[%s8 + $0x18] sm:$0xff]
    %1640 = vmatprep.subr.mxu0 0.0
    %1641 = vmatpush1.msra.mxu0 0.0
    %1642 = vmatprep.subr.mxu0 0.0
    %1643 = vmatpush1.msra.mxu0 0.0
    %1644 = vmatprep.subr.mxu0 0.0
    %1645 = vmatpush1.msra.mxu0 0.0
    %1646 = vmatprep.subr.mxu0 0.0
    %1647 = vmatpush1.msra.mxu0 0.0
    %1648 = vmatprep.subr.mxu0 0.0
    %1649 = vmatpush1.msra.mxu0 0.0
    %1650 = vmatprep.subr.mxu0 0.0
    %1651 = vmatpush1.msra.mxu0 0.0
    %1652 = vmatprep.subr.mxu0 0.0
    %1653 = vmatpush1.msra.mxu0 0.0
    %1654 = vmatprep.subr.mxu0 0.0
    %1655 = vmatpush1.msra.mxu0 0.0
    %1656 = vmatprep.subr.mxu0 0.0
    %1657 = vmatpush1.msra.mxu0 0.0
    %1658 = vmatprep.subr.mxu0 0.0
    %1659 = vmatpush1.msra.mxu0 0.0
    %1660 = vmatprep.subr.mxu0 0.0
    %1661 = vmatpush1.msra.mxu0 0.0
    %1662 = vmatprep.subr.mxu0 0.0
    %1663 = vmatpush1.msra.mxu0 0.0
    %1664 = vmatprep.subr.mxu0 0.0
    %1665 = vmatpush1.msra.mxu0 %v1639
    %1666 = vmatprep.subr.mxu0 0.0
    %1667 = vmatpush1.msra.mxu0 %v1638
    %1668 = vmatprep.subr.mxu0 0.0
    %1669 = vmatpush1.msra.mxu0 %v1637
    %1670 = vmatprep.subr.mxu0 0.0
    %1671 = vmatpush1.msra.mxu0 %v1636
    %1672 = vmatprep.subr.mxu0 0.0
    %1673 = vmatpush2.msra.mxu0 0.0
    %1674 = vmatprep.subr.mxu0 0.0
    %1675 = vmatpush2.msra.mxu0 0.0
    %1676 = vmatprep.subr.mxu0 0.0
    %1677 = vmatpush2.msra.mxu0 0.0
    %1678 = vmatprep.subr.mxu0 0.0
    %1679 = vmatpush2.msra.mxu0 0.0
    %1680 = vmatprep.subr.mxu0 0.0
    %1681 = vmatpush2.msra.mxu0 0.0
    %1682 = vmatprep.subr.mxu0 0.0
    %1683 = vmatpush2.msra.mxu0 0.0
    %1684 = vmatprep.subr.mxu0 0.0
    %1685 = vmatpush2.msra.mxu0 0.0
    %1686 = vmatprep.subr.mxu0 0.0
    %1687 = vmatpush2.msra.mxu0 0.0
    %1688 = vmatprep.subr.mxu0 0.0
    %1689 = vmatpush2.msra.mxu0 0.0
    %1690 = vmatprep.subr.mxu0 0.0
    %1691 = vmatpush2.msra.mxu0 0.0
    %1692 = vmatprep.subr.mxu0 0.0
    %1693 = vmatpush2.msra.mxu0 0.0
    %1694 = vmatprep.subr.mxu0 0.0
    %1695 = vmatpush2.msra.mxu0 0.0
    %1696 = vmatprep.subr.mxu0 0.0
    %1697 = vmatpush2.msra.mxu0 0.0
    %1698 = vmatprep.subr.mxu0 0.0
    %1699 = vmatpush2.msra.mxu0 0.0
    %1700 = vmatprep.subr.mxu0 0.0
    %1701 = vmatpush2.msra.mxu0 0.0
    %1702 = vmatprep.subr.mxu0 0.0
    %1703 = vmatpush2.msra.mxu0 0.0
    %1704 = vmatprep.mubr.f32.mxu0 0.0
    %1705 = vmatmul.mubr.f32.gmra.mxu0 %v1261
    %v1706 = vpop.f32.mrf.mxu0
    %v1707 = vadd.f32 0.0, %v1706
    %v1708 = vpop.f32.mrf.mxu0
    %1709 = vdwg.mxu0
    %v1710 = vadd.f32 %v1633, %v1707
    %v1711 = vld [vmem:[%s9] sm:$0x1]
    %v1713 = vlaneseq
    %v1714 = vshrl.u32 %v1713, 7
    %v1715 = vsub.s32 0, %v1714
    %v1716 = vrot.slane %v1711, %v1715
    %v1718 = vadd.f32 %v1710, %v1716
    %v1719 = vxor.u32 %v1718, 2147483648
    %v1720 = vmul.f32 %v1719, 1.442695
    %v1721 = vpow.pop %v1720
    %v1722 = vadd.f32 %v1721, 1.0
    %v1723 = vrcp.pop %v1722
    %v1724 = vmul.f32 1.0, %v1723
    %v1725 = vtanh.pop %v1718
    %v1726 = vmul.f32 %v1724, %v1086
    %1728 = vrot.lane.b32.xlu0 %v1725, 64
    %v1729 = vpop.permute.xlu0 %1728
    %v1731 = vmul.f32 %v1724, %v1729
    %1733 = vrot.lane.b32.xlu0 %v1731, 32
    %v1734 = vpop.permute.xlu0 %1733
    %v1736 = vadd.f32 %v1726, %v1734
    %v1737 = vtanh.pop %v1736
    %1739 = vrot.lane.b32.xlu0 %v1737, 64
    %v1740 = vpop.permute.xlu0 %1739
    %v1742 = vmul.f32 %v1724, %v1740
    %v1743 = vld [vmem:[%s14] sm:$0xff]
    %v1744 = vld [vmem:[%s14 + $0x8] sm:$0xff]
    %v1745 = vld [vmem:[%s14 + $0x10] sm:$0xff]
    %v1746 = vld [vmem:[%s14 + $0x18] sm:$0xff]
    %v1747 = vld [vmem:[%s15] sm:$0xff]
    %v1748 = vld [vmem:[%s15 + $0x8] sm:$0xff]
    %v1749 = vld [vmem:[%s15 + $0x10] sm:$0xff]
    %v1750 = vld [vmem:[%s15 + $0x18] sm:$0xff]
    %1751 = vmatprep.subr.mxu0 0.0
    %1752 = vmatpush1.msra.mxu0 0.0
    %1753 = vmatprep.subr.mxu0 0.0
    %1754 = vmatpush1.msra.mxu0 0.0
    %1755 = vmatprep.subr.mxu0 0.0
    %1756 = vmatpush1.msra.mxu0 0.0
    %1757 = vmatprep.subr.mxu0 0.0
    %1758 = vmatpush1.msra.mxu0 0.0
    %1759 = vmatprep.subr.mxu0 0.0
    %1760 = vmatpush1.msra.mxu0 0.0
    %1761 = vmatprep.subr.mxu0 0.0
    %1762 = vmatpush1.msra.mxu0 0.0
    %1763 = vmatprep.subr.mxu0 0.0
    %1764 = vmatpush1.msra.mxu0 0.0
    %1765 = vmatprep.subr.mxu0 0.0
    %1766 = vmatpush1.msra.mxu0 0.0
    %1767 = vmatprep.subr.mxu0 0.0
    %1768 = vmatpush1.msra.mxu0 0.0
    %1769 = vmatprep.subr.mxu0 0.0
    %1770 = vmatpush1.msra.mxu0 0.0
    %1771 = vmatprep.subr.mxu0 0.0
    %1772 = vmatpush1.msra.mxu0 0.0
    %1773 = vmatprep.subr.mxu0 0.0
    %1774 = vmatpush1.msra.mxu0 0.0
    %1775 = vmatprep.subr.mxu0 0.0
    %1776 = vmatpush1.msra.mxu0 %v1750
    %1777 = vmatprep.subr.mxu0 0.0
    %1778 = vmatpush1.msra.mxu0 %v1749
    %1779 = vmatprep.subr.mxu0 0.0
    %1780 = vmatpush1.msra.mxu0 %v1748
    %1781 = vmatprep.subr.mxu0 0.0
    %1782 = vmatpush1.msra.mxu0 %v1747
    %1783 = vmatprep.subr.mxu0 0.0
    %1784 = vmatpush2.msra.mxu0 0.0
    %1785 = vmatprep.subr.mxu0 0.0
    %1786 = vmatpush2.msra.mxu0 0.0
    %1787 = vmatprep.subr.mxu0 0.0
    %1788 = vmatpush2.msra.mxu0 0.0
    %1789 = vmatprep.subr.mxu0 0.0
    %1790 = vmatpush2.msra.mxu0 0.0
    %1791 = vmatprep.subr.mxu0 0.0
    %1792 = vmatpush2.msra.mxu0 0.0
    %1793 = vmatprep.subr.mxu0 0.0
    %1794 = vmatpush2.msra.mxu0 0.0
    %1795 = vmatprep.subr.mxu0 0.0
    %1796 = vmatpush2.msra.mxu0 0.0
    %1797 = vmatprep.subr.mxu0 0.0
    %1798 = vmatpush2.msra.mxu0 0.0
    %1799 = vmatprep.subr.mxu0 0.0
    %1800 = vmatpush2.msra.mxu0 0.0
    %1801 = vmatprep.subr.mxu0 0.0
    %1802 = vmatpush2.msra.mxu0 0.0
    %1803 = vmatprep.subr.mxu0 0.0
    %1804 = vmatpush2.msra.mxu0 0.0
    %1805 = vmatprep.subr.mxu0 0.0
    %1806 = vmatpush2.msra.mxu0 0.0
    %1807 = vmatprep.subr.mxu0 0.0
    %1808 = vmatpush2.msra.mxu0 0.0
    %1809 = vmatprep.subr.mxu0 0.0
    %1810 = vmatpush2.msra.mxu0 0.0
    %1811 = vmatprep.subr.mxu0 0.0
    %1812 = vmatpush2.msra.mxu0 0.0
    %1813 = vmatprep.subr.mxu0 0.0
    %1814 = vmatpush2.msra.mxu0 0.0
    %1815 = vmatprep.mubr.f32.mxu0 0.0
    %1816 = vmatmul.mubr.f32.gmra.mxu0 %v1494
    %v1817 = vpop.f32.mrf.mxu0
    %v1818 = vadd.f32 0.0, %v1817
    %v1819 = vpop.f32.mrf.mxu0
    %1820 = vdwg.mxu0
    %1822 = vrot.lane.b32.xlu0 %v1742, 32
    %v1823 = vpop.permute.xlu0 %1822
    %v1824 = vsel %vm232, %v1823, 0
    %1826 = vmatprep.subr.mxu0 0.0
    %1827 = vmatpush1.msra.mxu0 0.0
    %1828 = vmatprep.subr.mxu0 0.0
    %1829 = vmatpush1.msra.mxu0 0.0
    %1830 = vmatprep.subr.mxu0 0.0
    %1831 = vmatpush1.msra.mxu0 0.0
    %1832 = vmatprep.subr.mxu0 0.0
    %1833 = vmatpush1.msra.mxu0 0.0
    %1834 = vmatprep.subr.mxu0 0.0
    %1835 = vmatpush1.msra.mxu0 0.0
    %1836 = vmatprep.subr.mxu0 0.0
    %1837 = vmatpush1.msra.mxu0 0.0
    %1838 = vmatprep.subr.mxu0 0.0
    %1839 = vmatpush1.msra.mxu0 0.0
    %1840 = vmatprep.subr.mxu0 0.0
    %1841 = vmatpush1.msra.mxu0 0.0
    %1842 = vmatprep.subr.mxu0 0.0
    %1843 = vmatpush1.msra.mxu0 0.0
    %1844 = vmatprep.subr.mxu0 0.0
    %1845 = vmatpush1.msra.mxu0 0.0
    %1846 = vmatprep.subr.mxu0 0.0
    %1847 = vmatpush1.msra.mxu0 0.0
    %1848 = vmatprep.subr.mxu0 0.0
    %1849 = vmatpush1.msra.mxu0 0.0
    %1850 = vmatprep.subr.mxu0 0.0
    %1851 = vmatpush1.msra.mxu0 %v1746
    %1852 = vmatprep.subr.mxu0 0.0
    %1853 = vmatpush1.msra.mxu0 %v1745
    %1854 = vmatprep.subr.mxu0 0.0
    %1855 = vmatpush1.msra.mxu0 %v1744
    %1856 = vmatprep.subr.mxu0 0.0
    %1857 = vmatpush1.msra.mxu0 %v1743
    %1858 = vmatprep.subr.mxu0 0.0
    %1859 = vmatpush2.msra.mxu0 0.0
    %1860 = vmatprep.subr.mxu0 0.0
    %1861 = vmatpush2.msra.mxu0 0.0
    %1862 = vmatprep.subr.mxu0 0.0
    %1863 = vmatpush2.msra.mxu0 0.0
    %1864 = vmatprep.subr.mxu0 0.0
    %1865 = vmatpush2.msra.mxu0 0.0
    %1866 = vmatprep.subr.mxu0 0.0
    %1867 = vmatpush2.msra.mxu0 0.0
    %1868 = vmatprep.subr.mxu0 0.0
    %1869 = vmatpush2.msra.mxu0 0.0
    %1870 = vmatprep.subr.mxu0 0.0
    %1871 = vmatpush2.msra.mxu0 0.0
    %1872 = vmatprep.subr.mxu0 0.0
    %1873 = vmatpush2.msra.mxu0 0.0
    %1874 = vmatprep.subr.mxu0 0.0
    %1875 = vmatpush2.msra.mxu0 0.0
    %1876 = vmatprep.subr.mxu0 0.0
    %1877 = vmatpush2.msra.mxu0 0.0
    %1878 = vmatprep.subr.mxu0 0.0
    %1879 = vmatpush2.msra.mxu0 0.0
    %1880 = vmatprep.subr.mxu0 0.0
    %1881 = vmatpush2.msra.mxu0 0.0
    %1882 = vmatprep.subr.mxu0 0.0
    %1883 = vmatpush2.msra.mxu0 0.0
    %1884 = vmatprep.subr.mxu0 0.0
    %1885 = vmatpush2.msra.mxu0 0.0
    %1886 = vmatprep.subr.mxu0 0.0
    %1887 = vmatpush2.msra.mxu0 0.0
    %1888 = vmatprep.subr.mxu0 0.0
    %1889 = vmatpush2.msra.mxu0 0.0
    %1890 = vmatprep.mubr.f32.mxu0 0.0
    %1891 = vmatmul.mubr.f32.gmra.mxu0 %v1824
    %v1892 = vpop.f32.mrf.mxu0
    %v1893 = vadd.f32 %v1818, %v1892
    %v1894 = vpop.f32.mrf.mxu0
    %1895 = vdwg.mxu0
    %v1896 = vld [vmem:[%s16] sm:$0x1]
    %v1898 = vlaneseq
    %v1899 = vshrl.u32 %v1898, 7
    %v1900 = vsub.s32 0, %v1899
    %v1901 = vrot.slane %v1896, %v1900
    %v1903 = vadd.f32 %v1893, %v1901
    %1904 = vst [vmem:[%s17] sm:$0xff] %v1903
    %s1905 = sld [smem:[#allocation5]]
    %p1906 = scmp.gt.s32.totalorder %s1905, 0
    %s1907 = scalar_select %p1906, 1, 0
    %s1908 = scvt.s32.f32 %s1907
    %s1909 = scalar_lea.vmem %s1, 8
    %v1910 = vld [vmem:[%s1909] sm:$0xff]
    %v1911 = vstv %s1908
    %v1912 = vmul.f32 %v1911, %v1910
    %s1913 = ssub.f32 1.0, %s1908
    %v1914 = vstv %s1913
    %v1915 = vmul.f32 %v1914, %v1903
    %v1916 = vadd.f32 %v1912, %v1915
    %v1917 = vld [vmem:[%s10] sm:$0xff]
    %v1918 = vld [vmem:[%s10 + $0x8] sm:$0xff]
    %v1919 = vld [vmem:[%s10 + $0x10] sm:$0xff]
    %v1920 = vld [vmem:[%s10 + $0x18] sm:$0xff]
    %1921 = vmatprep.subr.mxu0 0.0
    %1922 = vmatpush1.msra.mxu0 0.0
    %1923 = vmatprep.subr.mxu0 0.0
    %1924 = vmatpush1.msra.mxu0 0.0
    %1925 = vmatprep.subr.mxu0 0.0
    %1926 = vmatpush1.msra.mxu0 0.0
    %1927 = vmatprep.subr.mxu0 0.0
    %1928 = vmatpush1.msra.mxu0 0.0
    %1929 = vmatprep.subr.mxu0 0.0
    %1930 = vmatpush1.msra.mxu0 0.0
    %1931 = vmatprep.subr.mxu0 0.0
    %1932 = vmatpush1.msra.mxu0 0.0
    %1933 = vmatprep.subr.mxu0 0.0
    %1934 = vmatpush1.msra.mxu0 0.0
    %1935 = vmatprep.subr.mxu0 0.0
    %1936 = vmatpush1.msra.mxu0 0.0
    %1937 = vmatprep.subr.mxu0 0.0
    %1938 = vmatpush1.msra.mxu0 0.0
    %1939 = vmatprep.subr.mxu0 0.0
    %1940 = vmatpush1.msra.mxu0 0.0
    %1941 = vmatprep.subr.mxu0 0.0
    %1942 = vmatpush1.msra.mxu0 0.0
    %1943 = vmatprep.subr.mxu0 0.0
    %1944 = vmatpush1.msra.mxu0 0.0
    %1945 = vmatprep.subr.mxu0 0.0
    %1946 = vmatpush1.msra.mxu0 %v1920
    %1947 = vmatprep.subr.mxu0 0.0
    %1948 = vmatpush1.msra.mxu0 %v1919
    %1949 = vmatprep.subr.mxu0 0.0
    %1950 = vmatpush1.msra.mxu0 %v1918
    %1951 = vmatprep.subr.mxu0 0.0
    %1952 = vmatpush1.msra.mxu0 %v1917
    %1953 = vmatprep.subr.mxu0 0.0
    %1954 = vmatpush2.msra.mxu0 0.0
    %1955 = vmatprep.subr.mxu0 0.0
    %1956 = vmatpush2.msra.mxu0 0.0
    %1957 = vmatprep.subr.mxu0 0.0
    %1958 = vmatpush2.msra.mxu0 0.0
    %1959 = vmatprep.subr.mxu0 0.0
    %1960 = vmatpush2.msra.mxu0 0.0
    %1961 = vmatprep.subr.mxu0 0.0
    %1962 = vmatpush2.msra.mxu0 0.0
    %1963 = vmatprep.subr.mxu0 0.0
    %1964 = vmatpush2.msra.mxu0 0.0
    %1965 = vmatprep.subr.mxu0 0.0
    %1966 = vmatpush2.msra.mxu0 0.0
    %1967 = vmatprep.subr.mxu0 0.0
    %1968 = vmatpush2.msra.mxu0 0.0
    %1969 = vmatprep.subr.mxu0 0.0
    %1970 = vmatpush2.msra.mxu0 0.0
    %1971 = vmatprep.subr.mxu0 0.0
    %1972 = vmatpush2.msra.mxu0 0.0
    %1973 = vmatprep.subr.mxu0 0.0
    %1974 = vmatpush2.msra.mxu0 0.0
    %1975 = vmatprep.subr.mxu0 0.0
    %1976 = vmatpush2.msra.mxu0 0.0
    %1977 = vmatprep.subr.mxu0 0.0
    %1978 = vmatpush2.msra.mxu0 0.0
    %1979 = vmatprep.subr.mxu0 0.0
    %1980 = vmatpush2.msra.mxu0 0.0
    %1981 = vmatprep.subr.mxu0 0.0
    %1982 = vmatpush2.msra.mxu0 0.0
    %1983 = vmatprep.subr.mxu0 0.0
    %1984 = vmatpush2.msra.mxu0 0.0
    %1985 = vmatprep.mubr.f32.mxu0 0.0
    %1986 = vmatmul.mubr.f32.gmra.mxu0 %v1824
    %v1987 = vpop.f32.mrf.mxu0
    %v1988 = vadd.f32 0.0, %v1987
    %v1989 = vpop.f32.mrf.mxu0
    %1990 = vdwg.mxu0
    %v1991 = vld [vmem:[#allocation4] sm:$0xff]
    %v1992 = vld [vmem:[#allocation4 + $0x8] sm:$0xff]
    %v1993 = vld [vmem:[#allocation4 + $0x10] sm:$0xff]
    %v1994 = vld [vmem:[#allocation4 + $0x18] sm:$0xff]
    %v1995 = vld [vmem:[#allocation4 + $0x20] sm:$0xff]
    %v1996 = vld [vmem:[#allocation4 + $0x28] sm:$0xff]
    %v1997 = vld [vmem:[#allocation4 + $0x30] sm:$0xff]
    %v1998 = vld [vmem:[#allocation4 + $0x38] sm:$0xff]
    %v1999 = vadd.f32 %v1991, %v1988
    %v2000 = vadd.f32 %v1992, %v1988
    %v2001 = vadd.f32 %v1993, %v1988
    %v2002 = vadd.f32 %v1994, %v1988
    %v2003 = vadd.f32 %v1995, %v1988
    %v2004 = vadd.f32 %v1996, %v1988
    %v2005 = vadd.f32 %v1997, %v1988
    %v2006 = vadd.f32 %v1998, %v1988
    %v2007 = vtanh.pop %v1999
    %v2008 = vtanh.pop %v2000
    %v2009 = vtanh.pop %v2001
    %v2010 = vtanh.pop %v2002
    %v2011 = vtanh.pop %v2003
    %v2012 = vtanh.pop %v2004
    %v2013 = vtanh.pop %v2005
    %v2014 = vtanh.pop %v2006
    %v2015 = vmul.f32 %v2007, %v1361
    %v2016 = vmul.f32 %v2008, %v1361
    %v2017 = vmul.f32 %v2009, %v1361
    %v2018 = vmul.f32 %v2010, %v1361
    %v2019 = vmul.f32 %v2011, %v1361
    %v2020 = vmul.f32 %v2012, %v1361
    %v2021 = vmul.f32 %v2013, %v1361
    %v2022 = vmul.f32 %v2014, %v1361
    %v2023 = vsel %vm232, %v2015, 0.0
    %2024 = vadd.xlane.f32.xlu0 %v2023
    %v2025 = vpop.xlane.xlu0 %2024
    %v2026 = vsel %vm232, %v2016, 0.0
    %2027 = vadd.xlane.f32.xlu0 %v2026
    %v2028 = vpop.xlane.xlu0 %2027
    %v2029 = vsel %vm232, %v2017, 0.0
    %2030 = vadd.xlane.f32.xlu0 %v2029
    %v2031 = vpop.xlane.xlu0 %2030
    %v2032 = vsel %vm232, %v2018, 0.0
    %2033 = vadd.xlane.f32.xlu0 %v2032
    %v2034 = vpop.xlane.xlu0 %2033
    %v2035 = vsel %vm232, %v2019, 0.0
    %2036 = vadd.xlane.f32.xlu0 %v2035
    %v2037 = vpop.xlane.xlu0 %2036
    %v2038 = vsel %vm232, %v2020, 0.0
    %2039 = vadd.xlane.f32.xlu0 %v2038
    %v2040 = vpop.xlane.xlu0 %2039
    %v2041 = vsel %vm232, %v2021, 0.0
    %2042 = vadd.xlane.f32.xlu0 %v2041
    %v2043 = vpop.xlane.xlu0 %2042
    %v2044 = vsel %vm232, %v2022, 0.0
    %2045 = vadd.xlane.f32.xlu0 %v2044
    %v2046 = vpop.xlane.xlu0 %2045
    %v2047 = vmax.f32 %v2025, %v2037
    %v2048 = vmax.f32 %v2028, %v2040
    %v2049 = vmax.f32 %v2031, %v2043
    %v2050 = vmax.f32 %v2034, %v2046
    %v2051 = vmax.f32 %v2047, %v2048
    %v2052 = vmax.f32 %v2049, %v2050
    %v2053 = vmax.f32 %v2051, %v2052
    %v2054 = vsub.f32 %v2025, %v2053
    %v2055 = vsub.f32 %v2028, %v2053
    %v2056 = vsub.f32 %v2031, %v2053
    %v2057 = vsub.f32 %v2034, %v2053
    %v2058 = vsub.f32 %v2037, %v2053
    %v2059 = vsub.f32 %v2040, %v2053
    %v2060 = vsub.f32 %v2043, %v2053
    %v2061 = vsub.f32 %v2046, %v2053
    %v2062 = vmul.f32 %v2054, 1.442695
    %v2063 = vpow.pop %v2062
    %v2064 = vmul.f32 %v2055, 1.442695
    %v2065 = vpow.pop %v2064
    %v2066 = vmul.f32 %v2056, 1.442695
    %v2067 = vpow.pop %v2066
    %v2068 = vmul.f32 %v2057, 1.442695
    %v2069 = vpow.pop %v2068
    %v2070 = vmul.f32 %v2058, 1.442695
    %v2071 = vpow.pop %v2070
    %v2072 = vmul.f32 %v2059, 1.442695
    %v2073 = vpow.pop %v2072
    %v2074 = vmul.f32 %v2060, 1.442695
    %v2075 = vpow.pop %v2074
    %v2076 = vmul.f32 %v2061, 1.442695
    %v2077 = vpow.pop %v2076
    %v2078 = vadd.f32 %v2063, %v2065
    %v2079 = vadd.f32 %v2078, %v2067
    %v2080 = vadd.f32 %v2079, %v2069
    %v2081 = vadd.f32 %v2080, %v2071
    %v2082 = vadd.f32 %v2081, %v2073
    %v2083 = vadd.f32 %v2082, %v2075
    %v2084 = vadd.f32 %v2083, %v2077
    %v2085 = vrcp.pop %v2084
    %v2086 = vmul.f32 %v2063, %v2085
    %v2087 = vmul.f32 %v2065, %v2085
    %v2088 = vmul.f32 %v2067, %v2085
    %v2089 = vmul.f32 %v2069, %v2085
    %v2090 = vmul.f32 %v2071, %v2085
    %v2091 = vmul.f32 %v2073, %v2085
    %v2092 = vmul.f32 %v2075, %v2085
    %v2093 = vmul.f32 %v2077, %v2085
    %v2094 = vld [vmem:[#allocation3] sm:$0xff]
    %v2095 = vld [vmem:[#allocation3 + $0x8] sm:$0xff]
    %v2096 = vld [vmem:[#allocation3 + $0x10] sm:$0xff]
    %v2097 = vld [vmem:[#allocation3 + $0x18] sm:$0xff]
    %v2098 = vld [vmem:[#allocation3 + $0x20] sm:$0xff]
    %v2099 = vld [vmem:[#allocation3 + $0x28] sm:$0xff]
    %v2100 = vld [vmem:[#allocation3 + $0x30] sm:$0xff]
    %v2101 = vld [vmem:[#allocation3 + $0x38] sm:$0xff]
    %v2102 = vmul.f32 %v2086, %v2094
    %v2103 = vmul.f32 %v2087, %v2095
    %v2104 = vmul.f32 %v2088, %v2096
    %v2105 = vmul.f32 %v2089, %v2097
    %v2106 = vmul.f32 %v2090, %v2098
    %v2107 = vmul.f32 %v2091, %v2099
    %v2108 = vmul.f32 %v2092, %v2100
    %v2109 = vmul.f32 %v2093, %v2101
    %v2110 = vsel %vm232, %v2102, 0.0
    %v2111 = vsel %vm232, %v2103, 0.0
    %v2112 = vadd.f32 %v2110, %v2111
    %v2113 = vsel %vm232, %v2104, 0.0
    %v2114 = vadd.f32 %v2112, %v2113
    %v2115 = vsel %vm232, %v2105, 0.0
    %v2116 = vadd.f32 %v2114, %v2115
    %v2117 = vsel %vm232, %v2106, 0.0
    %v2118 = vadd.f32 %v2116, %v2117
    %v2119 = vsel %vm232, %v2107, 0.0
    %v2120 = vadd.f32 %v2118, %v2119
    %v2121 = vsel %vm232, %v2108, 0.0
    %v2122 = vadd.f32 %v2120, %v2121
    %v2123 = vsel %vm232, %v2109, 0.0
    %v2124 = vadd.f32 %v2122, %v2123
    %v2125 = vld [vmem:[%s6] sm:$0xff]
    %v2126 = vld [vmem:[%s6 + $0x8] sm:$0xff]
    %v2127 = vld [vmem:[%s6 + $0x10] sm:$0xff]
    %v2128 = vld [vmem:[%s6 + $0x18] sm:$0xff]
    %v2129 = vld [vmem:[%s6 + $0x20] sm:$0xff]
    %v2130 = vld [vmem:[%s6 + $0x28] sm:$0xff]
    %v2131 = vld [vmem:[%s6 + $0x30] sm:$0xff]
    %v2132 = vld [vmem:[%s6 + $0x38] sm:$0xff]
    %v2133 = vld [vmem:[%s6 + $0x40] sm:$0xff]
    %v2134 = vld [vmem:[%s6 + $0x48] sm:$0xff]
    %v2135 = vld [vmem:[%s6 + $0x50] sm:$0xff]
    %v2136 = vld [vmem:[%s6 + $0x58] sm:$0xff]
    %v2137 = vld [vmem:[%s6 + $0x60] sm:$0xff]
    %v2138 = vld [vmem:[%s6 + $0x68] sm:$0xff]
    %v2139 = vld [vmem:[%s6 + $0x70] sm:$0xff]
    %v2140 = vld [vmem:[%s6 + $0x78] sm:$0xff]
    %v2141 = vld [vmem:[%s7] sm:$0xff]
    %v2142 = vld [vmem:[%s7 + $0x8] sm:$0xff]
    %v2143 = vld [vmem:[%s7 + $0x10] sm:$0xff]
    %v2144 = vld [vmem:[%s7 + $0x18] sm:$0xff]
    %v2146 = vsel %vm232, %v2124, 0
    %2148 = vmatprep.subr.mxu0 0.0
    %2149 = vmatpush1.msra.mxu0 0.0
    %2150 = vmatprep.subr.mxu0 0.0
    %2151 = vmatpush1.msra.mxu0 0.0
    %2152 = vmatprep.subr.mxu0 0.0
    %2153 = vmatpush1.msra.mxu0 0.0
    %2154 = vmatprep.subr.mxu0 0.0
    %2155 = vmatpush1.msra.mxu0 0.0
    %2156 = vmatprep.subr.mxu0 0.0
    %2157 = vmatpush1.msra.mxu0 0.0
    %2158 = vmatprep.subr.mxu0 0.0
    %2159 = vmatpush1.msra.mxu0 0.0
    %2160 = vmatprep.subr.mxu0 0.0
    %2161 = vmatpush1.msra.mxu0 0.0
    %2162 = vmatprep.subr.mxu0 0.0
    %2163 = vmatpush1.msra.mxu0 0.0
    %2164 = vmatprep.subr.mxu0 0.0
    %2165 = vmatpush1.msra.mxu0 0.0
    %2166 = vmatprep.subr.mxu0 0.0
    %2167 = vmatpush1.msra.mxu0 0.0
    %2168 = vmatprep.subr.mxu0 0.0
    %2169 = vmatpush1.msra.mxu0 0.0
    %2170 = vmatprep.subr.mxu0 0.0
    %2171 = vmatpush1.msra.mxu0 0.0
    %2172 = vmatprep.subr.mxu0 0.0
    %2173 = vmatpush1.msra.mxu0 %v2144
    %2174 = vmatprep.subr.mxu0 0.0
    %2175 = vmatpush1.msra.mxu0 %v2143
    %2176 = vmatprep.subr.mxu0 0.0
    %2177 = vmatpush1.msra.mxu0 %v2142
    %2178 = vmatprep.subr.mxu0 0.0
    %2179 = vmatpush1.msra.mxu0 %v2141
    %2180 = vmatprep.subr.mxu0 0.0
    %2181 = vmatpush2.msra.mxu0 0.0
    %2182 = vmatprep.subr.mxu0 0.0
    %2183 = vmatpush2.msra.mxu0 0.0
    %2184 = vmatprep.subr.mxu0 0.0
    %2185 = vmatpush2.msra.mxu0 0.0
    %2186 = vmatprep.subr.mxu0 0.0
    %2187 = vmatpush2.msra.mxu0 0.0
    %2188 = vmatprep.subr.mxu0 0.0
    %2189 = vmatpush2.msra.mxu0 0.0
    %2190 = vmatprep.subr.mxu0 0.0
    %2191 = vmatpush2.msra.mxu0 0.0
    %2192 = vmatprep.subr.mxu0 0.0
    %2193 = vmatpush2.msra.mxu0 0.0
    %2194 = vmatprep.subr.mxu0 0.0
    %2195 = vmatpush2.msra.mxu0 0.0
    %2196 = vmatprep.subr.mxu0 0.0
    %2197 = vmatpush2.msra.mxu0 0.0
    %2198 = vmatprep.subr.mxu0 0.0
    %2199 = vmatpush2.msra.mxu0 0.0
    %2200 = vmatprep.subr.mxu0 0.0
    %2201 = vmatpush2.msra.mxu0 0.0
    %2202 = vmatprep.subr.mxu0 0.0
    %2203 = vmatpush2.msra.mxu0 0.0
    %2204 = vmatprep.subr.mxu0 0.0
    %2205 = vmatpush2.msra.mxu0 0.0
    %2206 = vmatprep.subr.mxu0 0.0
    %2207 = vmatpush2.msra.mxu0 0.0
    %2208 = vmatprep.subr.mxu0 0.0
    %2209 = vmatpush2.msra.mxu0 0.0
    %2210 = vmatprep.subr.mxu0 0.0
    %2211 = vmatpush2.msra.mxu0 0.0
    %2212 = vmatprep.mubr.f32.mxu0 0.0
    %2213 = vmatmul.mubr.f32.gmra.mxu0 %v2146
    %v2214 = vpop.f32.mrf.mxu0
    %v2215 = vadd.f32 0.0, %v2214
    %v2216 = vpop.f32.mrf.mxu0
    %2217 = vdwg.mxu0
    %2218 = vmatprep.subr.mxu0 0.0
    %2219 = vmatpush1.msra.mxu0 %v2140
    %2220 = vmatprep.subr.mxu0 0.0
    %2221 = vmatpush1.msra.mxu0 %v2139
    %2222 = vmatprep.subr.mxu0 0.0
    %2223 = vmatpush1.msra.mxu0 %v2138
    %2224 = vmatprep.subr.mxu0 0.0
    %2225 = vmatpush1.msra.mxu0 %v2137
    %2226 = vmatprep.subr.mxu0 0.0
    %2227 = vmatpush1.msra.mxu0 %v2136
    %2228 = vmatprep.subr.mxu0 0.0
    %2229 = vmatpush1.msra.mxu0 %v2135
    %2230 = vmatprep.subr.mxu0 0.0
    %2231 = vmatpush1.msra.mxu0 %v2134
    %2232 = vmatprep.subr.mxu0 0.0
    %2233 = vmatpush1.msra.mxu0 %v2133
    %2234 = vmatprep.subr.mxu0 0.0
    %2235 = vmatpush1.msra.mxu0 %v2132
    %2236 = vmatprep.subr.mxu0 0.0
    %2237 = vmatpush1.msra.mxu0 %v2131
    %2238 = vmatprep.subr.mxu0 0.0
    %2239 = vmatpush1.msra.mxu0 %v2130
    %2240 = vmatprep.subr.mxu0 0.0
    %2241 = vmatpush1.msra.mxu0 %v2129
    %2242 = vmatprep.subr.mxu0 0.0
    %2243 = vmatpush1.msra.mxu0 %v2128
    %2244 = vmatprep.subr.mxu0 0.0
    %2245 = vmatpush1.msra.mxu0 %v2127
    %2246 = vmatprep.subr.mxu0 0.0
    %2247 = vmatpush1.msra.mxu0 %v2126
    %2248 = vmatprep.subr.mxu0 0.0
    %2249 = vmatpush1.msra.mxu0 %v2125
    %2250 = vmatprep.subr.mxu0 0.0
    %2251 = vmatpush2.msra.mxu0 0.0
    %2252 = vmatprep.subr.mxu0 0.0
    %2253 = vmatpush2.msra.mxu0 0.0
    %2254 = vmatprep.subr.mxu0 0.0
    %2255 = vmatpush2.msra.mxu0 0.0
    %2256 = vmatprep.subr.mxu0 0.0
    %2257 = vmatpush2.msra.mxu0 0.0
    %2258 = vmatprep.subr.mxu0 0.0
    %2259 = vmatpush2.msra.mxu0 0.0
    %2260 = vmatprep.subr.mxu0 0.0
    %2261 = vmatpush2.msra.mxu0 0.0
    %2262 = vmatprep.subr.mxu0 0.0
    %2263 = vmatpush2.msra.mxu0 0.0
    %2264 = vmatprep.subr.mxu0 0.0
    %2265 = vmatpush2.msra.mxu0 0.0
    %2266 = vmatprep.subr.mxu0 0.0
    %2267 = vmatpush2.msra.mxu0 0.0
    %2268 = vmatprep.subr.mxu0 0.0
    %2269 = vmatpush2.msra.mxu0 0.0
    %2270 = vmatprep.subr.mxu0 0.0
    %2271 = vmatpush2.msra.mxu0 0.0
    %2272 = vmatprep.subr.mxu0 0.0
    %2273 = vmatpush2.msra.mxu0 0.0
    %2274 = vmatprep.subr.mxu0 0.0
    %2275 = vmatpush2.msra.mxu0 0.0
    %2276 = vmatprep.subr.mxu0 0.0
    %2277 = vmatpush2.msra.mxu0 0.0
    %2278 = vmatprep.subr.mxu0 0.0
    %2279 = vmatpush2.msra.mxu0 0.0
    %2280 = vmatprep.subr.mxu0 0.0
    %2281 = vmatpush2.msra.mxu0 0.0
    %2282 = vmatprep.mubr.f32.mxu0 0.0
    %2283 = vmatmul.mubr.f32.gmra.mxu0 %v1916
    %v2284 = vpop.f32.mrf.mxu0
    %v2285 = vadd.f32 %v2215, %v2284
    %v2286 = vpop.f32.mrf.mxu0
    %2287 = vdwg.mxu0
    %v2288 = vld [vmem:[%s8] sm:$0xff]
    %v2289 = vld [vmem:[%s8 + $0x8] sm:$0xff]
    %v2290 = vld [vmem:[%s8 + $0x10] sm:$0xff]
    %v2291 = vld [vmem:[%s8 + $0x18] sm:$0xff]
    %2292 = vmatprep.subr.mxu0 0.0
    %2293 = vmatpush1.msra.mxu0 0.0
    %2294 = vmatprep.subr.mxu0 0.0
    %2295 = vmatpush1.msra.mxu0 0.0
    %2296 = vmatprep.subr.mxu0 0.0
    %2297 = vmatpush1.msra.mxu0 0.0
    %2298 = vmatprep.subr.mxu0 0.0
    %2299 = vmatpush1.msra.mxu0 0.0
    %2300 = vmatprep.subr.mxu0 0.0
    %2301 = vmatpush1.msra.mxu0 0.0
    %2302 = vmatprep.subr.mxu0 0.0
    %2303 = vmatpush1.msra.mxu0 0.0
    %2304 = vmatprep.subr.mxu0 0.0
    %2305 = vmatpush1.msra.mxu0 0.0
    %2306 = vmatprep.subr.mxu0 0.0
    %2307 = vmatpush1.msra.mxu0 0.0
    %2308 = vmatprep.subr.mxu0 0.0
    %2309 = vmatpush1.msra.mxu0 0.0
    %2310 = vmatprep.subr.mxu0 0.0
    %2311 = vmatpush1.msra.mxu0 0.0
    %2312 = vmatprep.subr.mxu0 0.0
    %2313 = vmatpush1.msra.mxu0 0.0
    %2314 = vmatprep.subr.mxu0 0.0
    %2315 = vmatpush1.msra.mxu0 0.0
    %2316 = vmatprep.subr.mxu0 0.0
    %2317 = vmatpush1.msra.mxu0 %v2291
    %2318 = vmatprep.subr.mxu0 0.0
    %2319 = vmatpush1.msra.mxu0 %v2290
    %2320 = vmatprep.subr.mxu0 0.0
    %2321 = vmatpush1.msra.mxu0 %v2289
    %2322 = vmatprep.subr.mxu0 0.0
    %2323 = vmatpush1.msra.mxu0 %v2288
    %2324 = vmatprep.subr.mxu0 0.0
    %2325 = vmatpush2.msra.mxu0 0.0
    %2326 = vmatprep.subr.mxu0 0.0
    %2327 = vmatpush2.msra.mxu0 0.0
    %2328 = vmatprep.subr.mxu0 0.0
    %2329 = vmatpush2.msra.mxu0 0.0
    %2330 = vmatprep.subr.mxu0 0.0
    %2331 = vmatpush2.msra.mxu0 0.0
    %2332 = vmatprep.subr.mxu0 0.0
    %2333 = vmatpush2.msra.mxu0 0.0
    %2334 = vmatprep.subr.mxu0 0.0
    %2335 = vmatpush2.msra.mxu0 0.0
    %2336 = vmatprep.subr.mxu0 0.0
    %2337 = vmatpush2.msra.mxu0 0.0
    %2338 = vmatprep.subr.mxu0 0.0
    %2339 = vmatpush2.msra.mxu0 0.0
    %2340 = vmatprep.subr.mxu0 0.0
    %2341 = vmatpush2.msra.mxu0 0.0
    %2342 = vmatprep.subr.mxu0 0.0
    %2343 = vmatpush2.msra.mxu0 0.0
    %2344 = vmatprep.subr.mxu0 0.0
    %2345 = vmatpush2.msra.mxu0 0.0
    %2346 = vmatprep.subr.mxu0 0.0
    %2347 = vmatpush2.msra.mxu0 0.0
    %2348 = vmatprep.subr.mxu0 0.0
    %2349 = vmatpush2.msra.mxu0 0.0
    %2350 = vmatprep.subr.mxu0 0.0
    %2351 = vmatpush2.msra.mxu0 0.0
    %2352 = vmatprep.subr.mxu0 0.0
    %2353 = vmatpush2.msra.mxu0 0.0
    %2354 = vmatprep.subr.mxu0 0.0
    %2355 = vmatpush2.msra.mxu0 0.0
    %2356 = vmatprep.mubr.f32.mxu0 0.0
    %2357 = vmatmul.mubr.f32.gmra.mxu0 %v1824
    %v2358 = vpop.f32.mrf.mxu0
    %v2359 = vadd.f32 0.0, %v2358
    %v2360 = vpop.f32.mrf.mxu0
    %2361 = vdwg.mxu0
    %v2362 = vadd.f32 %v2285, %v2359
    %v2363 = vld [vmem:[%s9] sm:$0x1]
    %v2365 = vlaneseq
    %v2366 = vshrl.u32 %v2365, 7
    %v2367 = vsub.s32 0, %v2366
    %v2368 = vrot.slane %v2363, %v2367
    %v2370 = vadd.f32 %v2362, %v2368
    %v2371 = vxor.u32 %v2370, 2147483648
    %v2372 = vmul.f32 %v2371, 1.442695
    %v2373 = vpow.pop %v2372
    %v2374 = vadd.f32 %v2373, 1.0
    %v2375 = vrcp.pop %v2374
    %v2376 = vmul.f32 1.0, %v2375
    %v2377 = vtanh.pop %v2370
    %v2378 = vmul.f32 %v2376, %v1736
    %2380 = vrot.lane.b32.xlu0 %v2377, 64
    %v2381 = vpop.permute.xlu0 %2380
    %v2383 = vmul.f32 %v2376, %v2381
    %2385 = vrot.lane.b32.xlu0 %v2383, 32
    %v2386 = vpop.permute.xlu0 %2385
    %v2388 = vadd.f32 %v2378, %v2386
    %v2389 = vtanh.pop %v2388
    %2391 = vrot.lane.b32.xlu0 %v2389, 64
    %v2392 = vpop.permute.xlu0 %2391
    %v2394 = vmul.f32 %v2376, %v2392
    %v2395 = vld [vmem:[%s14] sm:$0xff]
    %v2396 = vld [vmem:[%s14 + $0x8] sm:$0xff]
    %v2397 = vld [vmem:[%s14 + $0x10] sm:$0xff]
    %v2398 = vld [vmem:[%s14 + $0x18] sm:$0xff]
    %v2399 = vld [vmem:[%s15] sm:$0xff]
    %v2400 = vld [vmem:[%s15 + $0x8] sm:$0xff]
    %v2401 = vld [vmem:[%s15 + $0x10] sm:$0xff]
    %v2402 = vld [vmem:[%s15 + $0x18] sm:$0xff]
    %2403 = vmatprep.subr.mxu0 0.0
    %2404 = vmatpush1.msra.mxu0 0.0
    %2405 = vmatprep.subr.mxu0 0.0
    %2406 = vmatpush1.msra.mxu0 0.0
    %2407 = vmatprep.subr.mxu0 0.0
    %2408 = vmatpush1.msra.mxu0 0.0
    %2409 = vmatprep.subr.mxu0 0.0
    %2410 = vmatpush1.msra.mxu0 0.0
    %2411 = vmatprep.subr.mxu0 0.0
    %2412 = vmatpush1.msra.mxu0 0.0
    %2413 = vmatprep.subr.mxu0 0.0
    %2414 = vmatpush1.msra.mxu0 0.0
    %2415 = vmatprep.subr.mxu0 0.0
    %2416 = vmatpush1.msra.mxu0 0.0
    %2417 = vmatprep.subr.mxu0 0.0
    %2418 = vmatpush1.msra.mxu0 0.0
    %2419 = vmatprep.subr.mxu0 0.0
    %2420 = vmatpush1.msra.mxu0 0.0
    %2421 = vmatprep.subr.mxu0 0.0
    %2422 = vmatpush1.msra.mxu0 0.0
    %2423 = vmatprep.subr.mxu0 0.0
    %2424 = vmatpush1.msra.mxu0 0.0
    %2425 = vmatprep.subr.mxu0 0.0
    %2426 = vmatpush1.msra.mxu0 0.0
    %2427 = vmatprep.subr.mxu0 0.0
    %2428 = vmatpush1.msra.mxu0 %v2402
    %2429 = vmatprep.subr.mxu0 0.0
    %2430 = vmatpush1.msra.mxu0 %v2401
    %2431 = vmatprep.subr.mxu0 0.0
    %2432 = vmatpush1.msra.mxu0 %v2400
    %2433 = vmatprep.subr.mxu0 0.0
    %2434 = vmatpush1.msra.mxu0 %v2399
    %2435 = vmatprep.subr.mxu0 0.0
    %2436 = vmatpush2.msra.mxu0 0.0
    %2437 = vmatprep.subr.mxu0 0.0
    %2438 = vmatpush2.msra.mxu0 0.0
    %2439 = vmatprep.subr.mxu0 0.0
    %2440 = vmatpush2.msra.mxu0 0.0
    %2441 = vmatprep.subr.mxu0 0.0
    %2442 = vmatpush2.msra.mxu0 0.0
    %2443 = vmatprep.subr.mxu0 0.0
    %2444 = vmatpush2.msra.mxu0 0.0
    %2445 = vmatprep.subr.mxu0 0.0
    %2446 = vmatpush2.msra.mxu0 0.0
    %2447 = vmatprep.subr.mxu0 0.0
    %2448 = vmatpush2.msra.mxu0 0.0
    %2449 = vmatprep.subr.mxu0 0.0
    %2450 = vmatpush2.msra.mxu0 0.0
    %2451 = vmatprep.subr.mxu0 0.0
    %2452 = vmatpush2.msra.mxu0 0.0
    %2453 = vmatprep.subr.mxu0 0.0
    %2454 = vmatpush2.msra.mxu0 0.0
    %2455 = vmatprep.subr.mxu0 0.0
    %2456 = vmatpush2.msra.mxu0 0.0
    %2457 = vmatprep.subr.mxu0 0.0
    %2458 = vmatpush2.msra.mxu0 0.0
    %2459 = vmatprep.subr.mxu0 0.0
    %2460 = vmatpush2.msra.mxu0 0.0
    %2461 = vmatprep.subr.mxu0 0.0
    %2462 = vmatpush2.msra.mxu0 0.0
    %2463 = vmatprep.subr.mxu0 0.0
    %2464 = vmatpush2.msra.mxu0 0.0
    %2465 = vmatprep.subr.mxu0 0.0
    %2466 = vmatpush2.msra.mxu0 0.0
    %2467 = vmatprep.mubr.f32.mxu0 0.0
    %2468 = vmatmul.mubr.f32.gmra.mxu0 %v2146
    %v2469 = vpop.f32.mrf.mxu0
    %v2470 = vadd.f32 0.0, %v2469
    %v2471 = vpop.f32.mrf.mxu0
    %2472 = vdwg.mxu0
    %2474 = vrot.lane.b32.xlu0 %v2394, 32
    %v2475 = vpop.permute.xlu0 %2474
    %v2476 = vsel %vm232, %v2475, 0
    %2478 = vmatprep.subr.mxu0 0.0
    %2479 = vmatpush1.msra.mxu0 0.0
    %2480 = vmatprep.subr.mxu0 0.0
    %2481 = vmatpush1.msra.mxu0 0.0
    %2482 = vmatprep.subr.mxu0 0.0
    %2483 = vmatpush1.msra.mxu0 0.0
    %2484 = vmatprep.subr.mxu0 0.0
    %2485 = vmatpush1.msra.mxu0 0.0
    %2486 = vmatprep.subr.mxu0 0.0
    %2487 = vmatpush1.msra.mxu0 0.0
    %2488 = vmatprep.subr.mxu0 0.0
    %2489 = vmatpush1.msra.mxu0 0.0
    %2490 = vmatprep.subr.mxu0 0.0
    %2491 = vmatpush1.msra.mxu0 0.0
    %2492 = vmatprep.subr.mxu0 0.0
    %2493 = vmatpush1.msra.mxu0 0.0
    %2494 = vmatprep.subr.mxu0 0.0
    %2495 = vmatpush1.msra.mxu0 0.0
    %2496 = vmatprep.subr.mxu0 0.0
    %2497 = vmatpush1.msra.mxu0 0.0
    %2498 = vmatprep.subr.mxu0 0.0
    %2499 = vmatpush1.msra.mxu0 0.0
    %2500 = vmatprep.subr.mxu0 0.0
    %2501 = vmatpush1.msra.mxu0 0.0
    %2502 = vmatprep.subr.mxu0 0.0
    %2503 = vmatpush1.msra.mxu0 %v2398
    %2504 = vmatprep.subr.mxu0 0.0
    %2505 = vmatpush1.msra.mxu0 %v2397
    %2506 = vmatprep.subr.mxu0 0.0
    %2507 = vmatpush1.msra.mxu0 %v2396
    %2508 = vmatprep.subr.mxu0 0.0
    %2509 = vmatpush1.msra.mxu0 %v2395
    %2510 = vmatprep.subr.mxu0 0.0
    %2511 = vmatpush2.msra.mxu0 0.0
    %2512 = vmatprep.subr.mxu0 0.0
    %2513 = vmatpush2.msra.mxu0 0.0
    %2514 = vmatprep.subr.mxu0 0.0
    %2515 = vmatpush2.msra.mxu0 0.0
    %2516 = vmatprep.subr.mxu0 0.0
    %2517 = vmatpush2.msra.mxu0 0.0
    %2518 = vmatprep.subr.mxu0 0.0
    %2519 = vmatpush2.msra.mxu0 0.0
    %2520 = vmatprep.subr.mxu0 0.0
    %2521 = vmatpush2.msra.mxu0 0.0
    %2522 = vmatprep.subr.mxu0 0.0
    %2523 = vmatpush2.msra.mxu0 0.0
    %2524 = vmatprep.subr.mxu0 0.0
    %2525 = vmatpush2.msra.mxu0 0.0
    %2526 = vmatprep.subr.mxu0 0.0
    %2527 = vmatpush2.msra.mxu0 0.0
    %2528 = vmatprep.subr.mxu0 0.0
    %2529 = vmatpush2.msra.mxu0 0.0
    %2530 = vmatprep.subr.mxu0 0.0
    %2531 = vmatpush2.msra.mxu0 0.0
    %2532 = vmatprep.subr.mxu0 0.0
    %2533 = vmatpush2.msra.mxu0 0.0
    %2534 = vmatprep.subr.mxu0 0.0
    %2535 = vmatpush2.msra.mxu0 0.0
    %2536 = vmatprep.subr.mxu0 0.0
    %2537 = vmatpush2.msra.mxu0 0.0
    %2538 = vmatprep.subr.mxu0 0.0
    %2539 = vmatpush2.msra.mxu0 0.0
    %2540 = vmatprep.subr.mxu0 0.0
    %2541 = vmatpush2.msra.mxu0 0.0
    %2542 = vmatprep.mubr.f32.mxu0 0.0
    %2543 = vmatmul.mubr.f32.gmra.mxu0 %v2476
    %v2544 = vpop.f32.mrf.mxu0
    %v2545 = vadd.f32 %v2470, %v2544
    %v2546 = vpop.f32.mrf.mxu0
    %2547 = vdwg.mxu0
    %v2548 = vld [vmem:[%s16] sm:$0x1]
    %v2550 = vlaneseq
    %v2551 = vshrl.u32 %v2550, 7
    %v2552 = vsub.s32 0, %v2551
    %v2553 = vrot.slane %v2548, %v2552
    %v2555 = vadd.f32 %v2545, %v2553
    %s2556 = scalar_lea.vmem %s17, 8
    %2557 = vst [vmem:[%s2556] sm:$0xff] %v2555
    %s2558 = sld [smem:[#allocation5 + $0x1]]
    %p2559 = scmp.gt.s32.totalorder %s2558, 0
    %s2560 = scalar_select %p2559, 1, 0
    %s2561 = scvt.s32.f32 %s2560
    %s2562 = scalar_lea.vmem %s1, 16
    %v2563 = vld [vmem:[%s2562] sm:$0xff]
    %v2564 = vstv %s2561
    %v2565 = vmul.f32 %v2564, %v2563
    %s2566 = ssub.f32 1.0, %s2561
    %v2567 = vstv %s2566
    %v2568 = vmul.f32 %v2567, %v2555
    %v2569 = vadd.f32 %v2565, %v2568
    %v2570 = vld [vmem:[%s10] sm:$0xff]
    %v2571 = vld [vmem:[%s10 + $0x8] sm:$0xff]
    %v2572 = vld [vmem:[%s10 + $0x10] sm:$0xff]
    %v2573 = vld [vmem:[%s10 + $0x18] sm:$0xff]
    %2574 = vmatprep.subr.mxu0 0.0
    %2575 = vmatpush1.msra.mxu0 0.0
    %2576 = vmatprep.subr.mxu0 0.0
    %2577 = vmatpush1.msra.mxu0 0.0
    %2578 = vmatprep.subr.mxu0 0.0
    %2579 = vmatpush1.msra.mxu0 0.0
    %2580 = vmatprep.subr.mxu0 0.0
    %2581 = vmatpush1.msra.mxu0 0.0
    %2582 = vmatprep.subr.mxu0 0.0
    %2583 = vmatpush1.msra.mxu0 0.0
    %2584 = vmatprep.subr.mxu0 0.0
    %2585 = vmatpush1.msra.mxu0 0.0
    %2586 = vmatprep.subr.mxu0 0.0
    %2587 = vmatpush1.msra.mxu0 0.0
    %2588 = vmatprep.subr.mxu0 0.0
    %2589 = vmatpush1.msra.mxu0 0.0
    %2590 = vmatprep.subr.mxu0 0.0
    %2591 = vmatpush1.msra.mxu0 0.0
    %2592 = vmatprep.subr.mxu0 0.0
    %2593 = vmatpush1.msra.mxu0 0.0
    %2594 = vmatprep.subr.mxu0 0.0
    %2595 = vmatpush1.msra.mxu0 0.0
    %2596 = vmatprep.subr.mxu0 0.0
    %2597 = vmatpush1.msra.mxu0 0.0
    %2598 = vmatprep.subr.mxu0 0.0
    %2599 = vmatpush1.msra.mxu0 %v2573
    %2600 = vmatprep.subr.mxu0 0.0
    %2601 = vmatpush1.msra.mxu0 %v2572
    %2602 = vmatprep.subr.mxu0 0.0
    %2603 = vmatpush1.msra.mxu0 %v2571
    %2604 = vmatprep.subr.mxu0 0.0
    %2605 = vmatpush1.msra.mxu0 %v2570
    %2606 = vmatprep.subr.mxu0 0.0
    %2607 = vmatpush2.msra.mxu0 0.0
    %2608 = vmatprep.subr.mxu0 0.0
    %2609 = vmatpush2.msra.mxu0 0.0
    %2610 = vmatprep.subr.mxu0 0.0
    %2611 = vmatpush2.msra.mxu0 0.0
    %2612 = vmatprep.subr.mxu0 0.0
    %2613 = vmatpush2.msra.mxu0 0.0
    %2614 = vmatprep.subr.mxu0 0.0
    %2615 = vmatpush2.msra.mxu0 0.0
    %2616 = vmatprep.subr.mxu0 0.0
    %2617 = vmatpush2.msra.mxu0 0.0
    %2618 = vmatprep.subr.mxu0 0.0
    %2619 = vmatpush2.msra.mxu0 0.0
    %2620 = vmatprep.subr.mxu0 0.0
    %2621 = vmatpush2.msra.mxu0 0.0
    %2622 = vmatprep.subr.mxu0 0.0
    %2623 = vmatpush2.msra.mxu0 0.0
    %2624 = vmatprep.subr.mxu0 0.0
    %2625 = vmatpush2.msra.mxu0 0.0
    %2626 = vmatprep.subr.mxu0 0.0
    %2627 = vmatpush2.msra.mxu0 0.0
    %2628 = vmatprep.subr.mxu0 0.0
    %2629 = vmatpush2.msra.mxu0 0.0
    %2630 = vmatprep.subr.mxu0 0.0
    %2631 = vmatpush2.msra.mxu0 0.0
    %2632 = vmatprep.subr.mxu0 0.0
    %2633 = vmatpush2.msra.mxu0 0.0
    %2634 = vmatprep.subr.mxu0 0.0
    %2635 = vmatpush2.msra.mxu0 0.0
    %2636 = vmatprep.subr.mxu0 0.0
    %2637 = vmatpush2.msra.mxu0 0.0
    %2638 = vmatprep.mubr.f32.mxu0 0.0
    %2639 = vmatmul.mubr.f32.gmra.mxu0 %v2476
    %v2640 = vpop.f32.mrf.mxu0
    %v2641 = vadd.f32 0.0, %v2640
    %v2642 = vpop.f32.mrf.mxu0
    %2643 = vdwg.mxu0
    %v2644 = vld [vmem:[#allocation4] sm:$0xff]
    %v2645 = vld [vmem:[#allocation4 + $0x8] sm:$0xff]
    %v2646 = vld [vmem:[#allocation4 + $0x10] sm:$0xff]
    %v2647 = vld [vmem:[#allocation4 + $0x18] sm:$0xff]
    %v2648 = vld [vmem:[#allocation4 + $0x20] sm:$0xff]
    %v2649 = vld [vmem:[#allocation4 + $0x28] sm:$0xff]
    %v2650 = vld [vmem:[#allocation4 + $0x30] sm:$0xff]
    %v2651 = vld [vmem:[#allocation4 + $0x38] sm:$0xff]
    %v2652 = vadd.f32 %v2644, %v2641
    %v2653 = vadd.f32 %v2645, %v2641
    %v2654 = vadd.f32 %v2646, %v2641
    %v2655 = vadd.f32 %v2647, %v2641
    %v2656 = vadd.f32 %v2648, %v2641
    %v2657 = vadd.f32 %v2649, %v2641
    %v2658 = vadd.f32 %v2650, %v2641
    %v2659 = vadd.f32 %v2651, %v2641
    %v2660 = vtanh.pop %v2652
    %v2661 = vtanh.pop %v2653
    %v2662 = vtanh.pop %v2654
    %v2663 = vtanh.pop %v2655
    %v2664 = vtanh.pop %v2656
    %v2665 = vtanh.pop %v2657
    %v2666 = vtanh.pop %v2658
    %v2667 = vtanh.pop %v2659
    %v2668 = vmul.f32 %v2660, %v1361
    %v2669 = vmul.f32 %v2661, %v1361
    %v2670 = vmul.f32 %v2662, %v1361
    %v2671 = vmul.f32 %v2663, %v1361
    %v2672 = vmul.f32 %v2664, %v1361
    %v2673 = vmul.f32 %v2665, %v1361
    %v2674 = vmul.f32 %v2666, %v1361
    %v2675 = vmul.f32 %v2667, %v1361
    %v2676 = vsel %vm232, %v2668, 0.0
    %2677 = vadd.xlane.f32.xlu0 %v2676
    %v2678 = vpop.xlane.xlu0 %2677
    %v2679 = vsel %vm232, %v2669, 0.0
    %2680 = vadd.xlane.f32.xlu0 %v2679
    %v2681 = vpop.xlane.xlu0 %2680
    %v2682 = vsel %vm232, %v2670, 0.0
    %2683 = vadd.xlane.f32.xlu0 %v2682
    %v2684 = vpop.xlane.xlu0 %2683
    %v2685 = vsel %vm232, %v2671, 0.0
    %2686 = vadd.xlane.f32.xlu0 %v2685
    %v2687 = vpop.xlane.xlu0 %2686
    %v2688 = vsel %vm232, %v2672, 0.0
    %2689 = vadd.xlane.f32.xlu0 %v2688
    %v2690 = vpop.xlane.xlu0 %2689
    %v2691 = vsel %vm232, %v2673, 0.0
    %2692 = vadd.xlane.f32.xlu0 %v2691
    %v2693 = vpop.xlane.xlu0 %2692
    %v2694 = vsel %vm232, %v2674, 0.0
    %2695 = vadd.xlane.f32.xlu0 %v2694
    %v2696 = vpop.xlane.xlu0 %2695
    %v2697 = vsel %vm232, %v2675, 0.0
    %2698 = vadd.xlane.f32.xlu0 %v2697
    %v2699 = vpop.xlane.xlu0 %2698
    %v2700 = vmax.f32 %v2678, %v2690
    %v2701 = vmax.f32 %v2681, %v2693
    %v2702 = vmax.f32 %v2684, %v2696
    %v2703 = vmax.f32 %v2687, %v2699
    %v2704 = vmax.f32 %v2700, %v2701
    %v2705 = vmax.f32 %v2702, %v2703
    %v2706 = vmax.f32 %v2704, %v2705
    %v2707 = vsub.f32 %v2678, %v2706
    %v2708 = vsub.f32 %v2681, %v2706
    %v2709 = vsub.f32 %v2684, %v2706
    %v2710 = vsub.f32 %v2687, %v2706
    %v2711 = vsub.f32 %v2690, %v2706
    %v2712 = vsub.f32 %v2693, %v2706
    %v2713 = vsub.f32 %v2696, %v2706
    %v2714 = vsub.f32 %v2699, %v2706
    %v2715 = vmul.f32 %v2707, 1.442695
    %v2716 = vpow.pop %v2715
    %v2717 = vmul.f32 %v2708, 1.442695
    %v2718 = vpow.pop %v2717
    %v2719 = vmul.f32 %v2709, 1.442695
    %v2720 = vpow.pop %v2719
    %v2721 = vmul.f32 %v2710, 1.442695
    %v2722 = vpow.pop %v2721
    %v2723 = vmul.f32 %v2711, 1.442695
    %v2724 = vpow.pop %v2723
    %v2725 = vmul.f32 %v2712, 1.442695
    %v2726 = vpow.pop %v2725
    %v2727 = vmul.f32 %v2713, 1.442695
    %v2728 = vpow.pop %v2727
    %v2729 = vmul.f32 %v2714, 1.442695
    %v2730 = vpow.pop %v2729
    %v2731 = vadd.f32 %v2716, %v2718
    %v2732 = vadd.f32 %v2731, %v2720
    %v2733 = vadd.f32 %v2732, %v2722
    %v2734 = vadd.f32 %v2733, %v2724
    %v2735 = vadd.f32 %v2734, %v2726
    %v2736 = vadd.f32 %v2735, %v2728
    %v2737 = vadd.f32 %v2736, %v2730
    %v2738 = vrcp.pop %v2737
    %v2739 = vmul.f32 %v2716, %v2738
    %v2740 = vmul.f32 %v2718, %v2738
    %v2741 = vmul.f32 %v2720, %v2738
    %v2742 = vmul.f32 %v2722, %v2738
    %v2743 = vmul.f32 %v2724, %v2738
    %v2744 = vmul.f32 %v2726, %v2738
    %v2745 = vmul.f32 %v2728, %v2738
    %v2746 = vmul.f32 %v2730, %v2738
    %v2747 = vld [vmem:[#allocation3] sm:$0xff]
    %v2748 = vld [vmem:[#allocation3 + $0x8] sm:$0xff]
    %v2749 = vld [vmem:[#allocation3 + $0x10] sm:$0xff]
    %v2750 = vld [vmem:[#allocation3 + $0x18] sm:$0xff]
    %v2751 = vld [vmem:[#allocation3 + $0x20] sm:$0xff]
    %v2752 = vld [vmem:[#allocation3 + $0x28] sm:$0xff]
    %v2753 = vld [vmem:[#allocation3 + $0x30] sm:$0xff]
    %v2754 = vld [vmem:[#allocation3 + $0x38] sm:$0xff]
    %v2755 = vmul.f32 %v2739, %v2747
    %v2756 = vmul.f32 %v2740, %v2748
    %v2757 = vmul.f32 %v2741, %v2749
    %v2758 = vmul.f32 %v2742, %v2750
    %v2759 = vmul.f32 %v2743, %v2751
    %v2760 = vmul.f32 %v2744, %v2752
    %v2761 = vmul.f32 %v2745, %v2753
    %v2762 = vmul.f32 %v2746, %v2754
    %v2763 = vsel %vm232, %v2755, 0.0
    %v2764 = vsel %vm232, %v2756, 0.0
    %v2765 = vadd.f32 %v2763, %v2764
    %v2766 = vsel %vm232, %v2757, 0.0
    %v2767 = vadd.f32 %v2765, %v2766
    %v2768 = vsel %vm232, %v2758, 0.0
    %v2769 = vadd.f32 %v2767, %v2768
    %v2770 = vsel %vm232, %v2759, 0.0
    %v2771 = vadd.f32 %v2769, %v2770
    %v2772 = vsel %vm232, %v2760, 0.0
    %v2773 = vadd.f32 %v2771, %v2772
    %v2774 = vsel %vm232, %v2761, 0.0
    %v2775 = vadd.f32 %v2773, %v2774
    %v2776 = vsel %vm232, %v2762, 0.0
    %v2777 = vadd.f32 %v2775, %v2776
    %v2778 = vld [vmem:[%s6] sm:$0xff]
    %v2779 = vld [vmem:[%s6 + $0x8] sm:$0xff]
    %v2780 = vld [vmem:[%s6 + $0x10] sm:$0xff]
    %v2781 = vld [vmem:[%s6 + $0x18] sm:$0xff]
    %v2782 = vld [vmem:[%s6 + $0x20] sm:$0xff]
    %v2783 = vld [vmem:[%s6 + $0x28] sm:$0xff]
    %v2784 = vld [vmem:[%s6 + $0x30] sm:$0xff]
    %v2785 = vld [vmem:[%s6 + $0x38] sm:$0xff]
    %v2786 = vld [vmem:[%s6 + $0x40] sm:$0xff]
    %v2787 = vld [vmem:[%s6 + $0x48] sm:$0xff]
    %v2788 = vld [vmem:[%s6 + $0x50] sm:$0xff]
    %v2789 = vld [vmem:[%s6 + $0x58] sm:$0xff]
    %v2790 = vld [vmem:[%s6 + $0x60] sm:$0xff]
    %v2791 = vld [vmem:[%s6 + $0x68] sm:$0xff]
    %v2792 = vld [vmem:[%s6 + $0x70] sm:$0xff]
    %v2793 = vld [vmem:[%s6 + $0x78] sm:$0xff]
    %v2794 = vld [vmem:[%s7] sm:$0xff]
    %v2795 = vld [vmem:[%s7 + $0x8] sm:$0xff]
    %v2796 = vld [vmem:[%s7 + $0x10] sm:$0xff]
    %v2797 = vld [vmem:[%s7 + $0x18] sm:$0xff]
    %v2799 = vsel %vm232, %v2777, 0
    %2801 = vmatprep.subr.mxu0 0.0
    %2802 = vmatpush1.msra.mxu0 0.0
    %2803 = vmatprep.subr.mxu0 0.0
    %2804 = vmatpush1.msra.mxu0 0.0
    %2805 = vmatprep.subr.mxu0 0.0
    %2806 = vmatpush1.msra.mxu0 0.0
    %2807 = vmatprep.subr.mxu0 0.0
    %2808 = vmatpush1.msra.mxu0 0.0
    %2809 = vmatprep.subr.mxu0 0.0
    %2810 = vmatpush1.msra.mxu0 0.0
    %2811 = vmatprep.subr.mxu0 0.0
    %2812 = vmatpush1.msra.mxu0 0.0
    %2813 = vmatprep.subr.mxu0 0.0
    %2814 = vmatpush1.msra.mxu0 0.0
    %2815 = vmatprep.subr.mxu0 0.0
    %2816 = vmatpush1.msra.mxu0 0.0
    %2817 = vmatprep.subr.mxu0 0.0
    %2818 = vmatpush1.msra.mxu0 0.0
    %2819 = vmatprep.subr.mxu0 0.0
    %2820 = vmatpush1.msra.mxu0 0.0
    %2821 = vmatprep.subr.mxu0 0.0
    %2822 = vmatpush1.msra.mxu0 0.0
    %2823 = vmatprep.subr.mxu0 0.0
    %2824 = vmatpush1.msra.mxu0 0.0
    %2825 = vmatprep.subr.mxu0 0.0
    %2826 = vmatpush1.msra.mxu0 %v2797
    %2827 = vmatprep.subr.mxu0 0.0
    %2828 = vmatpush1.msra.mxu0 %v2796
    %2829 = vmatprep.subr.mxu0 0.0
    %2830 = vmatpush1.msra.mxu0 %v2795
    %2831 = vmatprep.subr.mxu0 0.0
    %2832 = vmatpush1.msra.mxu0 %v2794
    %2833 = vmatprep.subr.mxu0 0.0
    %2834 = vmatpush2.msra.mxu0 0.0
    %2835 = vmatprep.subr.mxu0 0.0
    %2836 = vmatpush2.msra.mxu0 0.0
    %2837 = vmatprep.subr.mxu0 0.0
    %2838 = vmatpush2.msra.mxu0 0.0
    %2839 = vmatprep.subr.mxu0 0.0
    %2840 = vmatpush2.msra.mxu0 0.0
    %2841 = vmatprep.subr.mxu0 0.0
    %2842 = vmatpush2.msra.mxu0 0.0
    %2843 = vmatprep.subr.mxu0 0.0
    %2844 = vmatpush2.msra.mxu0 0.0
    %2845 = vmatprep.subr.mxu0 0.0
    %2846 = vmatpush2.msra.mxu0 0.0
    %2847 = vmatprep.subr.mxu0 0.0
    %2848 = vmatpush2.msra.mxu0 0.0
    %2849 = vmatprep.subr.mxu0 0.0
    %2850 = vmatpush2.msra.mxu0 0.0
    %2851 = vmatprep.subr.mxu0 0.0
    %2852 = vmatpush2.msra.mxu0 0.0
    %2853 = vmatprep.subr.mxu0 0.0
    %2854 = vmatpush2.msra.mxu0 0.0
    %2855 = vmatprep.subr.mxu0 0.0
    %2856 = vmatpush2.msra.mxu0 0.0
    %2857 = vmatprep.subr.mxu0 0.0
    %2858 = vmatpush2.msra.mxu0 0.0
    %2859 = vmatprep.subr.mxu0 0.0
    %2860 = vmatpush2.msra.mxu0 0.0
    %2861 = vmatprep.subr.mxu0 0.0
    %2862 = vmatpush2.msra.mxu0 0.0
    %2863 = vmatprep.subr.mxu0 0.0
    %2864 = vmatpush2.msra.mxu0 0.0
    %2865 = vmatprep.mubr.f32.mxu0 0.0
    %2866 = vmatmul.mubr.f32.gmra.mxu0 %v2799
    %v2867 = vpop.f32.mrf.mxu0
    %v2868 = vadd.f32 0.0, %v2867
    %v2869 = vpop.f32.mrf.mxu0
    %2870 = vdwg.mxu0
    %2871 = vmatprep.subr.mxu0 0.0
    %2872 = vmatpush1.msra.mxu0 %v2793
    %2873 = vmatprep.subr.mxu0 0.0
    %2874 = vmatpush1.msra.mxu0 %v2792
    %2875 = vmatprep.subr.mxu0 0.0
    %2876 = vmatpush1.msra.mxu0 %v2791
    %2877 = vmatprep.subr.mxu0 0.0
    %2878 = vmatpush1.msra.mxu0 %v2790
    %2879 = vmatprep.subr.mxu0 0.0
    %2880 = vmatpush1.msra.mxu0 %v2789
    %2881 = vmatprep.subr.mxu0 0.0
    %2882 = vmatpush1.msra.mxu0 %v2788
    %2883 = vmatprep.subr.mxu0 0.0
    %2884 = vmatpush1.msra.mxu0 %v2787
    %2885 = vmatprep.subr.mxu0 0.0
    %2886 = vmatpush1.msra.mxu0 %v2786
    %2887 = vmatprep.subr.mxu0 0.0
    %2888 = vmatpush1.msra.mxu0 %v2785
    %2889 = vmatprep.subr.mxu0 0.0
    %2890 = vmatpush1.msra.mxu0 %v2784
    %2891 = vmatprep.subr.mxu0 0.0
    %2892 = vmatpush1.msra.mxu0 %v2783
    %2893 = vmatprep.subr.mxu0 0.0
    %2894 = vmatpush1.msra.mxu0 %v2782
    %2895 = vmatprep.subr.mxu0 0.0
    %2896 = vmatpush1.msra.mxu0 %v2781
    %2897 = vmatprep.subr.mxu0 0.0
    %2898 = vmatpush1.msra.mxu0 %v2780
    %2899 = vmatprep.subr.mxu0 0.0
    %2900 = vmatpush1.msra.mxu0 %v2779
    %2901 = vmatprep.subr.mxu0 0.0
    %2902 = vmatpush1.msra.mxu0 %v2778
    %2903 = vmatprep.subr.mxu0 0.0
    %2904 = vmatpush2.msra.mxu0 0.0
    %2905 = vmatprep.subr.mxu0 0.0
    %2906 = vmatpush2.msra.mxu0 0.0
    %2907 = vmatprep.subr.mxu0 0.0
    %2908 = vmatpush2.msra.mxu0 0.0
    %2909 = vmatprep.subr.mxu0 0.0
    %2910 = vmatpush2.msra.mxu0 0.0
    %2911 = vmatprep.subr.mxu0 0.0
    %2912 = vmatpush2.msra.mxu0 0.0
    %2913 = vmatprep.subr.mxu0 0.0
    %2914 = vmatpush2.msra.mxu0 0.0
    %2915 = vmatprep.subr.mxu0 0.0
    %2916 = vmatpush2.msra.mxu0 0.0
    %2917 = vmatprep.subr.mxu0 0.0
    %2918 = vmatpush2.msra.mxu0 0.0
    %2919 = vmatprep.subr.mxu0 0.0
    %2920 = vmatpush2.msra.mxu0 0.0
    %2921 = vmatprep.subr.mxu0 0.0
    %2922 = vmatpush2.msra.mxu0 0.0
    %2923 = vmatprep.subr.mxu0 0.0
    %2924 = vmatpush2.msra.mxu0 0.0
    %2925 = vmatprep.subr.mxu0 0.0
    %2926 = vmatpush2.msra.mxu0 0.0
    %2927 = vmatprep.subr.mxu0 0.0
    %2928 = vmatpush2.msra.mxu0 0.0
    %2929 = vmatprep.subr.mxu0 0.0
    %2930 = vmatpush2.msra.mxu0 0.0
    %2931 = vmatprep.subr.mxu0 0.0
    %2932 = vmatpush2.msra.mxu0 0.0
    %2933 = vmatprep.subr.mxu0 0.0
    %2934 = vmatpush2.msra.mxu0 0.0
    %2935 = vmatprep.mubr.f32.mxu0 0.0
    %2936 = vmatmul.mubr.f32.gmra.mxu0 %v2569
    %v2937 = vpop.f32.mrf.mxu0
    %v2938 = vadd.f32 %v2868, %v2937
    %v2939 = vpop.f32.mrf.mxu0
    %2940 = vdwg.mxu0
    %v2941 = vld [vmem:[%s8] sm:$0xff]
    %v2942 = vld [vmem:[%s8 + $0x8] sm:$0xff]
    %v2943 = vld [vmem:[%s8 + $0x10] sm:$0xff]
    %v2944 = vld [vmem:[%s8 + $0x18] sm:$0xff]
    %2945 = vmatprep.subr.mxu0 0.0
    %2946 = vmatpush1.msra.mxu0 0.0
    %2947 = vmatprep.subr.mxu0 0.0
    %2948 = vmatpush1.msra.mxu0 0.0
    %2949 = vmatprep.subr.mxu0 0.0
    %2950 = vmatpush1.msra.mxu0 0.0
    %2951 = vmatprep.subr.mxu0 0.0
    %2952 = vmatpush1.msra.mxu0 0.0
    %2953 = vmatprep.subr.mxu0 0.0
    %2954 = vmatpush1.msra.mxu0 0.0
    %2955 = vmatprep.subr.mxu0 0.0
    %2956 = vmatpush1.msra.mxu0 0.0
    %2957 = vmatprep.subr.mxu0 0.0
    %2958 = vmatpush1.msra.mxu0 0.0
    %2959 = vmatprep.subr.mxu0 0.0
    %2960 = vmatpush1.msra.mxu0 0.0
    %2961 = vmatprep.subr.mxu0 0.0
    %2962 = vmatpush1.msra.mxu0 0.0
    %2963 = vmatprep.subr.mxu0 0.0
    %2964 = vmatpush1.msra.mxu0 0.0
    %2965 = vmatprep.subr.mxu0 0.0
    %2966 = vmatpush1.msra.mxu0 0.0
    %2967 = vmatprep.subr.mxu0 0.0
    %2968 = vmatpush1.msra.mxu0 0.0
    %2969 = vmatprep.subr.mxu0 0.0
    %2970 = vmatpush1.msra.mxu0 %v2944
    %2971 = vmatprep.subr.mxu0 0.0
    %2972 = vmatpush1.msra.mxu0 %v2943
    %2973 = vmatprep.subr.mxu0 0.0
    %2974 = vmatpush1.msra.mxu0 %v2942
    %2975 = vmatprep.subr.mxu0 0.0
    %2976 = vmatpush1.msra.mxu0 %v2941
    %2977 = vmatprep.subr.mxu0 0.0
    %2978 = vmatpush2.msra.mxu0 0.0
    %2979 = vmatprep.subr.mxu0 0.0
    %2980 = vmatpush2.msra.mxu0 0.0
    %2981 = vmatprep.subr.mxu0 0.0
    %2982 = vmatpush2.msra.mxu0 0.0
    %2983 = vmatprep.subr.mxu0 0.0
    %2984 = vmatpush2.msra.mxu0 0.0
    %2985 = vmatprep.subr.mxu0 0.0
    %2986 = vmatpush2.msra.mxu0 0.0
    %2987 = vmatprep.subr.mxu0 0.0
    %2988 = vmatpush2.msra.mxu0 0.0
    %2989 = vmatprep.subr.mxu0 0.0
    %2990 = vmatpush2.msra.mxu0 0.0
    %2991 = vmatprep.subr.mxu0 0.0
    %2992 = vmatpush2.msra.mxu0 0.0
    %2993 = vmatprep.subr.mxu0 0.0
    %2994 = vmatpush2.msra.mxu0 0.0
    %2995 = vmatprep.subr.mxu0 0.0
    %2996 = vmatpush2.msra.mxu0 0.0
    %2997 = vmatprep.subr.mxu0 0.0
    %2998 = vmatpush2.msra.mxu0 0.0
    %2999 = vmatprep.subr.mxu0 0.0
    %3000 = vmatpush2.msra.mxu0 0.0
    %3001 = vmatprep.subr.mxu0 0.0
    %3002 = vmatpush2.msra.mxu0 0.0
    %3003 = vmatprep.subr.mxu0 0.0
    %3004 = vmatpush2.msra.mxu0 0.0
    %3005 = vmatprep.subr.mxu0 0.0
    %3006 = vmatpush2.msra.mxu0 0.0
    %3007 = vmatprep.subr.mxu0 0.0
    %3008 = vmatpush2.msra.mxu0 0.0
    %3009 = vmatprep.mubr.f32.mxu0 0.0
    %3010 = vmatmul.mubr.f32.gmra.mxu0 %v2476
    %v3011 = vpop.f32.mrf.mxu0
    %v3012 = vadd.f32 0.0, %v3011
    %v3013 = vpop.f32.mrf.mxu0
    %3014 = vdwg.mxu0
    %v3015 = vadd.f32 %v2938, %v3012
    %v3016 = vld [vmem:[%s9] sm:$0x1]
    %v3018 = vlaneseq
    %v3019 = vshrl.u32 %v3018, 7
    %v3020 = vsub.s32 0, %v3019
    %v3021 = vrot.slane %v3016, %v3020
    %v3023 = vadd.f32 %v3015, %v3021
    %v3024 = vxor.u32 %v3023, 2147483648
    %v3025 = vmul.f32 %v3024, 1.442695
    %v3026 = vpow.pop %v3025
    %v3027 = vadd.f32 %v3026, 1.0
    %v3028 = vrcp.pop %v3027
    %v3029 = vmul.f32 1.0, %v3028
    %v3030 = vtanh.pop %v3023
    %v3031 = vmul.f32 %v3029, %v2388
    %3033 = vrot.lane.b32.xlu0 %v3030, 64
    %v3034 = vpop.permute.xlu0 %3033
    %v3036 = vmul.f32 %v3029, %v3034
    %3038 = vrot.lane.b32.xlu0 %v3036, 32
    %v3039 = vpop.permute.xlu0 %3038
    %v3041 = vadd.f32 %v3031, %v3039
    %v3042 = vtanh.pop %v3041
    %3044 = vrot.lane.b32.xlu0 %v3042, 64
    %v3045 = vpop.permute.xlu0 %3044
    %v3047 = vmul.f32 %v3029, %v3045
    %v3048 = vld [vmem:[%s14] sm:$0xff]
    %v3049 = vld [vmem:[%s14 + $0x8] sm:$0xff]
    %v3050 = vld [vmem:[%s14 + $0x10] sm:$0xff]
    %v3051 = vld [vmem:[%s14 + $0x18] sm:$0xff]
    %v3052 = vld [vmem:[%s15] sm:$0xff]
    %v3053 = vld [vmem:[%s15 + $0x8] sm:$0xff]
    %v3054 = vld [vmem:[%s15 + $0x10] sm:$0xff]
    %v3055 = vld [vmem:[%s15 + $0x18] sm:$0xff]
    %3056 = vmatprep.subr.mxu0 0.0
    %3057 = vmatpush1.msra.mxu0 0.0
    %3058 = vmatprep.subr.mxu0 0.0
    %3059 = vmatpush1.msra.mxu0 0.0
    %3060 = vmatprep.subr.mxu0 0.0
    %3061 = vmatpush1.msra.mxu0 0.0
    %3062 = vmatprep.subr.mxu0 0.0
    %3063 = vmatpush1.msra.mxu0 0.0
    %3064 = vmatprep.subr.mxu0 0.0
    %3065 = vmatpush1.msra.mxu0 0.0
    %3066 = vmatprep.subr.mxu0 0.0
    %3067 = vmatpush1.msra.mxu0 0.0
    %3068 = vmatprep.subr.mxu0 0.0
    %3069 = vmatpush1.msra.mxu0 0.0
    %3070 = vmatprep.subr.mxu0 0.0
    %3071 = vmatpush1.msra.mxu0 0.0
    %3072 = vmatprep.subr.mxu0 0.0
    %3073 = vmatpush1.msra.mxu0 0.0
    %3074 = vmatprep.subr.mxu0 0.0
    %3075 = vmatpush1.msra.mxu0 0.0
    %3076 = vmatprep.subr.mxu0 0.0
    %3077 = vmatpush1.msra.mxu0 0.0
    %3078 = vmatprep.subr.mxu0 0.0
    %3079 = vmatpush1.msra.mxu0 0.0
    %3080 = vmatprep.subr.mxu0 0.0
    %3081 = vmatpush1.msra.mxu0 %v3055
    %3082 = vmatprep.subr.mxu0 0.0
    %3083 = vmatpush1.msra.mxu0 %v3054
    %3084 = vmatprep.subr.mxu0 0.0
    %3085 = vmatpush1.msra.mxu0 %v3053
    %3086 = vmatprep.subr.mxu0 0.0
    %3087 = vmatpush1.msra.mxu0 %v3052
    %3088 = vmatprep.subr.mxu0 0.0
    %3089 = vmatpush2.msra.mxu0 0.0
    %3090 = vmatprep.subr.mxu0 0.0
    %3091 = vmatpush2.msra.mxu0 0.0
    %3092 = vmatprep.subr.mxu0 0.0
    %3093 = vmatpush2.msra.mxu0 0.0
    %3094 = vmatprep.subr.mxu0 0.0
    %3095 = vmatpush2.msra.mxu0 0.0
    %3096 = vmatprep.subr.mxu0 0.0
    %3097 = vmatpush2.msra.mxu0 0.0
    %3098 = vmatprep.subr.mxu0 0.0
    %3099 = vmatpush2.msra.mxu0 0.0
    %3100 = vmatprep.subr.mxu0 0.0
    %3101 = vmatpush2.msra.mxu0 0.0
    %3102 = vmatprep.subr.mxu0 0.0
    %3103 = vmatpush2.msra.mxu0 0.0
    %3104 = vmatprep.subr.mxu0 0.0
    %3105 = vmatpush2.msra.mxu0 0.0
    %3106 = vmatprep.subr.mxu0 0.0
    %3107 = vmatpush2.msra.mxu0 0.0
    %3108 = vmatprep.subr.mxu0 0.0
    %3109 = vmatpush2.msra.mxu0 0.0
    %3110 = vmatprep.subr.mxu0 0.0
    %3111 = vmatpush2.msra.mxu0 0.0
    %3112 = vmatprep.subr.mxu0 0.0
    %3113 = vmatpush2.msra.mxu0 0.0
    %3114 = vmatprep.subr.mxu0 0.0
    %3115 = vmatpush2.msra.mxu0 0.0
    %3116 = vmatprep.subr.mxu0 0.0
    %3117 = vmatpush2.msra.mxu0 0.0
    %3118 = vmatprep.subr.mxu0 0.0
    %3119 = vmatpush2.msra.mxu0 0.0
    %3120 = vmatprep.mubr.f32.mxu0 0.0
    %3121 = vmatmul.mubr.f32.gmra.mxu0 %v2799
    %v3122 = vpop.f32.mrf.mxu0
    %v3123 = vadd.f32 0.0, %v3122
    %v3124 = vpop.f32.mrf.mxu0
    %3125 = vdwg.mxu0
    %3127 = vrot.lane.b32.xlu0 %v3047, 32
    %v3128 = vpop.permute.xlu0 %3127
    %v3129 = vsel %vm232, %v3128, 0
    %3131 = vmatprep.subr.mxu0 0.0
    %3132 = vmatpush1.msra.mxu0 0.0
    %3133 = vmatprep.subr.mxu0 0.0
    %3134 = vmatpush1.msra.mxu0 0.0
    %3135 = vmatprep.subr.mxu0 0.0
    %3136 = vmatpush1.msra.mxu0 0.0
    %3137 = vmatprep.subr.mxu0 0.0
    %3138 = vmatpush1.msra.mxu0 0.0
    %3139 = vmatprep.subr.mxu0 0.0
    %3140 = vmatpush1.msra.mxu0 0.0
    %3141 = vmatprep.subr.mxu0 0.0
    %3142 = vmatpush1.msra.mxu0 0.0
    %3143 = vmatprep.subr.mxu0 0.0
    %3144 = vmatpush1.msra.mxu0 0.0
    %3145 = vmatprep.subr.mxu0 0.0
    %3146 = vmatpush1.msra.mxu0 0.0
    %3147 = vmatprep.subr.mxu0 0.0
    %3148 = vmatpush1.msra.mxu0 0.0
    %3149 = vmatprep.subr.mxu0 0.0
    %3150 = vmatpush1.msra.mxu0 0.0
    %3151 = vmatprep.subr.mxu0 0.0
    %3152 = vmatpush1.msra.mxu0 0.0
    %3153 = vmatprep.subr.mxu0 0.0
    %3154 = vmatpush1.msra.mxu0 0.0
    %3155 = vmatprep.subr.mxu0 0.0
    %3156 = vmatpush1.msra.mxu0 %v3051
    %3157 = vmatprep.subr.mxu0 0.0
    %3158 = vmatpush1.msra.mxu0 %v3050
    %3159 = vmatprep.subr.mxu0 0.0
    %3160 = vmatpush1.msra.mxu0 %v3049
    %3161 = vmatprep.subr.mxu0 0.0
    %3162 = vmatpush1.msra.mxu0 %v3048
    %3163 = vmatprep.subr.mxu0 0.0
    %3164 = vmatpush2.msra.mxu0 0.0
    %3165 = vmatprep.subr.mxu0 0.0
    %3166 = vmatpush2.msra.mxu0 0.0
    %3167 = vmatprep.subr.mxu0 0.0
    %3168 = vmatpush2.msra.mxu0 0.0
    %3169 = vmatprep.subr.mxu0 0.0
    %3170 = vmatpush2.msra.mxu0 0.0
    %3171 = vmatprep.subr.mxu0 0.0
    %3172 = vmatpush2.msra.mxu0 0.0
    %3173 = vmatprep.subr.mxu0 0.0
    %3174 = vmatpush2.msra.mxu0 0.0
    %3175 = vmatprep.subr.mxu0 0.0
    %3176 = vmatpush2.msra.mxu0 0.0
    %3177 = vmatprep.subr.mxu0 0.0
    %3178 = vmatpush2.msra.mxu0 0.0
    %3179 = vmatprep.subr.mxu0 0.0
    %3180 = vmatpush2.msra.mxu0 0.0
    %3181 = vmatprep.subr.mxu0 0.0
    %3182 = vmatpush2.msra.mxu0 0.0
    %3183 = vmatprep.subr.mxu0 0.0
    %3184 = vmatpush2.msra.mxu0 0.0
    %3185 = vmatprep.subr.mxu0 0.0
    %3186 = vmatpush2.msra.mxu0 0.0
    %3187 = vmatprep.subr.mxu0 0.0
    %3188 = vmatpush2.msra.mxu0 0.0
    %3189 = vmatprep.subr.mxu0 0.0
    %3190 = vmatpush2.msra.mxu0 0.0
    %3191 = vmatprep.subr.mxu0 0.0
    %3192 = vmatpush2.msra.mxu0 0.0
    %3193 = vmatprep.subr.mxu0 0.0
    %3194 = vmatpush2.msra.mxu0 0.0
    %3195 = vmatprep.mubr.f32.mxu0 0.0
    %3196 = vmatmul.mubr.f32.gmra.mxu0 %v3129
    %v3197 = vpop.f32.mrf.mxu0
    %v3198 = vadd.f32 %v3123, %v3197
    %v3199 = vpop.f32.mrf.mxu0
    %3200 = vdwg.mxu0
    %v3201 = vld [vmem:[%s16] sm:$0x1]
    %v3203 = vlaneseq
    %v3204 = vshrl.u32 %v3203, 7
    %v3205 = vsub.s32 0, %v3204
    %v3206 = vrot.slane %v3201, %v3205
    %v3208 = vadd.f32 %v3198, %v3206
    %s3209 = scalar_lea.vmem %s17, 16
    %3210 = vst [vmem:[%s3209] sm:$0xff] %v3208
    %s3211 = sld [smem:[#allocation5 + $0x2]]
    %p3212 = scmp.gt.s32.totalorder %s3211, 0
    %s3213 = scalar_select %p3212, 1, 0
    %s3214 = scvt.s32.f32 %s3213
    %s3215 = scalar_lea.vmem %s1, 24
    %v3216 = vld [vmem:[%s3215] sm:$0xff]
    %v3217 = vstv %s3214
    %v3218 = vmul.f32 %v3217, %v3216
    %s3219 = ssub.f32 1.0, %s3214
    %v3220 = vstv %s3219
    %v3221 = vmul.f32 %v3220, %v3208
    %v3222 = vadd.f32 %v3218, %v3221
    %v3223 = vld [vmem:[%s10] sm:$0xff]
    %v3224 = vld [vmem:[%s10 + $0x8] sm:$0xff]
    %v3225 = vld [vmem:[%s10 + $0x10] sm:$0xff]
    %v3226 = vld [vmem:[%s10 + $0x18] sm:$0xff]
    %3227 = vmatprep.subr.mxu0 0.0
    %3228 = vmatpush1.msra.mxu0 0.0
    %3229 = vmatprep.subr.mxu0 0.0
    %3230 = vmatpush1.msra.mxu0 0.0
    %3231 = vmatprep.subr.mxu0 0.0
    %3232 = vmatpush1.msra.mxu0 0.0
    %3233 = vmatprep.subr.mxu0 0.0
    %3234 = vmatpush1.msra.mxu0 0.0
    %3235 = vmatprep.subr.mxu0 0.0
    %3236 = vmatpush1.msra.mxu0 0.0
    %3237 = vmatprep.subr.mxu0 0.0
    %3238 = vmatpush1.msra.mxu0 0.0
    %3239 = vmatprep.subr.mxu0 0.0
    %3240 = vmatpush1.msra.mxu0 0.0
    %3241 = vmatprep.subr.mxu0 0.0
    %3242 = vmatpush1.msra.mxu0 0.0
    %3243 = vmatprep.subr.mxu0 0.0
    %3244 = vmatpush1.msra.mxu0 0.0
    %3245 = vmatprep.subr.mxu0 0.0
    %3246 = vmatpush1.msra.mxu0 0.0
    %3247 = vmatprep.subr.mxu0 0.0
    %3248 = vmatpush1.msra.mxu0 0.0
    %3249 = vmatprep.subr.mxu0 0.0
    %3250 = vmatpush1.msra.mxu0 0.0
    %3251 = vmatprep.subr.mxu0 0.0
    %3252 = vmatpush1.msra.mxu0 %v3226
    %3253 = vmatprep.subr.mxu0 0.0
    %3254 = vmatpush1.msra.mxu0 %v3225
    %3255 = vmatprep.subr.mxu0 0.0
    %3256 = vmatpush1.msra.mxu0 %v3224
    %3257 = vmatprep.subr.mxu0 0.0
    %3258 = vmatpush1.msra.mxu0 %v3223
    %3259 = vmatprep.subr.mxu0 0.0
    %3260 = vmatpush2.msra.mxu0 0.0
    %3261 = vmatprep.subr.mxu0 0.0
    %3262 = vmatpush2.msra.mxu0 0.0
    %3263 = vmatprep.subr.mxu0 0.0
    %3264 = vmatpush2.msra.mxu0 0.0
    %3265 = vmatprep.subr.mxu0 0.0
    %3266 = vmatpush2.msra.mxu0 0.0
    %3267 = vmatprep.subr.mxu0 0.0
    %3268 = vmatpush2.msra.mxu0 0.0
    %3269 = vmatprep.subr.mxu0 0.0
    %3270 = vmatpush2.msra.mxu0 0.0
    %3271 = vmatprep.subr.mxu0 0.0
    %3272 = vmatpush2.msra.mxu0 0.0
    %3273 = vmatprep.subr.mxu0 0.0
    %3274 = vmatpush2.msra.mxu0 0.0
    %3275 = vmatprep.subr.mxu0 0.0
    %3276 = vmatpush2.msra.mxu0 0.0
    %3277 = vmatprep.subr.mxu0 0.0
    %3278 = vmatpush2.msra.mxu0 0.0
    %3279 = vmatprep.subr.mxu0 0.0
    %3280 = vmatpush2.msra.mxu0 0.0
    %3281 = vmatprep.subr.mxu0 0.0
    %3282 = vmatpush2.msra.mxu0 0.0
    %3283 = vmatprep.subr.mxu0 0.0
    %3284 = vmatpush2.msra.mxu0 0.0
    %3285 = vmatprep.subr.mxu0 0.0
    %3286 = vmatpush2.msra.mxu0 0.0
    %3287 = vmatprep.subr.mxu0 0.0
    %3288 = vmatpush2.msra.mxu0 0.0
    %3289 = vmatprep.subr.mxu0 0.0
    %3290 = vmatpush2.msra.mxu0 0.0
    %3291 = vmatprep.mubr.f32.mxu0 0.0
    %3292 = vmatmul.mubr.f32.gmra.mxu0 %v3129
    %v3293 = vpop.f32.mrf.mxu0
    %v3294 = vadd.f32 0.0, %v3293
    %v3295 = vpop.f32.mrf.mxu0
    %3296 = vdwg.mxu0
    %v3297 = vld [vmem:[#allocation4] sm:$0xff]
    %v3298 = vld [vmem:[#allocation4 + $0x8] sm:$0xff]
    %v3299 = vld [vmem:[#allocation4 + $0x10] sm:$0xff]
    %v3300 = vld [vmem:[#allocation4 + $0x18] sm:$0xff]
    %v3301 = vld [vmem:[#allocation4 + $0x20] sm:$0xff]
    %v3302 = vld [vmem:[#allocation4 + $0x28] sm:$0xff]
    %v3303 = vld [vmem:[#allocation4 + $0x30] sm:$0xff]
    %v3304 = vld [vmem:[#allocation4 + $0x38] sm:$0xff]
    %v3305 = vadd.f32 %v3297, %v3294
    %v3306 = vadd.f32 %v3298, %v3294
    %v3307 = vadd.f32 %v3299, %v3294
    %v3308 = vadd.f32 %v3300, %v3294
    %v3309 = vadd.f32 %v3301, %v3294
    %v3310 = vadd.f32 %v3302, %v3294
    %v3311 = vadd.f32 %v3303, %v3294
    %v3312 = vadd.f32 %v3304, %v3294
    %v3313 = vtanh.pop %v3305
    %v3314 = vtanh.pop %v3306
    %v3315 = vtanh.pop %v3307
    %v3316 = vtanh.pop %v3308
    %v3317 = vtanh.pop %v3309
    %v3318 = vtanh.pop %v3310
    %v3319 = vtanh.pop %v3311
    %v3320 = vtanh.pop %v3312
    %v3321 = vmul.f32 %v3313, %v1361
    %v3322 = vmul.f32 %v3314, %v1361
    %v3323 = vmul.f32 %v3315, %v1361
    %v3324 = vmul.f32 %v3316, %v1361
    %v3325 = vmul.f32 %v3317, %v1361
    %v3326 = vmul.f32 %v3318, %v1361
    %v3327 = vmul.f32 %v3319, %v1361
    %v3328 = vmul.f32 %v3320, %v1361
    %v3329 = vsel %vm232, %v3321, 0.0
    %3330 = vadd.xlane.f32.xlu0 %v3329
    %v3331 = vpop.xlane.xlu0 %3330
    %v3332 = vsel %vm232, %v3322, 0.0
    %3333 = vadd.xlane.f32.xlu0 %v3332
    %v3334 = vpop.xlane.xlu0 %3333
    %v3335 = vsel %vm232, %v3323, 0.0
    %3336 = vadd.xlane.f32.xlu0 %v3335
    %v3337 = vpop.xlane.xlu0 %3336
    %v3338 = vsel %vm232, %v3324, 0.0
    %3339 = vadd.xlane.f32.xlu0 %v3338
    %v3340 = vpop.xlane.xlu0 %3339
    %v3341 = vsel %vm232, %v3325, 0.0
    %3342 = vadd.xlane.f32.xlu0 %v3341
    %v3343 = vpop.xlane.xlu0 %3342
    %v3344 = vsel %vm232, %v3326, 0.0
    %3345 = vadd.xlane.f32.xlu0 %v3344
    %v3346 = vpop.xlane.xlu0 %3345
    %v3347 = vsel %vm232, %v3327, 0.0
    %3348 = vadd.xlane.f32.xlu0 %v3347
    %v3349 = vpop.xlane.xlu0 %3348
    %v3350 = vsel %vm232, %v3328, 0.0
    %3351 = vadd.xlane.f32.xlu0 %v3350
    %v3352 = vpop.xlane.xlu0 %3351
    %v3353 = vmax.f32 %v3331, %v3343
    %v3354 = vmax.f32 %v3334, %v3346
    %v3355 = vmax.f32 %v3337, %v3349
    %v3356 = vmax.f32 %v3340, %v3352
    %v3357 = vmax.f32 %v3353, %v3354
    %v3358 = vmax.f32 %v3355, %v3356
    %v3359 = vmax.f32 %v3357, %v3358
    %v3360 = vsub.f32 %v3331, %v3359
    %v3361 = vsub.f32 %v3334, %v3359
    %v3362 = vsub.f32 %v3337, %v3359
    %v3363 = vsub.f32 %v3340, %v3359
    %v3364 = vsub.f32 %v3343, %v3359
    %v3365 = vsub.f32 %v3346, %v3359
    %v3366 = vsub.f32 %v3349, %v3359
    %v3367 = vsub.f32 %v3352, %v3359
    %v3368 = vmul.f32 %v3360, 1.442695
    %v3369 = vpow.pop %v3368
    %v3370 = vmul.f32 %v3361, 1.442695
    %v3371 = vpow.pop %v3370
    %v3372 = vmul.f32 %v3362, 1.442695
    %v3373 = vpow.pop %v3372
    %v3374 = vmul.f32 %v3363, 1.442695
    %v3375 = vpow.pop %v3374
    %v3376 = vmul.f32 %v3364, 1.442695
    %v3377 = vpow.pop %v3376
    %v3378 = vmul.f32 %v3365, 1.442695
    %v3379 = vpow.pop %v3378
    %v3380 = vmul.f32 %v3366, 1.442695
    %v3381 = vpow.pop %v3380
    %v3382 = vmul.f32 %v3367, 1.442695
    %v3383 = vpow.pop %v3382
    %v3384 = vadd.f32 %v3369, %v3371
    %v3385 = vadd.f32 %v3384, %v3373
    %v3386 = vadd.f32 %v3385, %v3375
    %v3387 = vadd.f32 %v3386, %v3377
    %v3388 = vadd.f32 %v3387, %v3379
    %v3389 = vadd.f32 %v3388, %v3381
    %v3390 = vadd.f32 %v3389, %v3383
    %v3391 = vrcp.pop %v3390
    %v3392 = vmul.f32 %v3369, %v3391
    %v3393 = vmul.f32 %v3371, %v3391
    %v3394 = vmul.f32 %v3373, %v3391
    %v3395 = vmul.f32 %v3375, %v3391
    %v3396 = vmul.f32 %v3377, %v3391
    %v3397 = vmul.f32 %v3379, %v3391
    %v3398 = vmul.f32 %v3381, %v3391
    %v3399 = vmul.f32 %v3383, %v3391
    %v3400 = vld [vmem:[#allocation3] sm:$0xff]
    %v3401 = vld [vmem:[#allocation3 + $0x8] sm:$0xff]
    %v3402 = vld [vmem:[#allocation3 + $0x10] sm:$0xff]
    %v3403 = vld [vmem:[#allocation3 + $0x18] sm:$0xff]
    %v3404 = vld [vmem:[#allocation3 + $0x20] sm:$0xff]
    %v3405 = vld [vmem:[#allocation3 + $0x28] sm:$0xff]
    %v3406 = vld [vmem:[#allocation3 + $0x30] sm:$0xff]
    %v3407 = vld [vmem:[#allocation3 + $0x38] sm:$0xff]
    %v3408 = vmul.f32 %v3392, %v3400
    %v3409 = vmul.f32 %v3393, %v3401
    %v3410 = vmul.f32 %v3394, %v3402
    %v3411 = vmul.f32 %v3395, %v3403
    %v3412 = vmul.f32 %v3396, %v3404
    %v3413 = vmul.f32 %v3397, %v3405
    %v3414 = vmul.f32 %v3398, %v3406
    %v3415 = vmul.f32 %v3399, %v3407
    %v3416 = vsel %vm232, %v3408, 0.0
    %v3417 = vsel %vm232, %v3409, 0.0
    %v3418 = vadd.f32 %v3416, %v3417
    %v3419 = vsel %vm232, %v3410, 0.0
    %v3420 = vadd.f32 %v3418, %v3419
    %v3421 = vsel %vm232, %v3411, 0.0
    %v3422 = vadd.f32 %v3420, %v3421
    %v3423 = vsel %vm232, %v3412, 0.0
    %v3424 = vadd.f32 %v3422, %v3423
    %v3425 = vsel %vm232, %v3413, 0.0
    %v3426 = vadd.f32 %v3424, %v3425
    %v3427 = vsel %vm232, %v3414, 0.0
    %v3428 = vadd.f32 %v3426, %v3427
    %v3429 = vsel %vm232, %v3415, 0.0
    %v3430 = vadd.f32 %v3428, %v3429
    %v3431 = vld [vmem:[%s6] sm:$0xff]
    %v3432 = vld [vmem:[%s6 + $0x8] sm:$0xff]
    %v3433 = vld [vmem:[%s6 + $0x10] sm:$0xff]
    %v3434 = vld [vmem:[%s6 + $0x18] sm:$0xff]
    %v3435 = vld [vmem:[%s6 + $0x20] sm:$0xff]
    %v3436 = vld [vmem:[%s6 + $0x28] sm:$0xff]
    %v3437 = vld [vmem:[%s6 + $0x30] sm:$0xff]
    %v3438 = vld [vmem:[%s6 + $0x38] sm:$0xff]
    %v3439 = vld [vmem:[%s6 + $0x40] sm:$0xff]
    %v3440 = vld [vmem:[%s6 + $0x48] sm:$0xff]
    %v3441 = vld [vmem:[%s6 + $0x50] sm:$0xff]
    %v3442 = vld [vmem:[%s6 + $0x58] sm:$0xff]
    %v3443 = vld [vmem:[%s6 + $0x60] sm:$0xff]
    %v3444 = vld [vmem:[%s6 + $0x68] sm:$0xff]
    %v3445 = vld [vmem:[%s6 + $0x70] sm:$0xff]
    %v3446 = vld [vmem:[%s6 + $0x78] sm:$0xff]
    %v3447 = vld [vmem:[%s7] sm:$0xff]
    %v3448 = vld [vmem:[%s7 + $0x8] sm:$0xff]
    %v3449 = vld [vmem:[%s7 + $0x10] sm:$0xff]
    %v3450 = vld [vmem:[%s7 + $0x18] sm:$0xff]
    %v3452 = vsel %vm232, %v3430, 0
    %3454 = vmatprep.subr.mxu0 0.0
    %3455 = vmatpush1.msra.mxu0 0.0
    %3456 = vmatprep.subr.mxu0 0.0
    %3457 = vmatpush1.msra.mxu0 0.0
    %3458 = vmatprep.subr.mxu0 0.0
    %3459 = vmatpush1.msra.mxu0 0.0
    %3460 = vmatprep.subr.mxu0 0.0
    %3461 = vmatpush1.msra.mxu0 0.0
    %3462 = vmatprep.subr.mxu0 0.0
    %3463 = vmatpush1.msra.mxu0 0.0
    %3464 = vmatprep.subr.mxu0 0.0
    %3465 = vmatpush1.msra.mxu0 0.0
    %3466 = vmatprep.subr.mxu0 0.0
    %3467 = vmatpush1.msra.mxu0 0.0
    %3468 = vmatprep.subr.mxu0 0.0
    %3469 = vmatpush1.msra.mxu0 0.0
    %3470 = vmatprep.subr.mxu0 0.0
    %3471 = vmatpush1.msra.mxu0 0.0
    %3472 = vmatprep.subr.mxu0 0.0
    %3473 = vmatpush1.msra.mxu0 0.0
    %3474 = vmatprep.subr.mxu0 0.0
    %3475 = vmatpush1.msra.mxu0 0.0
    %3476 = vmatprep.subr.mxu0 0.0
    %3477 = vmatpush1.msra.mxu0 0.0
    %3478 = vmatprep.subr.mxu0 0.0
    %3479 = vmatpush1.msra.mxu0 %v3450
    %3480 = vmatprep.subr.mxu0 0.0
    %3481 = vmatpush1.msra.mxu0 %v3449
    %3482 = vmatprep.subr.mxu0 0.0
    %3483 = vmatpush1.msra.mxu0 %v3448
    %3484 = vmatprep.subr.mxu0 0.0
    %3485 = vmatpush1.msra.mxu0 %v3447
    %3486 = vmatprep.subr.mxu0 0.0
    %3487 = vmatpush2.msra.mxu0 0.0
    %3488 = vmatprep.subr.mxu0 0.0
    %3489 = vmatpush2.msra.mxu0 0.0
    %3490 = vmatprep.subr.mxu0 0.0
    %3491 = vmatpush2.msra.mxu0 0.0
    %3492 = vmatprep.subr.mxu0 0.0
    %3493 = vmatpush2.msra.mxu0 0.0
    %3494 = vmatprep.subr.mxu0 0.0
    %3495 = vmatpush2.msra.mxu0 0.0
    %3496 = vmatprep.subr.mxu0 0.0
    %3497 = vmatpush2.msra.mxu0 0.0
    %3498 = vmatprep.subr.mxu0 0.0
    %3499 = vmatpush2.msra.mxu0 0.0
    %3500 = vmatprep.subr.mxu0 0.0
    %3501 = vmatpush2.msra.mxu0 0.0
    %3502 = vmatprep.subr.mxu0 0.0
    %3503 = vmatpush2.msra.mxu0 0.0
    %3504 = vmatprep.subr.mxu0 0.0
    %3505 = vmatpush2.msra.mxu0 0.0
    %3506 = vmatprep.subr.mxu0 0.0
    %3507 = vmatpush2.msra.mxu0 0.0
    %3508 = vmatprep.subr.mxu0 0.0
    %3509 = vmatpush2.msra.mxu0 0.0
    %3510 = vmatprep.subr.mxu0 0.0
    %3511 = vmatpush2.msra.mxu0 0.0
    %3512 = vmatprep.subr.mxu0 0.0
    %3513 = vmatpush2.msra.mxu0 0.0
    %3514 = vmatprep.subr.mxu0 0.0
    %3515 = vmatpush2.msra.mxu0 0.0
    %3516 = vmatprep.subr.mxu0 0.0
    %3517 = vmatpush2.msra.mxu0 0.0
    %3518 = vmatprep.mubr.f32.mxu0 0.0
    %3519 = vmatmul.mubr.f32.gmra.mxu0 %v3452
    %v3520 = vpop.f32.mrf.mxu0
    %v3521 = vadd.f32 0.0, %v3520
    %v3522 = vpop.f32.mrf.mxu0
    %3523 = vdwg.mxu0
    %3524 = vmatprep.subr.mxu0 0.0
    %3525 = vmatpush1.msra.mxu0 %v3446
    %3526 = vmatprep.subr.mxu0 0.0
    %3527 = vmatpush1.msra.mxu0 %v3445
    %3528 = vmatprep.subr.mxu0 0.0
    %3529 = vmatpush1.msra.mxu0 %v3444
    %3530 = vmatprep.subr.mxu0 0.0
    %3531 = vmatpush1.msra.mxu0 %v3443
    %3532 = vmatprep.subr.mxu0 0.0
    %3533 = vmatpush1.msra.mxu0 %v3442
    %3534 = vmatprep.subr.mxu0 0.0
    %3535 = vmatpush1.msra.mxu0 %v3441
    %3536 = vmatprep.subr.mxu0 0.0
    %3537 = vmatpush1.msra.mxu0 %v3440
    %3538 = vmatprep.subr.mxu0 0.0
    %3539 = vmatpush1.msra.mxu0 %v3439
    %3540 = vmatprep.subr.mxu0 0.0
    %3541 = vmatpush1.msra.mxu0 %v3438
    %3542 = vmatprep.subr.mxu0 0.0
    %3543 = vmatpush1.msra.mxu0 %v3437
    %3544 = vmatprep.subr.mxu0 0.0
    %3545 = vmatpush1.msra.mxu0 %v3436
    %3546 = vmatprep.subr.mxu0 0.0
    %3547 = vmatpush1.msra.mxu0 %v3435
    %3548 = vmatprep.subr.mxu0 0.0
    %3549 = vmatpush1.msra.mxu0 %v3434
    %3550 = vmatprep.subr.mxu0 0.0
    %3551 = vmatpush1.msra.mxu0 %v3433
    %3552 = vmatprep.subr.mxu0 0.0
    %3553 = vmatpush1.msra.mxu0 %v3432
    %3554 = vmatprep.subr.mxu0 0.0
    %3555 = vmatpush1.msra.mxu0 %v3431
    %3556 = vmatprep.subr.mxu0 0.0
    %3557 = vmatpush2.msra.mxu0 0.0
    %3558 = vmatprep.subr.mxu0 0.0
    %3559 = vmatpush2.msra.mxu0 0.0
    %3560 = vmatprep.subr.mxu0 0.0
    %3561 = vmatpush2.msra.mxu0 0.0
    %3562 = vmatprep.subr.mxu0 0.0
    %3563 = vmatpush2.msra.mxu0 0.0
    %3564 = vmatprep.subr.mxu0 0.0
    %3565 = vmatpush2.msra.mxu0 0.0
    %3566 = vmatprep.subr.mxu0 0.0
    %3567 = vmatpush2.msra.mxu0 0.0
    %3568 = vmatprep.subr.mxu0 0.0
    %3569 = vmatpush2.msra.mxu0 0.0
    %3570 = vmatprep.subr.mxu0 0.0
    %3571 = vmatpush2.msra.mxu0 0.0
    %3572 = vmatprep.subr.mxu0 0.0
    %3573 = vmatpush2.msra.mxu0 0.0
    %3574 = vmatprep.subr.mxu0 0.0
    %3575 = vmatpush2.msra.mxu0 0.0
    %3576 = vmatprep.subr.mxu0 0.0
    %3577 = vmatpush2.msra.mxu0 0.0
    %3578 = vmatprep.subr.mxu0 0.0
    %3579 = vmatpush2.msra.mxu0 0.0
    %3580 = vmatprep.subr.mxu0 0.0
    %3581 = vmatpush2.msra.mxu0 0.0
    %3582 = vmatprep.subr.mxu0 0.0
    %3583 = vmatpush2.msra.mxu0 0.0
    %3584 = vmatprep.subr.mxu0 0.0
    %3585 = vmatpush2.msra.mxu0 0.0
    %3586 = vmatprep.subr.mxu0 0.0
    %3587 = vmatpush2.msra.mxu0 0.0
    %3588 = vmatprep.mubr.f32.mxu0 0.0
    %3589 = vmatmul.mubr.f32.gmra.mxu0 %v3222
    %v3590 = vpop.f32.mrf.mxu0
    %v3591 = vadd.f32 %v3521, %v3590
    %v3592 = vpop.f32.mrf.mxu0
    %3593 = vdwg.mxu0
    %v3594 = vld [vmem:[%s8] sm:$0xff]
    %v3595 = vld [vmem:[%s8 + $0x8] sm:$0xff]
    %v3596 = vld [vmem:[%s8 + $0x10] sm:$0xff]
    %v3597 = vld [vmem:[%s8 + $0x18] sm:$0xff]
    %3598 = vmatprep.subr.mxu0 0.0
    %3599 = vmatpush1.msra.mxu0 0.0
    %3600 = vmatprep.subr.mxu0 0.0
    %3601 = vmatpush1.msra.mxu0 0.0
    %3602 = vmatprep.subr.mxu0 0.0
    %3603 = vmatpush1.msra.mxu0 0.0
    %3604 = vmatprep.subr.mxu0 0.0
    %3605 = vmatpush1.msra.mxu0 0.0
    %3606 = vmatprep.subr.mxu0 0.0
    %3607 = vmatpush1.msra.mxu0 0.0
    %3608 = vmatprep.subr.mxu0 0.0
    %3609 = vmatpush1.msra.mxu0 0.0
    %3610 = vmatprep.subr.mxu0 0.0
    %3611 = vmatpush1.msra.mxu0 0.0
    %3612 = vmatprep.subr.mxu0 0.0
    %3613 = vmatpush1.msra.mxu0 0.0
    %3614 = vmatprep.subr.mxu0 0.0
    %3615 = vmatpush1.msra.mxu0 0.0
    %3616 = vmatprep.subr.mxu0 0.0
    %3617 = vmatpush1.msra.mxu0 0.0
    %3618 = vmatprep.subr.mxu0 0.0
    %3619 = vmatpush1.msra.mxu0 0.0
    %3620 = vmatprep.subr.mxu0 0.0
    %3621 = vmatpush1.msra.mxu0 0.0
    %3622 = vmatprep.subr.mxu0 0.0
    %3623 = vmatpush1.msra.mxu0 %v3597
    %3624 = vmatprep.subr.mxu0 0.0
    %3625 = vmatpush1.msra.mxu0 %v3596
    %3626 = vmatprep.subr.mxu0 0.0
    %3627 = vmatpush1.msra.mxu0 %v3595
    %3628 = vmatprep.subr.mxu0 0.0
    %3629 = vmatpush1.msra.mxu0 %v3594
    %3630 = vmatprep.subr.mxu0 0.0
    %3631 = vmatpush2.msra.mxu0 0.0
    %3632 = vmatprep.subr.mxu0 0.0
    %3633 = vmatpush2.msra.mxu0 0.0
    %3634 = vmatprep.subr.mxu0 0.0
    %3635 = vmatpush2.msra.mxu0 0.0
    %3636 = vmatprep.subr.mxu0 0.0
    %3637 = vmatpush2.msra.mxu0 0.0
    %3638 = vmatprep.subr.mxu0 0.0
    %3639 = vmatpush2.msra.mxu0 0.0
    %3640 = vmatprep.subr.mxu0 0.0
    %3641 = vmatpush2.msra.mxu0 0.0
    %3642 = vmatprep.subr.mxu0 0.0
    %3643 = vmatpush2.msra.mxu0 0.0
    %3644 = vmatprep.subr.mxu0 0.0
    %3645 = vmatpush2.msra.mxu0 0.0
    %3646 = vmatprep.subr.mxu0 0.0
    %3647 = vmatpush2.msra.mxu0 0.0
    %3648 = vmatprep.subr.mxu0 0.0
    %3649 = vmatpush2.msra.mxu0 0.0
    %3650 = vmatprep.subr.mxu0 0.0
    %3651 = vmatpush2.msra.mxu0 0.0
    %3652 = vmatprep.subr.mxu0 0.0
    %3653 = vmatpush2.msra.mxu0 0.0
    %3654 = vmatprep.subr.mxu0 0.0
    %3655 = vmatpush2.msra.mxu0 0.0
    %3656 = vmatprep.subr.mxu0 0.0
    %3657 = vmatpush2.msra.mxu0 0.0
    %3658 = vmatprep.subr.mxu0 0.0
    %3659 = vmatpush2.msra.mxu0 0.0
    %3660 = vmatprep.subr.mxu0 0.0
    %3661 = vmatpush2.msra.mxu0 0.0
    %3662 = vmatprep.mubr.f32.mxu0 0.0
    %3663 = vmatmul.mubr.f32.gmra.mxu0 %v3129
    %v3664 = vpop.f32.mrf.mxu0
    %v3665 = vadd.f32 0.0, %v3664
    %v3666 = vpop.f32.mrf.mxu0
    %3667 = vdwg.mxu0
    %v3668 = vadd.f32 %v3591, %v3665
    %v3669 = vld [vmem:[%s9] sm:$0x1]
    %v3671 = vlaneseq
    %v3672 = vshrl.u32 %v3671, 7
    %v3673 = vsub.s32 0, %v3672
    %v3674 = vrot.slane %v3669, %v3673
    %v3676 = vadd.f32 %v3668, %v3674
    %v3677 = vxor.u32 %v3676, 2147483648
    %v3678 = vmul.f32 %v3677, 1.442695
    %v3679 = vpow.pop %v3678
    %v3680 = vadd.f32 %v3679, 1.0
    %v3681 = vrcp.pop %v3680
    %v3682 = vmul.f32 1.0, %v3681
    %v3683 = vtanh.pop %v3676
    %v3684 = vmul.f32 %v3682, %v3041
    %3686 = vrot.lane.b32.xlu0 %v3683, 64
    %v3687 = vpop.permute.xlu0 %3686
    %v3689 = vmul.f32 %v3682, %v3687
    %3691 = vrot.lane.b32.xlu0 %v3689, 32
    %v3692 = vpop.permute.xlu0 %3691
    %v3694 = vadd.f32 %v3684, %v3692
    %v3695 = vtanh.pop %v3694
    %3697 = vrot.lane.b32.xlu0 %v3695, 64
    %v3698 = vpop.permute.xlu0 %3697
    %v3700 = vmul.f32 %v3682, %v3698
    %v3701 = vld [vmem:[%s14] sm:$0xff]
    %v3702 = vld [vmem:[%s14 + $0x8] sm:$0xff]
    %v3703 = vld [vmem:[%s14 + $0x10] sm:$0xff]
    %v3704 = vld [vmem:[%s14 + $0x18] sm:$0xff]
    %v3705 = vld [vmem:[%s15] sm:$0xff]
    %v3706 = vld [vmem:[%s15 + $0x8] sm:$0xff]
    %v3707 = vld [vmem:[%s15 + $0x10] sm:$0xff]
    %v3708 = vld [vmem:[%s15 + $0x18] sm:$0xff]
    %3709 = vmatprep.subr.mxu0 0.0
    %3710 = vmatpush1.msra.mxu0 0.0
    %3711 = vmatprep.subr.mxu0 0.0
    %3712 = vmatpush1.msra.mxu0 0.0
    %3713 = vmatprep.subr.mxu0 0.0
    %3714 = vmatpush1.msra.mxu0 0.0
    %3715 = vmatprep.subr.mxu0 0.0
    %3716 = vmatpush1.msra.mxu0 0.0
    %3717 = vmatprep.subr.mxu0 0.0
    %3718 = vmatpush1.msra.mxu0 0.0
    %3719 = vmatprep.subr.mxu0 0.0
    %3720 = vmatpush1.msra.mxu0 0.0
    %3721 = vmatprep.subr.mxu0 0.0
    %3722 = vmatpush1.msra.mxu0 0.0
    %3723 = vmatprep.subr.mxu0 0.0
    %3724 = vmatpush1.msra.mxu0 0.0
    %3725 = vmatprep.subr.mxu0 0.0
    %3726 = vmatpush1.msra.mxu0 0.0
    %3727 = vmatprep.subr.mxu0 0.0
    %3728 = vmatpush1.msra.mxu0 0.0
    %3729 = vmatprep.subr.mxu0 0.0
    %3730 = vmatpush1.msra.mxu0 0.0
    %3731 = vmatprep.subr.mxu0 0.0
    %3732 = vmatpush1.msra.mxu0 0.0
    %3733 = vmatprep.subr.mxu0 0.0
    %3734 = vmatpush1.msra.mxu0 %v3708
    %3735 = vmatprep.subr.mxu0 0.0
    %3736 = vmatpush1.msra.mxu0 %v3707
    %3737 = vmatprep.subr.mxu0 0.0
    %3738 = vmatpush1.msra.mxu0 %v3706
    %3739 = vmatprep.subr.mxu0 0.0
    %3740 = vmatpush1.msra.mxu0 %v3705
    %3741 = vmatprep.subr.mxu0 0.0
    %3742 = vmatpush2.msra.mxu0 0.0
    %3743 = vmatprep.subr.mxu0 0.0
    %3744 = vmatpush2.msra.mxu0 0.0
    %3745 = vmatprep.subr.mxu0 0.0
    %3746 = vmatpush2.msra.mxu0 0.0
    %3747 = vmatprep.subr.mxu0 0.0
    %3748 = vmatpush2.msra.mxu0 0.0
    %3749 = vmatprep.subr.mxu0 0.0
    %3750 = vmatpush2.msra.mxu0 0.0
    %3751 = vmatprep.subr.mxu0 0.0
    %3752 = vmatpush2.msra.mxu0 0.0
    %3753 = vmatprep.subr.mxu0 0.0
    %3754 = vmatpush2.msra.mxu0 0.0
    %3755 = vmatprep.subr.mxu0 0.0
    %3756 = vmatpush2.msra.mxu0 0.0
    %3757 = vmatprep.subr.mxu0 0.0
    %3758 = vmatpush2.msra.mxu0 0.0
    %3759 = vmatprep.subr.mxu0 0.0
    %3760 = vmatpush2.msra.mxu0 0.0
    %3761 = vmatprep.subr.mxu0 0.0
    %3762 = vmatpush2.msra.mxu0 0.0
    %3763 = vmatprep.subr.mxu0 0.0
    %3764 = vmatpush2.msra.mxu0 0.0
    %3765 = vmatprep.subr.mxu0 0.0
    %3766 = vmatpush2.msra.mxu0 0.0
    %3767 = vmatprep.subr.mxu0 0.0
    %3768 = vmatpush2.msra.mxu0 0.0
    %3769 = vmatprep.subr.mxu0 0.0
    %3770 = vmatpush2.msra.mxu0 0.0
    %3771 = vmatprep.subr.mxu0 0.0
    %3772 = vmatpush2.msra.mxu0 0.0
    %3773 = vmatprep.mubr.f32.mxu0 0.0
    %3774 = vmatmul.mubr.f32.gmra.mxu0 %v3452
    %v3775 = vpop.f32.mrf.mxu0
    %v3776 = vadd.f32 0.0, %v3775
    %v3777 = vpop.f32.mrf.mxu0
    %3778 = vdwg.mxu0
    %3780 = vrot.lane.b32.xlu0 %v3700, 32
    %v3781 = vpop.permute.xlu0 %3780
    %v3782 = vsel %vm232, %v3781, 0
    %3784 = vmatprep.subr.mxu0 0.0
    %3785 = vmatpush1.msra.mxu0 0.0
    %3786 = vmatprep.subr.mxu0 0.0
    %3787 = vmatpush1.msra.mxu0 0.0
    %3788 = vmatprep.subr.mxu0 0.0
    %3789 = vmatpush1.msra.mxu0 0.0
    %3790 = vmatprep.subr.mxu0 0.0
    %3791 = vmatpush1.msra.mxu0 0.0
    %3792 = vmatprep.subr.mxu0 0.0
    %3793 = vmatpush1.msra.mxu0 0.0
    %3794 = vmatprep.subr.mxu0 0.0
    %3795 = vmatpush1.msra.mxu0 0.0
    %3796 = vmatprep.subr.mxu0 0.0
    %3797 = vmatpush1.msra.mxu0 0.0
    %3798 = vmatprep.subr.mxu0 0.0
    %3799 = vmatpush1.msra.mxu0 0.0
    %3800 = vmatprep.subr.mxu0 0.0
    %3801 = vmatpush1.msra.mxu0 0.0
    %3802 = vmatprep.subr.mxu0 0.0
    %3803 = vmatpush1.msra.mxu0 0.0
    %3804 = vmatprep.subr.mxu0 0.0
    %3805 = vmatpush1.msra.mxu0 0.0
    %3806 = vmatprep.subr.mxu0 0.0
    %3807 = vmatpush1.msra.mxu0 0.0
    %3808 = vmatprep.subr.mxu0 0.0
    %3809 = vmatpush1.msra.mxu0 %v3704
    %3810 = vmatprep.subr.mxu0 0.0
    %3811 = vmatpush1.msra.mxu0 %v3703
    %3812 = vmatprep.subr.mxu0 0.0
    %3813 = vmatpush1.msra.mxu0 %v3702
    %3814 = vmatprep.subr.mxu0 0.0
    %3815 = vmatpush1.msra.mxu0 %v3701
    %3816 = vmatprep.subr.mxu0 0.0
    %3817 = vmatpush2.msra.mxu0 0.0
    %3818 = vmatprep.subr.mxu0 0.0
    %3819 = vmatpush2.msra.mxu0 0.0
    %3820 = vmatprep.subr.mxu0 0.0
    %3821 = vmatpush2.msra.mxu0 0.0
    %3822 = vmatprep.subr.mxu0 0.0
    %3823 = vmatpush2.msra.mxu0 0.0
    %3824 = vmatprep.subr.mxu0 0.0
    %3825 = vmatpush2.msra.mxu0 0.0
    %3826 = vmatprep.subr.mxu0 0.0
    %3827 = vmatpush2.msra.mxu0 0.0
    %3828 = vmatprep.subr.mxu0 0.0
    %3829 = vmatpush2.msra.mxu0 0.0
    %3830 = vmatprep.subr.mxu0 0.0
    %3831 = vmatpush2.msra.mxu0 0.0
    %3832 = vmatprep.subr.mxu0 0.0
    %3833 = vmatpush2.msra.mxu0 0.0
    %3834 = vmatprep.subr.mxu0 0.0
    %3835 = vmatpush2.msra.mxu0 0.0
    %3836 = vmatprep.subr.mxu0 0.0
    %3837 = vmatpush2.msra.mxu0 0.0
    %3838 = vmatprep.subr.mxu0 0.0
    %3839 = vmatpush2.msra.mxu0 0.0
    %3840 = vmatprep.subr.mxu0 0.0
    %3841 = vmatpush2.msra.mxu0 0.0
    %3842 = vmatprep.subr.mxu0 0.0
    %3843 = vmatpush2.msra.mxu0 0.0
    %3844 = vmatprep.subr.mxu0 0.0
    %3845 = vmatpush2.msra.mxu0 0.0
    %3846 = vmatprep.subr.mxu0 0.0
    %3847 = vmatpush2.msra.mxu0 0.0
    %3848 = vmatprep.mubr.f32.mxu0 0.0
    %3849 = vmatmul.mubr.f32.gmra.mxu0 %v3782
    %v3850 = vpop.f32.mrf.mxu0
    %v3851 = vadd.f32 %v3776, %v3850
    %v3852 = vpop.f32.mrf.mxu0
    %3853 = vdwg.mxu0
    %v3854 = vld [vmem:[%s16] sm:$0x1]
    %v3856 = vlaneseq
    %v3857 = vshrl.u32 %v3856, 7
    %v3858 = vsub.s32 0, %v3857
    %v3859 = vrot.slane %v3854, %v3858
    %v3861 = vadd.f32 %v3851, %v3859
    %s3862 = scalar_lea.vmem %s17, 24
    %3863 = vst [vmem:[%s3862] sm:$0xff] %v3861
    %s3864 = sld [smem:[#allocation5 + $0x3]]
    %p3865 = scmp.gt.s32.totalorder %s3864, 0
    %s3866 = scalar_select %p3865, 1, 0
    %s3867 = scvt.s32.f32 %s3866
    %s3868 = scalar_lea.vmem %s1, 32
    %v3869 = vld [vmem:[%s3868] sm:$0xff]
    %v3870 = vstv %s3867
    %v3871 = vmul.f32 %v3870, %v3869
    %s3872 = ssub.f32 1.0, %s3867
    %v3873 = vstv %s3872
    %v3874 = vmul.f32 %v3873, %v3861
    %v3875 = vadd.f32 %v3871, %v3874
    %v3876 = vld [vmem:[%s10] sm:$0xff]
    %v3877 = vld [vmem:[%s10 + $0x8] sm:$0xff]
    %v3878 = vld [vmem:[%s10 + $0x10] sm:$0xff]
    %v3879 = vld [vmem:[%s10 + $0x18] sm:$0xff]
    %3880 = vmatprep.subr.mxu0 0.0
    %3881 = vmatpush1.msra.mxu0 0.0
    %3882 = vmatprep.subr.mxu0 0.0
    %3883 = vmatpush1.msra.mxu0 0.0
    %3884 = vmatprep.subr.mxu0 0.0
    %3885 = vmatpush1.msra.mxu0 0.0
    %3886 = vmatprep.subr.mxu0 0.0
    %3887 = vmatpush1.msra.mxu0 0.0
    %3888 = vmatprep.subr.mxu0 0.0
    %3889 = vmatpush1.msra.mxu0 0.0
    %3890 = vmatprep.subr.mxu0 0.0
    %3891 = vmatpush1.msra.mxu0 0.0
    %3892 = vmatprep.subr.mxu0 0.0
    %3893 = vmatpush1.msra.mxu0 0.0
    %3894 = vmatprep.subr.mxu0 0.0
    %3895 = vmatpush1.msra.mxu0 0.0
    %3896 = vmatprep.subr.mxu0 0.0
    %3897 = vmatpush1.msra.mxu0 0.0
    %3898 = vmatprep.subr.mxu0 0.0
    %3899 = vmatpush1.msra.mxu0 0.0
    %3900 = vmatprep.subr.mxu0 0.0
    %3901 = vmatpush1.msra.mxu0 0.0
    %3902 = vmatprep.subr.mxu0 0.0
    %3903 = vmatpush1.msra.mxu0 0.0
    %3904 = vmatprep.subr.mxu0 0.0
    %3905 = vmatpush1.msra.mxu0 %v3879
    %3906 = vmatprep.subr.mxu0 0.0
    %3907 = vmatpush1.msra.mxu0 %v3878
    %3908 = vmatprep.subr.mxu0 0.0
    %3909 = vmatpush1.msra.mxu0 %v3877
    %3910 = vmatprep.subr.mxu0 0.0
    %3911 = vmatpush1.msra.mxu0 %v3876
    %3912 = vmatprep.subr.mxu0 0.0
    %3913 = vmatpush2.msra.mxu0 0.0
    %3914 = vmatprep.subr.mxu0 0.0
    %3915 = vmatpush2.msra.mxu0 0.0
    %3916 = vmatprep.subr.mxu0 0.0
    %3917 = vmatpush2.msra.mxu0 0.0
    %3918 = vmatprep.subr.mxu0 0.0
    %3919 = vmatpush2.msra.mxu0 0.0
    %3920 = vmatprep.subr.mxu0 0.0
    %3921 = vmatpush2.msra.mxu0 0.0
    %3922 = vmatprep.subr.mxu0 0.0
    %3923 = vmatpush2.msra.mxu0 0.0
    %3924 = vmatprep.subr.mxu0 0.0
    %3925 = vmatpush2.msra.mxu0 0.0
    %3926 = vmatprep.subr.mxu0 0.0
    %3927 = vmatpush2.msra.mxu0 0.0
    %3928 = vmatprep.subr.mxu0 0.0
    %3929 = vmatpush2.msra.mxu0 0.0
    %3930 = vmatprep.subr.mxu0 0.0
    %3931 = vmatpush2.msra.mxu0 0.0
    %3932 = vmatprep.subr.mxu0 0.0
    %3933 = vmatpush2.msra.mxu0 0.0
    %3934 = vmatprep.subr.mxu0 0.0
    %3935 = vmatpush2.msra.mxu0 0.0
    %3936 = vmatprep.subr.mxu0 0.0
    %3937 = vmatpush2.msra.mxu0 0.0
    %3938 = vmatprep.subr.mxu0 0.0
    %3939 = vmatpush2.msra.mxu0 0.0
    %3940 = vmatprep.subr.mxu0 0.0
    %3941 = vmatpush2.msra.mxu0 0.0
    %3942 = vmatprep.subr.mxu0 0.0
    %3943 = vmatpush2.msra.mxu0 0.0
    %3944 = vmatprep.mubr.f32.mxu0 0.0
    %3945 = vmatmul.mubr.f32.gmra.mxu0 %v3782
    %v3946 = vpop.f32.mrf.mxu0
    %v3947 = vadd.f32 0.0, %v3946
    %v3948 = vpop.f32.mrf.mxu0
    %3949 = vdwg.mxu0
    %v3950 = vld [vmem:[#allocation4] sm:$0xff]
    %v3951 = vld [vmem:[#allocation4 + $0x8] sm:$0xff]
    %v3952 = vld [vmem:[#allocation4 + $0x10] sm:$0xff]
    %v3953 = vld [vmem:[#allocation4 + $0x18] sm:$0xff]
    %v3954 = vld [vmem:[#allocation4 + $0x20] sm:$0xff]
    %v3955 = vld [vmem:[#allocation4 + $0x28] sm:$0xff]
    %v3956 = vld [vmem:[#allocation4 + $0x30] sm:$0xff]
    %v3957 = vld [vmem:[#allocation4 + $0x38] sm:$0xff]
    %v3958 = vadd.f32 %v3950, %v3947
    %v3959 = vadd.f32 %v3951, %v3947
    %v3960 = vadd.f32 %v3952, %v3947
    %v3961 = vadd.f32 %v3953, %v3947
    %v3962 = vadd.f32 %v3954, %v3947
    %v3963 = vadd.f32 %v3955, %v3947
    %v3964 = vadd.f32 %v3956, %v3947
    %v3965 = vadd.f32 %v3957, %v3947
    %v3966 = vtanh.pop %v3958
    %v3967 = vtanh.pop %v3959
    %v3968 = vtanh.pop %v3960
    %v3969 = vtanh.pop %v3961
    %v3970 = vtanh.pop %v3962
    %v3971 = vtanh.pop %v3963
    %v3972 = vtanh.pop %v3964
    %v3973 = vtanh.pop %v3965
    %v3974 = vmul.f32 %v3966, %v1361
    %v3975 = vmul.f32 %v3967, %v1361
    %v3976 = vmul.f32 %v3968, %v1361
    %v3977 = vmul.f32 %v3969, %v1361
    %v3978 = vmul.f32 %v3970, %v1361
    %v3979 = vmul.f32 %v3971, %v1361
    %v3980 = vmul.f32 %v3972, %v1361
    %v3981 = vmul.f32 %v3973, %v1361
    %v3982 = vsel %vm232, %v3974, 0.0
    %3983 = vadd.xlane.f32.xlu0 %v3982
    %v3984 = vpop.xlane.xlu0 %3983
    %v3985 = vsel %vm232, %v3975, 0.0
    %3986 = vadd.xlane.f32.xlu0 %v3985
    %v3987 = vpop.xlane.xlu0 %3986
    %v3988 = vsel %vm232, %v3976, 0.0
    %3989 = vadd.xlane.f32.xlu0 %v3988
    %v3990 = vpop.xlane.xlu0 %3989
    %v3991 = vsel %vm232, %v3977, 0.0
    %3992 = vadd.xlane.f32.xlu0 %v3991
    %v3993 = vpop.xlane.xlu0 %3992
    %v3994 = vsel %vm232, %v3978, 0.0
    %3995 = vadd.xlane.f32.xlu0 %v3994
    %v3996 = vpop.xlane.xlu0 %3995
    %v3997 = vsel %vm232, %v3979, 0.0
    %3998 = vadd.xlane.f32.xlu0 %v3997
    %v3999 = vpop.xlane.xlu0 %3998
    %v4000 = vsel %vm232, %v3980, 0.0
    %4001 = vadd.xlane.f32.xlu0 %v4000
    %v4002 = vpop.xlane.xlu0 %4001
    %v4003 = vsel %vm232, %v3981, 0.0
    %4004 = vadd.xlane.f32.xlu0 %v4003
    %v4005 = vpop.xlane.xlu0 %4004
    %v4006 = vmax.f32 %v3984, %v3996
    %v4007 = vmax.f32 %v3987, %v3999
    %v4008 = vmax.f32 %v3990, %v4002
    %v4009 = vmax.f32 %v3993, %v4005
    %v4010 = vmax.f32 %v4006, %v4007
    %v4011 = vmax.f32 %v4008, %v4009
    %v4012 = vmax.f32 %v4010, %v4011
    %v4013 = vsub.f32 %v3984, %v4012
    %v4014 = vsub.f32 %v3987, %v4012
    %v4015 = vsub.f32 %v3990, %v4012
    %v4016 = vsub.f32 %v3993, %v4012
    %v4017 = vsub.f32 %v3996, %v4012
    %v4018 = vsub.f32 %v3999, %v4012
    %v4019 = vsub.f32 %v4002, %v4012
    %v4020 = vsub.f32 %v4005, %v4012
    %v4021 = vmul.f32 %v4013, 1.442695
    %v4022 = vpow.pop %v4021
    %v4023 = vmul.f32 %v4014, 1.442695
    %v4024 = vpow.pop %v4023
    %v4025 = vmul.f32 %v4015, 1.442695
    %v4026 = vpow.pop %v4025
    %v4027 = vmul.f32 %v4016, 1.442695
    %v4028 = vpow.pop %v4027
    %v4029 = vmul.f32 %v4017, 1.442695
    %v4030 = vpow.pop %v4029
    %v4031 = vmul.f32 %v4018, 1.442695
    %v4032 = vpow.pop %v4031
    %v4033 = vmul.f32 %v4019, 1.442695
    %v4034 = vpow.pop %v4033
    %v4035 = vmul.f32 %v4020, 1.442695
    %v4036 = vpow.pop %v4035
    %v4037 = vadd.f32 %v4022, %v4024
    %v4038 = vadd.f32 %v4037, %v4026
    %v4039 = vadd.f32 %v4038, %v4028
    %v4040 = vadd.f32 %v4039, %v4030
    %v4041 = vadd.f32 %v4040, %v4032
    %v4042 = vadd.f32 %v4041, %v4034
    %v4043 = vadd.f32 %v4042, %v4036
    %v4044 = vrcp.pop %v4043
    %v4045 = vmul.f32 %v4022, %v4044
    %v4046 = vmul.f32 %v4024, %v4044
    %v4047 = vmul.f32 %v4026, %v4044
    %v4048 = vmul.f32 %v4028, %v4044
    %v4049 = vmul.f32 %v4030, %v4044
    %v4050 = vmul.f32 %v4032, %v4044
    %v4051 = vmul.f32 %v4034, %v4044
    %v4052 = vmul.f32 %v4036, %v4044
    %v4053 = vld [vmem:[#allocation3] sm:$0xff]
    %v4054 = vld [vmem:[#allocation3 + $0x8] sm:$0xff]
    %v4055 = vld [vmem:[#allocation3 + $0x10] sm:$0xff]
    %v4056 = vld [vmem:[#allocation3 + $0x18] sm:$0xff]
    %v4057 = vld [vmem:[#allocation3 + $0x20] sm:$0xff]
    %v4058 = vld [vmem:[#allocation3 + $0x28] sm:$0xff]
    %v4059 = vld [vmem:[#allocation3 + $0x30] sm:$0xff]
    %v4060 = vld [vmem:[#allocation3 + $0x38] sm:$0xff]
    %v4061 = vmul.f32 %v4045, %v4053
    %v4062 = vmul.f32 %v4046, %v4054
    %v4063 = vmul.f32 %v4047, %v4055
    %v4064 = vmul.f32 %v4048, %v4056
    %v4065 = vmul.f32 %v4049, %v4057
    %v4066 = vmul.f32 %v4050, %v4058
    %v4067 = vmul.f32 %v4051, %v4059
    %v4068 = vmul.f32 %v4052, %v4060
    %v4069 = vsel %vm232, %v4061, 0.0
    %v4070 = vsel %vm232, %v4062, 0.0
    %v4071 = vadd.f32 %v4069, %v4070
    %v4072 = vsel %vm232, %v4063, 0.0
    %v4073 = vadd.f32 %v4071, %v4072
    %v4074 = vsel %vm232, %v4064, 0.0
    %v4075 = vadd.f32 %v4073, %v4074
    %v4076 = vsel %vm232, %v4065, 0.0
    %v4077 = vadd.f32 %v4075, %v4076
    %v4078 = vsel %vm232, %v4066, 0.0
    %v4079 = vadd.f32 %v4077, %v4078
    %v4080 = vsel %vm232, %v4067, 0.0
    %v4081 = vadd.f32 %v4079, %v4080
    %v4082 = vsel %vm232, %v4068, 0.0
    %v4083 = vadd.f32 %v4081, %v4082
    %v4084 = vld [vmem:[%s6] sm:$0xff]
    %v4085 = vld [vmem:[%s6 + $0x8] sm:$0xff]
    %v4086 = vld [vmem:[%s6 + $0x10] sm:$0xff]
    %v4087 = vld [vmem:[%s6 + $0x18] sm:$0xff]
    %v4088 = vld [vmem:[%s6 + $0x20] sm:$0xff]
    %v4089 = vld [vmem:[%s6 + $0x28] sm:$0xff]
    %v4090 = vld [vmem:[%s6 + $0x30] sm:$0xff]
    %v4091 = vld [vmem:[%s6 + $0x38] sm:$0xff]
    %v4092 = vld [vmem:[%s6 + $0x40] sm:$0xff]
    %v4093 = vld [vmem:[%s6 + $0x48] sm:$0xff]
    %v4094 = vld [vmem:[%s6 + $0x50] sm:$0xff]
    %v4095 = vld [vmem:[%s6 + $0x58] sm:$0xff]
    %v4096 = vld [vmem:[%s6 + $0x60] sm:$0xff]
    %v4097 = vld [vmem:[%s6 + $0x68] sm:$0xff]
    %v4098 = vld [vmem:[%s6 + $0x70] sm:$0xff]
    %v4099 = vld [vmem:[%s6 + $0x78] sm:$0xff]
    %v4100 = vld [vmem:[%s7] sm:$0xff]
    %v4101 = vld [vmem:[%s7 + $0x8] sm:$0xff]
    %v4102 = vld [vmem:[%s7 + $0x10] sm:$0xff]
    %v4103 = vld [vmem:[%s7 + $0x18] sm:$0xff]
    %v4105 = vsel %vm232, %v4083, 0
    %4107 = vmatprep.subr.mxu0 0.0
    %4108 = vmatpush1.msra.mxu0 0.0
    %4109 = vmatprep.subr.mxu0 0.0
    %4110 = vmatpush1.msra.mxu0 0.0
    %4111 = vmatprep.subr.mxu0 0.0
    %4112 = vmatpush1.msra.mxu0 0.0
    %4113 = vmatprep.subr.mxu0 0.0
    %4114 = vmatpush1.msra.mxu0 0.0
    %4115 = vmatprep.subr.mxu0 0.0
    %4116 = vmatpush1.msra.mxu0 0.0
    %4117 = vmatprep.subr.mxu0 0.0
    %4118 = vmatpush1.msra.mxu0 0.0
    %4119 = vmatprep.subr.mxu0 0.0
    %4120 = vmatpush1.msra.mxu0 0.0
    %4121 = vmatprep.subr.mxu0 0.0
    %4122 = vmatpush1.msra.mxu0 0.0
    %4123 = vmatprep.subr.mxu0 0.0
    %4124 = vmatpush1.msra.mxu0 0.0
    %4125 = vmatprep.subr.mxu0 0.0
    %4126 = vmatpush1.msra.mxu0 0.0
    %4127 = vmatprep.subr.mxu0 0.0
    %4128 = vmatpush1.msra.mxu0 0.0
    %4129 = vmatprep.subr.mxu0 0.0
    %4130 = vmatpush1.msra.mxu0 0.0
    %4131 = vmatprep.subr.mxu0 0.0
    %4132 = vmatpush1.msra.mxu0 %v4103
    %4133 = vmatprep.subr.mxu0 0.0
    %4134 = vmatpush1.msra.mxu0 %v4102
    %4135 = vmatprep.subr.mxu0 0.0
    %4136 = vmatpush1.msra.mxu0 %v4101
    %4137 = vmatprep.subr.mxu0 0.0
    %4138 = vmatpush1.msra.mxu0 %v4100
    %4139 = vmatprep.subr.mxu0 0.0
    %4140 = vmatpush2.msra.mxu0 0.0
    %4141 = vmatprep.subr.mxu0 0.0
    %4142 = vmatpush2.msra.mxu0 0.0
    %4143 = vmatprep.subr.mxu0 0.0
    %4144 = vmatpush2.msra.mxu0 0.0
    %4145 = vmatprep.subr.mxu0 0.0
    %4146 = vmatpush2.msra.mxu0 0.0
    %4147 = vmatprep.subr.mxu0 0.0
    %4148 = vmatpush2.msra.mxu0 0.0
    %4149 = vmatprep.subr.mxu0 0.0
    %4150 = vmatpush2.msra.mxu0 0.0
    %4151 = vmatprep.subr.mxu0 0.0
    %4152 = vmatpush2.msra.mxu0 0.0
    %4153 = vmatprep.subr.mxu0 0.0
    %4154 = vmatpush2.msra.mxu0 0.0
    %4155 = vmatprep.subr.mxu0 0.0
    %4156 = vmatpush2.msra.mxu0 0.0
    %4157 = vmatprep.subr.mxu0 0.0
    %4158 = vmatpush2.msra.mxu0 0.0
    %4159 = vmatprep.subr.mxu0 0.0
    %4160 = vmatpush2.msra.mxu0 0.0
    %4161 = vmatprep.subr.mxu0 0.0
    %4162 = vmatpush2.msra.mxu0 0.0
    %4163 = vmatprep.subr.mxu0 0.0
    %4164 = vmatpush2.msra.mxu0 0.0
    %4165 = vmatprep.subr.mxu0 0.0
    %4166 = vmatpush2.msra.mxu0 0.0
    %4167 = vmatprep.subr.mxu0 0.0
    %4168 = vmatpush2.msra.mxu0 0.0
    %4169 = vmatprep.subr.mxu0 0.0
    %4170 = vmatpush2.msra.mxu0 0.0
    %4171 = vmatprep.mubr.f32.mxu0 0.0
    %4172 = vmatmul.mubr.f32.gmra.mxu0 %v4105
    %v4173 = vpop.f32.mrf.mxu0
    %v4174 = vadd.f32 0.0, %v4173
    %v4175 = vpop.f32.mrf.mxu0
    %4176 = vdwg.mxu0
    %4177 = vmatprep.subr.mxu0 0.0
    %4178 = vmatpush1.msra.mxu0 %v4099
    %4179 = vmatprep.subr.mxu0 0.0
    %4180 = vmatpush1.msra.mxu0 %v4098
    %4181 = vmatprep.subr.mxu0 0.0
    %4182 = vmatpush1.msra.mxu0 %v4097
    %4183 = vmatprep.subr.mxu0 0.0
    %4184 = vmatpush1.msra.mxu0 %v4096
    %4185 = vmatprep.subr.mxu0 0.0
    %4186 = vmatpush1.msra.mxu0 %v4095
    %4187 = vmatprep.subr.mxu0 0.0
    %4188 = vmatpush1.msra.mxu0 %v4094
    %4189 = vmatprep.subr.mxu0 0.0
    %4190 = vmatpush1.msra.mxu0 %v4093
    %4191 = vmatprep.subr.mxu0 0.0
    %4192 = vmatpush1.msra.mxu0 %v4092
    %4193 = vmatprep.subr.mxu0 0.0
    %4194 = vmatpush1.msra.mxu0 %v4091
    %4195 = vmatprep.subr.mxu0 0.0
    %4196 = vmatpush1.msra.mxu0 %v4090
    %4197 = vmatprep.subr.mxu0 0.0
    %4198 = vmatpush1.msra.mxu0 %v4089
    %4199 = vmatprep.subr.mxu0 0.0
    %4200 = vmatpush1.msra.mxu0 %v4088
    %4201 = vmatprep.subr.mxu0 0.0
    %4202 = vmatpush1.msra.mxu0 %v4087
    %4203 = vmatprep.subr.mxu0 0.0
    %4204 = vmatpush1.msra.mxu0 %v4086
    %4205 = vmatprep.subr.mxu0 0.0
    %4206 = vmatpush1.msra.mxu0 %v4085
    %4207 = vmatprep.subr.mxu0 0.0
    %4208 = vmatpush1.msra.mxu0 %v4084
    %4209 = vmatprep.subr.mxu0 0.0
    %4210 = vmatpush2.msra.mxu0 0.0
    %4211 = vmatprep.subr.mxu0 0.0
    %4212 = vmatpush2.msra.mxu0 0.0
    %4213 = vmatprep.subr.mxu0 0.0
    %4214 = vmatpush2.msra.mxu0 0.0
    %4215 = vmatprep.subr.mxu0 0.0
    %4216 = vmatpush2.msra.mxu0 0.0
    %4217 = vmatprep.subr.mxu0 0.0
    %4218 = vmatpush2.msra.mxu0 0.0
    %4219 = vmatprep.subr.mxu0 0.0
    %4220 = vmatpush2.msra.mxu0 0.0
    %4221 = vmatprep.subr.mxu0 0.0
    %4222 = vmatpush2.msra.mxu0 0.0
    %4223 = vmatprep.subr.mxu0 0.0
    %4224 = vmatpush2.msra.mxu0 0.0
    %4225 = vmatprep.subr.mxu0 0.0
    %4226 = vmatpush2.msra.mxu0 0.0
    %4227 = vmatprep.subr.mxu0 0.0
    %4228 = vmatpush2.msra.mxu0 0.0
    %4229 = vmatprep.subr.mxu0 0.0
    %4230 = vmatpush2.msra.mxu0 0.0
    %4231 = vmatprep.subr.mxu0 0.0
    %4232 = vmatpush2.msra.mxu0 0.0
    %4233 = vmatprep.subr.mxu0 0.0
    %4234 = vmatpush2.msra.mxu0 0.0
    %4235 = vmatprep.subr.mxu0 0.0
    %4236 = vmatpush2.msra.mxu0 0.0
    %4237 = vmatprep.subr.mxu0 0.0
    %4238 = vmatpush2.msra.mxu0 0.0
    %4239 = vmatprep.subr.mxu0 0.0
    %4240 = vmatpush2.msra.mxu0 0.0
    %4241 = vmatprep.mubr.f32.mxu0 0.0
    %4242 = vmatmul.mubr.f32.gmra.mxu0 %v3875
    %v4243 = vpop.f32.mrf.mxu0
    %v4244 = vadd.f32 %v4174, %v4243
    %v4245 = vpop.f32.mrf.mxu0
    %4246 = vdwg.mxu0
    %v4247 = vld [vmem:[%s8] sm:$0xff]
    %v4248 = vld [vmem:[%s8 + $0x8] sm:$0xff]
    %v4249 = vld [vmem:[%s8 + $0x10] sm:$0xff]
    %v4250 = vld [vmem:[%s8 + $0x18] sm:$0xff]
    %4251 = vmatprep.subr.mxu0 0.0
    %4252 = vmatpush1.msra.mxu0 0.0
    %4253 = vmatprep.subr.mxu0 0.0
    %4254 = vmatpush1.msra.mxu0 0.0
    %4255 = vmatprep.subr.mxu0 0.0
    %4256 = vmatpush1.msra.mxu0 0.0
    %4257 = vmatprep.subr.mxu0 0.0
    %4258 = vmatpush1.msra.mxu0 0.0
    %4259 = vmatprep.subr.mxu0 0.0
    %4260 = vmatpush1.msra.mxu0 0.0
    %4261 = vmatprep.subr.mxu0 0.0
    %4262 = vmatpush1.msra.mxu0 0.0
    %4263 = vmatprep.subr.mxu0 0.0
    %4264 = vmatpush1.msra.mxu0 0.0
    %4265 = vmatprep.subr.mxu0 0.0
    %4266 = vmatpush1.msra.mxu0 0.0
    %4267 = vmatprep.subr.mxu0 0.0
    %4268 = vmatpush1.msra.mxu0 0.0
    %4269 = vmatprep.subr.mxu0 0.0
    %4270 = vmatpush1.msra.mxu0 0.0
    %4271 = vmatprep.subr.mxu0 0.0
    %4272 = vmatpush1.msra.mxu0 0.0
    %4273 = vmatprep.subr.mxu0 0.0
    %4274 = vmatpush1.msra.mxu0 0.0
    %4275 = vmatprep.subr.mxu0 0.0
    %4276 = vmatpush1.msra.mxu0 %v4250
    %4277 = vmatprep.subr.mxu0 0.0
    %4278 = vmatpush1.msra.mxu0 %v4249
    %4279 = vmatprep.subr.mxu0 0.0
    %4280 = vmatpush1.msra.mxu0 %v4248
    %4281 = vmatprep.subr.mxu0 0.0
    %4282 = vmatpush1.msra.mxu0 %v4247
    %4283 = vmatprep.subr.mxu0 0.0
    %4284 = vmatpush2.msra.mxu0 0.0
    %4285 = vmatprep.subr.mxu0 0.0
    %4286 = vmatpush2.msra.mxu0 0.0
    %4287 = vmatprep.subr.mxu0 0.0
    %4288 = vmatpush2.msra.mxu0 0.0
    %4289 = vmatprep.subr.mxu0 0.0
    %4290 = vmatpush2.msra.mxu0 0.0
    %4291 = vmatprep.subr.mxu0 0.0
    %4292 = vmatpush2.msra.mxu0 0.0
    %4293 = vmatprep.subr.mxu0 0.0
    %4294 = vmatpush2.msra.mxu0 0.0
    %4295 = vmatprep.subr.mxu0 0.0
    %4296 = vmatpush2.msra.mxu0 0.0
    %4297 = vmatprep.subr.mxu0 0.0
    %4298 = vmatpush2.msra.mxu0 0.0
    %4299 = vmatprep.subr.mxu0 0.0
    %4300 = vmatpush2.msra.mxu0 0.0
    %4301 = vmatprep.subr.mxu0 0.0
    %4302 = vmatpush2.msra.mxu0 0.0
    %4303 = vmatprep.subr.mxu0 0.0
    %4304 = vmatpush2.msra.mxu0 0.0
    %4305 = vmatprep.subr.mxu0 0.0
    %4306 = vmatpush2.msra.mxu0 0.0
    %4307 = vmatprep.subr.mxu0 0.0
    %4308 = vmatpush2.msra.mxu0 0.0
    %4309 = vmatprep.subr.mxu0 0.0
    %4310 = vmatpush2.msra.mxu0 0.0
    %4311 = vmatprep.subr.mxu0 0.0
    %4312 = vmatpush2.msra.mxu0 0.0
    %4313 = vmatprep.subr.mxu0 0.0
    %4314 = vmatpush2.msra.mxu0 0.0
    %4315 = vmatprep.mubr.f32.mxu0 0.0
    %4316 = vmatmul.mubr.f32.gmra.mxu0 %v3782
    %v4317 = vpop.f32.mrf.mxu0
    %v4318 = vadd.f32 0.0, %v4317
    %v4319 = vpop.f32.mrf.mxu0
    %4320 = vdwg.mxu0
    %v4321 = vadd.f32 %v4244, %v4318
    %v4322 = vld [vmem:[%s9] sm:$0x1]
    %v4324 = vlaneseq
    %v4325 = vshrl.u32 %v4324, 7
    %v4326 = vsub.s32 0, %v4325
    %v4327 = vrot.slane %v4322, %v4326
    %v4329 = vadd.f32 %v4321, %v4327
    %v4330 = vxor.u32 %v4329, 2147483648
    %v4331 = vmul.f32 %v4330, 1.442695
    %v4332 = vpow.pop %v4331
    %v4333 = vadd.f32 %v4332, 1.0
    %v4334 = vrcp.pop %v4333
    %v4335 = vmul.f32 1.0, %v4334
    %v4336 = vtanh.pop %v4329
    %v4337 = vmul.f32 %v4335, %v3694
    %4339 = vrot.lane.b32.xlu0 %v4336, 64
    %v4340 = vpop.permute.xlu0 %4339
    %v4342 = vmul.f32 %v4335, %v4340
    %4344 = vrot.lane.b32.xlu0 %v4342, 32
    %v4345 = vpop.permute.xlu0 %4344
    %v4347 = vadd.f32 %v4337, %v4345
    %v4348 = vtanh.pop %v4347
    %4350 = vrot.lane.b32.xlu0 %v4348, 64
    %v4351 = vpop.permute.xlu0 %4350
    %v4353 = vmul.f32 %v4335, %v4351
    %v4354 = vld [vmem:[%s14] sm:$0xff]
    %v4355 = vld [vmem:[%s14 + $0x8] sm:$0xff]
    %v4356 = vld [vmem:[%s14 + $0x10] sm:$0xff]
    %v4357 = vld [vmem:[%s14 + $0x18] sm:$0xff]
    %v4358 = vld [vmem:[%s15] sm:$0xff]
    %v4359 = vld [vmem:[%s15 + $0x8] sm:$0xff]
    %v4360 = vld [vmem:[%s15 + $0x10] sm:$0xff]
    %v4361 = vld [vmem:[%s15 + $0x18] sm:$0xff]
    %4362 = vmatprep.subr.mxu0 0.0
    %4363 = vmatpush1.msra.mxu0 0.0
    %4364 = vmatprep.subr.mxu0 0.0
    %4365 = vmatpush1.msra.mxu0 0.0
    %4366 = vmatprep.subr.mxu0 0.0
    %4367 = vmatpush1.msra.mxu0 0.0
    %4368 = vmatprep.subr.mxu0 0.0
    %4369 = vmatpush1.msra.mxu0 0.0
    %4370 = vmatprep.subr.mxu0 0.0
    %4371 = vmatpush1.msra.mxu0 0.0
    %4372 = vmatprep.subr.mxu0 0.0
    %4373 = vmatpush1.msra.mxu0 0.0
    %4374 = vmatprep.subr.mxu0 0.0
    %4375 = vmatpush1.msra.mxu0 0.0
    %4376 = vmatprep.subr.mxu0 0.0
    %4377 = vmatpush1.msra.mxu0 0.0
    %4378 = vmatprep.subr.mxu0 0.0
    %4379 = vmatpush1.msra.mxu0 0.0
    %4380 = vmatprep.subr.mxu0 0.0
    %4381 = vmatpush1.msra.mxu0 0.0
    %4382 = vmatprep.subr.mxu0 0.0
    %4383 = vmatpush1.msra.mxu0 0.0
    %4384 = vmatprep.subr.mxu0 0.0
    %4385 = vmatpush1.msra.mxu0 0.0
    %4386 = vmatprep.subr.mxu0 0.0
    %4387 = vmatpush1.msra.mxu0 %v4361
    %4388 = vmatprep.subr.mxu0 0.0
    %4389 = vmatpush1.msra.mxu0 %v4360
    %4390 = vmatprep.subr.mxu0 0.0
    %4391 = vmatpush1.msra.mxu0 %v4359
    %4392 = vmatprep.subr.mxu0 0.0
    %4393 = vmatpush1.msra.mxu0 %v4358
    %4394 = vmatprep.subr.mxu0 0.0
    %4395 = vmatpush2.msra.mxu0 0.0
    %4396 = vmatprep.subr.mxu0 0.0
    %4397 = vmatpush2.msra.mxu0 0.0
    %4398 = vmatprep.subr.mxu0 0.0
    %4399 = vmatpush2.msra.mxu0 0.0
    %4400 = vmatprep.subr.mxu0 0.0
    %4401 = vmatpush2.msra.mxu0 0.0
    %4402 = vmatprep.subr.mxu0 0.0
    %4403 = vmatpush2.msra.mxu0 0.0
    %4404 = vmatprep.subr.mxu0 0.0
    %4405 = vmatpush2.msra.mxu0 0.0
    %4406 = vmatprep.subr.mxu0 0.0
    %4407 = vmatpush2.msra.mxu0 0.0
    %4408 = vmatprep.subr.mxu0 0.0
    %4409 = vmatpush2.msra.mxu0 0.0
    %4410 = vmatprep.subr.mxu0 0.0
    %4411 = vmatpush2.msra.mxu0 0.0
    %4412 = vmatprep.subr.mxu0 0.0
    %4413 = vmatpush2.msra.mxu0 0.0
    %4414 = vmatprep.subr.mxu0 0.0
    %4415 = vmatpush2.msra.mxu0 0.0
    %4416 = vmatprep.subr.mxu0 0.0
    %4417 = vmatpush2.msra.mxu0 0.0
    %4418 = vmatprep.subr.mxu0 0.0
    %4419 = vmatpush2.msra.mxu0 0.0
    %4420 = vmatprep.subr.mxu0 0.0
    %4421 = vmatpush2.msra.mxu0 0.0
    %4422 = vmatprep.subr.mxu0 0.0
    %4423 = vmatpush2.msra.mxu0 0.0
    %4424 = vmatprep.subr.mxu0 0.0
    %4425 = vmatpush2.msra.mxu0 0.0
    %4426 = vmatprep.mubr.f32.mxu0 0.0
    %4427 = vmatmul.mubr.f32.gmra.mxu0 %v4105
    %v4428 = vpop.f32.mrf.mxu0
    %v4429 = vadd.f32 0.0, %v4428
    %v4430 = vpop.f32.mrf.mxu0
    %4431 = vdwg.mxu0
    %4433 = vrot.lane.b32.xlu0 %v4353, 32
    %v4434 = vpop.permute.xlu0 %4433
    %v4435 = vsel %vm232, %v4434, 0
    %4437 = vmatprep.subr.mxu0 0.0
    %4438 = vmatpush1.msra.mxu0 0.0
    %4439 = vmatprep.subr.mxu0 0.0
    %4440 = vmatpush1.msra.mxu0 0.0
    %4441 = vmatprep.subr.mxu0 0.0
    %4442 = vmatpush1.msra.mxu0 0.0
    %4443 = vmatprep.subr.mxu0 0.0
    %4444 = vmatpush1.msra.mxu0 0.0
    %4445 = vmatprep.subr.mxu0 0.0
    %4446 = vmatpush1.msra.mxu0 0.0
    %4447 = vmatprep.subr.mxu0 0.0
    %4448 = vmatpush1.msra.mxu0 0.0
    %4449 = vmatprep.subr.mxu0 0.0
    %4450 = vmatpush1.msra.mxu0 0.0
    %4451 = vmatprep.subr.mxu0 0.0
    %4452 = vmatpush1.msra.mxu0 0.0
    %4453 = vmatprep.subr.mxu0 0.0
    %4454 = vmatpush1.msra.mxu0 0.0
    %4455 = vmatprep.subr.mxu0 0.0
    %4456 = vmatpush1.msra.mxu0 0.0
    %4457 = vmatprep.subr.mxu0 0.0
    %4458 = vmatpush1.msra.mxu0 0.0
    %4459 = vmatprep.subr.mxu0 0.0
    %4460 = vmatpush1.msra.mxu0 0.0
    %4461 = vmatprep.subr.mxu0 0.0
    %4462 = vmatpush1.msra.mxu0 %v4357
    %4463 = vmatprep.subr.mxu0 0.0
    %4464 = vmatpush1.msra.mxu0 %v4356
    %4465 = vmatprep.subr.mxu0 0.0
    %4466 = vmatpush1.msra.mxu0 %v4355
    %4467 = vmatprep.subr.mxu0 0.0
    %4468 = vmatpush1.msra.mxu0 %v4354
    %4469 = vmatprep.subr.mxu0 0.0
    %4470 = vmatpush2.msra.mxu0 0.0
    %4471 = vmatprep.subr.mxu0 0.0
    %4472 = vmatpush2.msra.mxu0 0.0
    %4473 = vmatprep.subr.mxu0 0.0
    %4474 = vmatpush2.msra.mxu0 0.0
    %4475 = vmatprep.subr.mxu0 0.0
    %4476 = vmatpush2.msra.mxu0 0.0
    %4477 = vmatprep.subr.mxu0 0.0
    %4478 = vmatpush2.msra.mxu0 0.0
    %4479 = vmatprep.subr.mxu0 0.0
    %4480 = vmatpush2.msra.mxu0 0.0
    %4481 = vmatprep.subr.mxu0 0.0
    %4482 = vmatpush2.msra.mxu0 0.0
    %4483 = vmatprep.subr.mxu0 0.0
    %4484 = vmatpush2.msra.mxu0 0.0
    %4485 = vmatprep.subr.mxu0 0.0
    %4486 = vmatpush2.msra.mxu0 0.0
    %4487 = vmatprep.subr.mxu0 0.0
    %4488 = vmatpush2.msra.mxu0 0.0
    %4489 = vmatprep.subr.mxu0 0.0
    %4490 = vmatpush2.msra.mxu0 0.0
    %4491 = vmatprep.subr.mxu0 0.0
    %4492 = vmatpush2.msra.mxu0 0.0
    %4493 = vmatprep.subr.mxu0 0.0
    %4494 = vmatpush2.msra.mxu0 0.0
    %4495 = vmatprep.subr.mxu0 0.0
    %4496 = vmatpush2.msra.mxu0 0.0
    %4497 = vmatprep.subr.mxu0 0.0
    %4498 = vmatpush2.msra.mxu0 0.0
    %4499 = vmatprep.subr.mxu0 0.0
    %4500 = vmatpush2.msra.mxu0 0.0
    %4501 = vmatprep.mubr.f32.mxu0 0.0
    %4502 = vmatmul.mubr.f32.gmra.mxu0 %v4435
    %v4503 = vpop.f32.mrf.mxu0
    %v4504 = vadd.f32 %v4429, %v4503
    %v4505 = vpop.f32.mrf.mxu0
    %4506 = vdwg.mxu0
    %v4507 = vld [vmem:[%s16] sm:$0x1]
    %v4509 = vlaneseq
    %v4510 = vshrl.u32 %v4509, 7
    %v4511 = vsub.s32 0, %v4510
    %v4512 = vrot.slane %v4507, %v4511
    %v4514 = vadd.f32 %v4504, %v4512
    %s4515 = scalar_lea.vmem %s17, 32
    %4516 = vst [vmem:[%s4515] sm:$0xff] %v4514
    %s4517 = sld [smem:[#allocation5 + $0x4]]
    %p4518 = scmp.gt.s32.totalorder %s4517, 0
    %s4519 = scalar_select %p4518, 1, 0
    %s4520 = scvt.s32.f32 %s4519
    %s4521 = scalar_lea.vmem %s1, 40
    %v4522 = vld [vmem:[%s4521] sm:$0xff]
    %v4523 = vstv %s4520
    %v4524 = vmul.f32 %v4523, %v4522
    %s4525 = ssub.f32 1.0, %s4520
    %v4526 = vstv %s4525
    %v4527 = vmul.f32 %v4526, %v4514
    %v4528 = vadd.f32 %v4524, %v4527
    %v4529 = vld [vmem:[%s10] sm:$0xff]
    %v4530 = vld [vmem:[%s10 + $0x8] sm:$0xff]
    %v4531 = vld [vmem:[%s10 + $0x10] sm:$0xff]
    %v4532 = vld [vmem:[%s10 + $0x18] sm:$0xff]
    %4533 = vmatprep.subr.mxu0 0.0
    %4534 = vmatpush1.msra.mxu0 0.0
    %4535 = vmatprep.subr.mxu0 0.0
    %4536 = vmatpush1.msra.mxu0 0.0
    %4537 = vmatprep.subr.mxu0 0.0
    %4538 = vmatpush1.msra.mxu0 0.0
    %4539 = vmatprep.subr.mxu0 0.0
    %4540 = vmatpush1.msra.mxu0 0.0
    %4541 = vmatprep.subr.mxu0 0.0
    %4542 = vmatpush1.msra.mxu0 0.0
    %4543 = vmatprep.subr.mxu0 0.0
    %4544 = vmatpush1.msra.mxu0 0.0
    %4545 = vmatprep.subr.mxu0 0.0
    %4546 = vmatpush1.msra.mxu0 0.0
    %4547 = vmatprep.subr.mxu0 0.0
    %4548 = vmatpush1.msra.mxu0 0.0
    %4549 = vmatprep.subr.mxu0 0.0
    %4550 = vmatpush1.msra.mxu0 0.0
    %4551 = vmatprep.subr.mxu0 0.0
    %4552 = vmatpush1.msra.mxu0 0.0
    %4553 = vmatprep.subr.mxu0 0.0
    %4554 = vmatpush1.msra.mxu0 0.0
    %4555 = vmatprep.subr.mxu0 0.0
    %4556 = vmatpush1.msra.mxu0 0.0
    %4557 = vmatprep.subr.mxu0 0.0
    %4558 = vmatpush1.msra.mxu0 %v4532
    %4559 = vmatprep.subr.mxu0 0.0
    %4560 = vmatpush1.msra.mxu0 %v4531
    %4561 = vmatprep.subr.mxu0 0.0
    %4562 = vmatpush1.msra.mxu0 %v4530
    %4563 = vmatprep.subr.mxu0 0.0
    %4564 = vmatpush1.msra.mxu0 %v4529
    %4565 = vmatprep.subr.mxu0 0.0
    %4566 = vmatpush2.msra.mxu0 0.0
    %4567 = vmatprep.subr.mxu0 0.0
    %4568 = vmatpush2.msra.mxu0 0.0
    %4569 = vmatprep.subr.mxu0 0.0
    %4570 = vmatpush2.msra.mxu0 0.0
    %4571 = vmatprep.subr.mxu0 0.0
    %4572 = vmatpush2.msra.mxu0 0.0
    %4573 = vmatprep.subr.mxu0 0.0
    %4574 = vmatpush2.msra.mxu0 0.0
    %4575 = vmatprep.subr.mxu0 0.0
    %4576 = vmatpush2.msra.mxu0 0.0
    %4577 = vmatprep.subr.mxu0 0.0
    %4578 = vmatpush2.msra.mxu0 0.0
    %4579 = vmatprep.subr.mxu0 0.0
    %4580 = vmatpush2.msra.mxu0 0.0
    %4581 = vmatprep.subr.mxu0 0.0
    %4582 = vmatpush2.msra.mxu0 0.0
    %4583 = vmatprep.subr.mxu0 0.0
    %4584 = vmatpush2.msra.mxu0 0.0
    %4585 = vmatprep.subr.mxu0 0.0
    %4586 = vmatpush2.msra.mxu0 0.0
    %4587 = vmatprep.subr.mxu0 0.0
    %4588 = vmatpush2.msra.mxu0 0.0
    %4589 = vmatprep.subr.mxu0 0.0
    %4590 = vmatpush2.msra.mxu0 0.0
    %4591 = vmatprep.subr.mxu0 0.0
    %4592 = vmatpush2.msra.mxu0 0.0
    %4593 = vmatprep.subr.mxu0 0.0
    %4594 = vmatpush2.msra.mxu0 0.0
    %4595 = vmatprep.subr.mxu0 0.0
    %4596 = vmatpush2.msra.mxu0 0.0
    %4597 = vmatprep.mubr.f32.mxu0 0.0
    %4598 = vmatmul.mubr.f32.gmra.mxu0 %v4435
    %v4599 = vpop.f32.mrf.mxu0
    %v4600 = vadd.f32 0.0, %v4599
    %v4601 = vpop.f32.mrf.mxu0
    %4602 = vdwg.mxu0
    %v4603 = vld [vmem:[#allocation4] sm:$0xff]
    %v4604 = vld [vmem:[#allocation4 + $0x8] sm:$0xff]
    %v4605 = vld [vmem:[#allocation4 + $0x10] sm:$0xff]
    %v4606 = vld [vmem:[#allocation4 + $0x18] sm:$0xff]
    %v4607 = vld [vmem:[#allocation4 + $0x20] sm:$0xff]
    %v4608 = vld [vmem:[#allocation4 + $0x28] sm:$0xff]
    %v4609 = vld [vmem:[#allocation4 + $0x30] sm:$0xff]
    %v4610 = vld [vmem:[#allocation4 + $0x38] sm:$0xff]
    %v4611 = vadd.f32 %v4603, %v4600
    %v4612 = vadd.f32 %v4604, %v4600
    %v4613 = vadd.f32 %v4605, %v4600
    %v4614 = vadd.f32 %v4606, %v4600
    %v4615 = vadd.f32 %v4607, %v4600
    %v4616 = vadd.f32 %v4608, %v4600
    %v4617 = vadd.f32 %v4609, %v4600
    %v4618 = vadd.f32 %v4610, %v4600
    %v4619 = vtanh.pop %v4611
    %v4620 = vtanh.pop %v4612
    %v4621 = vtanh.pop %v4613
    %v4622 = vtanh.pop %v4614
    %v4623 = vtanh.pop %v4615
    %v4624 = vtanh.pop %v4616
    %v4625 = vtanh.pop %v4617
    %v4626 = vtanh.pop %v4618
    %v4627 = vmul.f32 %v4619, %v1361
    %v4628 = vmul.f32 %v4620, %v1361
    %v4629 = vmul.f32 %v4621, %v1361
    %v4630 = vmul.f32 %v4622, %v1361
    %v4631 = vmul.f32 %v4623, %v1361
    %v4632 = vmul.f32 %v4624, %v1361
    %v4633 = vmul.f32 %v4625, %v1361
    %v4634 = vmul.f32 %v4626, %v1361
    %v4635 = vsel %vm232, %v4627, 0.0
    %4636 = vadd.xlane.f32.xlu0 %v4635
    %v4637 = vpop.xlane.xlu0 %4636
    %v4638 = vsel %vm232, %v4628, 0.0
    %4639 = vadd.xlane.f32.xlu0 %v4638
    %v4640 = vpop.xlane.xlu0 %4639
    %v4641 = vsel %vm232, %v4629, 0.0
    %4642 = vadd.xlane.f32.xlu0 %v4641
    %v4643 = vpop.xlane.xlu0 %4642
    %v4644 = vsel %vm232, %v4630, 0.0
    %4645 = vadd.xlane.f32.xlu0 %v4644
    %v4646 = vpop.xlane.xlu0 %4645
    %v4647 = vsel %vm232, %v4631, 0.0
    %4648 = vadd.xlane.f32.xlu0 %v4647
    %v4649 = vpop.xlane.xlu0 %4648
    %v4650 = vsel %vm232, %v4632, 0.0
    %4651 = vadd.xlane.f32.xlu0 %v4650
    %v4652 = vpop.xlane.xlu0 %4651
    %v4653 = vsel %vm232, %v4633, 0.0
    %4654 = vadd.xlane.f32.xlu0 %v4653
    %v4655 = vpop.xlane.xlu0 %4654
    %v4656 = vsel %vm232, %v4634, 0.0
    %4657 = vadd.xlane.f32.xlu0 %v4656
    %v4658 = vpop.xlane.xlu0 %4657
    %v4659 = vmax.f32 %v4637, %v4649
    %v4660 = vmax.f32 %v4640, %v4652
    %v4661 = vmax.f32 %v4643, %v4655
    %v4662 = vmax.f32 %v4646, %v4658
    %v4663 = vmax.f32 %v4659, %v4660
    %v4664 = vmax.f32 %v4661, %v4662
    %v4665 = vmax.f32 %v4663, %v4664
    %v4666 = vsub.f32 %v4637, %v4665
    %v4667 = vsub.f32 %v4640, %v4665
    %v4668 = vsub.f32 %v4643, %v4665
    %v4669 = vsub.f32 %v4646, %v4665
    %v4670 = vsub.f32 %v4649, %v4665
    %v4671 = vsub.f32 %v4652, %v4665
    %v4672 = vsub.f32 %v4655, %v4665
    %v4673 = vsub.f32 %v4658, %v4665
    %v4674 = vmul.f32 %v4666, 1.442695
    %v4675 = vpow.pop %v4674
    %v4676 = vmul.f32 %v4667, 1.442695
    %v4677 = vpow.pop %v4676
    %v4678 = vmul.f32 %v4668, 1.442695
    %v4679 = vpow.pop %v4678
    %v4680 = vmul.f32 %v4669, 1.442695
    %v4681 = vpow.pop %v4680
    %v4682 = vmul.f32 %v4670, 1.442695
    %v4683 = vpow.pop %v4682
    %v4684 = vmul.f32 %v4671, 1.442695
    %v4685 = vpow.pop %v4684
    %v4686 = vmul.f32 %v4672, 1.442695
    %v4687 = vpow.pop %v4686
    %v4688 = vmul.f32 %v4673, 1.442695
    %v4689 = vpow.pop %v4688
    %v4690 = vadd.f32 %v4675, %v4677
    %v4691 = vadd.f32 %v4690, %v4679
    %v4692 = vadd.f32 %v4691, %v4681
    %v4693 = vadd.f32 %v4692, %v4683
    %v4694 = vadd.f32 %v4693, %v4685
    %v4695 = vadd.f32 %v4694, %v4687
    %v4696 = vadd.f32 %v4695, %v4689
    %v4697 = vrcp.pop %v4696
    %v4698 = vmul.f32 %v4675, %v4697
    %v4699 = vmul.f32 %v4677, %v4697
    %v4700 = vmul.f32 %v4679, %v4697
    %v4701 = vmul.f32 %v4681, %v4697
    %v4702 = vmul.f32 %v4683, %v4697
    %v4703 = vmul.f32 %v4685, %v4697
    %v4704 = vmul.f32 %v4687, %v4697
    %v4705 = vmul.f32 %v4689, %v4697
    %v4706 = vld [vmem:[#allocation3] sm:$0xff]
    %v4707 = vld [vmem:[#allocation3 + $0x8] sm:$0xff]
    %v4708 = vld [vmem:[#allocation3 + $0x10] sm:$0xff]
    %v4709 = vld [vmem:[#allocation3 + $0x18] sm:$0xff]
    %v4710 = vld [vmem:[#allocation3 + $0x20] sm:$0xff]
    %v4711 = vld [vmem:[#allocation3 + $0x28] sm:$0xff]
    %v4712 = vld [vmem:[#allocation3 + $0x30] sm:$0xff]
    %v4713 = vld [vmem:[#allocation3 + $0x38] sm:$0xff]
    %v4714 = vmul.f32 %v4698, %v4706
    %v4715 = vmul.f32 %v4699, %v4707
    %v4716 = vmul.f32 %v4700, %v4708
    %v4717 = vmul.f32 %v4701, %v4709
    %v4718 = vmul.f32 %v4702, %v4710
    %v4719 = vmul.f32 %v4703, %v4711
    %v4720 = vmul.f32 %v4704, %v4712
    %v4721 = vmul.f32 %v4705, %v4713
    %v4722 = vsel %vm232, %v4714, 0.0
    %v4723 = vsel %vm232, %v4715, 0.0
    %v4724 = vadd.f32 %v4722, %v4723
    %v4725 = vsel %vm232, %v4716, 0.0
    %v4726 = vadd.f32 %v4724, %v4725
    %v4727 = vsel %vm232, %v4717, 0.0
    %v4728 = vadd.f32 %v4726, %v4727
    %v4729 = vsel %vm232, %v4718, 0.0
    %v4730 = vadd.f32 %v4728, %v4729
    %v4731 = vsel %vm232, %v4719, 0.0
    %v4732 = vadd.f32 %v4730, %v4731
    %v4733 = vsel %vm232, %v4720, 0.0
    %v4734 = vadd.f32 %v4732, %v4733
    %v4735 = vsel %vm232, %v4721, 0.0
    %v4736 = vadd.f32 %v4734, %v4735
    %v4737 = vld [vmem:[%s6] sm:$0xff]
    %v4738 = vld [vmem:[%s6 + $0x8] sm:$0xff]
    %v4739 = vld [vmem:[%s6 + $0x10] sm:$0xff]
    %v4740 = vld [vmem:[%s6 + $0x18] sm:$0xff]
    %v4741 = vld [vmem:[%s6 + $0x20] sm:$0xff]
    %v4742 = vld [vmem:[%s6 + $0x28] sm:$0xff]
    %v4743 = vld [vmem:[%s6 + $0x30] sm:$0xff]
    %v4744 = vld [vmem:[%s6 + $0x38] sm:$0xff]
    %v4745 = vld [vmem:[%s6 + $0x40] sm:$0xff]
    %v4746 = vld [vmem:[%s6 + $0x48] sm:$0xff]
    %v4747 = vld [vmem:[%s6 + $0x50] sm:$0xff]
    %v4748 = vld [vmem:[%s6 + $0x58] sm:$0xff]
    %v4749 = vld [vmem:[%s6 + $0x60] sm:$0xff]
    %v4750 = vld [vmem:[%s6 + $0x68] sm:$0xff]
    %v4751 = vld [vmem:[%s6 + $0x70] sm:$0xff]
    %v4752 = vld [vmem:[%s6 + $0x78] sm:$0xff]
    %v4753 = vld [vmem:[%s7] sm:$0xff]
    %v4754 = vld [vmem:[%s7 + $0x8] sm:$0xff]
    %v4755 = vld [vmem:[%s7 + $0x10] sm:$0xff]
    %v4756 = vld [vmem:[%s7 + $0x18] sm:$0xff]
    %v4758 = vsel %vm232, %v4736, 0
    %4760 = vmatprep.subr.mxu0 0.0
    %4761 = vmatpush1.msra.mxu0 0.0
    %4762 = vmatprep.subr.mxu0 0.0
    %4763 = vmatpush1.msra.mxu0 0.0
    %4764 = vmatprep.subr.mxu0 0.0
    %4765 = vmatpush1.msra.mxu0 0.0
    %4766 = vmatprep.subr.mxu0 0.0
    %4767 = vmatpush1.msra.mxu0 0.0
    %4768 = vmatprep.subr.mxu0 0.0
    %4769 = vmatpush1.msra.mxu0 0.0
    %4770 = vmatprep.subr.mxu0 0.0
    %4771 = vmatpush1.msra.mxu0 0.0
    %4772 = vmatprep.subr.mxu0 0.0
    %4773 = vmatpush1.msra.mxu0 0.0
    %4774 = vmatprep.subr.mxu0 0.0
    %4775 = vmatpush1.msra.mxu0 0.0
    %4776 = vmatprep.subr.mxu0 0.0
    %4777 = vmatpush1.msra.mxu0 0.0
    %4778 = vmatprep.subr.mxu0 0.0
    %4779 = vmatpush1.msra.mxu0 0.0
    %4780 = vmatprep.subr.mxu0 0.0
    %4781 = vmatpush1.msra.mxu0 0.0
    %4782 = vmatprep.subr.mxu0 0.0
    %4783 = vmatpush1.msra.mxu0 0.0
    %4784 = vmatprep.subr.mxu0 0.0
    %4785 = vmatpush1.msra.mxu0 %v4756
    %4786 = vmatprep.subr.mxu0 0.0
    %4787 = vmatpush1.msra.mxu0 %v4755
    %4788 = vmatprep.subr.mxu0 0.0
    %4789 = vmatpush1.msra.mxu0 %v4754
    %4790 = vmatprep.subr.mxu0 0.0
    %4791 = vmatpush1.msra.mxu0 %v4753
    %4792 = vmatprep.subr.mxu0 0.0
    %4793 = vmatpush2.msra.mxu0 0.0
    %4794 = vmatprep.subr.mxu0 0.0
    %4795 = vmatpush2.msra.mxu0 0.0
    %4796 = vmatprep.subr.mxu0 0.0
    %4797 = vmatpush2.msra.mxu0 0.0
    %4798 = vmatprep.subr.mxu0 0.0
    %4799 = vmatpush2.msra.mxu0 0.0
    %4800 = vmatprep.subr.mxu0 0.0
    %4801 = vmatpush2.msra.mxu0 0.0
    %4802 = vmatprep.subr.mxu0 0.0
    %4803 = vmatpush2.msra.mxu0 0.0
    %4804 = vmatprep.subr.mxu0 0.0
    %4805 = vmatpush2.msra.mxu0 0.0
    %4806 = vmatprep.subr.mxu0 0.0
    %4807 = vmatpush2.msra.mxu0 0.0
    %4808 = vmatprep.subr.mxu0 0.0
    %4809 = vmatpush2.msra.mxu0 0.0
    %4810 = vmatprep.subr.mxu0 0.0
    %4811 = vmatpush2.msra.mxu0 0.0
    %4812 = vmatprep.subr.mxu0 0.0
    %4813 = vmatpush2.msra.mxu0 0.0
    %4814 = vmatprep.subr.mxu0 0.0
    %4815 = vmatpush2.msra.mxu0 0.0
    %4816 = vmatprep.subr.mxu0 0.0
    %4817 = vmatpush2.msra.mxu0 0.0
    %4818 = vmatprep.subr.mxu0 0.0
    %4819 = vmatpush2.msra.mxu0 0.0
    %4820 = vmatprep.subr.mxu0 0.0
    %4821 = vmatpush2.msra.mxu0 0.0
    %4822 = vmatprep.subr.mxu0 0.0
    %4823 = vmatpush2.msra.mxu0 0.0
    %4824 = vmatprep.mubr.f32.mxu0 0.0
    %4825 = vmatmul.mubr.f32.gmra.mxu0 %v4758
    %v4826 = vpop.f32.mrf.mxu0
    %v4827 = vadd.f32 0.0, %v4826
    %v4828 = vpop.f32.mrf.mxu0
    %4829 = vdwg.mxu0
    %4830 = vmatprep.subr.mxu0 0.0
    %4831 = vmatpush1.msra.mxu0 %v4752
    %4832 = vmatprep.subr.mxu0 0.0
    %4833 = vmatpush1.msra.mxu0 %v4751
    %4834 = vmatprep.subr.mxu0 0.0
    %4835 = vmatpush1.msra.mxu0 %v4750
    %4836 = vmatprep.subr.mxu0 0.0
    %4837 = vmatpush1.msra.mxu0 %v4749
    %4838 = vmatprep.subr.mxu0 0.0
    %4839 = vmatpush1.msra.mxu0 %v4748
    %4840 = vmatprep.subr.mxu0 0.0
    %4841 = vmatpush1.msra.mxu0 %v4747
    %4842 = vmatprep.subr.mxu0 0.0
    %4843 = vmatpush1.msra.mxu0 %v4746
    %4844 = vmatprep.subr.mxu0 0.0
    %4845 = vmatpush1.msra.mxu0 %v4745
    %4846 = vmatprep.subr.mxu0 0.0
    %4847 = vmatpush1.msra.mxu0 %v4744
    %4848 = vmatprep.subr.mxu0 0.0
    %4849 = vmatpush1.msra.mxu0 %v4743
    %4850 = vmatprep.subr.mxu0 0.0
    %4851 = vmatpush1.msra.mxu0 %v4742
    %4852 = vmatprep.subr.mxu0 0.0
    %4853 = vmatpush1.msra.mxu0 %v4741
    %4854 = vmatprep.subr.mxu0 0.0
    %4855 = vmatpush1.msra.mxu0 %v4740
    %4856 = vmatprep.subr.mxu0 0.0
    %4857 = vmatpush1.msra.mxu0 %v4739
    %4858 = vmatprep.subr.mxu0 0.0
    %4859 = vmatpush1.msra.mxu0 %v4738
    %4860 = vmatprep.subr.mxu0 0.0
    %4861 = vmatpush1.msra.mxu0 %v4737
    %4862 = vmatprep.subr.mxu0 0.0
    %4863 = vmatpush2.msra.mxu0 0.0
    %4864 = vmatprep.subr.mxu0 0.0
    %4865 = vmatpush2.msra.mxu0 0.0
    %4866 = vmatprep.subr.mxu0 0.0
    %4867 = vmatpush2.msra.mxu0 0.0
    %4868 = vmatprep.subr.mxu0 0.0
    %4869 = vmatpush2.msra.mxu0 0.0
    %4870 = vmatprep.subr.mxu0 0.0
    %4871 = vmatpush2.msra.mxu0 0.0
    %4872 = vmatprep.subr.mxu0 0.0
    %4873 = vmatpush2.msra.mxu0 0.0
    %4874 = vmatprep.subr.mxu0 0.0
    %4875 = vmatpush2.msra.mxu0 0.0
    %4876 = vmatprep.subr.mxu0 0.0
    %4877 = vmatpush2.msra.mxu0 0.0
    %4878 = vmatprep.subr.mxu0 0.0
    %4879 = vmatpush2.msra.mxu0 0.0
    %4880 = vmatprep.subr.mxu0 0.0
    %4881 = vmatpush2.msra.mxu0 0.0
    %4882 = vmatprep.subr.mxu0 0.0
    %4883 = vmatpush2.msra.mxu0 0.0
    %4884 = vmatprep.subr.mxu0 0.0
    %4885 = vmatpush2.msra.mxu0 0.0
    %4886 = vmatprep.subr.mxu0 0.0
    %4887 = vmatpush2.msra.mxu0 0.0
    %4888 = vmatprep.subr.mxu0 0.0
    %4889 = vmatpush2.msra.mxu0 0.0
    %4890 = vmatprep.subr.mxu0 0.0
    %4891 = vmatpush2.msra.mxu0 0.0
    %4892 = vmatprep.subr.mxu0 0.0
    %4893 = vmatpush2.msra.mxu0 0.0
    %4894 = vmatprep.mubr.f32.mxu0 0.0
    %4895 = vmatmul.mubr.f32.gmra.mxu0 %v4528
    %v4896 = vpop.f32.mrf.mxu0
    %v4897 = vadd.f32 %v4827, %v4896
    %v4898 = vpop.f32.mrf.mxu0
    %4899 = vdwg.mxu0
    %v4900 = vld [vmem:[%s8] sm:$0xff]
    %v4901 = vld [vmem:[%s8 + $0x8] sm:$0xff]
    %v4902 = vld [vmem:[%s8 + $0x10] sm:$0xff]
    %v4903 = vld [vmem:[%s8 + $0x18] sm:$0xff]
    %4904 = vmatprep.subr.mxu0 0.0
    %4905 = vmatpush1.msra.mxu0 0.0
    %4906 = vmatprep.subr.mxu0 0.0
    %4907 = vmatpush1.msra.mxu0 0.0
    %4908 = vmatprep.subr.mxu0 0.0
    %4909 = vmatpush1.msra.mxu0 0.0
    %4910 = vmatprep.subr.mxu0 0.0
    %4911 = vmatpush1.msra.mxu0 0.0
    %4912 = vmatprep.subr.mxu0 0.0
    %4913 = vmatpush1.msra.mxu0 0.0
    %4914 = vmatprep.subr.mxu0 0.0
    %4915 = vmatpush1.msra.mxu0 0.0
    %4916 = vmatprep.subr.mxu0 0.0
    %4917 = vmatpush1.msra.mxu0 0.0
    %4918 = vmatprep.subr.mxu0 0.0
    %4919 = vmatpush1.msra.mxu0 0.0
    %4920 = vmatprep.subr.mxu0 0.0
    %4921 = vmatpush1.msra.mxu0 0.0
    %4922 = vmatprep.subr.mxu0 0.0
    %4923 = vmatpush1.msra.mxu0 0.0
    %4924 = vmatprep.subr.mxu0 0.0
    %4925 = vmatpush1.msra.mxu0 0.0
    %4926 = vmatprep.subr.mxu0 0.0
    %4927 = vmatpush1.msra.mxu0 0.0
    %4928 = vmatprep.subr.mxu0 0.0
    %4929 = vmatpush1.msra.mxu0 %v4903
    %4930 = vmatprep.subr.mxu0 0.0
    %4931 = vmatpush1.msra.mxu0 %v4902
    %4932 = vmatprep.subr.mxu0 0.0
    %4933 = vmatpush1.msra.mxu0 %v4901
    %4934 = vmatprep.subr.mxu0 0.0
    %4935 = vmatpush1.msra.mxu0 %v4900
    %4936 = vmatprep.subr.mxu0 0.0
    %4937 = vmatpush2.msra.mxu0 0.0
    %4938 = vmatprep.subr.mxu0 0.0
    %4939 = vmatpush2.msra.mxu0 0.0
    %4940 = vmatprep.subr.mxu0 0.0
    %4941 = vmatpush2.msra.mxu0 0.0
    %4942 = vmatprep.subr.mxu0 0.0
    %4943 = vmatpush2.msra.mxu0 0.0
    %4944 = vmatprep.subr.mxu0 0.0
    %4945 = vmatpush2.msra.mxu0 0.0
    %4946 = vmatprep.subr.mxu0 0.0
    %4947 = vmatpush2.msra.mxu0 0.0
    %4948 = vmatprep.subr.mxu0 0.0
    %4949 = vmatpush2.msra.mxu0 0.0
    %4950 = vmatprep.subr.mxu0 0.0
    %4951 = vmatpush2.msra.mxu0 0.0
    %4952 = vmatprep.subr.mxu0 0.0
    %4953 = vmatpush2.msra.mxu0 0.0
    %4954 = vmatprep.subr.mxu0 0.0
    %4955 = vmatpush2.msra.mxu0 0.0
    %4956 = vmatprep.subr.mxu0 0.0
    %4957 = vmatpush2.msra.mxu0 0.0
    %4958 = vmatprep.subr.mxu0 0.0
    %4959 = vmatpush2.msra.mxu0 0.0
    %4960 = vmatprep.subr.mxu0 0.0
    %4961 = vmatpush2.msra.mxu0 0.0
    %4962 = vmatprep.subr.mxu0 0.0
    %4963 = vmatpush2.msra.mxu0 0.0
    %4964 = vmatprep.subr.mxu0 0.0
    %4965 = vmatpush2.msra.mxu0 0.0
    %4966 = vmatprep.subr.mxu0 0.0
    %4967 = vmatpush2.msra.mxu0 0.0
    %4968 = vmatprep.mubr.f32.mxu0 0.0
    %4969 = vmatmul.mubr.f32.gmra.mxu0 %v4435
    %v4970 = vpop.f32.mrf.mxu0
    %v4971 = vadd.f32 0.0, %v4970
    %v4972 = vpop.f32.mrf.mxu0
    %4973 = vdwg.mxu0
    %v4974 = vadd.f32 %v4897, %v4971
    %v4975 = vld [vmem:[%s9] sm:$0x1]
    %v4977 = vlaneseq
    %v4978 = vshrl.u32 %v4977, 7
    %v4979 = vsub.s32 0, %v4978
    %v4980 = vrot.slane %v4975, %v4979
    %v4982 = vadd.f32 %v4974, %v4980
    %v4983 = vxor.u32 %v4982, 2147483648
    %v4984 = vmul.f32 %v4983, 1.442695
    %v4985 = vpow.pop %v4984
    %v4986 = vadd.f32 %v4985, 1.0
    %v4987 = vrcp.pop %v4986
    %v4988 = vmul.f32 1.0, %v4987
    %v4989 = vtanh.pop %v4982
    %v4990 = vmul.f32 %v4988, %v4347
    %4992 = vrot.lane.b32.xlu0 %v4989, 64
    %v4993 = vpop.permute.xlu0 %4992
    %v4995 = vmul.f32 %v4988, %v4993
    %4997 = vrot.lane.b32.xlu0 %v4995, 32
    %v4998 = vpop.permute.xlu0 %4997
    %v5000 = vadd.f32 %v4990, %v4998
    %v5001 = vtanh.pop %v5000
    %5003 = vrot.lane.b32.xlu0 %v5001, 64
    %v5004 = vpop.permute.xlu0 %5003
    %v5006 = vmul.f32 %v4988, %v5004
    %v5007 = vld [vmem:[%s14] sm:$0xff]
    %v5008 = vld [vmem:[%s14 + $0x8] sm:$0xff]
    %v5009 = vld [vmem:[%s14 + $0x10] sm:$0xff]
    %v5010 = vld [vmem:[%s14 + $0x18] sm:$0xff]
    %v5011 = vld [vmem:[%s15] sm:$0xff]
    %v5012 = vld [vmem:[%s15 + $0x8] sm:$0xff]
    %v5013 = vld [vmem:[%s15 + $0x10] sm:$0xff]
    %v5014 = vld [vmem:[%s15 + $0x18] sm:$0xff]
    %5015 = vmatprep.subr.mxu0 0.0
    %5016 = vmatpush1.msra.mxu0 0.0
    %5017 = vmatprep.subr.mxu0 0.0
    %5018 = vmatpush1.msra.mxu0 0.0
    %5019 = vmatprep.subr.mxu0 0.0
    %5020 = vmatpush1.msra.mxu0 0.0
    %5021 = vmatprep.subr.mxu0 0.0
    %5022 = vmatpush1.msra.mxu0 0.0
    %5023 = vmatprep.subr.mxu0 0.0
    %5024 = vmatpush1.msra.mxu0 0.0
    %5025 = vmatprep.subr.mxu0 0.0
    %5026 = vmatpush1.msra.mxu0 0.0
    %5027 = vmatprep.subr.mxu0 0.0
    %5028 = vmatpush1.msra.mxu0 0.0
    %5029 = vmatprep.subr.mxu0 0.0
    %5030 = vmatpush1.msra.mxu0 0.0
    %5031 = vmatprep.subr.mxu0 0.0
    %5032 = vmatpush1.msra.mxu0 0.0
    %5033 = vmatprep.subr.mxu0 0.0
    %5034 = vmatpush1.msra.mxu0 0.0
    %5035 = vmatprep.subr.mxu0 0.0
    %5036 = vmatpush1.msra.mxu0 0.0
    %5037 = vmatprep.subr.mxu0 0.0
    %5038 = vmatpush1.msra.mxu0 0.0
    %5039 = vmatprep.subr.mxu0 0.0
    %5040 = vmatpush1.msra.mxu0 %v5014
    %5041 = vmatprep.subr.mxu0 0.0
    %5042 = vmatpush1.msra.mxu0 %v5013
    %5043 = vmatprep.subr.mxu0 0.0
    %5044 = vmatpush1.msra.mxu0 %v5012
    %5045 = vmatprep.subr.mxu0 0.0
    %5046 = vmatpush1.msra.mxu0 %v5011
    %5047 = vmatprep.subr.mxu0 0.0
    %5048 = vmatpush2.msra.mxu0 0.0
    %5049 = vmatprep.subr.mxu0 0.0
    %5050 = vmatpush2.msra.mxu0 0.0
    %5051 = vmatprep.subr.mxu0 0.0
    %5052 = vmatpush2.msra.mxu0 0.0
    %5053 = vmatprep.subr.mxu0 0.0
    %5054 = vmatpush2.msra.mxu0 0.0
    %5055 = vmatprep.subr.mxu0 0.0
    %5056 = vmatpush2.msra.mxu0 0.0
    %5057 = vmatprep.subr.mxu0 0.0
    %5058 = vmatpush2.msra.mxu0 0.0
    %5059 = vmatprep.subr.mxu0 0.0
    %5060 = vmatpush2.msra.mxu0 0.0
    %5061 = vmatprep.subr.mxu0 0.0
    %5062 = vmatpush2.msra.mxu0 0.0
    %5063 = vmatprep.subr.mxu0 0.0
    %5064 = vmatpush2.msra.mxu0 0.0
    %5065 = vmatprep.subr.mxu0 0.0
    %5066 = vmatpush2.msra.mxu0 0.0
    %5067 = vmatprep.subr.mxu0 0.0
    %5068 = vmatpush2.msra.mxu0 0.0
    %5069 = vmatprep.subr.mxu0 0.0
    %5070 = vmatpush2.msra.mxu0 0.0
    %5071 = vmatprep.subr.mxu0 0.0
    %5072 = vmatpush2.msra.mxu0 0.0
    %5073 = vmatprep.subr.mxu0 0.0
    %5074 = vmatpush2.msra.mxu0 0.0
    %5075 = vmatprep.subr.mxu0 0.0
    %5076 = vmatpush2.msra.mxu0 0.0
    %5077 = vmatprep.subr.mxu0 0.0
    %5078 = vmatpush2.msra.mxu0 0.0
    %5079 = vmatprep.mubr.f32.mxu0 0.0
    %5080 = vmatmul.mubr.f32.gmra.mxu0 %v4758
    %v5081 = vpop.f32.mrf.mxu0
    %v5082 = vadd.f32 0.0, %v5081
    %v5083 = vpop.f32.mrf.mxu0
    %5084 = vdwg.mxu0
    %5086 = vrot.lane.b32.xlu0 %v5006, 32
    %v5087 = vpop.permute.xlu0 %5086
    %v5088 = vsel %vm232, %v5087, 0
    %5090 = vmatprep.subr.mxu0 0.0
    %5091 = vmatpush1.msra.mxu0 0.0
    %5092 = vmatprep.subr.mxu0 0.0
    %5093 = vmatpush1.msra.mxu0 0.0
    %5094 = vmatprep.subr.mxu0 0.0
    %5095 = vmatpush1.msra.mxu0 0.0
    %5096 = vmatprep.subr.mxu0 0.0
    %5097 = vmatpush1.msra.mxu0 0.0
    %5098 = vmatprep.subr.mxu0 0.0
    %5099 = vmatpush1.msra.mxu0 0.0
    %5100 = vmatprep.subr.mxu0 0.0
    %5101 = vmatpush1.msra.mxu0 0.0
    %5102 = vmatprep.subr.mxu0 0.0
    %5103 = vmatpush1.msra.mxu0 0.0
    %5104 = vmatprep.subr.mxu0 0.0
    %5105 = vmatpush1.msra.mxu0 0.0
    %5106 = vmatprep.subr.mxu0 0.0
    %5107 = vmatpush1.msra.mxu0 0.0
    %5108 = vmatprep.subr.mxu0 0.0
    %5109 = vmatpush1.msra.mxu0 0.0
    %5110 = vmatprep.subr.mxu0 0.0
    %5111 = vmatpush1.msra.mxu0 0.0
    %5112 = vmatprep.subr.mxu0 0.0
    %5113 = vmatpush1.msra.mxu0 0.0
    %5114 = vmatprep.subr.mxu0 0.0
    %5115 = vmatpush1.msra.mxu0 %v5010
    %5116 = vmatprep.subr.mxu0 0.0
    %5117 = vmatpush1.msra.mxu0 %v5009
    %5118 = vmatprep.subr.mxu0 0.0
    %5119 = vmatpush1.msra.mxu0 %v5008
    %5120 = vmatprep.subr.mxu0 0.0
    %5121 = vmatpush1.msra.mxu0 %v5007
    %5122 = vmatprep.subr.mxu0 0.0
    %5123 = vmatpush2.msra.mxu0 0.0
    %5124 = vmatprep.subr.mxu0 0.0
    %5125 = vmatpush2.msra.mxu0 0.0
    %5126 = vmatprep.subr.mxu0 0.0
    %5127 = vmatpush2.msra.mxu0 0.0
    %5128 = vmatprep.subr.mxu0 0.0
    %5129 = vmatpush2.msra.mxu0 0.0
    %5130 = vmatprep.subr.mxu0 0.0
    %5131 = vmatpush2.msra.mxu0 0.0
    %5132 = vmatprep.subr.mxu0 0.0
    %5133 = vmatpush2.msra.mxu0 0.0
    %5134 = vmatprep.subr.mxu0 0.0
    %5135 = vmatpush2.msra.mxu0 0.0
    %5136 = vmatprep.subr.mxu0 0.0
    %5137 = vmatpush2.msra.mxu0 0.0
    %5138 = vmatprep.subr.mxu0 0.0
    %5139 = vmatpush2.msra.mxu0 0.0
    %5140 = vmatprep.subr.mxu0 0.0
    %5141 = vmatpush2.msra.mxu0 0.0
    %5142 = vmatprep.subr.mxu0 0.0
    %5143 = vmatpush2.msra.mxu0 0.0
    %5144 = vmatprep.subr.mxu0 0.0
    %5145 = vmatpush2.msra.mxu0 0.0
    %5146 = vmatprep.subr.mxu0 0.0
    %5147 = vmatpush2.msra.mxu0 0.0
    %5148 = vmatprep.subr.mxu0 0.0
    %5149 = vmatpush2.msra.mxu0 0.0
    %5150 = vmatprep.subr.mxu0 0.0
    %5151 = vmatpush2.msra.mxu0 0.0
    %5152 = vmatprep.subr.mxu0 0.0
    %5153 = vmatpush2.msra.mxu0 0.0
    %5154 = vmatprep.mubr.f32.mxu0 0.0
    %5155 = vmatmul.mubr.f32.gmra.mxu0 %v5088
    %v5156 = vpop.f32.mrf.mxu0
    %v5157 = vadd.f32 %v5082, %v5156
    %v5158 = vpop.f32.mrf.mxu0
    %5159 = vdwg.mxu0
    %v5160 = vld [vmem:[%s16] sm:$0x1]
    %v5162 = vlaneseq
    %v5163 = vshrl.u32 %v5162, 7
    %v5164 = vsub.s32 0, %v5163
    %v5165 = vrot.slane %v5160, %v5164
    %v5167 = vadd.f32 %v5157, %v5165
    %s5168 = scalar_lea.vmem %s17, 40
    %5169 = vst [vmem:[%s5168] sm:$0xff] %v5167
    %s5170 = sld [smem:[#allocation5 + $0x5]]
    %p5171 = scmp.gt.s32.totalorder %s5170, 0
    %s5172 = scalar_select %p5171, 1, 0
    %s5173 = scvt.s32.f32 %s5172
    %s5174 = scalar_lea.vmem %s1, 48
    %v5175 = vld [vmem:[%s5174] sm:$0xff]
    %v5176 = vstv %s5173
    %v5177 = vmul.f32 %v5176, %v5175
    %s5178 = ssub.f32 1.0, %s5173
    %v5179 = vstv %s5178
    %v5180 = vmul.f32 %v5179, %v5167
    %v5181 = vadd.f32 %v5177, %v5180
    %v5182 = vld [vmem:[%s10] sm:$0xff]
    %v5183 = vld [vmem:[%s10 + $0x8] sm:$0xff]
    %v5184 = vld [vmem:[%s10 + $0x10] sm:$0xff]
    %v5185 = vld [vmem:[%s10 + $0x18] sm:$0xff]
    %5186 = vmatprep.subr.mxu0 0.0
    %5187 = vmatpush1.msra.mxu0 0.0
    %5188 = vmatprep.subr.mxu0 0.0
    %5189 = vmatpush1.msra.mxu0 0.0
    %5190 = vmatprep.subr.mxu0 0.0
    %5191 = vmatpush1.msra.mxu0 0.0
    %5192 = vmatprep.subr.mxu0 0.0
    %5193 = vmatpush1.msra.mxu0 0.0
    %5194 = vmatprep.subr.mxu0 0.0
    %5195 = vmatpush1.msra.mxu0 0.0
    %5196 = vmatprep.subr.mxu0 0.0
    %5197 = vmatpush1.msra.mxu0 0.0
    %5198 = vmatprep.subr.mxu0 0.0
    %5199 = vmatpush1.msra.mxu0 0.0
    %5200 = vmatprep.subr.mxu0 0.0
    %5201 = vmatpush1.msra.mxu0 0.0
    %5202 = vmatprep.subr.mxu0 0.0
    %5203 = vmatpush1.msra.mxu0 0.0
    %5204 = vmatprep.subr.mxu0 0.0
    %5205 = vmatpush1.msra.mxu0 0.0
    %5206 = vmatprep.subr.mxu0 0.0
    %5207 = vmatpush1.msra.mxu0 0.0
    %5208 = vmatprep.subr.mxu0 0.0
    %5209 = vmatpush1.msra.mxu0 0.0
    %5210 = vmatprep.subr.mxu0 0.0
    %5211 = vmatpush1.msra.mxu0 %v5185
    %5212 = vmatprep.subr.mxu0 0.0
    %5213 = vmatpush1.msra.mxu0 %v5184
    %5214 = vmatprep.subr.mxu0 0.0
    %5215 = vmatpush1.msra.mxu0 %v5183
    %5216 = vmatprep.subr.mxu0 0.0
    %5217 = vmatpush1.msra.mxu0 %v5182
    %5218 = vmatprep.subr.mxu0 0.0
    %5219 = vmatpush2.msra.mxu0 0.0
    %5220 = vmatprep.subr.mxu0 0.0
    %5221 = vmatpush2.msra.mxu0 0.0
    %5222 = vmatprep.subr.mxu0 0.0
    %5223 = vmatpush2.msra.mxu0 0.0
    %5224 = vmatprep.subr.mxu0 0.0
    %5225 = vmatpush2.msra.mxu0 0.0
    %5226 = vmatprep.subr.mxu0 0.0
    %5227 = vmatpush2.msra.mxu0 0.0
    %5228 = vmatprep.subr.mxu0 0.0
    %5229 = vmatpush2.msra.mxu0 0.0
    %5230 = vmatprep.subr.mxu0 0.0
    %5231 = vmatpush2.msra.mxu0 0.0
    %5232 = vmatprep.subr.mxu0 0.0
    %5233 = vmatpush2.msra.mxu0 0.0
    %5234 = vmatprep.subr.mxu0 0.0
    %5235 = vmatpush2.msra.mxu0 0.0
    %5236 = vmatprep.subr.mxu0 0.0
    %5237 = vmatpush2.msra.mxu0 0.0
    %5238 = vmatprep.subr.mxu0 0.0
    %5239 = vmatpush2.msra.mxu0 0.0
    %5240 = vmatprep.subr.mxu0 0.0
    %5241 = vmatpush2.msra.mxu0 0.0
    %5242 = vmatprep.subr.mxu0 0.0
    %5243 = vmatpush2.msra.mxu0 0.0
    %5244 = vmatprep.subr.mxu0 0.0
    %5245 = vmatpush2.msra.mxu0 0.0
    %5246 = vmatprep.subr.mxu0 0.0
    %5247 = vmatpush2.msra.mxu0 0.0
    %5248 = vmatprep.subr.mxu0 0.0
    %5249 = vmatpush2.msra.mxu0 0.0
    %5250 = vmatprep.mubr.f32.mxu0 0.0
    %5251 = vmatmul.mubr.f32.gmra.mxu0 %v5088
    %v5252 = vpop.f32.mrf.mxu0
    %v5253 = vadd.f32 0.0, %v5252
    %v5254 = vpop.f32.mrf.mxu0
    %5255 = vdwg.mxu0
    %v5256 = vld [vmem:[#allocation4] sm:$0xff]
    %v5257 = vld [vmem:[#allocation4 + $0x8] sm:$0xff]
    %v5258 = vld [vmem:[#allocation4 + $0x10] sm:$0xff]
    %v5259 = vld [vmem:[#allocation4 + $0x18] sm:$0xff]
    %v5260 = vld [vmem:[#allocation4 + $0x20] sm:$0xff]
    %v5261 = vld [vmem:[#allocation4 + $0x28] sm:$0xff]
    %v5262 = vld [vmem:[#allocation4 + $0x30] sm:$0xff]
    %v5263 = vld [vmem:[#allocation4 + $0x38] sm:$0xff]
    %v5264 = vadd.f32 %v5256, %v5253
    %v5265 = vadd.f32 %v5257, %v5253
    %v5266 = vadd.f32 %v5258, %v5253
    %v5267 = vadd.f32 %v5259, %v5253
    %v5268 = vadd.f32 %v5260, %v5253
    %v5269 = vadd.f32 %v5261, %v5253
    %v5270 = vadd.f32 %v5262, %v5253
    %v5271 = vadd.f32 %v5263, %v5253
    %v5272 = vtanh.pop %v5264
    %v5273 = vtanh.pop %v5265
    %v5274 = vtanh.pop %v5266
    %v5275 = vtanh.pop %v5267
    %v5276 = vtanh.pop %v5268
    %v5277 = vtanh.pop %v5269
    %v5278 = vtanh.pop %v5270
    %v5279 = vtanh.pop %v5271
    %v5280 = vmul.f32 %v5272, %v1361
    %v5281 = vmul.f32 %v5273, %v1361
    %v5282 = vmul.f32 %v5274, %v1361
    %v5283 = vmul.f32 %v5275, %v1361
    %v5284 = vmul.f32 %v5276, %v1361
    %v5285 = vmul.f32 %v5277, %v1361
    %v5286 = vmul.f32 %v5278, %v1361
    %v5287 = vmul.f32 %v5279, %v1361
    %v5288 = vsel %vm232, %v5280, 0.0
    %5289 = vadd.xlane.f32.xlu0 %v5288
    %v5290 = vpop.xlane.xlu0 %5289
    %v5291 = vsel %vm232, %v5281, 0.0
    %5292 = vadd.xlane.f32.xlu0 %v5291
    %v5293 = vpop.xlane.xlu0 %5292
    %v5294 = vsel %vm232, %v5282, 0.0
    %5295 = vadd.xlane.f32.xlu0 %v5294
    %v5296 = vpop.xlane.xlu0 %5295
    %v5297 = vsel %vm232, %v5283, 0.0
    %5298 = vadd.xlane.f32.xlu0 %v5297
    %v5299 = vpop.xlane.xlu0 %5298
    %v5300 = vsel %vm232, %v5284, 0.0
    %5301 = vadd.xlane.f32.xlu0 %v5300
    %v5302 = vpop.xlane.xlu0 %5301
    %v5303 = vsel %vm232, %v5285, 0.0
    %5304 = vadd.xlane.f32.xlu0 %v5303
    %v5305 = vpop.xlane.xlu0 %5304
    %v5306 = vsel %vm232, %v5286, 0.0
    %5307 = vadd.xlane.f32.xlu0 %v5306
    %v5308 = vpop.xlane.xlu0 %5307
    %v5309 = vsel %vm232, %v5287, 0.0
    %5310 = vadd.xlane.f32.xlu0 %v5309
    %v5311 = vpop.xlane.xlu0 %5310
    %v5312 = vmax.f32 %v5290, %v5302
    %v5313 = vmax.f32 %v5293, %v5305
    %v5314 = vmax.f32 %v5296, %v5308
    %v5315 = vmax.f32 %v5299, %v5311
    %v5316 = vmax.f32 %v5312, %v5313
    %v5317 = vmax.f32 %v5314, %v5315
    %v5318 = vmax.f32 %v5316, %v5317
    %v5319 = vsub.f32 %v5290, %v5318
    %v5320 = vsub.f32 %v5293, %v5318
    %v5321 = vsub.f32 %v5296, %v5318
    %v5322 = vsub.f32 %v5299, %v5318
    %v5323 = vsub.f32 %v5302, %v5318
    %v5324 = vsub.f32 %v5305, %v5318
    %v5325 = vsub.f32 %v5308, %v5318
    %v5326 = vsub.f32 %v5311, %v5318
    %v5327 = vmul.f32 %v5319, 1.442695
    %v5328 = vpow.pop %v5327
    %v5329 = vmul.f32 %v5320, 1.442695
    %v5330 = vpow.pop %v5329
    %v5331 = vmul.f32 %v5321, 1.442695
    %v5332 = vpow.pop %v5331
    %v5333 = vmul.f32 %v5322, 1.442695
    %v5334 = vpow.pop %v5333
    %v5335 = vmul.f32 %v5323, 1.442695
    %v5336 = vpow.pop %v5335
    %v5337 = vmul.f32 %v5324, 1.442695
    %v5338 = vpow.pop %v5337
    %v5339 = vmul.f32 %v5325, 1.442695
    %v5340 = vpow.pop %v5339
    %v5341 = vmul.f32 %v5326, 1.442695
    %v5342 = vpow.pop %v5341
    %v5343 = vadd.f32 %v5328, %v5330
    %v5344 = vadd.f32 %v5343, %v5332
    %v5345 = vadd.f32 %v5344, %v5334
    %v5346 = vadd.f32 %v5345, %v5336
    %v5347 = vadd.f32 %v5346, %v5338
    %v5348 = vadd.f32 %v5347, %v5340
    %v5349 = vadd.f32 %v5348, %v5342
    %v5350 = vrcp.pop %v5349
    %v5351 = vmul.f32 %v5328, %v5350
    %v5352 = vmul.f32 %v5330, %v5350
    %v5353 = vmul.f32 %v5332, %v5350
    %v5354 = vmul.f32 %v5334, %v5350
    %v5355 = vmul.f32 %v5336, %v5350
    %v5356 = vmul.f32 %v5338, %v5350
    %v5357 = vmul.f32 %v5340, %v5350
    %v5358 = vmul.f32 %v5342, %v5350
    %v5359 = vld [vmem:[#allocation3] sm:$0xff]
    %v5360 = vld [vmem:[#allocation3 + $0x8] sm:$0xff]
    %v5361 = vld [vmem:[#allocation3 + $0x10] sm:$0xff]
    %v5362 = vld [vmem:[#allocation3 + $0x18] sm:$0xff]
    %v5363 = vld [vmem:[#allocation3 + $0x20] sm:$0xff]
    %v5364 = vld [vmem:[#allocation3 + $0x28] sm:$0xff]
    %v5365 = vld [vmem:[#allocation3 + $0x30] sm:$0xff]
    %v5366 = vld [vmem:[#allocation3 + $0x38] sm:$0xff]
    %v5367 = vmul.f32 %v5351, %v5359
    %v5368 = vmul.f32 %v5352, %v5360
    %v5369 = vmul.f32 %v5353, %v5361
    %v5370 = vmul.f32 %v5354, %v5362
    %v5371 = vmul.f32 %v5355, %v5363
    %v5372 = vmul.f32 %v5356, %v5364
    %v5373 = vmul.f32 %v5357, %v5365
    %v5374 = vmul.f32 %v5358, %v5366
    %v5375 = vsel %vm232, %v5367, 0.0
    %v5376 = vsel %vm232, %v5368, 0.0
    %v5377 = vadd.f32 %v5375, %v5376
    %v5378 = vsel %vm232, %v5369, 0.0
    %v5379 = vadd.f32 %v5377, %v5378
    %v5380 = vsel %vm232, %v5370, 0.0
    %v5381 = vadd.f32 %v5379, %v5380
    %v5382 = vsel %vm232, %v5371, 0.0
    %v5383 = vadd.f32 %v5381, %v5382
    %v5384 = vsel %vm232, %v5372, 0.0
    %v5385 = vadd.f32 %v5383, %v5384
    %v5386 = vsel %vm232, %v5373, 0.0
    %v5387 = vadd.f32 %v5385, %v5386
    %v5388 = vsel %vm232, %v5374, 0.0
    %v5389 = vadd.f32 %v5387, %v5388
    %v5390 = vld [vmem:[%s6] sm:$0xff]
    %v5391 = vld [vmem:[%s6 + $0x8] sm:$0xff]
    %v5392 = vld [vmem:[%s6 + $0x10] sm:$0xff]
    %v5393 = vld [vmem:[%s6 + $0x18] sm:$0xff]
    %v5394 = vld [vmem:[%s6 + $0x20] sm:$0xff]
    %v5395 = vld [vmem:[%s6 + $0x28] sm:$0xff]
    %v5396 = vld [vmem:[%s6 + $0x30] sm:$0xff]
    %v5397 = vld [vmem:[%s6 + $0x38] sm:$0xff]
    %v5398 = vld [vmem:[%s6 + $0x40] sm:$0xff]
    %v5399 = vld [vmem:[%s6 + $0x48] sm:$0xff]
    %v5400 = vld [vmem:[%s6 + $0x50] sm:$0xff]
    %v5401 = vld [vmem:[%s6 + $0x58] sm:$0xff]
    %v5402 = vld [vmem:[%s6 + $0x60] sm:$0xff]
    %v5403 = vld [vmem:[%s6 + $0x68] sm:$0xff]
    %v5404 = vld [vmem:[%s6 + $0x70] sm:$0xff]
    %v5405 = vld [vmem:[%s6 + $0x78] sm:$0xff]
    %v5406 = vld [vmem:[%s7] sm:$0xff]
    %v5407 = vld [vmem:[%s7 + $0x8] sm:$0xff]
    %v5408 = vld [vmem:[%s7 + $0x10] sm:$0xff]
    %v5409 = vld [vmem:[%s7 + $0x18] sm:$0xff]
    %v5411 = vsel %vm232, %v5389, 0
    %5413 = vmatprep.subr.mxu0 0.0
    %5414 = vmatpush1.msra.mxu0 0.0
    %5415 = vmatprep.subr.mxu0 0.0
    %5416 = vmatpush1.msra.mxu0 0.0
    %5417 = vmatprep.subr.mxu0 0.0
    %5418 = vmatpush1.msra.mxu0 0.0
    %5419 = vmatprep.subr.mxu0 0.0
    %5420 = vmatpush1.msra.mxu0 0.0
    %5421 = vmatprep.subr.mxu0 0.0
    %5422 = vmatpush1.msra.mxu0 0.0
    %5423 = vmatprep.subr.mxu0 0.0
    %5424 = vmatpush1.msra.mxu0 0.0
    %5425 = vmatprep.subr.mxu0 0.0
    %5426 = vmatpush1.msra.mxu0 0.0
    %5427 = vmatprep.subr.mxu0 0.0
    %5428 = vmatpush1.msra.mxu0 0.0
    %5429 = vmatprep.subr.mxu0 0.0
    %5430 = vmatpush1.msra.mxu0 0.0
    %5431 = vmatprep.subr.mxu0 0.0
    %5432 = vmatpush1.msra.mxu0 0.0
    %5433 = vmatprep.subr.mxu0 0.0
    %5434 = vmatpush1.msra.mxu0 0.0
    %5435 = vmatprep.subr.mxu0 0.0
    %5436 = vmatpush1.msra.mxu0 0.0
    %5437 = vmatprep.subr.mxu0 0.0
    %5438 = vmatpush1.msra.mxu0 %v5409
    %5439 = vmatprep.subr.mxu0 0.0
    %5440 = vmatpush1.msra.mxu0 %v5408
    %5441 = vmatprep.subr.mxu0 0.0
    %5442 = vmatpush1.msra.mxu0 %v5407
    %5443 = vmatprep.subr.mxu0 0.0
    %5444 = vmatpush1.msra.mxu0 %v5406
    %5445 = vmatprep.subr.mxu0 0.0
    %5446 = vmatpush2.msra.mxu0 0.0
    %5447 = vmatprep.subr.mxu0 0.0
    %5448 = vmatpush2.msra.mxu0 0.0
    %5449 = vmatprep.subr.mxu0 0.0
    %5450 = vmatpush2.msra.mxu0 0.0
    %5451 = vmatprep.subr.mxu0 0.0
    %5452 = vmatpush2.msra.mxu0 0.0
    %5453 = vmatprep.subr.mxu0 0.0
    %5454 = vmatpush2.msra.mxu0 0.0
    %5455 = vmatprep.subr.mxu0 0.0
    %5456 = vmatpush2.msra.mxu0 0.0
    %5457 = vmatprep.subr.mxu0 0.0
    %5458 = vmatpush2.msra.mxu0 0.0
    %5459 = vmatprep.subr.mxu0 0.0
    %5460 = vmatpush2.msra.mxu0 0.0
    %5461 = vmatprep.subr.mxu0 0.0
    %5462 = vmatpush2.msra.mxu0 0.0
    %5463 = vmatprep.subr.mxu0 0.0
    %5464 = vmatpush2.msra.mxu0 0.0
    %5465 = vmatprep.subr.mxu0 0.0
    %5466 = vmatpush2.msra.mxu0 0.0
    %5467 = vmatprep.subr.mxu0 0.0
    %5468 = vmatpush2.msra.mxu0 0.0
    %5469 = vmatprep.subr.mxu0 0.0
    %5470 = vmatpush2.msra.mxu0 0.0
    %5471 = vmatprep.subr.mxu0 0.0
    %5472 = vmatpush2.msra.mxu0 0.0
    %5473 = vmatprep.subr.mxu0 0.0
    %5474 = vmatpush2.msra.mxu0 0.0
    %5475 = vmatprep.subr.mxu0 0.0
    %5476 = vmatpush2.msra.mxu0 0.0
    %5477 = vmatprep.mubr.f32.mxu0 0.0
    %5478 = vmatmul.mubr.f32.gmra.mxu0 %v5411
    %v5479 = vpop.f32.mrf.mxu0
    %v5480 = vadd.f32 0.0, %v5479
    %v5481 = vpop.f32.mrf.mxu0
    %5482 = vdwg.mxu0
    %5483 = vmatprep.subr.mxu0 0.0
    %5484 = vmatpush1.msra.mxu0 %v5405
    %5485 = vmatprep.subr.mxu0 0.0
    %5486 = vmatpush1.msra.mxu0 %v5404
    %5487 = vmatprep.subr.mxu0 0.0
    %5488 = vmatpush1.msra.mxu0 %v5403
    %5489 = vmatprep.subr.mxu0 0.0
    %5490 = vmatpush1.msra.mxu0 %v5402
    %5491 = vmatprep.subr.mxu0 0.0
    %5492 = vmatpush1.msra.mxu0 %v5401
    %5493 = vmatprep.subr.mxu0 0.0
    %5494 = vmatpush1.msra.mxu0 %v5400
    %5495 = vmatprep.subr.mxu0 0.0
    %5496 = vmatpush1.msra.mxu0 %v5399
    %5497 = vmatprep.subr.mxu0 0.0
    %5498 = vmatpush1.msra.mxu0 %v5398
    %5499 = vmatprep.subr.mxu0 0.0
    %5500 = vmatpush1.msra.mxu0 %v5397
    %5501 = vmatprep.subr.mxu0 0.0
    %5502 = vmatpush1.msra.mxu0 %v5396
    %5503 = vmatprep.subr.mxu0 0.0
    %5504 = vmatpush1.msra.mxu0 %v5395
    %5505 = vmatprep.subr.mxu0 0.0
    %5506 = vmatpush1.msra.mxu0 %v5394
    %5507 = vmatprep.subr.mxu0 0.0
    %5508 = vmatpush1.msra.mxu0 %v5393
    %5509 = vmatprep.subr.mxu0 0.0
    %5510 = vmatpush1.msra.mxu0 %v5392
    %5511 = vmatprep.subr.mxu0 0.0
    %5512 = vmatpush1.msra.mxu0 %v5391
    %5513 = vmatprep.subr.mxu0 0.0
    %5514 = vmatpush1.msra.mxu0 %v5390
    %5515 = vmatprep.subr.mxu0 0.0
    %5516 = vmatpush2.msra.mxu0 0.0
    %5517 = vmatprep.subr.mxu0 0.0
    %5518 = vmatpush2.msra.mxu0 0.0
    %5519 = vmatprep.subr.mxu0 0.0
    %5520 = vmatpush2.msra.mxu0 0.0
    %5521 = vmatprep.subr.mxu0 0.0
    %5522 = vmatpush2.msra.mxu0 0.0
    %5523 = vmatprep.subr.mxu0 0.0
    %5524 = vmatpush2.msra.mxu0 0.0
    %5525 = vmatprep.subr.mxu0 0.0
    %5526 = vmatpush2.msra.mxu0 0.0
    %5527 = vmatprep.subr.mxu0 0.0
    %5528 = vmatpush2.msra.mxu0 0.0
    %5529 = vmatprep.subr.mxu0 0.0
    %5530 = vmatpush2.msra.mxu0 0.0
    %5531 = vmatprep.subr.mxu0 0.0
    %5532 = vmatpush2.msra.mxu0 0.0
    %5533 = vmatprep.subr.mxu0 0.0
    %5534 = vmatpush2.msra.mxu0 0.0
    %5535 = vmatprep.subr.mxu0 0.0
    %5536 = vmatpush2.msra.mxu0 0.0
    %5537 = vmatprep.subr.mxu0 0.0
    %5538 = vmatpush2.msra.mxu0 0.0
    %5539 = vmatprep.subr.mxu0 0.0
    %5540 = vmatpush2.msra.mxu0 0.0
    %5541 = vmatprep.subr.mxu0 0.0
    %5542 = vmatpush2.msra.mxu0 0.0
    %5543 = vmatprep.subr.mxu0 0.0
    %5544 = vmatpush2.msra.mxu0 0.0
    %5545 = vmatprep.subr.mxu0 0.0
    %5546 = vmatpush2.msra.mxu0 0.0
    %5547 = vmatprep.mubr.f32.mxu0 0.0
    %5548 = vmatmul.mubr.f32.gmra.mxu0 %v5181
    %v5549 = vpop.f32.mrf.mxu0
    %v5550 = vadd.f32 %v5480, %v5549
    %v5551 = vpop.f32.mrf.mxu0
    %5552 = vdwg.mxu0
    %v5553 = vld [vmem:[%s8] sm:$0xff]
    %v5554 = vld [vmem:[%s8 + $0x8] sm:$0xff]
    %v5555 = vld [vmem:[%s8 + $0x10] sm:$0xff]
    %v5556 = vld [vmem:[%s8 + $0x18] sm:$0xff]
    %5557 = vmatprep.subr.mxu0 0.0
    %5558 = vmatpush1.msra.mxu0 0.0
    %5559 = vmatprep.subr.mxu0 0.0
    %5560 = vmatpush1.msra.mxu0 0.0
    %5561 = vmatprep.subr.mxu0 0.0
    %5562 = vmatpush1.msra.mxu0 0.0
    %5563 = vmatprep.subr.mxu0 0.0
    %5564 = vmatpush1.msra.mxu0 0.0
    %5565 = vmatprep.subr.mxu0 0.0
    %5566 = vmatpush1.msra.mxu0 0.0
    %5567 = vmatprep.subr.mxu0 0.0
    %5568 = vmatpush1.msra.mxu0 0.0
    %5569 = vmatprep.subr.mxu0 0.0
    %5570 = vmatpush1.msra.mxu0 0.0
    %5571 = vmatprep.subr.mxu0 0.0
    %5572 = vmatpush1.msra.mxu0 0.0
    %5573 = vmatprep.subr.mxu0 0.0
    %5574 = vmatpush1.msra.mxu0 0.0
    %5575 = vmatprep.subr.mxu0 0.0
    %5576 = vmatpush1.msra.mxu0 0.0
    %5577 = vmatprep.subr.mxu0 0.0
    %5578 = vmatpush1.msra.mxu0 0.0
    %5579 = vmatprep.subr.mxu0 0.0
    %5580 = vmatpush1.msra.mxu0 0.0
    %5581 = vmatprep.subr.mxu0 0.0
    %5582 = vmatpush1.msra.mxu0 %v5556
    %5583 = vmatprep.subr.mxu0 0.0
    %5584 = vmatpush1.msra.mxu0 %v5555
    %5585 = vmatprep.subr.mxu0 0.0
    %5586 = vmatpush1.msra.mxu0 %v5554
    %5587 = vmatprep.subr.mxu0 0.0
    %5588 = vmatpush1.msra.mxu0 %v5553
    %5589 = vmatprep.subr.mxu0 0.0
    %5590 = vmatpush2.msra.mxu0 0.0
    %5591 = vmatprep.subr.mxu0 0.0
    %5592 = vmatpush2.msra.mxu0 0.0
    %5593 = vmatprep.subr.mxu0 0.0
    %5594 = vmatpush2.msra.mxu0 0.0
    %5595 = vmatprep.subr.mxu0 0.0
    %5596 = vmatpush2.msra.mxu0 0.0
    %5597 = vmatprep.subr.mxu0 0.0
    %5598 = vmatpush2.msra.mxu0 0.0
    %5599 = vmatprep.subr.mxu0 0.0
    %5600 = vmatpush2.msra.mxu0 0.0
    %5601 = vmatprep.subr.mxu0 0.0
    %5602 = vmatpush2.msra.mxu0 0.0
    %5603 = vmatprep.subr.mxu0 0.0
    %5604 = vmatpush2.msra.mxu0 0.0
    %5605 = vmatprep.subr.mxu0 0.0
    %5606 = vmatpush2.msra.mxu0 0.0
    %5607 = vmatprep.subr.mxu0 0.0
    %5608 = vmatpush2.msra.mxu0 0.0
    %5609 = vmatprep.subr.mxu0 0.0
    %5610 = vmatpush2.msra.mxu0 0.0
    %5611 = vmatprep.subr.mxu0 0.0
    %5612 = vmatpush2.msra.mxu0 0.0
    %5613 = vmatprep.subr.mxu0 0.0
    %5614 = vmatpush2.msra.mxu0 0.0
    %5615 = vmatprep.subr.mxu0 0.0
    %5616 = vmatpush2.msra.mxu0 0.0
    %5617 = vmatprep.subr.mxu0 0.0
    %5618 = vmatpush2.msra.mxu0 0.0
    %5619 = vmatprep.subr.mxu0 0.0
    %5620 = vmatpush2.msra.mxu0 0.0
    %5621 = vmatprep.mubr.f32.mxu0 0.0
    %5622 = vmatmul.mubr.f32.gmra.mxu0 %v5088
    %v5623 = vpop.f32.mrf.mxu0
    %v5624 = vadd.f32 0.0, %v5623
    %v5625 = vpop.f32.mrf.mxu0
    %5626 = vdwg.mxu0
    %v5627 = vadd.f32 %v5550, %v5624
    %v5628 = vld [vmem:[%s9] sm:$0x1]
    %v5630 = vlaneseq
    %v5631 = vshrl.u32 %v5630, 7
    %v5632 = vsub.s32 0, %v5631
    %v5633 = vrot.slane %v5628, %v5632
    %v5635 = vadd.f32 %v5627, %v5633
    %v5636 = vxor.u32 %v5635, 2147483648
    %v5637 = vmul.f32 %v5636, 1.442695
    %v5638 = vpow.pop %v5637
    %v5639 = vadd.f32 %v5638, 1.0
    %v5640 = vrcp.pop %v5639
    %v5641 = vmul.f32 1.0, %v5640
    %v5642 = vtanh.pop %v5635
    %v5643 = vmul.f32 %v5641, %v5000
    %5645 = vrot.lane.b32.xlu0 %v5642, 64
    %v5646 = vpop.permute.xlu0 %5645
    %v5648 = vmul.f32 %v5641, %v5646
    %5650 = vrot.lane.b32.xlu0 %v5648, 32
    %v5651 = vpop.permute.xlu0 %5650
    %v5653 = vadd.f32 %v5643, %v5651
    %v5654 = vtanh.pop %v5653
    %5656 = vrot.lane.b32.xlu0 %v5654, 64
    %v5657 = vpop.permute.xlu0 %5656
    %v5659 = vmul.f32 %v5641, %v5657
    %v5660 = vld [vmem:[%s14] sm:$0xff]
    %v5661 = vld [vmem:[%s14 + $0x8] sm:$0xff]
    %v5662 = vld [vmem:[%s14 + $0x10] sm:$0xff]
    %v5663 = vld [vmem:[%s14 + $0x18] sm:$0xff]
    %v5664 = vld [vmem:[%s15] sm:$0xff]
    %v5665 = vld [vmem:[%s15 + $0x8] sm:$0xff]
    %v5666 = vld [vmem:[%s15 + $0x10] sm:$0xff]
    %v5667 = vld [vmem:[%s15 + $0x18] sm:$0xff]
    %5668 = vmatprep.subr.mxu0 0.0
    %5669 = vmatpush1.msra.mxu0 0.0
    %5670 = vmatprep.subr.mxu0 0.0
    %5671 = vmatpush1.msra.mxu0 0.0
    %5672 = vmatprep.subr.mxu0 0.0
    %5673 = vmatpush1.msra.mxu0 0.0
    %5674 = vmatprep.subr.mxu0 0.0
    %5675 = vmatpush1.msra.mxu0 0.0
    %5676 = vmatprep.subr.mxu0 0.0
    %5677 = vmatpush1.msra.mxu0 0.0
    %5678 = vmatprep.subr.mxu0 0.0
    %5679 = vmatpush1.msra.mxu0 0.0
    %5680 = vmatprep.subr.mxu0 0.0
    %5681 = vmatpush1.msra.mxu0 0.0
    %5682 = vmatprep.subr.mxu0 0.0
    %5683 = vmatpush1.msra.mxu0 0.0
    %5684 = vmatprep.subr.mxu0 0.0
    %5685 = vmatpush1.msra.mxu0 0.0
    %5686 = vmatprep.subr.mxu0 0.0
    %5687 = vmatpush1.msra.mxu0 0.0
    %5688 = vmatprep.subr.mxu0 0.0
    %5689 = vmatpush1.msra.mxu0 0.0
    %5690 = vmatprep.subr.mxu0 0.0
    %5691 = vmatpush1.msra.mxu0 0.0
    %5692 = vmatprep.subr.mxu0 0.0
    %5693 = vmatpush1.msra.mxu0 %v5667
    %5694 = vmatprep.subr.mxu0 0.0
    %5695 = vmatpush1.msra.mxu0 %v5666
    %5696 = vmatprep.subr.mxu0 0.0
    %5697 = vmatpush1.msra.mxu0 %v5665
    %5698 = vmatprep.subr.mxu0 0.0
    %5699 = vmatpush1.msra.mxu0 %v5664
    %5700 = vmatprep.subr.mxu0 0.0
    %5701 = vmatpush2.msra.mxu0 0.0
    %5702 = vmatprep.subr.mxu0 0.0
    %5703 = vmatpush2.msra.mxu0 0.0
    %5704 = vmatprep.subr.mxu0 0.0
    %5705 = vmatpush2.msra.mxu0 0.0
    %5706 = vmatprep.subr.mxu0 0.0
    %5707 = vmatpush2.msra.mxu0 0.0
    %5708 = vmatprep.subr.mxu0 0.0
    %5709 = vmatpush2.msra.mxu0 0.0
    %5710 = vmatprep.subr.mxu0 0.0
    %5711 = vmatpush2.msra.mxu0 0.0
    %5712 = vmatprep.subr.mxu0 0.0
    %5713 = vmatpush2.msra.mxu0 0.0
    %5714 = vmatprep.subr.mxu0 0.0
    %5715 = vmatpush2.msra.mxu0 0.0
    %5716 = vmatprep.subr.mxu0 0.0
    %5717 = vmatpush2.msra.mxu0 0.0
    %5718 = vmatprep.subr.mxu0 0.0
    %5719 = vmatpush2.msra.mxu0 0.0
    %5720 = vmatprep.subr.mxu0 0.0
    %5721 = vmatpush2.msra.mxu0 0.0
    %5722 = vmatprep.subr.mxu0 0.0
    %5723 = vmatpush2.msra.mxu0 0.0
    %5724 = vmatprep.subr.mxu0 0.0
    %5725 = vmatpush2.msra.mxu0 0.0
    %5726 = vmatprep.subr.mxu0 0.0
    %5727 = vmatpush2.msra.mxu0 0.0
    %5728 = vmatprep.subr.mxu0 0.0
    %5729 = vmatpush2.msra.mxu0 0.0
    %5730 = vmatprep.subr.mxu0 0.0
    %5731 = vmatpush2.msra.mxu0 0.0
    %5732 = vmatprep.mubr.f32.mxu0 0.0
    %5733 = vmatmul.mubr.f32.gmra.mxu0 %v5411
    %v5734 = vpop.f32.mrf.mxu0
    %v5735 = vadd.f32 0.0, %v5734
    %v5736 = vpop.f32.mrf.mxu0
    %5737 = vdwg.mxu0
    %5739 = vrot.lane.b32.xlu0 %v5659, 32
    %v5740 = vpop.permute.xlu0 %5739
    %v5741 = vsel %vm232, %v5740, 0
    %5743 = vmatprep.subr.mxu0 0.0
    %5744 = vmatpush1.msra.mxu0 0.0
    %5745 = vmatprep.subr.mxu0 0.0
    %5746 = vmatpush1.msra.mxu0 0.0
    %5747 = vmatprep.subr.mxu0 0.0
    %5748 = vmatpush1.msra.mxu0 0.0
    %5749 = vmatprep.subr.mxu0 0.0
    %5750 = vmatpush1.msra.mxu0 0.0
    %5751 = vmatprep.subr.mxu0 0.0
    %5752 = vmatpush1.msra.mxu0 0.0
    %5753 = vmatprep.subr.mxu0 0.0
    %5754 = vmatpush1.msra.mxu0 0.0
    %5755 = vmatprep.subr.mxu0 0.0
    %5756 = vmatpush1.msra.mxu0 0.0
    %5757 = vmatprep.subr.mxu0 0.0
    %5758 = vmatpush1.msra.mxu0 0.0
    %5759 = vmatprep.subr.mxu0 0.0
    %5760 = vmatpush1.msra.mxu0 0.0
    %5761 = vmatprep.subr.mxu0 0.0
    %5762 = vmatpush1.msra.mxu0 0.0
    %5763 = vmatprep.subr.mxu0 0.0
    %5764 = vmatpush1.msra.mxu0 0.0
    %5765 = vmatprep.subr.mxu0 0.0
    %5766 = vmatpush1.msra.mxu0 0.0
    %5767 = vmatprep.subr.mxu0 0.0
    %5768 = vmatpush1.msra.mxu0 %v5663
    %5769 = vmatprep.subr.mxu0 0.0
    %5770 = vmatpush1.msra.mxu0 %v5662
    %5771 = vmatprep.subr.mxu0 0.0
    %5772 = vmatpush1.msra.mxu0 %v5661
    %5773 = vmatprep.subr.mxu0 0.0
    %5774 = vmatpush1.msra.mxu0 %v5660
    %5775 = vmatprep.subr.mxu0 0.0
    %5776 = vmatpush2.msra.mxu0 0.0
    %5777 = vmatprep.subr.mxu0 0.0
    %5778 = vmatpush2.msra.mxu0 0.0
    %5779 = vmatprep.subr.mxu0 0.0
    %5780 = vmatpush2.msra.mxu0 0.0
    %5781 = vmatprep.subr.mxu0 0.0
    %5782 = vmatpush2.msra.mxu0 0.0
    %5783 = vmatprep.subr.mxu0 0.0
    %5784 = vmatpush2.msra.mxu0 0.0
    %5785 = vmatprep.subr.mxu0 0.0
    %5786 = vmatpush2.msra.mxu0 0.0
    %5787 = vmatprep.subr.mxu0 0.0
    %5788 = vmatpush2.msra.mxu0 0.0
    %5789 = vmatprep.subr.mxu0 0.0
    %5790 = vmatpush2.msra.mxu0 0.0
    %5791 = vmatprep.subr.mxu0 0.0
    %5792 = vmatpush2.msra.mxu0 0.0
    %5793 = vmatprep.subr.mxu0 0.0
    %5794 = vmatpush2.msra.mxu0 0.0
    %5795 = vmatprep.subr.mxu0 0.0
    %5796 = vmatpush2.msra.mxu0 0.0
    %5797 = vmatprep.subr.mxu0 0.0
    %5798 = vmatpush2.msra.mxu0 0.0
    %5799 = vmatprep.subr.mxu0 0.0
    %5800 = vmatpush2.msra.mxu0 0.0
    %5801 = vmatprep.subr.mxu0 0.0
    %5802 = vmatpush2.msra.mxu0 0.0
    %5803 = vmatprep.subr.mxu0 0.0
    %5804 = vmatpush2.msra.mxu0 0.0
    %5805 = vmatprep.subr.mxu0 0.0
    %5806 = vmatpush2.msra.mxu0 0.0
    %5807 = vmatprep.mubr.f32.mxu0 0.0
    %5808 = vmatmul.mubr.f32.gmra.mxu0 %v5741
    %v5809 = vpop.f32.mrf.mxu0
    %v5810 = vadd.f32 %v5735, %v5809
    %v5811 = vpop.f32.mrf.mxu0
    %5812 = vdwg.mxu0
    %v5813 = vld [vmem:[%s16] sm:$0x1]
    %v5815 = vlaneseq
    %v5816 = vshrl.u32 %v5815, 7
    %v5817 = vsub.s32 0, %v5816
    %v5818 = vrot.slane %v5813, %v5817
    %v5820 = vadd.f32 %v5810, %v5818
    %s5821 = scalar_lea.vmem %s17, 48
    %5822 = vst [vmem:[%s5821] sm:$0xff] %v5820
    %s5823 = sld [smem:[#allocation5 + $0x6]]
    %p5824 = scmp.gt.s32.totalorder %s5823, 0
    %s5825 = scalar_select %p5824, 1, 0
    %s5826 = scvt.s32.f32 %s5825
    %s5827 = scalar_lea.vmem %s1, 56
    %v5828 = vld [vmem:[%s5827] sm:$0xff]
    %v5829 = vstv %s5826
    %v5830 = vmul.f32 %v5829, %v5828
    %s5831 = ssub.f32 1.0, %s5826
    %v5832 = vstv %s5831
    %v5833 = vmul.f32 %v5832, %v5820
    %v5834 = vadd.f32 %v5830, %v5833
    %v5835 = vld [vmem:[%s10] sm:$0xff]
    %v5836 = vld [vmem:[%s10 + $0x8] sm:$0xff]
    %v5837 = vld [vmem:[%s10 + $0x10] sm:$0xff]
    %v5838 = vld [vmem:[%s10 + $0x18] sm:$0xff]
    %5839 = vmatprep.subr.mxu0 0.0
    %5840 = vmatpush1.msra.mxu0 0.0
    %5841 = vmatprep.subr.mxu0 0.0
    %5842 = vmatpush1.msra.mxu0 0.0
    %5843 = vmatprep.subr.mxu0 0.0
    %5844 = vmatpush1.msra.mxu0 0.0
    %5845 = vmatprep.subr.mxu0 0.0
    %5846 = vmatpush1.msra.mxu0 0.0
    %5847 = vmatprep.subr.mxu0 0.0
    %5848 = vmatpush1.msra.mxu0 0.0
    %5849 = vmatprep.subr.mxu0 0.0
    %5850 = vmatpush1.msra.mxu0 0.0
    %5851 = vmatprep.subr.mxu0 0.0
    %5852 = vmatpush1.msra.mxu0 0.0
    %5853 = vmatprep.subr.mxu0 0.0
    %5854 = vmatpush1.msra.mxu0 0.0
    %5855 = vmatprep.subr.mxu0 0.0
    %5856 = vmatpush1.msra.mxu0 0.0
    %5857 = vmatprep.subr.mxu0 0.0
    %5858 = vmatpush1.msra.mxu0 0.0
    %5859 = vmatprep.subr.mxu0 0.0
    %5860 = vmatpush1.msra.mxu0 0.0
    %5861 = vmatprep.subr.mxu0 0.0
    %5862 = vmatpush1.msra.mxu0 0.0
    %5863 = vmatprep.subr.mxu0 0.0
    %5864 = vmatpush1.msra.mxu0 %v5838
    %5865 = vmatprep.subr.mxu0 0.0
    %5866 = vmatpush1.msra.mxu0 %v5837
    %5867 = vmatprep.subr.mxu0 0.0
    %5868 = vmatpush1.msra.mxu0 %v5836
    %5869 = vmatprep.subr.mxu0 0.0
    %5870 = vmatpush1.msra.mxu0 %v5835
    %5871 = vmatprep.subr.mxu0 0.0
    %5872 = vmatpush2.msra.mxu0 0.0
    %5873 = vmatprep.subr.mxu0 0.0
    %5874 = vmatpush2.msra.mxu0 0.0
    %5875 = vmatprep.subr.mxu0 0.0
    %5876 = vmatpush2.msra.mxu0 0.0
    %5877 = vmatprep.subr.mxu0 0.0
    %5878 = vmatpush2.msra.mxu0 0.0
    %5879 = vmatprep.subr.mxu0 0.0
    %5880 = vmatpush2.msra.mxu0 0.0
    %5881 = vmatprep.subr.mxu0 0.0
    %5882 = vmatpush2.msra.mxu0 0.0
    %5883 = vmatprep.subr.mxu0 0.0
    %5884 = vmatpush2.msra.mxu0 0.0
    %5885 = vmatprep.subr.mxu0 0.0
    %5886 = vmatpush2.msra.mxu0 0.0
    %5887 = vmatprep.subr.mxu0 0.0
    %5888 = vmatpush2.msra.mxu0 0.0
    %5889 = vmatprep.subr.mxu0 0.0
    %5890 = vmatpush2.msra.mxu0 0.0
    %5891 = vmatprep.subr.mxu0 0.0
    %5892 = vmatpush2.msra.mxu0 0.0
    %5893 = vmatprep.subr.mxu0 0.0
    %5894 = vmatpush2.msra.mxu0 0.0
    %5895 = vmatprep.subr.mxu0 0.0
    %5896 = vmatpush2.msra.mxu0 0.0
    %5897 = vmatprep.subr.mxu0 0.0
    %5898 = vmatpush2.msra.mxu0 0.0
    %5899 = vmatprep.subr.mxu0 0.0
    %5900 = vmatpush2.msra.mxu0 0.0
    %5901 = vmatprep.subr.mxu0 0.0
    %5902 = vmatpush2.msra.mxu0 0.0
    %5903 = vmatprep.mubr.f32.mxu0 0.0
    %5904 = vmatmul.mubr.f32.gmra.mxu0 %v5741
    %v5905 = vpop.f32.mrf.mxu0
    %v5906 = vadd.f32 0.0, %v5905
    %v5907 = vpop.f32.mrf.mxu0
    %5908 = vdwg.mxu0
    %v5909 = vld [vmem:[#allocation4] sm:$0xff]
    %v5910 = vld [vmem:[#allocation4 + $0x8] sm:$0xff]
    %v5911 = vld [vmem:[#allocation4 + $0x10] sm:$0xff]
    %v5912 = vld [vmem:[#allocation4 + $0x18] sm:$0xff]
    %v5913 = vld [vmem:[#allocation4 + $0x20] sm:$0xff]
    %v5914 = vld [vmem:[#allocation4 + $0x28] sm:$0xff]
    %v5915 = vld [vmem:[#allocation4 + $0x30] sm:$0xff]
    %v5916 = vld [vmem:[#allocation4 + $0x38] sm:$0xff]
    %v5917 = vadd.f32 %v5909, %v5906
    %v5918 = vadd.f32 %v5910, %v5906
    %v5919 = vadd.f32 %v5911, %v5906
    %v5920 = vadd.f32 %v5912, %v5906
    %v5921 = vadd.f32 %v5913, %v5906
    %v5922 = vadd.f32 %v5914, %v5906
    %v5923 = vadd.f32 %v5915, %v5906
    %v5924 = vadd.f32 %v5916, %v5906
    %v5925 = vtanh.pop %v5917
    %v5926 = vtanh.pop %v5918
    %v5927 = vtanh.pop %v5919
    %v5928 = vtanh.pop %v5920
    %v5929 = vtanh.pop %v5921
    %v5930 = vtanh.pop %v5922
    %v5931 = vtanh.pop %v5923
    %v5932 = vtanh.pop %v5924
    %v5933 = vmul.f32 %v5925, %v1361
    %v5934 = vmul.f32 %v5926, %v1361
    %v5935 = vmul.f32 %v5927, %v1361
    %v5936 = vmul.f32 %v5928, %v1361
    %v5937 = vmul.f32 %v5929, %v1361
    %v5938 = vmul.f32 %v5930, %v1361
    %v5939 = vmul.f32 %v5931, %v1361
    %v5940 = vmul.f32 %v5932, %v1361
    %v5941 = vsel %vm232, %v5933, 0.0
    %5942 = vadd.xlane.f32.xlu0 %v5941
    %v5943 = vpop.xlane.xlu0 %5942
    %v5944 = vsel %vm232, %v5934, 0.0
    %5945 = vadd.xlane.f32.xlu0 %v5944
    %v5946 = vpop.xlane.xlu0 %5945
    %v5947 = vsel %vm232, %v5935, 0.0
    %5948 = vadd.xlane.f32.xlu0 %v5947
    %v5949 = vpop.xlane.xlu0 %5948
    %v5950 = vsel %vm232, %v5936, 0.0
    %5951 = vadd.xlane.f32.xlu0 %v5950
    %v5952 = vpop.xlane.xlu0 %5951
    %v5953 = vsel %vm232, %v5937, 0.0
    %5954 = vadd.xlane.f32.xlu0 %v5953
    %v5955 = vpop.xlane.xlu0 %5954
    %v5956 = vsel %vm232, %v5938, 0.0
    %5957 = vadd.xlane.f32.xlu0 %v5956
    %v5958 = vpop.xlane.xlu0 %5957
    %v5959 = vsel %vm232, %v5939, 0.0
    %5960 = vadd.xlane.f32.xlu0 %v5959
    %v5961 = vpop.xlane.xlu0 %5960
    %v5962 = vsel %vm232, %v5940, 0.0
    %5963 = vadd.xlane.f32.xlu0 %v5962
    %v5964 = vpop.xlane.xlu0 %5963
    %v5965 = vmax.f32 %v5943, %v5955
    %v5966 = vmax.f32 %v5946, %v5958
    %v5967 = vmax.f32 %v5949, %v5961
    %v5968 = vmax.f32 %v5952, %v5964
    %v5969 = vmax.f32 %v5965, %v5966
    %v5970 = vmax.f32 %v5967, %v5968
    %v5971 = vmax.f32 %v5969, %v5970
    %v5972 = vsub.f32 %v5943, %v5971
    %v5973 = vsub.f32 %v5946, %v5971
    %v5974 = vsub.f32 %v5949, %v5971
    %v5975 = vsub.f32 %v5952, %v5971
    %v5976 = vsub.f32 %v5955, %v5971
    %v5977 = vsub.f32 %v5958, %v5971
    %v5978 = vsub.f32 %v5961, %v5971
    %v5979 = vsub.f32 %v5964, %v5971
    %v5980 = vmul.f32 %v5972, 1.442695
    %v5981 = vpow.pop %v5980
    %v5982 = vmul.f32 %v5973, 1.442695
    %v5983 = vpow.pop %v5982
    %v5984 = vmul.f32 %v5974, 1.442695
    %v5985 = vpow.pop %v5984
    %v5986 = vmul.f32 %v5975, 1.442695
    %v5987 = vpow.pop %v5986
    %v5988 = vmul.f32 %v5976, 1.442695
    %v5989 = vpow.pop %v5988
    %v5990 = vmul.f32 %v5977, 1.442695
    %v5991 = vpow.pop %v5990
    %v5992 = vmul.f32 %v5978, 1.442695
    %v5993 = vpow.pop %v5992
    %v5994 = vmul.f32 %v5979, 1.442695
    %v5995 = vpow.pop %v5994
    %v5996 = vadd.f32 %v5981, %v5983
    %v5997 = vadd.f32 %v5996, %v5985
    %v5998 = vadd.f32 %v5997, %v5987
    %v5999 = vadd.f32 %v5998, %v5989
    %v6000 = vadd.f32 %v5999, %v5991
    %v6001 = vadd.f32 %v6000, %v5993
    %v6002 = vadd.f32 %v6001, %v5995
    %v6003 = vrcp.pop %v6002
    %v6004 = vmul.f32 %v5981, %v6003
    %v6005 = vmul.f32 %v5983, %v6003
    %v6006 = vmul.f32 %v5985, %v6003
    %v6007 = vmul.f32 %v5987, %v6003
    %v6008 = vmul.f32 %v5989, %v6003
    %v6009 = vmul.f32 %v5991, %v6003
    %v6010 = vmul.f32 %v5993, %v6003
    %v6011 = vmul.f32 %v5995, %v6003
    %v6012 = vld [vmem:[#allocation3] sm:$0xff]
    %v6013 = vld [vmem:[#allocation3 + $0x8] sm:$0xff]
    %v6014 = vld [vmem:[#allocation3 + $0x10] sm:$0xff]
    %v6015 = vld [vmem:[#allocation3 + $0x18] sm:$0xff]
    %v6016 = vld [vmem:[#allocation3 + $0x20] sm:$0xff]
    %v6017 = vld [vmem:[#allocation3 + $0x28] sm:$0xff]
    %v6018 = vld [vmem:[#allocation3 + $0x30] sm:$0xff]
    %v6019 = vld [vmem:[#allocation3 + $0x38] sm:$0xff]
    %v6020 = vmul.f32 %v6004, %v6012
    %v6021 = vmul.f32 %v6005, %v6013
    %v6022 = vmul.f32 %v6006, %v6014
    %v6023 = vmul.f32 %v6007, %v6015
    %v6024 = vmul.f32 %v6008, %v6016
    %v6025 = vmul.f32 %v6009, %v6017
    %v6026 = vmul.f32 %v6010, %v6018
    %v6027 = vmul.f32 %v6011, %v6019
    %v6028 = vsel %vm232, %v6020, 0.0
    %v6029 = vsel %vm232, %v6021, 0.0
    %v6030 = vadd.f32 %v6028, %v6029
    %v6031 = vsel %vm232, %v6022, 0.0
    %v6032 = vadd.f32 %v6030, %v6031
    %v6033 = vsel %vm232, %v6023, 0.0
    %v6034 = vadd.f32 %v6032, %v6033
    %v6035 = vsel %vm232, %v6024, 0.0
    %v6036 = vadd.f32 %v6034, %v6035
    %v6037 = vsel %vm232, %v6025, 0.0
    %v6038 = vadd.f32 %v6036, %v6037
    %v6039 = vsel %vm232, %v6026, 0.0
    %v6040 = vadd.f32 %v6038, %v6039
    %v6041 = vsel %vm232, %v6027, 0.0
    %v6042 = vadd.f32 %v6040, %v6041
    %v6043 = vld [vmem:[%s6] sm:$0xff]
    %v6044 = vld [vmem:[%s6 + $0x8] sm:$0xff]
    %v6045 = vld [vmem:[%s6 + $0x10] sm:$0xff]
    %v6046 = vld [vmem:[%s6 + $0x18] sm:$0xff]
    %v6047 = vld [vmem:[%s6 + $0x20] sm:$0xff]
    %v6048 = vld [vmem:[%s6 + $0x28] sm:$0xff]
    %v6049 = vld [vmem:[%s6 + $0x30] sm:$0xff]
    %v6050 = vld [vmem:[%s6 + $0x38] sm:$0xff]
    %v6051 = vld [vmem:[%s6 + $0x40] sm:$0xff]
    %v6052 = vld [vmem:[%s6 + $0x48] sm:$0xff]
    %v6053 = vld [vmem:[%s6 + $0x50] sm:$0xff]
    %v6054 = vld [vmem:[%s6 + $0x58] sm:$0xff]
    %v6055 = vld [vmem:[%s6 + $0x60] sm:$0xff]
    %v6056 = vld [vmem:[%s6 + $0x68] sm:$0xff]
    %v6057 = vld [vmem:[%s6 + $0x70] sm:$0xff]
    %v6058 = vld [vmem:[%s6 + $0x78] sm:$0xff]
    %v6059 = vld [vmem:[%s7] sm:$0xff]
    %v6060 = vld [vmem:[%s7 + $0x8] sm:$0xff]
    %v6061 = vld [vmem:[%s7 + $0x10] sm:$0xff]
    %v6062 = vld [vmem:[%s7 + $0x18] sm:$0xff]
    %v6064 = vsel %vm232, %v6042, 0
    %6066 = vmatprep.subr.mxu0 0.0
    %6067 = vmatpush1.msra.mxu0 0.0
    %6068 = vmatprep.subr.mxu0 0.0
    %6069 = vmatpush1.msra.mxu0 0.0
    %6070 = vmatprep.subr.mxu0 0.0
    %6071 = vmatpush1.msra.mxu0 0.0
    %6072 = vmatprep.subr.mxu0 0.0
    %6073 = vmatpush1.msra.mxu0 0.0
    %6074 = vmatprep.subr.mxu0 0.0
    %6075 = vmatpush1.msra.mxu0 0.0
    %6076 = vmatprep.subr.mxu0 0.0
    %6077 = vmatpush1.msra.mxu0 0.0
    %6078 = vmatprep.subr.mxu0 0.0
    %6079 = vmatpush1.msra.mxu0 0.0
    %6080 = vmatprep.subr.mxu0 0.0
    %6081 = vmatpush1.msra.mxu0 0.0
    %6082 = vmatprep.subr.mxu0 0.0
    %6083 = vmatpush1.msra.mxu0 0.0
    %6084 = vmatprep.subr.mxu0 0.0
    %6085 = vmatpush1.msra.mxu0 0.0
    %6086 = vmatprep.subr.mxu0 0.0
    %6087 = vmatpush1.msra.mxu0 0.0
    %6088 = vmatprep.subr.mxu0 0.0
    %6089 = vmatpush1.msra.mxu0 0.0
    %6090 = vmatprep.subr.mxu0 0.0
    %6091 = vmatpush1.msra.mxu0 %v6062
    %6092 = vmatprep.subr.mxu0 0.0
    %6093 = vmatpush1.msra.mxu0 %v6061
    %6094 = vmatprep.subr.mxu0 0.0
    %6095 = vmatpush1.msra.mxu0 %v6060
    %6096 = vmatprep.subr.mxu0 0.0
    %6097 = vmatpush1.msra.mxu0 %v6059
    %6098 = vmatprep.subr.mxu0 0.0
    %6099 = vmatpush2.msra.mxu0 0.0
    %6100 = vmatprep.subr.mxu0 0.0
    %6101 = vmatpush2.msra.mxu0 0.0
    %6102 = vmatprep.subr.mxu0 0.0
    %6103 = vmatpush2.msra.mxu0 0.0
    %6104 = vmatprep.subr.mxu0 0.0
    %6105 = vmatpush2.msra.mxu0 0.0
    %6106 = vmatprep.subr.mxu0 0.0
    %6107 = vmatpush2.msra.mxu0 0.0
    %6108 = vmatprep.subr.mxu0 0.0
    %6109 = vmatpush2.msra.mxu0 0.0
    %6110 = vmatprep.subr.mxu0 0.0
    %6111 = vmatpush2.msra.mxu0 0.0
    %6112 = vmatprep.subr.mxu0 0.0
    %6113 = vmatpush2.msra.mxu0 0.0
    %6114 = vmatprep.subr.mxu0 0.0
    %6115 = vmatpush2.msra.mxu0 0.0
    %6116 = vmatprep.subr.mxu0 0.0
    %6117 = vmatpush2.msra.mxu0 0.0
    %6118 = vmatprep.subr.mxu0 0.0
    %6119 = vmatpush2.msra.mxu0 0.0
    %6120 = vmatprep.subr.mxu0 0.0
    %6121 = vmatpush2.msra.mxu0 0.0
    %6122 = vmatprep.subr.mxu0 0.0
    %6123 = vmatpush2.msra.mxu0 0.0
    %6124 = vmatprep.subr.mxu0 0.0
    %6125 = vmatpush2.msra.mxu0 0.0
    %6126 = vmatprep.subr.mxu0 0.0
    %6127 = vmatpush2.msra.mxu0 0.0
    %6128 = vmatprep.subr.mxu0 0.0
    %6129 = vmatpush2.msra.mxu0 0.0
    %6130 = vmatprep.mubr.f32.mxu0 0.0
    %6131 = vmatmul.mubr.f32.gmra.mxu0 %v6064
    %v6132 = vpop.f32.mrf.mxu0
    %v6133 = vadd.f32 0.0, %v6132
    %v6134 = vpop.f32.mrf.mxu0
    %6135 = vdwg.mxu0
    %6136 = vmatprep.subr.mxu0 0.0
    %6137 = vmatpush1.msra.mxu0 %v6058
    %6138 = vmatprep.subr.mxu0 0.0
    %6139 = vmatpush1.msra.mxu0 %v6057
    %6140 = vmatprep.subr.mxu0 0.0
    %6141 = vmatpush1.msra.mxu0 %v6056
    %6142 = vmatprep.subr.mxu0 0.0
    %6143 = vmatpush1.msra.mxu0 %v6055
    %6144 = vmatprep.subr.mxu0 0.0
    %6145 = vmatpush1.msra.mxu0 %v6054
    %6146 = vmatprep.subr.mxu0 0.0
    %6147 = vmatpush1.msra.mxu0 %v6053
    %6148 = vmatprep.subr.mxu0 0.0
    %6149 = vmatpush1.msra.mxu0 %v6052
    %6150 = vmatprep.subr.mxu0 0.0
    %6151 = vmatpush1.msra.mxu0 %v6051
    %6152 = vmatprep.subr.mxu0 0.0
    %6153 = vmatpush1.msra.mxu0 %v6050
    %6154 = vmatprep.subr.mxu0 0.0
    %6155 = vmatpush1.msra.mxu0 %v6049
    %6156 = vmatprep.subr.mxu0 0.0
    %6157 = vmatpush1.msra.mxu0 %v6048
    %6158 = vmatprep.subr.mxu0 0.0
    %6159 = vmatpush1.msra.mxu0 %v6047
    %6160 = vmatprep.subr.mxu0 0.0
    %6161 = vmatpush1.msra.mxu0 %v6046
    %6162 = vmatprep.subr.mxu0 0.0
    %6163 = vmatpush1.msra.mxu0 %v6045
    %6164 = vmatprep.subr.mxu0 0.0
    %6165 = vmatpush1.msra.mxu0 %v6044
    %6166 = vmatprep.subr.mxu0 0.0
    %6167 = vmatpush1.msra.mxu0 %v6043
    %6168 = vmatprep.subr.mxu0 0.0
    %6169 = vmatpush2.msra.mxu0 0.0
    %6170 = vmatprep.subr.mxu0 0.0
    %6171 = vmatpush2.msra.mxu0 0.0
    %6172 = vmatprep.subr.mxu0 0.0
    %6173 = vmatpush2.msra.mxu0 0.0
    %6174 = vmatprep.subr.mxu0 0.0
    %6175 = vmatpush2.msra.mxu0 0.0
    %6176 = vmatprep.subr.mxu0 0.0
    %6177 = vmatpush2.msra.mxu0 0.0
    %6178 = vmatprep.subr.mxu0 0.0
    %6179 = vmatpush2.msra.mxu0 0.0
    %6180 = vmatprep.subr.mxu0 0.0
    %6181 = vmatpush2.msra.mxu0 0.0
    %6182 = vmatprep.subr.mxu0 0.0
    %6183 = vmatpush2.msra.mxu0 0.0
    %6184 = vmatprep.subr.mxu0 0.0
    %6185 = vmatpush2.msra.mxu0 0.0
    %6186 = vmatprep.subr.mxu0 0.0
    %6187 = vmatpush2.msra.mxu0 0.0
    %6188 = vmatprep.subr.mxu0 0.0
    %6189 = vmatpush2.msra.mxu0 0.0
    %6190 = vmatprep.subr.mxu0 0.0
    %6191 = vmatpush2.msra.mxu0 0.0
    %6192 = vmatprep.subr.mxu0 0.0
    %6193 = vmatpush2.msra.mxu0 0.0
    %6194 = vmatprep.subr.mxu0 0.0
    %6195 = vmatpush2.msra.mxu0 0.0
    %6196 = vmatprep.subr.mxu0 0.0
    %6197 = vmatpush2.msra.mxu0 0.0
    %6198 = vmatprep.subr.mxu0 0.0
    %6199 = vmatpush2.msra.mxu0 0.0
    %6200 = vmatprep.mubr.f32.mxu0 0.0
    %6201 = vmatmul.mubr.f32.gmra.mxu0 %v5834
    %v6202 = vpop.f32.mrf.mxu0
    %v6203 = vadd.f32 %v6133, %v6202
    %v6204 = vpop.f32.mrf.mxu0
    %6205 = vdwg.mxu0
    %v6206 = vld [vmem:[%s8] sm:$0xff]
    %v6207 = vld [vmem:[%s8 + $0x8] sm:$0xff]
    %v6208 = vld [vmem:[%s8 + $0x10] sm:$0xff]
    %v6209 = vld [vmem:[%s8 + $0x18] sm:$0xff]
    %6210 = vmatprep.subr.mxu0 0.0
    %6211 = vmatpush1.msra.mxu0 0.0
    %6212 = vmatprep.subr.mxu0 0.0
    %6213 = vmatpush1.msra.mxu0 0.0
    %6214 = vmatprep.subr.mxu0 0.0
    %6215 = vmatpush1.msra.mxu0 0.0
    %6216 = vmatprep.subr.mxu0 0.0
    %6217 = vmatpush1.msra.mxu0 0.0
    %6218 = vmatprep.subr.mxu0 0.0
    %6219 = vmatpush1.msra.mxu0 0.0
    %6220 = vmatprep.subr.mxu0 0.0
    %6221 = vmatpush1.msra.mxu0 0.0
    %6222 = vmatprep.subr.mxu0 0.0
    %6223 = vmatpush1.msra.mxu0 0.0
    %6224 = vmatprep.subr.mxu0 0.0
    %6225 = vmatpush1.msra.mxu0 0.0
    %6226 = vmatprep.subr.mxu0 0.0
    %6227 = vmatpush1.msra.mxu0 0.0
    %6228 = vmatprep.subr.mxu0 0.0
    %6229 = vmatpush1.msra.mxu0 0.0
    %6230 = vmatprep.subr.mxu0 0.0
    %6231 = vmatpush1.msra.mxu0 0.0
    %6232 = vmatprep.subr.mxu0 0.0
    %6233 = vmatpush1.msra.mxu0 0.0
    %6234 = vmatprep.subr.mxu0 0.0
    %6235 = vmatpush1.msra.mxu0 %v6209
    %6236 = vmatprep.subr.mxu0 0.0
    %6237 = vmatpush1.msra.mxu0 %v6208
    %6238 = vmatprep.subr.mxu0 0.0
    %6239 = vmatpush1.msra.mxu0 %v6207
    %6240 = vmatprep.subr.mxu0 0.0
    %6241 = vmatpush1.msra.mxu0 %v6206
    %6242 = vmatprep.subr.mxu0 0.0
    %6243 = vmatpush2.msra.mxu0 0.0
    %6244 = vmatprep.subr.mxu0 0.0
    %6245 = vmatpush2.msra.mxu0 0.0
    %6246 = vmatprep.subr.mxu0 0.0
    %6247 = vmatpush2.msra.mxu0 0.0
    %6248 = vmatprep.subr.mxu0 0.0
    %6249 = vmatpush2.msra.mxu0 0.0
    %6250 = vmatprep.subr.mxu0 0.0
    %6251 = vmatpush2.msra.mxu0 0.0
    %6252 = vmatprep.subr.mxu0 0.0
    %6253 = vmatpush2.msra.mxu0 0.0
    %6254 = vmatprep.subr.mxu0 0.0
    %6255 = vmatpush2.msra.mxu0 0.0
    %6256 = vmatprep.subr.mxu0 0.0
    %6257 = vmatpush2.msra.mxu0 0.0
    %6258 = vmatprep.subr.mxu0 0.0
    %6259 = vmatpush2.msra.mxu0 0.0
    %6260 = vmatprep.subr.mxu0 0.0
    %6261 = vmatpush2.msra.mxu0 0.0
    %6262 = vmatprep.subr.mxu0 0.0
    %6263 = vmatpush2.msra.mxu0 0.0
    %6264 = vmatprep.subr.mxu0 0.0
    %6265 = vmatpush2.msra.mxu0 0.0
    %6266 = vmatprep.subr.mxu0 0.0
    %6267 = vmatpush2.msra.mxu0 0.0
    %6268 = vmatprep.subr.mxu0 0.0
    %6269 = vmatpush2.msra.mxu0 0.0
    %6270 = vmatprep.subr.mxu0 0.0
    %6271 = vmatpush2.msra.mxu0 0.0
    %6272 = vmatprep.subr.mxu0 0.0
    %6273 = vmatpush2.msra.mxu0 0.0
    %6274 = vmatprep.mubr.f32.mxu0 0.0
    %6275 = vmatmul.mubr.f32.gmra.mxu0 %v5741
    %v6276 = vpop.f32.mrf.mxu0
    %v6277 = vadd.f32 0.0, %v6276
    %v6278 = vpop.f32.mrf.mxu0
    %6279 = vdwg.mxu0
    %v6280 = vadd.f32 %v6203, %v6277
    %v6281 = vld [vmem:[%s9] sm:$0x1]
    %v6283 = vlaneseq
    %v6284 = vshrl.u32 %v6283, 7
    %v6285 = vsub.s32 0, %v6284
    %v6286 = vrot.slane %v6281, %v6285
    %v6288 = vadd.f32 %v6280, %v6286
    %v6289 = vxor.u32 %v6288, 2147483648
    %v6290 = vmul.f32 %v6289, 1.442695
    %v6291 = vpow.pop %v6290
    %v6292 = vadd.f32 %v6291, 1.0
    %v6293 = vrcp.pop %v6292
    %v6294 = vmul.f32 1.0, %v6293
    %v6295 = vtanh.pop %v6288
    %v6296 = vmul.f32 %v6294, %v5653
    %6298 = vrot.lane.b32.xlu0 %v6295, 64
    %v6299 = vpop.permute.xlu0 %6298
    %v6301 = vmul.f32 %v6294, %v6299
    %6303 = vrot.lane.b32.xlu0 %v6301, 32
    %v6304 = vpop.permute.xlu0 %6303
    %v6306 = vadd.f32 %v6296, %v6304
    %v6307 = vtanh.pop %v6306
    %6309 = vrot.lane.b32.xlu0 %v6307, 64
    %v6310 = vpop.permute.xlu0 %6309
    %v6312 = vmul.f32 %v6294, %v6310
    %v6313 = vld [vmem:[%s14] sm:$0xff]
    %v6314 = vld [vmem:[%s14 + $0x8] sm:$0xff]
    %v6315 = vld [vmem:[%s14 + $0x10] sm:$0xff]
    %v6316 = vld [vmem:[%s14 + $0x18] sm:$0xff]
    %v6317 = vld [vmem:[%s15] sm:$0xff]
    %v6318 = vld [vmem:[%s15 + $0x8] sm:$0xff]
    %v6319 = vld [vmem:[%s15 + $0x10] sm:$0xff]
    %v6320 = vld [vmem:[%s15 + $0x18] sm:$0xff]
    %6321 = vmatprep.subr.mxu0 0.0
    %6322 = vmatpush1.msra.mxu0 0.0
    %6323 = vmatprep.subr.mxu0 0.0
    %6324 = vmatpush1.msra.mxu0 0.0
    %6325 = vmatprep.subr.mxu0 0.0
    %6326 = vmatpush1.msra.mxu0 0.0
    %6327 = vmatprep.subr.mxu0 0.0
    %6328 = vmatpush1.msra.mxu0 0.0
    %6329 = vmatprep.subr.mxu0 0.0
    %6330 = vmatpush1.msra.mxu0 0.0
    %6331 = vmatprep.subr.mxu0 0.0
    %6332 = vmatpush1.msra.mxu0 0.0
    %6333 = vmatprep.subr.mxu0 0.0
    %6334 = vmatpush1.msra.mxu0 0.0
    %6335 = vmatprep.subr.mxu0 0.0
    %6336 = vmatpush1.msra.mxu0 0.0
    %6337 = vmatprep.subr.mxu0 0.0
    %6338 = vmatpush1.msra.mxu0 0.0
    %6339 = vmatprep.subr.mxu0 0.0
    %6340 = vmatpush1.msra.mxu0 0.0
    %6341 = vmatprep.subr.mxu0 0.0
    %6342 = vmatpush1.msra.mxu0 0.0
    %6343 = vmatprep.subr.mxu0 0.0
    %6344 = vmatpush1.msra.mxu0 0.0
    %6345 = vmatprep.subr.mxu0 0.0
    %6346 = vmatpush1.msra.mxu0 %v6320
    %6347 = vmatprep.subr.mxu0 0.0
    %6348 = vmatpush1.msra.mxu0 %v6319
    %6349 = vmatprep.subr.mxu0 0.0
    %6350 = vmatpush1.msra.mxu0 %v6318
    %6351 = vmatprep.subr.mxu0 0.0
    %6352 = vmatpush1.msra.mxu0 %v6317
    %6353 = vmatprep.subr.mxu0 0.0
    %6354 = vmatpush2.msra.mxu0 0.0
    %6355 = vmatprep.subr.mxu0 0.0
    %6356 = vmatpush2.msra.mxu0 0.0
    %6357 = vmatprep.subr.mxu0 0.0
    %6358 = vmatpush2.msra.mxu0 0.0
    %6359 = vmatprep.subr.mxu0 0.0
    %6360 = vmatpush2.msra.mxu0 0.0
    %6361 = vmatprep.subr.mxu0 0.0
    %6362 = vmatpush2.msra.mxu0 0.0
    %6363 = vmatprep.subr.mxu0 0.0
    %6364 = vmatpush2.msra.mxu0 0.0
    %6365 = vmatprep.subr.mxu0 0.0
    %6366 = vmatpush2.msra.mxu0 0.0
    %6367 = vmatprep.subr.mxu0 0.0
    %6368 = vmatpush2.msra.mxu0 0.0
    %6369 = vmatprep.subr.mxu0 0.0
    %6370 = vmatpush2.msra.mxu0 0.0
    %6371 = vmatprep.subr.mxu0 0.0
    %6372 = vmatpush2.msra.mxu0 0.0
    %6373 = vmatprep.subr.mxu0 0.0
    %6374 = vmatpush2.msra.mxu0 0.0
    %6375 = vmatprep.subr.mxu0 0.0
    %6376 = vmatpush2.msra.mxu0 0.0
    %6377 = vmatprep.subr.mxu0 0.0
    %6378 = vmatpush2.msra.mxu0 0.0
    %6379 = vmatprep.subr.mxu0 0.0
    %6380 = vmatpush2.msra.mxu0 0.0
    %6381 = vmatprep.subr.mxu0 0.0
    %6382 = vmatpush2.msra.mxu0 0.0
    %6383 = vmatprep.subr.mxu0 0.0
    %6384 = vmatpush2.msra.mxu0 0.0
    %6385 = vmatprep.mubr.f32.mxu0 0.0
    %6386 = vmatmul.mubr.f32.gmra.mxu0 %v6064
    %v6387 = vpop.f32.mrf.mxu0
    %v6388 = vadd.f32 0.0, %v6387
    %v6389 = vpop.f32.mrf.mxu0
    %6390 = vdwg.mxu0
    %6392 = vrot.lane.b32.xlu0 %v6312, 32
    %v6393 = vpop.permute.xlu0 %6392
    %v6394 = vsel %vm232, %v6393, 0
    %6396 = vmatprep.subr.mxu0 0.0
    %6397 = vmatpush1.msra.mxu0 0.0
    %6398 = vmatprep.subr.mxu0 0.0
    %6399 = vmatpush1.msra.mxu0 0.0
    %6400 = vmatprep.subr.mxu0 0.0
    %6401 = vmatpush1.msra.mxu0 0.0
    %6402 = vmatprep.subr.mxu0 0.0
    %6403 = vmatpush1.msra.mxu0 0.0
    %6404 = vmatprep.subr.mxu0 0.0
    %6405 = vmatpush1.msra.mxu0 0.0
    %6406 = vmatprep.subr.mxu0 0.0
    %6407 = vmatpush1.msra.mxu0 0.0
    %6408 = vmatprep.subr.mxu0 0.0
    %6409 = vmatpush1.msra.mxu0 0.0
    %6410 = vmatprep.subr.mxu0 0.0
    %6411 = vmatpush1.msra.mxu0 0.0
    %6412 = vmatprep.subr.mxu0 0.0
    %6413 = vmatpush1.msra.mxu0 0.0
    %6414 = vmatprep.subr.mxu0 0.0
    %6415 = vmatpush1.msra.mxu0 0.0
    %6416 = vmatprep.subr.mxu0 0.0
    %6417 = vmatpush1.msra.mxu0 0.0
    %6418 = vmatprep.subr.mxu0 0.0
    %6419 = vmatpush1.msra.mxu0 0.0
    %6420 = vmatprep.subr.mxu0 0.0
    %6421 = vmatpush1.msra.mxu0 %v6316
    %6422 = vmatprep.subr.mxu0 0.0
    %6423 = vmatpush1.msra.mxu0 %v6315
    %6424 = vmatprep.subr.mxu0 0.0
    %6425 = vmatpush1.msra.mxu0 %v6314
    %6426 = vmatprep.subr.mxu0 0.0
    %6427 = vmatpush1.msra.mxu0 %v6313
    %6428 = vmatprep.subr.mxu0 0.0
    %6429 = vmatpush2.msra.mxu0 0.0
    %6430 = vmatprep.subr.mxu0 0.0
    %6431 = vmatpush2.msra.mxu0 0.0
    %6432 = vmatprep.subr.mxu0 0.0
    %6433 = vmatpush2.msra.mxu0 0.0
    %6434 = vmatprep.subr.mxu0 0.0
    %6435 = vmatpush2.msra.mxu0 0.0
    %6436 = vmatprep.subr.mxu0 0.0
    %6437 = vmatpush2.msra.mxu0 0.0
    %6438 = vmatprep.subr.mxu0 0.0
    %6439 = vmatpush2.msra.mxu0 0.0
    %6440 = vmatprep.subr.mxu0 0.0
    %6441 = vmatpush2.msra.mxu0 0.0
    %6442 = vmatprep.subr.mxu0 0.0
    %6443 = vmatpush2.msra.mxu0 0.0
    %6444 = vmatprep.subr.mxu0 0.0
    %6445 = vmatpush2.msra.mxu0 0.0
    %6446 = vmatprep.subr.mxu0 0.0
    %6447 = vmatpush2.msra.mxu0 0.0
    %6448 = vmatprep.subr.mxu0 0.0
    %6449 = vmatpush2.msra.mxu0 0.0
    %6450 = vmatprep.subr.mxu0 0.0
    %6451 = vmatpush2.msra.mxu0 0.0
    %6452 = vmatprep.subr.mxu0 0.0
    %6453 = vmatpush2.msra.mxu0 0.0
    %6454 = vmatprep.subr.mxu0 0.0
    %6455 = vmatpush2.msra.mxu0 0.0
    %6456 = vmatprep.subr.mxu0 0.0
    %6457 = vmatpush2.msra.mxu0 0.0
    %6458 = vmatprep.subr.mxu0 0.0
    %6459 = vmatpush2.msra.mxu0 0.0
    %6460 = vmatprep.mubr.f32.mxu0 0.0
    %6461 = vmatmul.mubr.f32.gmra.mxu0 %v6394
    %v6462 = vpop.f32.mrf.mxu0
    %v6463 = vadd.f32 %v6388, %v6462
    %v6464 = vpop.f32.mrf.mxu0
    %6465 = vdwg.mxu0
    %v6466 = vld [vmem:[%s16] sm:$0x1]
    %v6468 = vlaneseq
    %v6469 = vshrl.u32 %v6468, 7
    %v6470 = vsub.s32 0, %v6469
    %v6471 = vrot.slane %v6466, %v6470
    %v6473 = vadd.f32 %v6463, %v6471
    %s6474 = scalar_lea.vmem %s17, 56
    %6475 = vst [vmem:[%s6474] sm:$0xff] %v6473
    // Predicated region
    $region74: #{seq2seq_forward.1} parent=1 // pred_check
      _
    $region75: #{seq2seq_forward.1} parent=1 // pred_check_branch
      %6477 = sbr.rel (0) target = $region77
    $region76: #{seq2seq_forward.1} parent=1 // pred_region
      _
    $region77: #{seq2seq_forward.1} parent=1 // pred_fallthru
      _
    // Predicated region
    $region78: #{seq2seq_forward.1} parent=1 // pred_check
      _
    $region79: #{seq2seq_forward.1} parent=1 // pred_check_branch
      %6479 = sbr.rel (0) target = $region81
    $region80: #{seq2seq_forward.1} parent=1 // pred_region
      _
    $region81: #{seq2seq_forward.1} parent=1 // pred_fallthru
      _
    %6480 = vsyncpa [#allocation6], 1

</llo_original>
